<compile_context>
chip_gen: v7x
topology: tpu7x:2x2x1
jax: 0.10.0
libtpu: 0.0.40
codegen_flags: <defaults>
</compile_context>

<pallas_src>
import functools

import jax
import jax.numpy as jnp
from jax.experimental import pallas as pl
from jax.experimental.pallas import tpu as pltpu

ENSEMBLE_SIZE = 4
MXU_DTYPE = jnp.float32   # flip to jnp.bfloat16 on v6e/v7x (see TODO above)


# ----------------------------------------------------------------------------
# Pallas kernels
# ----------------------------------------------------------------------------
def _be_conv_kernel(p_ref, w_ref, b_ref, y_ref, sum_ref, sq_ref):
    """im2col conv + BatchEnsemble bias + BN partial stats, one ensemble group.

    p_ref:   (1, nr*S, K)   im2col patches for the nr samples of this group
    w_ref:   (1, K, C)      per-ensemble weight (alpha & gamma folded in)
    b_ref:   (1, 1, C)      per-ensemble bias
    y_ref:   (1, nr*S, C)   conv-module output (pre-BatchNorm)
    sum_ref: (1, 1, C)      per-group channel sum        (BN partial stats)
    sq_ref:  (1, 1, C)      per-group channel sum of squares
    """
    y = jnp.dot(p_ref[0], w_ref[0], preferred_element_type=jnp.float32)
    y = y + b_ref[0]
    y_ref[0] = y.astype(y_ref.dtype)
    sum_ref[0] = jnp.sum(y, axis=0, keepdims=True)
    sq_ref[0] = jnp.sum(y * y, axis=0, keepdims=True)


def _bn_be_relu_pool_kernel(y_ref, s_ref, t_ref, o_ref, *, cout, g):
    """Fused BN-apply + BE scale/shift + ReLU + 2x2 max-pool, lane-dense out.

    y_ref: (nr, Hp, 2, Wq, 2*g*C)  conv output (free reshape of (nr, H*W, C));
                                   dim 2 = even/odd input row of the pooling
                                   window, lanes = g column pairs x C chans.
    s_ref: (1, 1, 2*g*C)           fused scale = invstd * weight_be (tiled)
    t_ref: (1, 1, 2*g*C)           fused shift = bias_be - mean*invstd*w_be
    o_ref: (nr, Hp, Wq, g*C)       pooled output, g*C == 128 lanes
    """
    s = s_ref[0]                                 # (1, 2*g*C)
    t = t_ref[0]
    y = y_ref[...]                               # (nr, Hp, 2, Wq, 2*g*C)
    r0 = y[:, :, 0, :, :] * s + t                # even input rows
    r1 = y[:, :, 1, :, :] * s + t                # odd input rows
    m = jnp.maximum(r0, r1)                      # pool over the row pair
    parts = [jnp.maximum(m[..., (2 * j) * cout:(2 * j + 1) * cout],
                         m[..., (2 * j + 1) * cout:(2 * j + 2) * cout])
             for j in range(g)]                  # pool over the column pairs
    mm = parts[0] if g == 1 else jnp.concatenate(parts, axis=-1)
    # ReLU commutes with max, so applying it after the pool is exact.
    o_ref[...] = jnp.maximum(mm, 0.0).astype(o_ref.dtype)


def _be_linear_kernel(x_ref, wT_ref, g_ref, b_ref, o_ref):
    # x_ref: (1, nr, F)   wT_ref: (1, F, Op)   g_ref/b_ref: (1, 1, Op)
    # o_ref: (1, nr, Op); fc_alpha already folded into wT, O padded to 128.
    y = jnp.dot(x_ref[0], wT_ref[0], preferred_element_type=jnp.float32)
    o_ref[0] = (y * g_ref[0] + b_ref[0]).astype(o_ref.dtype)


# ----------------------------------------------------------------------------
# Wrappers around pallas_call
# ----------------------------------------------------------------------------
def be_conv_bn_relu_pool(x_nhwc, conv_w, alpha, gamma, conv_bias,
                         bn_w, bn_b, ensemble_size, eps=1e-5):
    """conv3x3(pad=1) + BE alpha/gamma/bias + BatchNorm (training-mode batch
    stats, biased variance) + BE scale/shift + ReLU + 2x2 max-pool.
    NHWC in / NHWC out."""
    B, H, W, Cin = x_nhwc.shape
    Cout = conv_w.shape[0]
    E = ensemble_size
    assert B % E == 0
    nr = B // E
    Hp, Wp = H // 2, W // 2
    S = H * W
    K = 9 * Cin

    # im2col patches built by XLA, grouped per ensemble member:
    # (E, nr*S, K), K ordered (kh, kw, cin).
    xp = jnp.pad(x_nhwc, ((0, 0), (1, 1), (1, 1), (0, 0)))
    cols = [xp[:, kh:kh + H, kw:kw + W, :]
            for kh in range(3) for kw in range(3)]
    patches = jnp.concatenate(cols, axis=-1).reshape(E, nr * S, K)
    patches = patches.astype(MXU_DTYPE)

    # Fold BatchEnsemble alpha / gamma into E per-ensemble weight copies:
    #   gamma * conv(alpha * x, W) == conv(x, alpha * gamma * W)
    w = jnp.transpose(conv_w, (2, 3, 1, 0))                 # (3, 3, Cin, Cout)
    w_eff = (w[None, :, :, :, :]
             * alpha[:, None, None, :, None]
             * gamma[:, None, None, None, :]).reshape(E, K, Cout)
    w_eff = w_eff.astype(MXU_DTYPE)
    bias_e = conv_bias.reshape(E, 1, Cout).astype(jnp.float32)

    conv_cost = pl.CostEstimate(
        flops=int(2 * B * S * K * Cout + 4 * B * S * Cout),
        transcendentals=0,
        bytes_accessed=int(4 * (B * S * K + E * K * Cout
                                + B * S * Cout + 2 * E * Cout)))

    y, ysum, ysq = pl.pallas_call(
        _be_conv_kernel,
        out_shape=(
            jax.ShapeDtypeStruct((E, nr * S, Cout), jnp.float32),
            jax.ShapeDtypeStruct((E, 1, Cout), jnp.float32),
            jax.ShapeDtypeStruct((E, 1, Cout), jnp.float32),
        ),
        grid_spec=pltpu.PrefetchScalarGridSpec(
            num_scalar_prefetch=0,
            grid=(E,),
            in_specs=[
                pl.BlockSpec((1, nr * S, K), lambda e: (e, 0, 0)),
                pl.BlockSpec((1, K, Cout), lambda e: (e, 0, 0)),
                pl.BlockSpec((1, 1, Cout), lambda e: (e, 0, 0)),
            ],
            out_specs=[
                pl.BlockSpec((1, nr * S, Cout), lambda e: (e, 0, 0)),
                pl.BlockSpec((1, 1, Cout), lambda e: (e, 0, 0)),
                pl.BlockSpec((1, 1, Cout), lambda e: (e, 0, 0)),
            ]),
        compiler_params=pltpu.CompilerParams(
            dimension_semantics=("parallel",)),
        cost_estimate=conv_cost,
    )(patches, w_eff, bias_e)

    # Finish BatchNorm batch statistics on the tiny (E, C) partial sums and
    # fold them with the BE weight_be / bias_be into one scale+shift per chan.
    cnt = float(B * S)
    mean = jnp.sum(ysum[:, 0, :], axis=0) / cnt             # (Cout,)
    ex2 = jnp.sum(ysq[:, 0, :], axis=0) / cnt
    var = ex2 - mean * mean
    invstd = jax.lax.rsqrt(var + eps)
    scale = invstd[None, :] * bn_w                          # (E, Cout)
    shift = bn_b - (mean * invstd)[None, :] * bn_w          # (E, Cout)

    # Lane-dense pooling layout: g pooled output columns per 128-lane group.
    g = 128 // Cout if (Cout <= 128 and 128 % Cout == 0) else 1
    while g > 1 and Wp % g != 0:
        g //= 2
    Wq = Wp // g
    L = 2 * g * Cout                                        # input lane group

    scale2 = jnp.tile(scale, (1, 2 * g)).reshape(E, 1, L)
    shift2 = jnp.tile(shift, (1, 2 * g)).reshape(E, 1, L)

    # Free contiguous reshape: (E, nr*S, C) == (B, H, W, C)
    #                          -> (B, Hp, 2, Wq, 2*g*C)
    y5 = y.reshape(B, Hp, 2, Wq, L)

    pool_cost = pl.CostEstimate(
        flops=int(6 * B * S * Cout),
        transcendentals=0,
        bytes_accessed=int(4 * (B * S * Cout + B * Hp * Wp * Cout
                                + 2 * E * L)))

    out = pl.pallas_call(
        functools.partial(_bn_be_relu_pool_kernel, cout=Cout, g=g),
        out_shape=jax.ShapeDtypeStruct((B, Hp, Wq, g * Cout), jnp.float32),
        grid_spec=pltpu.PrefetchScalarGridSpec(
            num_scalar_prefetch=0,
            grid=(E,),
            in_specs=[
                pl.BlockSpec((nr, Hp, 2, Wq, L),
                             lambda e: (e, 0, 0, 0, 0)),
                pl.BlockSpec((1, 1, L), lambda e: (e, 0, 0)),
                pl.BlockSpec((1, 1, L), lambda e: (e, 0, 0)),
            ],
            out_specs=pl.BlockSpec((nr, Hp, Wq, g * Cout),
                                   lambda e: (e, 0, 0, 0)),
        ),
        compiler_params=pltpu.CompilerParams(
            dimension_semantics=("parallel",)),
        cost_estimate=pool_cost,
    )(y5, scale2, shift2)

    # Free contiguous back-reshape to NHWC.
    return out.reshape(B, Hp, Wp, Cout)


def be_linear_nhwc(x_flat, weight, alpha, gamma, bias, ensemble_size, hwc):
    """BELinear on NHWC-flattened activations.

    `weight` / `alpha` columns arrive in torch NCHW flatten order (c, h, w);
    they are permuted once to NHWC (h, w, c) order, fc_alpha is folded into E
    per-ensemble weight copies, and the tiny output dim is zero-padded to a
    full 128-lane group (sliced back to O=10 in XLA)."""
    B, F = x_flat.shape
    O = weight.shape[0]
    Hs, Ws, C = hwc
    E = ensemble_size
    nr = B // E
    Op = ((O + 127) // 128) * 128

    def to_nhwc_cols(m):
        return m.reshape(-1, C, Hs, Ws).transpose(0, 2, 3, 1).reshape(-1, F)

    w_nhwc = to_nhwc_cols(weight)                           # (O, F)
    a_nhwc = to_nhwc_cols(alpha)                            # (E, F)
    # Fold alpha into the weight:  (x*a) @ W^T == x @ (a[:,None] * W^T)
    wT_eff = a_nhwc[:, :, None] * jnp.transpose(w_nhwc)[None, :, :]  # (E,F,O)
    wT_eff = jnp.pad(wT_eff, ((0, 0), (0, 0), (0, Op - O))).astype(MXU_DTYPE)
    g_pad = jnp.pad(gamma, ((0, 0), (0, Op - O))).reshape(E, 1, Op)
    b_pad = jnp.pad(bias, ((0, 0), (0, Op - O))).reshape(E, 1, Op)

    x_r = x_flat.reshape(E, nr, F).astype(MXU_DTYPE)

    fc_cost = pl.CostEstimate(
        flops=int(2 * B * F * Op),
        transcendentals=0,
        bytes_accessed=int(4 * (B * F + E * F * Op + B * Op)))

    out = pl.pallas_call(
        _be_linear_kernel,
        out_shape=jax.ShapeDtypeStruct((E, nr, Op), jnp.float32),
        grid_spec=pltpu.PrefetchScalarGridSpec(
            num_scalar_prefetch=0,
            grid=(E,),
            in_specs=[
                pl.BlockSpec((1, nr, F), lambda e: (e, 0, 0)),
                pl.BlockSpec((1, F, Op), lambda e: (e, 0, 0)),
                pl.BlockSpec((1, 1, Op), lambda e: (e, 0, 0)),
                pl.BlockSpec((1, 1, Op), lambda e: (e, 0, 0)),
            ],
            out_specs=pl.BlockSpec((1, nr, Op), lambda e: (e, 0, 0)),
        ),
        compiler_params=pltpu.CompilerParams(
            dimension_semantics=("parallel",)),
        cost_estimate=fc_cost,
    )(x_r, wT_eff, g_pad, b_pad)

    return out.reshape(B, Op)[:, :O]


# ----------------------------------------------------------------------------
# Full model forward
# ----------------------------------------------------------------------------
def batch_ensemble_cnn_forward(x_nchw, p, ensemble_size):
    x = jnp.transpose(x_nchw, (0, 2, 3, 1))     # NCHW -> NHWC
    x = be_conv_bn_relu_pool(x, p["conv1_w"], p["conv1_alpha"],
                             p["conv1_gamma"], p["conv1_bias"],
                             p["bn1_w"], p["bn1_b"], ensemble_size)
    x = be_conv_bn_relu_pool(x, p["conv2_w"], p["conv2_alpha"],
                             p["conv2_gamma"], p["conv2_bias"],
                             p["bn2_w"], p["bn2_b"], ensemble_size)
    B, Hs, Ws, C = x.shape
    x_flat = x.reshape(B, -1)                   # NHWC (h, w, c) flatten order
    return be_linear_nhwc(x_flat, p["fc_w"], p["fc_alpha"], p["fc_gamma"],
                          p["fc_bias"], ensemble_size, (Hs, Ws, C))


# ----------------------------------------------------------------------------
# Deterministic parameter init (shapes from the torch __init__)
# ----------------------------------------------------------------------------
def init_params(key, ensemble_size=ENSEMBLE_SIZE):
    ks = jax.random.split(key, 9)

    def rand_sign(k, shape, prob=0.5):
        return jnp.where(jax.random.uniform(k, shape) < prob, 1.0,
                         -1.0).astype(jnp.float32)

    p = {}
    p["conv1_w"] = (jax.random.normal(ks[0], (32, 3, 3, 3)) * 0.1
                    ).astype(jnp.float32)
    p["conv1_alpha"] = rand_sign(ks[1], (ensemble_size, 3))
    p["conv1_gamma"] = rand_sign(ks[2], (ensemble_size, 32))
    p["conv1_bias"] = jnp.zeros((ensemble_size, 32), jnp.float32)
    p["bn1_w"] = jnp.ones((ensemble_size, 32), jnp.float32)
    p["bn1_b"] = jnp.zeros((ensemble_size, 32), jnp.float32)

    p["conv2_w"] = (jax.random.normal(ks[3], (64, 32, 3, 3)) * 0.05
                    ).astype(jnp.float32)
    p["conv2_alpha"] = rand_sign(ks[4], (ensemble_size, 32))
    p["conv2_gamma"] = rand_sign(ks[5], (ensemble_size, 64))
    p["conv2_bias"] = jnp.zeros((ensemble_size, 64), jnp.float32)
    p["bn2_w"] = jnp.ones((ensemble_size, 64), jnp.float32)
    p["bn2_b"] = jnp.zeros((ensemble_size, 64), jnp.float32)

    p["fc_w"] = (jax.random.normal(ks[6], (10, 64 * 8 * 8)) * 0.02
                 ).astype(jnp.float32)
    p["fc_alpha"] = rand_sign(ks[7], (ensemble_size, 64 * 8 * 8))
    p["fc_gamma"] = rand_sign(ks[8], (ensemble_size, 10))
    p["fc_bias"] = jnp.zeros((ensemble_size, 10), jnp.float32)
    return p


# ----------------------------------------------------------------------------
# Pure-JAX reference (mirrors the PyTorch forward) for a correctness check
# ----------------------------------------------------------------------------
def reference_forward(x_nchw, p, ensemble_size):
    hi = jax.lax.Precision.HIGHEST

    def expand(param, B):
        return jnp.repeat(param, B // ensemble_size, axis=0)

    def be_conv_ref(x, w, alpha, gamma, bias):
        B = x.shape[0]
        x = x * expand(alpha, B)[:, :, None, None]
        y = jax.lax.conv_general_dilated(
            x, w, (1, 1), ((1, 1), (1, 1)),
            dimension_numbers=("NCHW", "OIHW", "NCHW"), precision=hi)
        y = y * expand(gamma, B)[:, :, None, None]
        return y + expand(bias, B)[:, :, None, None]

    def bn_ref(x, w_be, b_be):
        B = x.shape[0]
        mean = x.mean(axis=(0, 2, 3), keepdims=True)
        var = jnp.mean((x - mean) ** 2, axis=(0, 2, 3), keepdims=True)
        xhat = (x - mean) / jnp.sqrt(var + 1e-5)
        return (xhat * expand(w_be, B)[:, :, None, None]
                + expand(b_be, B)[:, :, None, None])

    def pool_ref(x):
        B, C, H, W = x.shape
        return x.reshape(B, C, H // 2, 2, W // 2, 2).max(axis=(3, 5))

    x = be_conv_ref(x_nchw, p["conv1_w"], p["conv1_alpha"], p["conv1_gamma"],
                    p["conv1_bias"])
    x = pool_ref(jnp.maximum(bn_ref(x, p["bn1_w"], p["bn1_b"]), 0.0))
    x = be_conv_ref(x, p["conv2_w"], p["conv2_alpha"], p["conv2_gamma"],
                    p["conv2_bias"])
    x = pool_ref(jnp.maximum(bn_ref(x, p["bn2_w"], p["bn2_b"]), 0.0))
    B = x.shape[0]
    x = x.reshape(B, -1)
    y = jnp.matmul(x * expand(p["fc_alpha"], B), p["fc_w"].T, precision=hi)
    return y * expand(p["fc_gamma"], B) + expand(p["fc_bias"], B)


# ----------------------------------------------------------------------------
if __name__ == "__main__":
    key = jax.random.PRNGKey(0)
    k_x, k_p = jax.random.split(key)

    B = 2 * ENSEMBLE_SIZE   # two samples per ensemble member (B multiple of E)
    x = jax.random.normal(k_x, (B, 3, 32, 32), dtype=jnp.float32)
    params = init_params(k_p, ENSEMBLE_SIZE)

    fwd = jax.jit(functools.partial(batch_ensemble_cnn_forward,
                                    ensemble_size=ENSEMBLE_SIZE))
    out = jax.block_until_ready(fwd(x, params))
    ref = jax.block_until_ready(reference_forward(x, params, ENSEMBLE_SIZE))

    assert out.shape == (B, 10), out.shape
    # Tolerance covers MXU multi-pass f32 rounding vs the HIGHEST-precision
    # XLA reference compounded across conv1 -> BN -> conv2 -> BN -> FC.
    max_err = float(jnp.max(jnp.abs(out - ref)))
    assert jnp.allclose(out, ref, rtol=2e-2, atol=2e-2), max_err
    print("KERNEL_OK")
</pallas_src>

<mosaic_0001>
module attributes {stable_mosaic.version = 11 : i64} {
  func.func @_be_conv_kernel(%arg0: i32, %arg1: memref<1x2048x27xf32, #tpu.memory_space<vmem>>, %arg2: memref<1x27x32xf32, #tpu.memory_space<vmem>>, %arg3: memref<1x1x32xf32, #tpu.memory_space<vmem>>, %arg4: memref<1x2048x32xf32, #tpu.memory_space<vmem>>, %arg5: memref<1x1x32xf32, #tpu.memory_space<vmem>>, %arg6: memref<1x1x32xf32, #tpu.memory_space<vmem>>) attributes {dimension_semantics = [#tpu.dimension_semantics<parallel>], iteration_bounds = array<i64: 4>, scalar_prefetch = 0 : i64, scratch_operands = 0 : i64, tpu.core_type = #tpu.core_type<tc>, window_params = [{transform_indices = @transform_0, window_bounds = array<i64: 1, 2048, 27>}, {transform_indices = @transform_1, window_bounds = array<i64: 1, 27, 32>}, {transform_indices = @transform_2, window_bounds = array<i64: 1, 1, 32>}, {transform_indices = @transform_3, window_bounds = array<i64: 1, 2048, 32>}, {transform_indices = @transform_4, window_bounds = array<i64: 1, 1, 32>}, {transform_indices = @transform_5, window_bounds = array<i64: 1, 1, 32>}]} {
    %c0 = arith.constant 0 : index
    %c0_0 = arith.constant 0 : index
    %c0_1 = arith.constant 0 : index
    %0 = vector.load %arg1[%c0, %c0_0, %c0_1] : memref<1x2048x27xf32, #tpu.memory_space<vmem>>, vector<1x2048x27xf32>
    %1 = vector.shape_cast %0 : vector<1x2048x27xf32> to vector<2048x27xf32>
    %c0_2 = arith.constant 0 : index
    %c0_3 = arith.constant 0 : index
    %c0_4 = arith.constant 0 : index
    %2 = vector.load %arg2[%c0_2, %c0_3, %c0_4] : memref<1x27x32xf32, #tpu.memory_space<vmem>>, vector<1x27x32xf32>
    %3 = vector.shape_cast %2 : vector<1x27x32xf32> to vector<27x32xf32>
    %cst = arith.constant dense<0.000000e+00> : vector<2048x32xf32>
    %4 = tpu.matmul %1, %3, %cst {dimension_numbers = #tpu.dot_dimension_numbers<[1], [0], [0], [1], [0, 0, 1, 1], [], []>} : vector<2048x27xf32>, vector<27x32xf32>, vector<2048x32xf32> -> vector<2048x32xf32>
    %c0_5 = arith.constant 0 : index
    %c0_6 = arith.constant 0 : index
    %c0_7 = arith.constant 0 : index
    %5 = vector.load %arg3[%c0_5, %c0_6, %c0_7] : memref<1x1x32xf32, #tpu.memory_space<vmem>>, vector<1x1x32xf32>
    %6 = vector.shape_cast %5 : vector<1x1x32xf32> to vector<1x32xf32>
    %7 = vector.broadcast %6 : vector<1x32xf32> to vector<2048x32xf32>
    %8 = arith.addf %4, %7 : vector<2048x32xf32>
    %c0_8 = arith.constant 0 : index
    %c0_9 = arith.constant 0 : index
    %c0_10 = arith.constant 0 : index
    %9 = vector.load %arg4[%c0_8, %c0_9, %c0_10] : memref<1x2048x32xf32, #tpu.memory_space<vmem>>, vector<1x2048x32xf32>
    %10 = vector.shape_cast %9 : vector<1x2048x32xf32> to vector<2048x32xf32>
    %11 = vector.shape_cast %8 : vector<2048x32xf32> to vector<1x2048x32xf32>
    tpu.vector_store %arg4[%c0_8, %c0_9, %c0_10], %11 {strides = array<i32>} : memref<1x2048x32xf32, #tpu.memory_space<vmem>>, vector<1x2048x32xf32>,
    %cst_11 = arith.constant dense<0.000000e+00> : vector<32xf32>
    %12 = vector.multi_reduction <add>, %8, %cst_11 [0] : vector<2048x32xf32> to vector<32xf32>
    %13 = vector.shape_cast %12 : vector<32xf32> to vector<1x32xf32>
    %c0_12 = arith.constant 0 : index
    %c0_13 = arith.constant 0 : index
    %c0_14 = arith.constant 0 : index
    %14 = vector.load %arg5[%c0_12, %c0_13, %c0_14] : memref<1x1x32xf32, #tpu.memory_space<vmem>>, vector<1x1x32xf32>
    %15 = vector.shape_cast %14 : vector<1x1x32xf32> to vector<1x32xf32>
    %16 = vector.shape_cast %13 : vector<1x32xf32> to vector<1x1x32xf32>
    tpu.vector_store %arg5[%c0_12, %c0_13, %c0_14], %16 {strides = array<i32>} : memref<1x1x32xf32, #tpu.memory_space<vmem>>, vector<1x1x32xf32>,
    %17 = arith.mulf %8, %8 : vector<2048x32xf32>
    %cst_15 = arith.constant dense<0.000000e+00> : vector<32xf32>
    %18 = vector.multi_reduction <add>, %17, %cst_15 [0] : vector<2048x32xf32> to vector<32xf32>
    %19 = vector.shape_cast %18 : vector<32xf32> to vector<1x32xf32>
    %c0_16 = arith.constant 0 : index
    %c0_17 = arith.constant 0 : index
    %c0_18 = arith.constant 0 : index
    %20 = vector.load %arg6[%c0_16, %c0_17, %c0_18] : memref<1x1x32xf32, #tpu.memory_space<vmem>>, vector<1x1x32xf32>
    %21 = vector.shape_cast %20 : vector<1x1x32xf32> to vector<1x32xf32>
    %22 = vector.shape_cast %19 : vector<1x32xf32> to vector<1x1x32xf32>
    tpu.vector_store %arg6[%c0_16, %c0_17, %c0_18], %22 {strides = array<i32>} : memref<1x1x32xf32, #tpu.memory_space<vmem>>, vector<1x1x32xf32>,
    return
  }
  func.func @transform_0(%arg0: i32) -> (i32, i32, i32) {
    %c0_i32 = arith.constant 0 : i32
    %c0_i32_0 = arith.constant 0 : i32
    %c0_i32_1 = arith.constant 0 : i32
    return %arg0, %c0_i32, %c0_i32_0 : i32, i32, i32
  }
  func.func @transform_1(%arg0: i32) -> (i32, i32, i32) {
    %c0_i32 = arith.constant 0 : i32
    %c0_i32_0 = arith.constant 0 : i32
    %c0_i32_1 = arith.constant 0 : i32
    return %arg0, %c0_i32, %c0_i32_0 : i32, i32, i32
  }
  func.func @transform_2(%arg0: i32) -> (i32, i32, i32) {
    %c0_i32 = arith.constant 0 : i32
    %c0_i32_0 = arith.constant 0 : i32
    %c0_i32_1 = arith.constant 0 : i32
    return %arg0, %c0_i32, %c0_i32_0 : i32, i32, i32
  }
  func.func @transform_3(%arg0: i32) -> (i32, i32, i32) {
    %c0_i32 = arith.constant 0 : i32
    %c0_i32_0 = arith.constant 0 : i32
    %c0_i32_1 = arith.constant 0 : i32
    return %arg0, %c0_i32, %c0_i32_0 : i32, i32, i32
  }
  func.func @transform_4(%arg0: i32) -> (i32, i32, i32) {
    %c0_i32 = arith.constant 0 : i32
    %c0_i32_0 = arith.constant 0 : i32
    %c0_i32_1 = arith.constant 0 : i32
    return %arg0, %c0_i32, %c0_i32_0 : i32, i32, i32
  }
  func.func @transform_5(%arg0: i32) -> (i32, i32, i32) {
    %c0_i32 = arith.constant 0 : i32
    %c0_i32_0 = arith.constant 0 : i32
    %c0_i32_1 = arith.constant 0 : i32
    return %arg0, %c0_i32, %c0_i32_0 : i32, i32, i32
  }
}

module attributes {stable_mosaic.version = 11 : i64} {
  func.func @_bn_be_relu_pool_kernel(%arg0: i32, %arg1: memref<2x16x2x4x256xf32, #tpu.memory_space<vmem>>, %arg2: memref<1x1x256xf32, #tpu.memory_space<vmem>>, %arg3: memref<1x1x256xf32, #tpu.memory_space<vmem>>, %arg4: memref<2x16x4x128xf32, #tpu.memory_space<vmem>>) attributes {dimension_semantics = [#tpu.dimension_semantics<parallel>], iteration_bounds = array<i64: 4>, scalar_prefetch = 0 : i64, scratch_operands = 0 : i64, tpu.core_type = #tpu.core_type<tc>, window_params = [{transform_indices = @transform_0, window_bounds = array<i64: 2, 16, 2, 4, 256>}, {transform_indices = @transform_1, window_bounds = array<i64: 1, 1, 256>}, {transform_indices = @transform_2, window_bounds = array<i64: 1, 1, 256>}, {transform_indices = @transform_3, window_bounds = array<i64: 2, 16, 4, 128>}]} {
    %c0 = arith.constant 0 : index
    %c0_0 = arith.constant 0 : index
    %c0_1 = arith.constant 0 : index
    %0 = vector.load %arg2[%c0, %c0_0, %c0_1] : memref<1x1x256xf32, #tpu.memory_space<vmem>>, vector<1x1x256xf32>
    %1 = vector.shape_cast %0 : vector<1x1x256xf32> to vector<1x256xf32>
    %c0_2 = arith.constant 0 : index
    %c0_3 = arith.constant 0 : index
    %c0_4 = arith.constant 0 : index
    %2 = vector.load %arg3[%c0_2, %c0_3, %c0_4] : memref<1x1x256xf32, #tpu.memory_space<vmem>>, vector<1x1x256xf32>
    %3 = vector.shape_cast %2 : vector<1x1x256xf32> to vector<1x256xf32>
    %c0_5 = arith.constant 0 : index
    %c0_6 = arith.constant 0 : index
    %c0_7 = arith.constant 0 : index
    %c0_8 = arith.constant 0 : index
    %c0_9 = arith.constant 0 : index
    %4 = vector.load %arg1[%c0_5, %c0_6, %c0_7, %c0_8, %c0_9] : memref<2x16x2x4x256xf32, #tpu.memory_space<vmem>>, vector<2x16x2x4x256xf32>
    %5 = vector.extract_strided_slice %4 {offsets = [0, 0, 0, 0, 0], sizes = [2, 16, 1, 4, 256], strides = [1, 1, 1, 1, 1]} : vector<2x16x2x4x256xf32> to vector<2x16x1x4x256xf32>
    %6 = vector.shape_cast %5 : vector<2x16x1x4x256xf32> to vector<2x16x4x256xf32>
    %7 = vector.shape_cast %1 : vector<1x256xf32> to vector<1x1x1x256xf32>
    %8 = vector.broadcast %7 : vector<1x1x1x256xf32> to vector<2x16x4x256xf32>
    %9 = arith.mulf %6, %8 : vector<2x16x4x256xf32>
    %10 = vector.shape_cast %3 : vector<1x256xf32> to vector<1x1x1x256xf32>
    %11 = vector.broadcast %10 : vector<1x1x1x256xf32> to vector<2x16x4x256xf32>
    %12 = arith.addf %9, %11 : vector<2x16x4x256xf32>
    %13 = vector.extract_strided_slice %4 {offsets = [0, 0, 1, 0, 0], sizes = [2, 16, 1, 4, 256], strides = [1, 1, 1, 1, 1]} : vector<2x16x2x4x256xf32> to vector<2x16x1x4x256xf32>
    %14 = vector.shape_cast %13 : vector<2x16x1x4x256xf32> to vector<2x16x4x256xf32>
    %15 = vector.shape_cast %1 : vector<1x256xf32> to vector<1x1x1x256xf32>
    %16 = vector.broadcast %15 : vector<1x1x1x256xf32> to vector<2x16x4x256xf32>
    %17 = arith.mulf %14, %16 : vector<2x16x4x256xf32>
    %18 = vector.shape_cast %3 : vector<1x256xf32> to vector<1x1x1x256xf32>
    %19 = vector.broadcast %18 : vector<1x1x1x256xf32> to vector<2x16x4x256xf32>
    %20 = arith.addf %17, %19 : vector<2x16x4x256xf32>
    %21 = arith.maximumf %12, %20 : vector<2x16x4x256xf32>
    %22 = vector.extract_strided_slice %21 {offsets = [0, 0, 0, 0], sizes = [2, 16, 4, 32], strides = [1, 1, 1, 1]} : vector<2x16x4x256xf32> to vector<2x16x4x32xf32>
    %23 = vector.extract_strided_slice %21 {offsets = [0, 0, 0, 32], sizes = [2, 16, 4, 32], strides = [1, 1, 1, 1]} : vector<2x16x4x256xf32> to vector<2x16x4x32xf32>
    %24 = arith.maximumf %22, %23 : vector<2x16x4x32xf32>
    %25 = vector.extract_strided_slice %21 {offsets = [0, 0, 0, 64], sizes = [2, 16, 4, 32], strides = [1, 1, 1, 1]} : vector<2x16x4x256xf32> to vector<2x16x4x32xf32>
    %26 = vector.extract_strided_slice %21 {offsets = [0, 0, 0, 96], sizes = [2, 16, 4, 32], strides = [1, 1, 1, 1]} : vector<2x16x4x256xf32> to vector<2x16x4x32xf32>
    %27 = arith.maximumf %25, %26 : vector<2x16x4x32xf32>
    %28 = vector.extract_strided_slice %21 {offsets = [0, 0, 0, 128], sizes = [2, 16, 4, 32], strides = [1, 1, 1, 1]} : vector<2x16x4x256xf32> to vector<2x16x4x32xf32>
    %29 = vector.extract_strided_slice %21 {offsets = [0, 0, 0, 160], sizes = [2, 16, 4, 32], strides = [1, 1, 1, 1]} : vector<2x16x4x256xf32> to vector<2x16x4x32xf32>
    %30 = arith.maximumf %28, %29 : vector<2x16x4x32xf32>
    %31 = vector.extract_strided_slice %21 {offsets = [0, 0, 0, 192], sizes = [2, 16, 4, 32], strides = [1, 1, 1, 1]} : vector<2x16x4x256xf32> to vector<2x16x4x32xf32>
    %32 = vector.extract_strided_slice %21 {offsets = [0, 0, 0, 224], sizes = [2, 16, 4, 32], strides = [1, 1, 1, 1]} : vector<2x16x4x256xf32> to vector<2x16x4x32xf32>
    %33 = arith.maximumf %31, %32 : vector<2x16x4x32xf32>
    %34 = tpu.concatenate %24, %27, %30, %33 in 3 : vector<2x16x4x32xf32>, vector<2x16x4x32xf32>, vector<2x16x4x32xf32>, vector<2x16x4x32xf32> -> vector<2x16x4x128xf32>
    %cst = arith.constant 0.000000e+00 : f32
    %35 = vector.broadcast %cst : f32 to vector<2x16x4x128xf32>
    %36 = arith.maximumf %34, %35 : vector<2x16x4x128xf32>
    %c0_10 = arith.constant 0 : index
    %c0_11 = arith.constant 0 : index
    %c0_12 = arith.constant 0 : index
    %c0_13 = arith.constant 0 : index
    %37 = vector.load %arg4[%c0_10, %c0_11, %c0_12, %c0_13] : memref<2x16x4x128xf32, #tpu.memory_space<vmem>>, vector<2x16x4x128xf32>
    tpu.vector_store %arg4[%c0_10, %c0_11, %c0_12, %c0_13], %36 {strides = array<i32>} : memref<2x16x4x128xf32, #tpu.memory_space<vmem>>, vector<2x16x4x128xf32>,
    return
  }
  func.func @transform_0(%arg0: i32) -> (i32, i32, i32, i32, i32) {
    %c0_i32 = arith.constant 0 : i32
    %c0_i32_0 = arith.constant 0 : i32
    %c0_i32_1 = arith.constant 0 : i32
    %c0_i32_2 = arith.constant 0 : i32
    %c0_i32_3 = arith.constant 0 : i32
    return %arg0, %c0_i32, %c0_i32_0, %c0_i32_1, %c0_i32_2 : i32, i32, i32, i32, i32
  }
  func.func @transform_1(%arg0: i32) -> (i32, i32, i32) {
    %c0_i32 = arith.constant 0 : i32
    %c0_i32_0 = arith.constant 0 : i32
    %c0_i32_1 = arith.constant 0 : i32
    return %arg0, %c0_i32, %c0_i32_0 : i32, i32, i32
  }
  func.func @transform_2(%arg0: i32) -> (i32, i32, i32) {
    %c0_i32 = arith.constant 0 : i32
    %c0_i32_0 = arith.constant 0 : i32
    %c0_i32_1 = arith.constant 0 : i32
    return %arg0, %c0_i32, %c0_i32_0 : i32, i32, i32
  }
  func.func @transform_3(%arg0: i32) -> (i32, i32, i32, i32) {
    %c0_i32 = arith.constant 0 : i32
    %c0_i32_0 = arith.constant 0 : i32
    %c0_i32_1 = arith.constant 0 : i32
    %c0_i32_2 = arith.constant 0 : i32
    return %arg0, %c0_i32, %c0_i32_0, %c0_i32_1 : i32, i32, i32, i32
  }
}

module attributes {stable_mosaic.version = 11 : i64} {
  func.func @_be_conv_kernel(%arg0: i32, %arg1: memref<1x512x288xf32, #tpu.memory_space<vmem>>, %arg2: memref<1x288x64xf32, #tpu.memory_space<vmem>>, %arg3: memref<1x1x64xf32, #tpu.memory_space<vmem>>, %arg4: memref<1x512x64xf32, #tpu.memory_space<vmem>>, %arg5: memref<1x1x64xf32, #tpu.memory_space<vmem>>, %arg6: memref<1x1x64xf32, #tpu.memory_space<vmem>>) attributes {dimension_semantics = [#tpu.dimension_semantics<parallel>], iteration_bounds = array<i64: 4>, scalar_prefetch = 0 : i64, scratch_operands = 0 : i64, tpu.core_type = #tpu.core_type<tc>, window_params = [{transform_indices = @transform_0, window_bounds = array<i64: 1, 512, 288>}, {transform_indices = @transform_1, window_bounds = array<i64: 1, 288, 64>}, {transform_indices = @transform_2, window_bounds = array<i64: 1, 1, 64>}, {transform_indices = @transform_3, window_bounds = array<i64: 1, 512, 64>}, {transform_indices = @transform_4, window_bounds = array<i64: 1, 1, 64>}, {transform_indices = @transform_5, window_bounds = array<i64: 1, 1, 64>}]} {
    %c0 = arith.constant 0 : index
    %c0_0 = arith.constant 0 : index
    %c0_1 = arith.constant 0 : index
    %0 = vector.load %arg1[%c0, %c0_0, %c0_1] : memref<1x512x288xf32, #tpu.memory_space<vmem>>, vector<1x512x288xf32>
    %1 = vector.shape_cast %0 : vector<1x512x288xf32> to vector<512x288xf32>
    %c0_2 = arith.constant 0 : index
    %c0_3 = arith.constant 0 : index
    %c0_4 = arith.constant 0 : index
    %2 = vector.load %arg2[%c0_2, %c0_3, %c0_4] : memref<1x288x64xf32, #tpu.memory_space<vmem>>, vector<1x288x64xf32>
    %3 = vector.shape_cast %2 : vector<1x288x64xf32> to vector<288x64xf32>
    %cst = arith.constant dense<0.000000e+00> : vector<512x64xf32>
    %4 = tpu.matmul %1, %3, %cst {dimension_numbers = #tpu.dot_dimension_numbers<[1], [0], [0], [1], [0, 0, 1, 1], [], []>} : vector<512x288xf32>, vector<288x64xf32>, vector<512x64xf32> -> vector<512x64xf32>
    %c0_5 = arith.constant 0 : index
    %c0_6 = arith.constant 0 : index
    %c0_7 = arith.constant 0 : index
    %5 = vector.load %arg3[%c0_5, %c0_6, %c0_7] : memref<1x1x64xf32, #tpu.memory_space<vmem>>, vector<1x1x64xf32>
    %6 = vector.shape_cast %5 : vector<1x1x64xf32> to vector<1x64xf32>
    %7 = vector.broadcast %6 : vector<1x64xf32> to vector<512x64xf32>
    %8 = arith.addf %4, %7 : vector<512x64xf32>
    %c0_8 = arith.constant 0 : index
    %c0_9 = arith.constant 0 : index
    %c0_10 = arith.constant 0 : index
    %9 = vector.load %arg4[%c0_8, %c0_9, %c0_10] : memref<1x512x64xf32, #tpu.memory_space<vmem>>, vector<1x512x64xf32>
    %10 = vector.shape_cast %9 : vector<1x512x64xf32> to vector<512x64xf32>
    %11 = vector.shape_cast %8 : vector<512x64xf32> to vector<1x512x64xf32>
    tpu.vector_store %arg4[%c0_8, %c0_9, %c0_10], %11 {strides = array<i32>} : memref<1x512x64xf32, #tpu.memory_space<vmem>>, vector<1x512x64xf32>,
    %cst_11 = arith.constant dense<0.000000e+00> : vector<64xf32>
    %12 = vector.multi_reduction <add>, %8, %cst_11 [0] : vector<512x64xf32> to vector<64xf32>
    %13 = vector.shape_cast %12 : vector<64xf32> to vector<1x64xf32>
    %c0_12 = arith.constant 0 : index
    %c0_13 = arith.constant 0 : index
    %c0_14 = arith.constant 0 : index
    %14 = vector.load %arg5[%c0_12, %c0_13, %c0_14] : memref<1x1x64xf32, #tpu.memory_space<vmem>>, vector<1x1x64xf32>
    %15 = vector.shape_cast %14 : vector<1x1x64xf32> to vector<1x64xf32>
    %16 = vector.shape_cast %13 : vector<1x64xf32> to vector<1x1x64xf32>
    tpu.vector_store %arg5[%c0_12, %c0_13, %c0_14], %16 {strides = array<i32>} : memref<1x1x64xf32, #tpu.memory_space<vmem>>, vector<1x1x64xf32>,
    %17 = arith.mulf %8, %8 : vector<512x64xf32>
    %cst_15 = arith.constant dense<0.000000e+00> : vector<64xf32>
    %18 = vector.multi_reduction <add>, %17, %cst_15 [0] : vector<512x64xf32> to vector<64xf32>
    %19 = vector.shape_cast %18 : vector<64xf32> to vector<1x64xf32>
    %c0_16 = arith.constant 0 : index
    %c0_17 = arith.constant 0 : index
    %c0_18 = arith.constant 0 : index
    %20 = vector.load %arg6[%c0_16, %c0_17, %c0_18] : memref<1x1x64xf32, #tpu.memory_space<vmem>>, vector<1x1x64xf32>
    %21 = vector.shape_cast %20 : vector<1x1x64xf32> to vector<1x64xf32>
    %22 = vector.shape_cast %19 : vector<1x64xf32> to vector<1x1x64xf32>
    tpu.vector_store %arg6[%c0_16, %c0_17, %c0_18], %22 {strides = array<i32>} : memref<1x1x64xf32, #tpu.memory_space<vmem>>, vector<1x1x64xf32>,
    return
  }
  func.func @transform_0(%arg0: i32) -> (i32, i32, i32) {
    %c0_i32 = arith.constant 0 : i32
    %c0_i32_0 = arith.constant 0 : i32
    %c0_i32_1 = arith.constant 0 : i32
    return %arg0, %c0_i32, %c0_i32_0 : i32, i32, i32
  }
  func.func @transform_1(%arg0: i32) -> (i32, i32, i32) {
    %c0_i32 = arith.constant 0 : i32
    %c0_i32_0 = arith.constant 0 : i32
    %c0_i32_1 = arith.constant 0 : i32
    return %arg0, %c0_i32, %c0_i32_0 : i32, i32, i32
  }
  func.func @transform_2(%arg0: i32) -> (i32, i32, i32) {
    %c0_i32 = arith.constant 0 : i32
    %c0_i32_0 = arith.constant 0 : i32
    %c0_i32_1 = arith.constant 0 : i32
    return %arg0, %c0_i32, %c0_i32_0 : i32, i32, i32
  }
  func.func @transform_3(%arg0: i32) -> (i32, i32, i32) {
    %c0_i32 = arith.constant 0 : i32
    %c0_i32_0 = arith.constant 0 : i32
    %c0_i32_1 = arith.constant 0 : i32
    return %arg0, %c0_i32, %c0_i32_0 : i32, i32, i32
  }
  func.func @transform_4(%arg0: i32) -> (i32, i32, i32) {
    %c0_i32 = arith.constant 0 : i32
    %c0_i32_0 = arith.constant 0 : i32
    %c0_i32_1 = arith.constant 0 : i32
    return %arg0, %c0_i32, %c0_i32_0 : i32, i32, i32
  }
  func.func @transform_5(%arg0: i32) -> (i32, i32, i32) {
    %c0_i32 = arith.constant 0 : i32
    %c0_i32_0 = arith.constant 0 : i32
    %c0_i32_1 = arith.constant 0 : i32
    return %arg0, %c0_i32, %c0_i32_0 : i32, i32, i32
  }
}

module attributes {stable_mosaic.version = 11 : i64} {
  func.func @_bn_be_relu_pool_kernel(%arg0: i32, %arg1: memref<2x8x2x4x256xf32, #tpu.memory_space<vmem>>, %arg2: memref<1x1x256xf32, #tpu.memory_space<vmem>>, %arg3: memref<1x1x256xf32, #tpu.memory_space<vmem>>, %arg4: memref<2x8x4x128xf32, #tpu.memory_space<vmem>>) attributes {dimension_semantics = [#tpu.dimension_semantics<parallel>], iteration_bounds = array<i64: 4>, scalar_prefetch = 0 : i64, scratch_operands = 0 : i64, tpu.core_type = #tpu.core_type<tc>, window_params = [{transform_indices = @transform_0, window_bounds = array<i64: 2, 8, 2, 4, 256>}, {transform_indices = @transform_1, window_bounds = array<i64: 1, 1, 256>}, {transform_indices = @transform_2, window_bounds = array<i64: 1, 1, 256>}, {transform_indices = @transform_3, window_bounds = array<i64: 2, 8, 4, 128>}]} {
    %c0 = arith.constant 0 : index
    %c0_0 = arith.constant 0 : index
    %c0_1 = arith.constant 0 : index
    %0 = vector.load %arg2[%c0, %c0_0, %c0_1] : memref<1x1x256xf32, #tpu.memory_space<vmem>>, vector<1x1x256xf32>
    %1 = vector.shape_cast %0 : vector<1x1x256xf32> to vector<1x256xf32>
    %c0_2 = arith.constant 0 : index
    %c0_3 = arith.constant 0 : index
    %c0_4 = arith.constant 0 : index
    %2 = vector.load %arg3[%c0_2, %c0_3, %c0_4] : memref<1x1x256xf32, #tpu.memory_space<vmem>>, vector<1x1x256xf32>
    %3 = vector.shape_cast %2 : vector<1x1x256xf32> to vector<1x256xf32>
    %c0_5 = arith.constant 0 : index
    %c0_6 = arith.constant 0 : index
    %c0_7 = arith.constant 0 : index
    %c0_8 = arith.constant 0 : index
    %c0_9 = arith.constant 0 : index
    %4 = vector.load %arg1[%c0_5, %c0_6, %c0_7, %c0_8, %c0_9] : memref<2x8x2x4x256xf32, #tpu.memory_space<vmem>>, vector<2x8x2x4x256xf32>
    %5 = vector.extract_strided_slice %4 {offsets = [0, 0, 0, 0, 0], sizes = [2, 8, 1, 4, 256], strides = [1, 1, 1, 1, 1]} : vector<2x8x2x4x256xf32> to vector<2x8x1x4x256xf32>
    %6 = vector.shape_cast %5 : vector<2x8x1x4x256xf32> to vector<2x8x4x256xf32>
    %7 = vector.shape_cast %1 : vector<1x256xf32> to vector<1x1x1x256xf32>
    %8 = vector.broadcast %7 : vector<1x1x1x256xf32> to vector<2x8x4x256xf32>
    %9 = arith.mulf %6, %8 : vector<2x8x4x256xf32>
    %10 = vector.shape_cast %3 : vector<1x256xf32> to vector<1x1x1x256xf32>
    %11 = vector.broadcast %10 : vector<1x1x1x256xf32> to vector<2x8x4x256xf32>
    %12 = arith.addf %9, %11 : vector<2x8x4x256xf32>
    %13 = vector.extract_strided_slice %4 {offsets = [0, 0, 1, 0, 0], sizes = [2, 8, 1, 4, 256], strides = [1, 1, 1, 1, 1]} : vector<2x8x2x4x256xf32> to vector<2x8x1x4x256xf32>
    %14 = vector.shape_cast %13 : vector<2x8x1x4x256xf32> to vector<2x8x4x256xf32>
    %15 = vector.shape_cast %1 : vector<1x256xf32> to vector<1x1x1x256xf32>
    %16 = vector.broadcast %15 : vector<1x1x1x256xf32> to vector<2x8x4x256xf32>
    %17 = arith.mulf %14, %16 : vector<2x8x4x256xf32>
    %18 = vector.shape_cast %3 : vector<1x256xf32> to vector<1x1x1x256xf32>
    %19 = vector.broadcast %18 : vector<1x1x1x256xf32> to vector<2x8x4x256xf32>
    %20 = arith.addf %17, %19 : vector<2x8x4x256xf32>
    %21 = arith.maximumf %12, %20 : vector<2x8x4x256xf32>
    %22 = vector.extract_strided_slice %21 {offsets = [0, 0, 0, 0], sizes = [2, 8, 4, 64], strides = [1, 1, 1, 1]} : vector<2x8x4x256xf32> to vector<2x8x4x64xf32>
    %23 = vector.extract_strided_slice %21 {offsets = [0, 0, 0, 64], sizes = [2, 8, 4, 64], strides = [1, 1, 1, 1]} : vector<2x8x4x256xf32> to vector<2x8x4x64xf32>
    %24 = arith.maximumf %22, %23 : vector<2x8x4x64xf32>
    %25 = vector.extract_strided_slice %21 {offsets = [0, 0, 0, 128], sizes = [2, 8, 4, 64], strides = [1, 1, 1, 1]} : vector<2x8x4x256xf32> to vector<2x8x4x64xf32>
    %26 = vector.extract_strided_slice %21 {offsets = [0, 0, 0, 192], sizes = [2, 8, 4, 64], strides = [1, 1, 1, 1]} : vector<2x8x4x256xf32> to vector<2x8x4x64xf32>
    %27 = arith.maximumf %25, %26 : vector<2x8x4x64xf32>
    %28 = tpu.concatenate %24, %27 in 3 : vector<2x8x4x64xf32>, vector<2x8x4x64xf32> -> vector<2x8x4x128xf32>
    %cst = arith.constant 0.000000e+00 : f32
    %29 = vector.broadcast %cst : f32 to vector<2x8x4x128xf32>
    %30 = arith.maximumf %28, %29 : vector<2x8x4x128xf32>
    %c0_10 = arith.constant 0 : index
    %c0_11 = arith.constant 0 : index
    %c0_12 = arith.constant 0 : index
    %c0_13 = arith.constant 0 : index
    %31 = vector.load %arg4[%c0_10, %c0_11, %c0_12, %c0_13] : memref<2x8x4x128xf32, #tpu.memory_space<vmem>>, vector<2x8x4x128xf32>
    tpu.vector_store %arg4[%c0_10, %c0_11, %c0_12, %c0_13], %30 {strides = array<i32>} : memref<2x8x4x128xf32, #tpu.memory_space<vmem>>, vector<2x8x4x128xf32>,
    return
  }
  func.func @transform_0(%arg0: i32) -> (i32, i32, i32, i32, i32) {
    %c0_i32 = arith.constant 0 : i32
    %c0_i32_0 = arith.constant 0 : i32
    %c0_i32_1 = arith.constant 0 : i32
    %c0_i32_2 = arith.constant 0 : i32
    %c0_i32_3 = arith.constant 0 : i32
    return %arg0, %c0_i32, %c0_i32_0, %c0_i32_1, %c0_i32_2 : i32, i32, i32, i32, i32
  }
  func.func @transform_1(%arg0: i32) -> (i32, i32, i32) {
    %c0_i32 = arith.constant 0 : i32
    %c0_i32_0 = arith.constant 0 : i32
    %c0_i32_1 = arith.constant 0 : i32
    return %arg0, %c0_i32, %c0_i32_0 : i32, i32, i32
  }
  func.func @transform_2(%arg0: i32) -> (i32, i32, i32) {
    %c0_i32 = arith.constant 0 : i32
    %c0_i32_0 = arith.constant 0 : i32
    %c0_i32_1 = arith.constant 0 : i32
    return %arg0, %c0_i32, %c0_i32_0 : i32, i32, i32
  }
  func.func @transform_3(%arg0: i32) -> (i32, i32, i32, i32) {
    %c0_i32 = arith.constant 0 : i32
    %c0_i32_0 = arith.constant 0 : i32
    %c0_i32_1 = arith.constant 0 : i32
    %c0_i32_2 = arith.constant 0 : i32
    return %arg0, %c0_i32, %c0_i32_0, %c0_i32_1 : i32, i32, i32, i32
  }
}

module attributes {stable_mosaic.version = 11 : i64} {
  func.func @_be_linear_kernel(%arg0: i32, %arg1: memref<1x2x4096xf32, #tpu.memory_space<vmem>>, %arg2: memref<1x4096x128xf32, #tpu.memory_space<vmem>>, %arg3: memref<1x1x128xf32, #tpu.memory_space<vmem>>, %arg4: memref<1x1x128xf32, #tpu.memory_space<vmem>>, %arg5: memref<1x2x128xf32, #tpu.memory_space<vmem>>) attributes {dimension_semantics = [#tpu.dimension_semantics<parallel>], iteration_bounds = array<i64: 4>, scalar_prefetch = 0 : i64, scratch_operands = 0 : i64, tpu.core_type = #tpu.core_type<tc>, window_params = [{transform_indices = @transform_0, window_bounds = array<i64: 1, 2, 4096>}, {transform_indices = @transform_1, window_bounds = array<i64: 1, 4096, 128>}, {transform_indices = @transform_2, window_bounds = array<i64: 1, 1, 128>}, {transform_indices = @transform_3, window_bounds = array<i64: 1, 1, 128>}, {transform_indices = @transform_4, window_bounds = array<i64: 1, 2, 128>}]} {
    %c0 = arith.constant 0 : index
    %c0_0 = arith.constant 0 : index
    %c0_1 = arith.constant 0 : index
    %0 = vector.load %arg1[%c0, %c0_0, %c0_1] : memref<1x2x4096xf32, #tpu.memory_space<vmem>>, vector<1x2x4096xf32>
    %1 = vector.shape_cast %0 : vector<1x2x4096xf32> to vector<2x4096xf32>
    %c0_2 = arith.constant 0 : index
    %c0_3 = arith.constant 0 : index
    %c0_4 = arith.constant 0 : index
    %2 = vector.load %arg2[%c0_2, %c0_3, %c0_4] : memref<1x4096x128xf32, #tpu.memory_space<vmem>>, vector<1x4096x128xf32>
    %3 = vector.shape_cast %2 : vector<1x4096x128xf32> to vector<4096x128xf32>
    %cst = arith.constant dense<0.000000e+00> : vector<2x128xf32>
    %4 = tpu.matmul %1, %3, %cst {dimension_numbers = #tpu.dot_dimension_numbers<[1], [0], [0], [1], [0, 0, 1, 1], [], []>} : vector<2x4096xf32>, vector<4096x128xf32>, vector<2x128xf32> -> vector<2x128xf32>
    %c0_5 = arith.constant 0 : index
    %c0_6 = arith.constant 0 : index
    %c0_7 = arith.constant 0 : index
    %5 = vector.load %arg3[%c0_5, %c0_6, %c0_7] : memref<1x1x128xf32, #tpu.memory_space<vmem>>, vector<1x1x128xf32>
    %6 = vector.shape_cast %5 : vector<1x1x128xf32> to vector<1x128xf32>
    %7 = vector.broadcast %6 : vector<1x128xf32> to vector<2x128xf32>
    %8 = arith.mulf %4, %7 : vector<2x128xf32>
    %c0_8 = arith.constant 0 : index
    %c0_9 = arith.constant 0 : index
    %c0_10 = arith.constant 0 : index
    %9 = vector.load %arg4[%c0_8, %c0_9, %c0_10] : memref<1x1x128xf32, #tpu.memory_space<vmem>>, vector<1x1x128xf32>
    %10 = vector.shape_cast %9 : vector<1x1x128xf32> to vector<1x128xf32>
    %11 = vector.broadcast %10 : vector<1x128xf32> to vector<2x128xf32>
    %12 = arith.addf %8, %11 : vector<2x128xf32>
    %c0_11 = arith.constant 0 : index
    %c0_12 = arith.constant 0 : index
    %c0_13 = arith.constant 0 : index
    %13 = vector.load %arg5[%c0_11, %c0_12, %c0_13] : memref<1x2x128xf32, #tpu.memory_space<vmem>>, vector<1x2x128xf32>
    %14 = vector.shape_cast %13 : vector<1x2x128xf32> to vector<2x128xf32>
    %15 = vector.shape_cast %12 : vector<2x128xf32> to vector<1x2x128xf32>
    tpu.vector_store %arg5[%c0_11, %c0_12, %c0_13], %15 {strides = array<i32>} : memref<1x2x128xf32, #tpu.memory_space<vmem>>, vector<1x2x128xf32>,
    return
  }
  func.func @transform_0(%arg0: i32) -> (i32, i32, i32) {
    %c0_i32 = arith.constant 0 : i32
    %c0_i32_0 = arith.constant 0 : i32
    %c0_i32_1 = arith.constant 0 : i32
    return %arg0, %c0_i32, %c0_i32_0 : i32, i32, i32
  }
  func.func @transform_1(%arg0: i32) -> (i32, i32, i32) {
    %c0_i32 = arith.constant 0 : i32
    %c0_i32_0 = arith.constant 0 : i32
    %c0_i32_1 = arith.constant 0 : i32
    return %arg0, %c0_i32, %c0_i32_0 : i32, i32, i32
  }
  func.func @transform_2(%arg0: i32) -> (i32, i32, i32) {
    %c0_i32 = arith.constant 0 : i32
    %c0_i32_0 = arith.constant 0 : i32
    %c0_i32_1 = arith.constant 0 : i32
    return %arg0, %c0_i32, %c0_i32_0 : i32, i32, i32
  }
  func.func @transform_3(%arg0: i32) -> (i32, i32, i32) {
    %c0_i32 = arith.constant 0 : i32
    %c0_i32_0 = arith.constant 0 : i32
    %c0_i32_1 = arith.constant 0 : i32
    return %arg0, %c0_i32, %c0_i32_0 : i32, i32, i32
  }
  func.func @transform_4(%arg0: i32) -> (i32, i32, i32) {
    %c0_i32 = arith.constant 0 : i32
    %c0_i32_0 = arith.constant 0 : i32
    %c0_i32_1 = arith.constant 0 : i32
    return %arg0, %c0_i32, %c0_i32_0 : i32, i32, i32
  }
}

</mosaic_0001>

<llo_original>
// kernel: batch_ensemble_cnn_forward.6
$region0: #{batch_ensemble_cnn_forward.6}
  #allocation0 [shape = 'u32[]', space=smem, size = 0x4, offset = 0x4, fixed_abs, tag = 'smem constant byte address 0x4 - core index']
  #allocation1 [shape = 'u32[144,128]{1,0:T(1,128)}', space=vmem, size = 0x12000, scoped, tag = 'internal scratch']
  %s0 = inlined_call_operand.vmem [shape: f32[8,16,2,4,256], index: 0, kind: input, shape index: {}]
  %s1 = inlined_call_operand.vmem [shape: f32[4,1,256], index: 1, kind: input, shape index: {}]
  %s2 = inlined_call_operand.vmem [shape: f32[4,1,256], index: 2, kind: input, shape index: {}]
  %s3 = inlined_call_operand.vmem [shape: f32[8,16,4,128], index: 3, kind: output, shape index: {}]
  %s4 = sld [smem:[#allocation0]]
  $region45: #{batch_ensemble_cnn_forward.6} parent=0
    _
  %s6 = ssub.s32 1, %s4
  %s7 = scalar_select 0, %s6, %s4
  loop: start=0, step=1, limit=6
  $region2: #{batch_ensemble_cnn_forward.6} parent=0 // loop_pre_header
    _
  $region3: #{batch_ensemble_cnn_forward.6} parent=0 // loop_header
    %s9 = sphi 0, %s13
    %p10 = scmp.ge.s32.totalorder %s9, 6
    %s19 = sphi 0, %s21
    %s22 = sphi 0, %s19
    %s23 = sphi 0, %s22
    %s39 = sphi 0, %s23
    %s45 = sphi 0, %s47
    %s48 = sphi 0, %s45
    %s49 = sphi 0, %s48
    %s65 = sphi 0, %s49
    %s71 = sphi 0, %s73
    %s74 = sphi 0, %s71
    %s75 = sphi 0, %s74
    %s91 = sphi 0, %s75
    %s97 = sphi 0, %s99
    %s100 = sphi 0, %s97
    %s101 = sphi 0, %s100
    %s117 = sphi 0, %s101
  $region4: #{batch_ensemble_cnn_forward.6} parent=0 // loop_header_branch
    %12 = sbr.rel (%p10) target = $region8
  $region5: #{batch_ensemble_cnn_forward.6} parent=0 // loop_body
    %s14 = ssub.s32 %s9, 1
    %s15 = ssub.s32 %s9, 2
    %s16 = sadd.s32 %s9, 1
    %s17 = ssub.s32 %s9, %s16
    %p18 = scmp.eq.s32.totalorder %s17, 0
    %s20 = sadd.s32 %s19, 1
    %s21 = scalar_select %p18, %s19, %s20
    %p24 = pneg %p18
    %p25 = scmp.eq.s32.totalorder %s9, 3
    %p26 = por %p24, %p25
    %p27 = scmp.ne.s32.totalorder %s19, %s22
    %p28 = scmp.eq.s32.totalorder %s9, 0
    %p29 = por %p27, %p28
    %p30 = scmp.ne.s32.totalorder %s19, %s22
    %p31 = scmp.eq.s32.totalorder %s14, 3
    %p32 = por %p30, %p31
    %p33 = scmp.ne.s32.totalorder %s22, %s23
    %p34 = scmp.eq.s32.totalorder %s14, 0
    %p35 = por %p33, %p34
    %p36 = scmp.ne.s32.totalorder %s22, %s23
    %p37 = scmp.eq.s32.totalorder %s15, 3
    %p38 = por %p36, %p37
    %p40 = scmp.ne.s32.totalorder %s23, %s39
    %p41 = scmp.eq.s32.totalorder %s15, 0
    %p42 = por %p40, %p41
    %s43 = ssub.s32 %s9, %s16
    %p44 = scmp.eq.s32.totalorder %s43, 0
    %s46 = sadd.s32 %s45, 1
    %s47 = scalar_select %p44, %s45, %s46
    %p50 = pneg %p44
    %p51 = scmp.eq.s32.totalorder %s9, 3
    %p52 = por %p50, %p51
    %p53 = scmp.ne.s32.totalorder %s45, %s48
    %p54 = scmp.eq.s32.totalorder %s9, 0
    %p55 = por %p53, %p54
    %p56 = scmp.ne.s32.totalorder %s45, %s48
    %p57 = scmp.eq.s32.totalorder %s14, 3
    %p58 = por %p56, %p57
    %p59 = scmp.ne.s32.totalorder %s48, %s49
    %p60 = scmp.eq.s32.totalorder %s14, 0
    %p61 = por %p59, %p60
    %p62 = scmp.ne.s32.totalorder %s48, %s49
    %p63 = scmp.eq.s32.totalorder %s15, 3
    %p64 = por %p62, %p63
    %p66 = scmp.ne.s32.totalorder %s49, %s65
    %p67 = scmp.eq.s32.totalorder %s15, 0
    %p68 = por %p66, %p67
    %s69 = ssub.s32 %s9, %s16
    %p70 = scmp.eq.s32.totalorder %s69, 0
    %s72 = sadd.s32 %s71, 1
    %s73 = scalar_select %p70, %s71, %s72
    %p76 = pneg %p70
    %p77 = scmp.eq.s32.totalorder %s9, 3
    %p78 = por %p76, %p77
    %p79 = scmp.ne.s32.totalorder %s71, %s74
    %p80 = scmp.eq.s32.totalorder %s9, 0
    %p81 = por %p79, %p80
    %p82 = scmp.ne.s32.totalorder %s71, %s74
    %p83 = scmp.eq.s32.totalorder %s14, 3
    %p84 = por %p82, %p83
    %p85 = scmp.ne.s32.totalorder %s74, %s75
    %p86 = scmp.eq.s32.totalorder %s14, 0
    %p87 = por %p85, %p86
    %p88 = scmp.ne.s32.totalorder %s74, %s75
    %p89 = scmp.eq.s32.totalorder %s15, 3
    %p90 = por %p88, %p89
    %p92 = scmp.ne.s32.totalorder %s75, %s91
    %p93 = scmp.eq.s32.totalorder %s15, 0
    %p94 = por %p92, %p93
    %s95 = ssub.s32 %s9, %s16
    %p96 = scmp.eq.s32.totalorder %s95, 0
    %s98 = sadd.s32 %s97, 1
    %s99 = scalar_select %p96, %s97, %s98
    %p102 = pneg %p96
    %p103 = scmp.eq.s32.totalorder %s9, 3
    %p104 = por %p102, %p103
    %p105 = scmp.ne.s32.totalorder %s97, %s100
    %p106 = scmp.eq.s32.totalorder %s9, 0
    %p107 = por %p105, %p106
    %p108 = scmp.ne.s32.totalorder %s97, %s100
    %p109 = scmp.eq.s32.totalorder %s14, 3
    %p110 = por %p108, %p109
    %p111 = scmp.ne.s32.totalorder %s100, %s101
    %p112 = scmp.eq.s32.totalorder %s14, 0
    %p113 = por %p111, %p112
    %p114 = scmp.ne.s32.totalorder %s100, %s101
    %p115 = scmp.eq.s32.totalorder %s15, 3
    %p116 = por %p114, %p115
    %p118 = scmp.ne.s32.totalorder %s101, %s117
    %p119 = scmp.eq.s32.totalorder %s15, 0
    %p120 = por %p118, %p119
    %p121 = scmp.le.s32.totalorder 1, %s9
    %p122 = scmp.lt.s32.totalorder %s9, 5
    %p123 = pnand %p121, %p122
    %p124 = pneg %p123
    // Predicated region
    $region9: #{batch_ensemble_cnn_forward.6} parent=5 // pred_check
      _
    $region10: #{batch_ensemble_cnn_forward.6} parent=5 // pred_check_branch
      %126 = sbr.rel (%p123) target = $region12
    $region11: #{batch_ensemble_cnn_forward.6} parent=5 // pred_region
      %s127 = ssub.s32 %s9, 1
    $region12: #{batch_ensemble_cnn_forward.6} parent=5 // pred_fallthru
      _
    %p128 = scmp.lt.s32.totalorder %s9, 4
    // Predicated region
    $region13: #{batch_ensemble_cnn_forward.6} parent=5 // pred_check
      %p129 = pneg %p128
    $region14: #{batch_ensemble_cnn_forward.6} parent=5 // pred_check_branch
      %131 = sbr.rel (%p129) target = $region16
    $region15: #{batch_ensemble_cnn_forward.6} parent=5 // pred_region
      // Predicated region
      $region17: #{batch_ensemble_cnn_forward.6} parent=15 // pred_check
        %p132 = pneg %p29
      $region18: #{batch_ensemble_cnn_forward.6} parent=15 // pred_check_branch
        %134 = sbr.rel (%p132) target = $region20
      $region19: #{batch_ensemble_cnn_forward.6} parent=15 // pred_region
        %s135 = smul.u32 2, %s9
        %p136 = scmp.lt.s32.totalorder %s135, 7
        %s137 = scalar_select %p136, %s135, 7
        %s138 = smul.addr %s137, 64
        %s139 = smul.addr %s138, 4
        %s140 = scalar_lea.vmem %s0, %s139
        %s141 = smul.u32 2, %s9
      $region20: #{batch_ensemble_cnn_forward.6} parent=15 // pred_fallthru
        _
      // Predicated region
      $region21: #{batch_ensemble_cnn_forward.6} parent=15 // pred_check
        %p142 = pneg %p55
      $region22: #{batch_ensemble_cnn_forward.6} parent=15 // pred_check_branch
        %144 = sbr.rel (%p142) target = $region24
      $region23: #{batch_ensemble_cnn_forward.6} parent=15 // pred_region
        %p145 = scmp.lt.s32.totalorder %s9, 3
        %s146 = scalar_select %p145, %s9, 3
        %s147 = smul.addr %s146, 2
        %s148 = scalar_lea.vmem %s1, %s147
      $region24: #{batch_ensemble_cnn_forward.6} parent=15 // pred_fallthru
        _
      // Predicated region
      $region25: #{batch_ensemble_cnn_forward.6} parent=15 // pred_check
        %p149 = pneg %p81
      $region26: #{batch_ensemble_cnn_forward.6} parent=15 // pred_check_branch
        %151 = sbr.rel (%p149) target = $region28
      $region27: #{batch_ensemble_cnn_forward.6} parent=15 // pred_region
        %p152 = scmp.lt.s32.totalorder %s9, 3
        %s153 = scalar_select %p152, %s9, 3
        %s154 = smul.addr %s153, 2
        %s155 = scalar_lea.vmem %s2, %s154
      $region28: #{batch_ensemble_cnn_forward.6} parent=15 // pred_fallthru
        _
    $region16: #{batch_ensemble_cnn_forward.6} parent=5 // pred_fallthru
      _
    %p156 = scmp.le.s32.totalorder 1, %s9
    %p157 = scmp.lt.s32.totalorder %s9, 5
    %p158 = pnand %p156, %p157
    %p159 = pneg %p158
    // Predicated region
    $region29: #{batch_ensemble_cnn_forward.6} parent=5 // pred_check
      _
    $region30: #{batch_ensemble_cnn_forward.6} parent=5 // pred_check_branch
      %161 = sbr.rel (%p158) target = $region32
    $region31: #{batch_ensemble_cnn_forward.6} parent=5 // pred_region
      %s162 = ssub.s32 %s9, 1
      %s163 = smul.u32 2, %s14
      %p164 = scmp.lt.s32.totalorder %s163, 7
      %s165 = scalar_select %p164, %s163, 7
      %s166 = smul.addr %s165, 64
      %s167 = smul.addr %s166, 4
      %s168 = scalar_lea.vmem %s0, %s167
      %p169 = pneg %p35
      %p170 = pneg %p32
      %p171 = scmp.lt.s32.totalorder %s14, 3
      %s172 = scalar_select %p171, %s14, 3
      %s173 = smul.addr %s172, 2
      %s174 = scalar_lea.vmem %s1, %s173
      %p175 = pneg %p61
      %p176 = pneg %p58
      %p177 = scmp.lt.s32.totalorder %s14, 3
      %s178 = scalar_select %p177, %s14, 3
      %s179 = smul.addr %s178, 2
      %s180 = scalar_lea.vmem %s2, %s179
      %p181 = pneg %p87
      %p182 = pneg %p84
      %p183 = pneg %p113
      %p184 = pneg %p110
      %s185 = smul.u32 2, %s14
      %p186 = scmp.lt.s32.totalorder %s185, 7
      %s187 = scalar_select %p186, %s185, 7
      %s188 = smul.addr %s187, 16
      %s189 = smul.addr %s188, 4
      %s190 = scalar_lea.vmem %s3, %s189
      %s191 = smul.u32 2, %s14
      %p192 = scmp.lt.s32.totalorder %s191, 7
      %s193 = scalar_select %p192, %s191, 7
      %s194 = smul.addr %s193, 64
      %s195 = smul.addr %s194, 4
      %s196 = scalar_lea.vmem %s0, %s195
      %s197 = smul.u32 2, %s14
      %p198 = scmp.lt.s32.totalorder %s14, 3
      %s199 = scalar_select %p198, %s14, 3
      %s200 = smul.addr %s199, 2
      %s201 = scalar_lea.vmem %s1, %s200
      %p202 = scmp.lt.s32.totalorder %s14, 3
      %s203 = scalar_select %p202, %s14, 3
      %s204 = smul.addr %s203, 2
      %s205 = scalar_lea.vmem %s2, %s204
      %s206 = smul.u32 2, %s14
      %p207 = scmp.lt.s32.totalorder %s206, 7
      %s208 = scalar_select %p207, %s206, 7
      %s209 = smul.addr %s208, 16
      %s210 = smul.addr %s209, 4
      %s211 = scalar_lea.vmem %s3, %s210
      %s212 = smul.u32 2, %s14
      %v213 = vld [vmem:[%s201] sm:$0x3]
      %v214 = vld [vmem:[%s205] sm:$0x3]
      %v215 = vld [vmem:[%s196] sm:$0xff]
      %v216 = vld [vmem:[%s196 + $0x8] sm:$0xff]
      %v217 = vld [vmem:[%s196 + $0x10] sm:$0xff]
      %v218 = vld [vmem:[%s196 + $0x18] sm:$0xff]
      %v219 = vld [vmem:[%s196 + $0x20] sm:$0xff]
      %v220 = vld [vmem:[%s196 + $0x28] sm:$0xff]
      %v221 = vld [vmem:[%s196 + $0x30] sm:$0xff]
      %v222 = vld [vmem:[%s196 + $0x38] sm:$0xff]
      %v223 = vld [vmem:[%s196 + $0x40] sm:$0xff]
      %v224 = vld [vmem:[%s196 + $0x48] sm:$0xff]
      %v225 = vld [vmem:[%s196 + $0x50] sm:$0xff]
      %v226 = vld [vmem:[%s196 + $0x58] sm:$0xff]
      %v227 = vld [vmem:[%s196 + $0x60] sm:$0xff]
      %v228 = vld [vmem:[%s196 + $0x68] sm:$0xff]
      %v229 = vld [vmem:[%s196 + $0x70] sm:$0xff]
      %v230 = vld [vmem:[%s196 + $0x78] sm:$0xff]
      %v231 = vld [vmem:[%s196 + $0x80] sm:$0xff]
      %v232 = vld [vmem:[%s196 + $0x88] sm:$0xff]
      %v233 = vld [vmem:[%s196 + $0x90] sm:$0xff]
      %v234 = vld [vmem:[%s196 + $0x98] sm:$0xff]
      %v235 = vld [vmem:[%s196 + $0xa0] sm:$0xff]
      %v236 = vld [vmem:[%s196 + $0xa8] sm:$0xff]
      %v237 = vld [vmem:[%s196 + $0xb0] sm:$0xff]
      %v238 = vld [vmem:[%s196 + $0xb8] sm:$0xff]
      %v239 = vld [vmem:[%s196 + $0xc0] sm:$0xff]
      %v240 = vld [vmem:[%s196 + $0xc8] sm:$0xff]
      %v241 = vld [vmem:[%s196 + $0xd0] sm:$0xff]
      %v242 = vld [vmem:[%s196 + $0xd8] sm:$0xff]
      %v243 = vld [vmem:[%s196 + $0xe0] sm:$0xff]
      %v244 = vld [vmem:[%s196 + $0xe8] sm:$0xff]
      %v245 = vld [vmem:[%s196 + $0xf0] sm:$0xff]
      %v246 = vld [vmem:[%s196 + $0xf8] sm:$0xff]
      %v247 = vld [vmem:[%s196 + $0x100] sm:$0xff]
      %v248 = vld [vmem:[%s196 + $0x108] sm:$0xff]
      %v249 = vld [vmem:[%s196 + $0x110] sm:$0xff]
      %v250 = vld [vmem:[%s196 + $0x118] sm:$0xff]
      %v251 = vld [vmem:[%s196 + $0x120] sm:$0xff]
      %v252 = vld [vmem:[%s196 + $0x128] sm:$0xff]
      %v253 = vld [vmem:[%s196 + $0x130] sm:$0xff]
      %v254 = vld [vmem:[%s196 + $0x138] sm:$0xff]
      %v255 = vld [vmem:[%s196 + $0x140] sm:$0xff]
      %v256 = vld [vmem:[%s196 + $0x148] sm:$0xff]
      %v257 = vld [vmem:[%s196 + $0x150] sm:$0xff]
      %v258 = vld [vmem:[%s196 + $0x158] sm:$0xff]
      %v259 = vld [vmem:[%s196 + $0x160] sm:$0xff]
      %v260 = vld [vmem:[%s196 + $0x168] sm:$0xff]
      %v261 = vld [vmem:[%s196 + $0x170] sm:$0xff]
      %v262 = vld [vmem:[%s196 + $0x178] sm:$0xff]
      %v263 = vld [vmem:[%s196 + $0x180] sm:$0xff]
      %v264 = vld [vmem:[%s196 + $0x188] sm:$0xff]
      %v265 = vld [vmem:[%s196 + $0x190] sm:$0xff]
      %v266 = vld [vmem:[%s196 + $0x198] sm:$0xff]
      %v267 = vld [vmem:[%s196 + $0x1a0] sm:$0xff]
      %v268 = vld [vmem:[%s196 + $0x1a8] sm:$0xff]
      %v269 = vld [vmem:[%s196 + $0x1b0] sm:$0xff]
      %v270 = vld [vmem:[%s196 + $0x1b8] sm:$0xff]
      %v271 = vld [vmem:[%s196 + $0x1c0] sm:$0xff]
      %v272 = vld [vmem:[%s196 + $0x1c8] sm:$0xff]
      %v273 = vld [vmem:[%s196 + $0x1d0] sm:$0xff]
      %v274 = vld [vmem:[%s196 + $0x1d8] sm:$0xff]
      %v275 = vld [vmem:[%s196 + $0x1e0] sm:$0xff]
      %v276 = vld [vmem:[%s196 + $0x1e8] sm:$0xff]
      %v277 = vld [vmem:[%s196 + $0x1f0] sm:$0xff]
      %v278 = vld [vmem:[%s196 + $0x1f8] sm:$0xff]
      %v280 = vlaneseq
      %v281 = vshrl.u32 %v280, 7
      %v282 = vsub.s32 0, %v281
      %v283 = vrot.slane %v213, %v282
      %v284 = vlaneseq
      %v285 = vshrl.u32 %v284, 7
      %v286 = vsub.s32 1, %v285
      %v287 = vrot.slane %v213, %v286
      %v288 = vcombine.low %v283, %v287
      %v290 = vmul.f32 %v215, %v288
      %v291 = vmul.f32 %v217, %v288
      %v292 = vmul.f32 %v219, %v288
      %v293 = vmul.f32 %v221, %v288
      %v294 = vmul.f32 %v223, %v288
      %v295 = vmul.f32 %v225, %v288
      %v296 = vmul.f32 %v227, %v288
      %v297 = vmul.f32 %v229, %v288
      %v298 = vmul.f32 %v231, %v288
      %v299 = vmul.f32 %v233, %v288
      %v300 = vmul.f32 %v235, %v288
      %v301 = vmul.f32 %v237, %v288
      %v302 = vmul.f32 %v239, %v288
      %v303 = vmul.f32 %v241, %v288
      %v304 = vmul.f32 %v243, %v288
      %v305 = vmul.f32 %v245, %v288
      %v306 = vmul.f32 %v247, %v288
      %v307 = vmul.f32 %v249, %v288
      %v308 = vmul.f32 %v251, %v288
      %v309 = vmul.f32 %v253, %v288
      %v310 = vmul.f32 %v255, %v288
      %v311 = vmul.f32 %v257, %v288
      %v312 = vmul.f32 %v259, %v288
      %v313 = vmul.f32 %v261, %v288
      %v314 = vmul.f32 %v263, %v288
      %v315 = vmul.f32 %v265, %v288
      %v316 = vmul.f32 %v267, %v288
      %v317 = vmul.f32 %v269, %v288
      %v318 = vmul.f32 %v271, %v288
      %v319 = vmul.f32 %v273, %v288
      %v320 = vmul.f32 %v275, %v288
      %v321 = vmul.f32 %v277, %v288
      %v323 = vlaneseq
      %v324 = vshrl.u32 %v323, 7
      %v325 = vsub.s32 0, %v324
      %v326 = vrot.slane %v214, %v325
      %v327 = vlaneseq
      %v328 = vshrl.u32 %v327, 7
      %v329 = vsub.s32 1, %v328
      %v330 = vrot.slane %v214, %v329
      %v331 = vcombine.low %v326, %v330
      %v333 = vadd.f32 %v290, %v331
      %v334 = vadd.f32 %v291, %v331
      %v335 = vadd.f32 %v292, %v331
      %v336 = vadd.f32 %v293, %v331
      %v337 = vadd.f32 %v294, %v331
      %v338 = vadd.f32 %v295, %v331
      %v339 = vadd.f32 %v296, %v331
      %v340 = vadd.f32 %v297, %v331
      %v341 = vadd.f32 %v298, %v331
      %v342 = vadd.f32 %v299, %v331
      %v343 = vadd.f32 %v300, %v331
      %v344 = vadd.f32 %v301, %v331
      %v345 = vadd.f32 %v302, %v331
      %v346 = vadd.f32 %v303, %v331
      %v347 = vadd.f32 %v304, %v331
      %v348 = vadd.f32 %v305, %v331
      %v349 = vadd.f32 %v306, %v331
      %v350 = vadd.f32 %v307, %v331
      %v351 = vadd.f32 %v308, %v331
      %v352 = vadd.f32 %v309, %v331
      %v353 = vadd.f32 %v310, %v331
      %v354 = vadd.f32 %v311, %v331
      %v355 = vadd.f32 %v312, %v331
      %v356 = vadd.f32 %v313, %v331
      %v357 = vadd.f32 %v314, %v331
      %v358 = vadd.f32 %v315, %v331
      %v359 = vadd.f32 %v316, %v331
      %v360 = vadd.f32 %v317, %v331
      %v361 = vadd.f32 %v318, %v331
      %v362 = vadd.f32 %v319, %v331
      %v363 = vadd.f32 %v320, %v331
      %v364 = vadd.f32 %v321, %v331
      %v365 = vmul.f32 %v216, %v288
      %v366 = vmul.f32 %v218, %v288
      %v367 = vmul.f32 %v220, %v288
      %v368 = vmul.f32 %v222, %v288
      %v369 = vmul.f32 %v224, %v288
      %v370 = vmul.f32 %v226, %v288
      %v371 = vmul.f32 %v228, %v288
      %v372 = vmul.f32 %v230, %v288
      %v373 = vmul.f32 %v232, %v288
      %v374 = vmul.f32 %v234, %v288
      %v375 = vmul.f32 %v236, %v288
      %v376 = vmul.f32 %v238, %v288
      %v377 = vmul.f32 %v240, %v288
      %v378 = vmul.f32 %v242, %v288
      %v379 = vmul.f32 %v244, %v288
      %v380 = vmul.f32 %v246, %v288
      %v381 = vmul.f32 %v248, %v288
      %v382 = vmul.f32 %v250, %v288
      %v383 = vmul.f32 %v252, %v288
      %v384 = vmul.f32 %v254, %v288
      %v385 = vmul.f32 %v256, %v288
      %v386 = vmul.f32 %v258, %v288
      %v387 = vmul.f32 %v260, %v288
      %v388 = vmul.f32 %v262, %v288
      %v389 = vmul.f32 %v264, %v288
      %v390 = vmul.f32 %v266, %v288
      %v391 = vmul.f32 %v268, %v288
      %v392 = vmul.f32 %v270, %v288
      %v393 = vmul.f32 %v272, %v288
      %v394 = vmul.f32 %v274, %v288
      %v395 = vmul.f32 %v276, %v288
      %v396 = vmul.f32 %v278, %v288
      %v397 = vadd.f32 %v365, %v331
      %v398 = vadd.f32 %v366, %v331
      %v399 = vadd.f32 %v367, %v331
      %v400 = vadd.f32 %v368, %v331
      %v401 = vadd.f32 %v369, %v331
      %v402 = vadd.f32 %v370, %v331
      %v403 = vadd.f32 %v371, %v331
      %v404 = vadd.f32 %v372, %v331
      %v405 = vadd.f32 %v373, %v331
      %v406 = vadd.f32 %v374, %v331
      %v407 = vadd.f32 %v375, %v331
      %v408 = vadd.f32 %v376, %v331
      %v409 = vadd.f32 %v377, %v331
      %v410 = vadd.f32 %v378, %v331
      %v411 = vadd.f32 %v379, %v331
      %v412 = vadd.f32 %v380, %v331
      %v413 = vadd.f32 %v381, %v331
      %v414 = vadd.f32 %v382, %v331
      %v415 = vadd.f32 %v383, %v331
      %v416 = vadd.f32 %v384, %v331
      %v417 = vadd.f32 %v385, %v331
      %v418 = vadd.f32 %v386, %v331
      %v419 = vadd.f32 %v387, %v331
      %v420 = vadd.f32 %v388, %v331
      %v421 = vadd.f32 %v389, %v331
      %v422 = vadd.f32 %v390, %v331
      %v423 = vadd.f32 %v391, %v331
      %v424 = vadd.f32 %v392, %v331
      %v425 = vadd.f32 %v393, %v331
      %v426 = vadd.f32 %v394, %v331
      %v427 = vadd.f32 %v395, %v331
      %v428 = vadd.f32 %v396, %v331
      %v429 = vmax.f32 %v333, %v397
      %v430 = vmax.f32 %v334, %v398
      %v431 = vmax.f32 %v335, %v399
      %v432 = vmax.f32 %v336, %v400
      %v433 = vmax.f32 %v337, %v401
      %v434 = vmax.f32 %v338, %v402
      %v435 = vmax.f32 %v339, %v403
      %v436 = vmax.f32 %v340, %v404
      %v437 = vmax.f32 %v341, %v405
      %v438 = vmax.f32 %v342, %v406
      %v439 = vmax.f32 %v343, %v407
      %v440 = vmax.f32 %v344, %v408
      %v441 = vmax.f32 %v345, %v409
      %v442 = vmax.f32 %v346, %v410
      %v443 = vmax.f32 %v347, %v411
      %v444 = vmax.f32 %v348, %v412
      %v445 = vmax.f32 %v349, %v413
      %v446 = vmax.f32 %v350, %v414
      %v447 = vmax.f32 %v351, %v415
      %v448 = vmax.f32 %v352, %v416
      %v449 = vmax.f32 %v353, %v417
      %v450 = vmax.f32 %v354, %v418
      %v451 = vmax.f32 %v355, %v419
      %v452 = vmax.f32 %v356, %v420
      %v453 = vmax.f32 %v357, %v421
      %v454 = vmax.f32 %v358, %v422
      %v455 = vmax.f32 %v359, %v423
      %v456 = vmax.f32 %v360, %v424
      %v457 = vmax.f32 %v361, %v425
      %v458 = vmax.f32 %v362, %v426
      %v459 = vmax.f32 %v363, %v427
      %v460 = vmax.f32 %v364, %v428
      %493 = vrot.lane.b32.xlu0 %v429, 96
      %v494 = vpop.permute.xlu0 %493
      %495 = vrot.lane.b32.xlu0 %v430, 96
      %v496 = vpop.permute.xlu0 %495
      %497 = vrot.lane.b32.xlu0 %v431, 96
      %v498 = vpop.permute.xlu0 %497
      %499 = vrot.lane.b32.xlu0 %v432, 96
      %v500 = vpop.permute.xlu0 %499
      %501 = vrot.lane.b32.xlu0 %v433, 96
      %v502 = vpop.permute.xlu0 %501
      %503 = vrot.lane.b32.xlu0 %v434, 96
      %v504 = vpop.permute.xlu0 %503
      %505 = vrot.lane.b32.xlu0 %v435, 96
      %v506 = vpop.permute.xlu0 %505
      %507 = vrot.lane.b32.xlu0 %v436, 96
      %v508 = vpop.permute.xlu0 %507
      %509 = vrot.lane.b32.xlu0 %v437, 96
      %v510 = vpop.permute.xlu0 %509
      %511 = vrot.lane.b32.xlu0 %v438, 96
      %v512 = vpop.permute.xlu0 %511
      %513 = vrot.lane.b32.xlu0 %v439, 96
      %v514 = vpop.permute.xlu0 %513
      %515 = vrot.lane.b32.xlu0 %v440, 96
      %v516 = vpop.permute.xlu0 %515
      %517 = vrot.lane.b32.xlu0 %v441, 96
      %v518 = vpop.permute.xlu0 %517
      %519 = vrot.lane.b32.xlu0 %v442, 96
      %v520 = vpop.permute.xlu0 %519
      %521 = vrot.lane.b32.xlu0 %v443, 96
      %v522 = vpop.permute.xlu0 %521
      %523 = vrot.lane.b32.xlu0 %v444, 96
      %v524 = vpop.permute.xlu0 %523
      %525 = vrot.lane.b32.xlu0 %v445, 96
      %v526 = vpop.permute.xlu0 %525
      %527 = vrot.lane.b32.xlu0 %v446, 96
      %v528 = vpop.permute.xlu0 %527
      %529 = vrot.lane.b32.xlu0 %v447, 96
      %v530 = vpop.permute.xlu0 %529
      %531 = vrot.lane.b32.xlu0 %v448, 96
      %v532 = vpop.permute.xlu0 %531
      %533 = vrot.lane.b32.xlu0 %v449, 96
      %v534 = vpop.permute.xlu0 %533
      %535 = vrot.lane.b32.xlu0 %v450, 96
      %v536 = vpop.permute.xlu0 %535
      %537 = vrot.lane.b32.xlu0 %v451, 96
      %v538 = vpop.permute.xlu0 %537
      %539 = vrot.lane.b32.xlu0 %v452, 96
      %v540 = vpop.permute.xlu0 %539
      %541 = vrot.lane.b32.xlu0 %v453, 96
      %v542 = vpop.permute.xlu0 %541
      %543 = vrot.lane.b32.xlu0 %v454, 96
      %v544 = vpop.permute.xlu0 %543
      %545 = vrot.lane.b32.xlu0 %v455, 96
      %v546 = vpop.permute.xlu0 %545
      %547 = vrot.lane.b32.xlu0 %v456, 96
      %v548 = vpop.permute.xlu0 %547
      %549 = vrot.lane.b32.xlu0 %v457, 96
      %v550 = vpop.permute.xlu0 %549
      %551 = vrot.lane.b32.xlu0 %v458, 96
      %v552 = vpop.permute.xlu0 %551
      %553 = vrot.lane.b32.xlu0 %v459, 96
      %v554 = vpop.permute.xlu0 %553
      %555 = vrot.lane.b32.xlu0 %v460, 96
      %v556 = vpop.permute.xlu0 %555
      %v589 = vmax.f32 %v429, %v494
      %v590 = vmax.f32 %v430, %v496
      %v591 = vmax.f32 %v431, %v498
      %v592 = vmax.f32 %v432, %v500
      %v593 = vmax.f32 %v433, %v502
      %v594 = vmax.f32 %v434, %v504
      %v595 = vmax.f32 %v435, %v506
      %v596 = vmax.f32 %v436, %v508
      %v597 = vmax.f32 %v437, %v510
      %v598 = vmax.f32 %v438, %v512
      %v599 = vmax.f32 %v439, %v514
      %v600 = vmax.f32 %v440, %v516
      %v601 = vmax.f32 %v441, %v518
      %v602 = vmax.f32 %v442, %v520
      %v603 = vmax.f32 %v443, %v522
      %v604 = vmax.f32 %v444, %v524
      %v605 = vmax.f32 %v445, %v526
      %v606 = vmax.f32 %v446, %v528
      %v607 = vmax.f32 %v447, %v530
      %v608 = vmax.f32 %v448, %v532
      %v609 = vmax.f32 %v449, %v534
      %v610 = vmax.f32 %v450, %v536
      %v611 = vmax.f32 %v451, %v538
      %v612 = vmax.f32 %v452, %v540
      %v613 = vmax.f32 %v453, %v542
      %v614 = vmax.f32 %v454, %v544
      %v615 = vmax.f32 %v455, %v546
      %v616 = vmax.f32 %v456, %v548
      %v617 = vmax.f32 %v457, %v550
      %v618 = vmax.f32 %v458, %v552
      %v619 = vmax.f32 %v459, %v554
      %v620 = vmax.f32 %v460, %v556
      %v621 = vrot.slane %v429, 4
      %v622 = vrot.slane %v430, 4
      %v623 = vrot.slane %v431, 4
      %v624 = vrot.slane %v432, 4
      %v625 = vrot.slane %v433, 4
      %v626 = vrot.slane %v434, 4
      %v627 = vrot.slane %v435, 4
      %v628 = vrot.slane %v436, 4
      %v629 = vrot.slane %v437, 4
      %v630 = vrot.slane %v438, 4
      %v631 = vrot.slane %v439, 4
      %v632 = vrot.slane %v440, 4
      %v633 = vrot.slane %v441, 4
      %v634 = vrot.slane %v442, 4
      %v635 = vrot.slane %v443, 4
      %v636 = vrot.slane %v444, 4
      %v637 = vrot.slane %v445, 4
      %v638 = vrot.slane %v446, 4
      %v639 = vrot.slane %v447, 4
      %v640 = vrot.slane %v448, 4
      %v641 = vrot.slane %v449, 4
      %v642 = vrot.slane %v450, 4
      %v643 = vrot.slane %v451, 4
      %v644 = vrot.slane %v452, 4
      %v645 = vrot.slane %v453, 4
      %v646 = vrot.slane %v454, 4
      %v647 = vrot.slane %v455, 4
      %v648 = vrot.slane %v456, 4
      %v649 = vrot.slane %v457, 4
      %v650 = vrot.slane %v458, 4
      %v651 = vrot.slane %v459, 4
      %v652 = vrot.slane %v460, 4
      %v685 = vrot.slane %v494, 4
      %v686 = vrot.slane %v496, 4
      %v687 = vrot.slane %v498, 4
      %v688 = vrot.slane %v500, 4
      %v689 = vrot.slane %v502, 4
      %v690 = vrot.slane %v504, 4
      %v691 = vrot.slane %v506, 4
      %v692 = vrot.slane %v508, 4
      %v693 = vrot.slane %v510, 4
      %v694 = vrot.slane %v512, 4
      %v695 = vrot.slane %v514, 4
      %v696 = vrot.slane %v516, 4
      %v697 = vrot.slane %v518, 4
      %v698 = vrot.slane %v520, 4
      %v699 = vrot.slane %v522, 4
      %v700 = vrot.slane %v524, 4
      %v701 = vrot.slane %v526, 4
      %v702 = vrot.slane %v528, 4
      %v703 = vrot.slane %v530, 4
      %v704 = vrot.slane %v532, 4
      %v705 = vrot.slane %v534, 4
      %v706 = vrot.slane %v536, 4
      %v707 = vrot.slane %v538, 4
      %v708 = vrot.slane %v540, 4
      %v709 = vrot.slane %v542, 4
      %v710 = vrot.slane %v544, 4
      %v711 = vrot.slane %v546, 4
      %v712 = vrot.slane %v548, 4
      %v713 = vrot.slane %v550, 4
      %v714 = vrot.slane %v552, 4
      %v715 = vrot.slane %v554, 4
      %v716 = vrot.slane %v556, 4
      %v749 = vmax.f32 %v621, %v685
      %v750 = vmax.f32 %v622, %v686
      %v751 = vmax.f32 %v623, %v687
      %v752 = vmax.f32 %v624, %v688
      %v753 = vmax.f32 %v625, %v689
      %v754 = vmax.f32 %v626, %v690
      %v755 = vmax.f32 %v627, %v691
      %v756 = vmax.f32 %v628, %v692
      %v757 = vmax.f32 %v629, %v693
      %v758 = vmax.f32 %v630, %v694
      %v759 = vmax.f32 %v631, %v695
      %v760 = vmax.f32 %v632, %v696
      %v761 = vmax.f32 %v633, %v697
      %v762 = vmax.f32 %v634, %v698
      %v763 = vmax.f32 %v635, %v699
      %v764 = vmax.f32 %v636, %v700
      %v765 = vmax.f32 %v637, %v701
      %v766 = vmax.f32 %v638, %v702
      %v767 = vmax.f32 %v639, %v703
      %v768 = vmax.f32 %v640, %v704
      %v769 = vmax.f32 %v641, %v705
      %v770 = vmax.f32 %v642, %v706
      %v771 = vmax.f32 %v643, %v707
      %v772 = vmax.f32 %v644, %v708
      %v773 = vmax.f32 %v645, %v709
      %v774 = vmax.f32 %v646, %v710
      %v775 = vmax.f32 %v647, %v711
      %v776 = vmax.f32 %v648, %v712
      %v777 = vmax.f32 %v649, %v713
      %v778 = vmax.f32 %v650, %v714
      %v779 = vmax.f32 %v651, %v715
      %v780 = vmax.f32 %v652, %v716
      %781 = vrot.lane.b32.xlu0 %v429, 64
      %v782 = vpop.permute.xlu0 %781
      %783 = vrot.lane.b32.xlu0 %v430, 64
      %v784 = vpop.permute.xlu0 %783
      %785 = vrot.lane.b32.xlu0 %v431, 64
      %v786 = vpop.permute.xlu0 %785
      %787 = vrot.lane.b32.xlu0 %v432, 64
      %v788 = vpop.permute.xlu0 %787
      %789 = vrot.lane.b32.xlu0 %v433, 64
      %v790 = vpop.permute.xlu0 %789
      %791 = vrot.lane.b32.xlu0 %v434, 64
      %v792 = vpop.permute.xlu0 %791
      %793 = vrot.lane.b32.xlu0 %v435, 64
      %v794 = vpop.permute.xlu0 %793
      %795 = vrot.lane.b32.xlu0 %v436, 64
      %v796 = vpop.permute.xlu0 %795
      %797 = vrot.lane.b32.xlu0 %v437, 64
      %v798 = vpop.permute.xlu0 %797
      %799 = vrot.lane.b32.xlu0 %v438, 64
      %v800 = vpop.permute.xlu0 %799
      %801 = vrot.lane.b32.xlu0 %v439, 64
      %v802 = vpop.permute.xlu0 %801
      %803 = vrot.lane.b32.xlu0 %v440, 64
      %v804 = vpop.permute.xlu0 %803
      %805 = vrot.lane.b32.xlu0 %v441, 64
      %v806 = vpop.permute.xlu0 %805
      %807 = vrot.lane.b32.xlu0 %v442, 64
      %v808 = vpop.permute.xlu0 %807
      %809 = vrot.lane.b32.xlu0 %v443, 64
      %v810 = vpop.permute.xlu0 %809
      %811 = vrot.lane.b32.xlu0 %v444, 64
      %v812 = vpop.permute.xlu0 %811
      %813 = vrot.lane.b32.xlu0 %v445, 64
      %v814 = vpop.permute.xlu0 %813
      %815 = vrot.lane.b32.xlu0 %v446, 64
      %v816 = vpop.permute.xlu0 %815
      %817 = vrot.lane.b32.xlu0 %v447, 64
      %v818 = vpop.permute.xlu0 %817
      %819 = vrot.lane.b32.xlu0 %v448, 64
      %v820 = vpop.permute.xlu0 %819
      %821 = vrot.lane.b32.xlu0 %v449, 64
      %v822 = vpop.permute.xlu0 %821
      %823 = vrot.lane.b32.xlu0 %v450, 64
      %v824 = vpop.permute.xlu0 %823
      %825 = vrot.lane.b32.xlu0 %v451, 64
      %v826 = vpop.permute.xlu0 %825
      %827 = vrot.lane.b32.xlu0 %v452, 64
      %v828 = vpop.permute.xlu0 %827
      %829 = vrot.lane.b32.xlu0 %v453, 64
      %v830 = vpop.permute.xlu0 %829
      %831 = vrot.lane.b32.xlu0 %v454, 64
      %v832 = vpop.permute.xlu0 %831
      %833 = vrot.lane.b32.xlu0 %v455, 64
      %v834 = vpop.permute.xlu0 %833
      %835 = vrot.lane.b32.xlu0 %v456, 64
      %v836 = vpop.permute.xlu0 %835
      %837 = vrot.lane.b32.xlu0 %v457, 64
      %v838 = vpop.permute.xlu0 %837
      %839 = vrot.lane.b32.xlu0 %v458, 64
      %v840 = vpop.permute.xlu0 %839
      %841 = vrot.lane.b32.xlu0 %v459, 64
      %v842 = vpop.permute.xlu0 %841
      %843 = vrot.lane.b32.xlu0 %v460, 64
      %v844 = vpop.permute.xlu0 %843
      %v845 = vrot.slane %v782, 4
      %v846 = vrot.slane %v784, 4
      %v847 = vrot.slane %v786, 4
      %v848 = vrot.slane %v788, 4
      %v849 = vrot.slane %v790, 4
      %v850 = vrot.slane %v792, 4
      %v851 = vrot.slane %v794, 4
      %v852 = vrot.slane %v796, 4
      %v853 = vrot.slane %v798, 4
      %v854 = vrot.slane %v800, 4
      %v855 = vrot.slane %v802, 4
      %v856 = vrot.slane %v804, 4
      %v857 = vrot.slane %v806, 4
      %v858 = vrot.slane %v808, 4
      %v859 = vrot.slane %v810, 4
      %v860 = vrot.slane %v812, 4
      %v861 = vrot.slane %v814, 4
      %v862 = vrot.slane %v816, 4
      %v863 = vrot.slane %v818, 4
      %v864 = vrot.slane %v820, 4
      %v865 = vrot.slane %v822, 4
      %v866 = vrot.slane %v824, 4
      %v867 = vrot.slane %v826, 4
      %v868 = vrot.slane %v828, 4
      %v869 = vrot.slane %v830, 4
      %v870 = vrot.slane %v832, 4
      %v871 = vrot.slane %v834, 4
      %v872 = vrot.slane %v836, 4
      %v873 = vrot.slane %v838, 4
      %v874 = vrot.slane %v840, 4
      %v875 = vrot.slane %v842, 4
      %v876 = vrot.slane %v844, 4
      %909 = vrot.lane.b32.xlu0 %v429, 32
      %v910 = vpop.permute.xlu0 %909
      %911 = vrot.lane.b32.xlu0 %v430, 32
      %v912 = vpop.permute.xlu0 %911
      %913 = vrot.lane.b32.xlu0 %v431, 32
      %v914 = vpop.permute.xlu0 %913
      %915 = vrot.lane.b32.xlu0 %v432, 32
      %v916 = vpop.permute.xlu0 %915
      %917 = vrot.lane.b32.xlu0 %v433, 32
      %v918 = vpop.permute.xlu0 %917
      %919 = vrot.lane.b32.xlu0 %v434, 32
      %v920 = vpop.permute.xlu0 %919
      %921 = vrot.lane.b32.xlu0 %v435, 32
      %v922 = vpop.permute.xlu0 %921
      %923 = vrot.lane.b32.xlu0 %v436, 32
      %v924 = vpop.permute.xlu0 %923
      %925 = vrot.lane.b32.xlu0 %v437, 32
      %v926 = vpop.permute.xlu0 %925
      %927 = vrot.lane.b32.xlu0 %v438, 32
      %v928 = vpop.permute.xlu0 %927
      %929 = vrot.lane.b32.xlu0 %v439, 32
      %v930 = vpop.permute.xlu0 %929
      %931 = vrot.lane.b32.xlu0 %v440, 32
      %v932 = vpop.permute.xlu0 %931
      %933 = vrot.lane.b32.xlu0 %v441, 32
      %v934 = vpop.permute.xlu0 %933
      %935 = vrot.lane.b32.xlu0 %v442, 32
      %v936 = vpop.permute.xlu0 %935
      %937 = vrot.lane.b32.xlu0 %v443, 32
      %v938 = vpop.permute.xlu0 %937
      %939 = vrot.lane.b32.xlu0 %v444, 32
      %v940 = vpop.permute.xlu0 %939
      %941 = vrot.lane.b32.xlu0 %v445, 32
      %v942 = vpop.permute.xlu0 %941
      %943 = vrot.lane.b32.xlu0 %v446, 32
      %v944 = vpop.permute.xlu0 %943
      %945 = vrot.lane.b32.xlu0 %v447, 32
      %v946 = vpop.permute.xlu0 %945
      %947 = vrot.lane.b32.xlu0 %v448, 32
      %v948 = vpop.permute.xlu0 %947
      %949 = vrot.lane.b32.xlu0 %v449, 32
      %v950 = vpop.permute.xlu0 %949
      %951 = vrot.lane.b32.xlu0 %v450, 32
      %v952 = vpop.permute.xlu0 %951
      %953 = vrot.lane.b32.xlu0 %v451, 32
      %v954 = vpop.permute.xlu0 %953
      %955 = vrot.lane.b32.xlu0 %v452, 32
      %v956 = vpop.permute.xlu0 %955
      %957 = vrot.lane.b32.xlu0 %v453, 32
      %v958 = vpop.permute.xlu0 %957
      %959 = vrot.lane.b32.xlu0 %v454, 32
      %v960 = vpop.permute.xlu0 %959
      %961 = vrot.lane.b32.xlu0 %v455, 32
      %v962 = vpop.permute.xlu0 %961
      %963 = vrot.lane.b32.xlu0 %v456, 32
      %v964 = vpop.permute.xlu0 %963
      %965 = vrot.lane.b32.xlu0 %v457, 32
      %v966 = vpop.permute.xlu0 %965
      %967 = vrot.lane.b32.xlu0 %v458, 32
      %v968 = vpop.permute.xlu0 %967
      %969 = vrot.lane.b32.xlu0 %v459, 32
      %v970 = vpop.permute.xlu0 %969
      %971 = vrot.lane.b32.xlu0 %v460, 32
      %v972 = vpop.permute.xlu0 %971
      %v973 = vrot.slane %v910, 4
      %v974 = vrot.slane %v912, 4
      %v975 = vrot.slane %v914, 4
      %v976 = vrot.slane %v916, 4
      %v977 = vrot.slane %v918, 4
      %v978 = vrot.slane %v920, 4
      %v979 = vrot.slane %v922, 4
      %v980 = vrot.slane %v924, 4
      %v981 = vrot.slane %v926, 4
      %v982 = vrot.slane %v928, 4
      %v983 = vrot.slane %v930, 4
      %v984 = vrot.slane %v932, 4
      %v985 = vrot.slane %v934, 4
      %v986 = vrot.slane %v936, 4
      %v987 = vrot.slane %v938, 4
      %v988 = vrot.slane %v940, 4
      %v989 = vrot.slane %v942, 4
      %v990 = vrot.slane %v944, 4
      %v991 = vrot.slane %v946, 4
      %v992 = vrot.slane %v948, 4
      %v993 = vrot.slane %v950, 4
      %v994 = vrot.slane %v952, 4
      %v995 = vrot.slane %v954, 4
      %v996 = vrot.slane %v956, 4
      %v997 = vrot.slane %v958, 4
      %v998 = vrot.slane %v960, 4
      %v999 = vrot.slane %v962, 4
      %v1000 = vrot.slane %v964, 4
      %v1001 = vrot.slane %v966, 4
      %v1002 = vrot.slane %v968, 4
      %v1003 = vrot.slane %v970, 4
      %v1004 = vrot.slane %v972, 4
      %v1037 = vmax.f32 %v845, %v973
      %v1038 = vmax.f32 %v846, %v974
      %v1039 = vmax.f32 %v847, %v975
      %v1040 = vmax.f32 %v848, %v976
      %v1041 = vmax.f32 %v849, %v977
      %v1042 = vmax.f32 %v850, %v978
      %v1043 = vmax.f32 %v851, %v979
      %v1044 = vmax.f32 %v852, %v980
      %v1045 = vmax.f32 %v853, %v981
      %v1046 = vmax.f32 %v854, %v982
      %v1047 = vmax.f32 %v855, %v983
      %v1048 = vmax.f32 %v856, %v984
      %v1049 = vmax.f32 %v857, %v985
      %v1050 = vmax.f32 %v858, %v986
      %v1051 = vmax.f32 %v859, %v987
      %v1052 = vmax.f32 %v860, %v988
      %v1053 = vmax.f32 %v861, %v989
      %v1054 = vmax.f32 %v862, %v990
      %v1055 = vmax.f32 %v863, %v991
      %v1056 = vmax.f32 %v864, %v992
      %v1057 = vmax.f32 %v865, %v993
      %v1058 = vmax.f32 %v866, %v994
      %v1059 = vmax.f32 %v867, %v995
      %v1060 = vmax.f32 %v868, %v996
      %v1061 = vmax.f32 %v869, %v997
      %v1062 = vmax.f32 %v870, %v998
      %v1063 = vmax.f32 %v871, %v999
      %v1064 = vmax.f32 %v872, %v1000
      %v1065 = vmax.f32 %v873, %v1001
      %v1066 = vmax.f32 %v874, %v1002
      %v1067 = vmax.f32 %v875, %v1003
      %v1068 = vmax.f32 %v876, %v1004
      %1101 = vrot.lane.b32.xlu0 %v589, 96
      %v1102 = vpop.permute.xlu0 %1101
      %1103 = vrot.lane.b32.xlu0 %v590, 96
      %v1104 = vpop.permute.xlu0 %1103
      %1105 = vrot.lane.b32.xlu0 %v591, 96
      %v1106 = vpop.permute.xlu0 %1105
      %1107 = vrot.lane.b32.xlu0 %v592, 96
      %v1108 = vpop.permute.xlu0 %1107
      %1109 = vrot.lane.b32.xlu0 %v593, 96
      %v1110 = vpop.permute.xlu0 %1109
      %1111 = vrot.lane.b32.xlu0 %v594, 96
      %v1112 = vpop.permute.xlu0 %1111
      %1113 = vrot.lane.b32.xlu0 %v595, 96
      %v1114 = vpop.permute.xlu0 %1113
      %1115 = vrot.lane.b32.xlu0 %v596, 96
      %v1116 = vpop.permute.xlu0 %1115
      %1117 = vrot.lane.b32.xlu0 %v597, 96
      %v1118 = vpop.permute.xlu0 %1117
      %1119 = vrot.lane.b32.xlu0 %v598, 96
      %v1120 = vpop.permute.xlu0 %1119
      %1121 = vrot.lane.b32.xlu0 %v599, 96
      %v1122 = vpop.permute.xlu0 %1121
      %1123 = vrot.lane.b32.xlu0 %v600, 96
      %v1124 = vpop.permute.xlu0 %1123
      %1125 = vrot.lane.b32.xlu0 %v601, 96
      %v1126 = vpop.permute.xlu0 %1125
      %1127 = vrot.lane.b32.xlu0 %v602, 96
      %v1128 = vpop.permute.xlu0 %1127
      %1129 = vrot.lane.b32.xlu0 %v603, 96
      %v1130 = vpop.permute.xlu0 %1129
      %1131 = vrot.lane.b32.xlu0 %v604, 96
      %v1132 = vpop.permute.xlu0 %1131
      %1133 = vrot.lane.b32.xlu0 %v605, 96
      %v1134 = vpop.permute.xlu0 %1133
      %1135 = vrot.lane.b32.xlu0 %v606, 96
      %v1136 = vpop.permute.xlu0 %1135
      %1137 = vrot.lane.b32.xlu0 %v607, 96
      %v1138 = vpop.permute.xlu0 %1137
      %1139 = vrot.lane.b32.xlu0 %v608, 96
      %v1140 = vpop.permute.xlu0 %1139
      %1141 = vrot.lane.b32.xlu0 %v609, 96
      %v1142 = vpop.permute.xlu0 %1141
      %1143 = vrot.lane.b32.xlu0 %v610, 96
      %v1144 = vpop.permute.xlu0 %1143
      %1145 = vrot.lane.b32.xlu0 %v611, 96
      %v1146 = vpop.permute.xlu0 %1145
      %1147 = vrot.lane.b32.xlu0 %v612, 96
      %v1148 = vpop.permute.xlu0 %1147
      %1149 = vrot.lane.b32.xlu0 %v613, 96
      %v1150 = vpop.permute.xlu0 %1149
      %1151 = vrot.lane.b32.xlu0 %v614, 96
      %v1152 = vpop.permute.xlu0 %1151
      %1153 = vrot.lane.b32.xlu0 %v615, 96
      %v1154 = vpop.permute.xlu0 %1153
      %1155 = vrot.lane.b32.xlu0 %v616, 96
      %v1156 = vpop.permute.xlu0 %1155
      %1157 = vrot.lane.b32.xlu0 %v617, 96
      %v1158 = vpop.permute.xlu0 %1157
      %1159 = vrot.lane.b32.xlu0 %v618, 96
      %v1160 = vpop.permute.xlu0 %1159
      %1161 = vrot.lane.b32.xlu0 %v619, 96
      %v1162 = vpop.permute.xlu0 %1161
      %1163 = vrot.lane.b32.xlu0 %v620, 96
      %v1164 = vpop.permute.xlu0 %1163
      %1229 = vrot.lane.b32.xlu0 %v749, 64
      %v1230 = vpop.permute.xlu0 %1229
      %1231 = vrot.lane.b32.xlu0 %v750, 64
      %v1232 = vpop.permute.xlu0 %1231
      %1233 = vrot.lane.b32.xlu0 %v751, 64
      %v1234 = vpop.permute.xlu0 %1233
      %1235 = vrot.lane.b32.xlu0 %v752, 64
      %v1236 = vpop.permute.xlu0 %1235
      %1237 = vrot.lane.b32.xlu0 %v753, 64
      %v1238 = vpop.permute.xlu0 %1237
      %1239 = vrot.lane.b32.xlu0 %v754, 64
      %v1240 = vpop.permute.xlu0 %1239
      %1241 = vrot.lane.b32.xlu0 %v755, 64
      %v1242 = vpop.permute.xlu0 %1241
      %1243 = vrot.lane.b32.xlu0 %v756, 64
      %v1244 = vpop.permute.xlu0 %1243
      %1245 = vrot.lane.b32.xlu0 %v757, 64
      %v1246 = vpop.permute.xlu0 %1245
      %1247 = vrot.lane.b32.xlu0 %v758, 64
      %v1248 = vpop.permute.xlu0 %1247
      %1249 = vrot.lane.b32.xlu0 %v759, 64
      %v1250 = vpop.permute.xlu0 %1249
      %1251 = vrot.lane.b32.xlu0 %v760, 64
      %v1252 = vpop.permute.xlu0 %1251
      %1253 = vrot.lane.b32.xlu0 %v761, 64
      %v1254 = vpop.permute.xlu0 %1253
      %1255 = vrot.lane.b32.xlu0 %v762, 64
      %v1256 = vpop.permute.xlu0 %1255
      %1257 = vrot.lane.b32.xlu0 %v763, 64
      %v1258 = vpop.permute.xlu0 %1257
      %1259 = vrot.lane.b32.xlu0 %v764, 64
      %v1260 = vpop.permute.xlu0 %1259
      %1261 = vrot.lane.b32.xlu0 %v765, 64
      %v1262 = vpop.permute.xlu0 %1261
      %1263 = vrot.lane.b32.xlu0 %v766, 64
      %v1264 = vpop.permute.xlu0 %1263
      %1265 = vrot.lane.b32.xlu0 %v767, 64
      %v1266 = vpop.permute.xlu0 %1265
      %1267 = vrot.lane.b32.xlu0 %v768, 64
      %v1268 = vpop.permute.xlu0 %1267
      %1269 = vrot.lane.b32.xlu0 %v769, 64
      %v1270 = vpop.permute.xlu0 %1269
      %1271 = vrot.lane.b32.xlu0 %v770, 64
      %v1272 = vpop.permute.xlu0 %1271
      %1273 = vrot.lane.b32.xlu0 %v771, 64
      %v1274 = vpop.permute.xlu0 %1273
      %1275 = vrot.lane.b32.xlu0 %v772, 64
      %v1276 = vpop.permute.xlu0 %1275
      %1277 = vrot.lane.b32.xlu0 %v773, 64
      %v1278 = vpop.permute.xlu0 %1277
      %1279 = vrot.lane.b32.xlu0 %v774, 64
      %v1280 = vpop.permute.xlu0 %1279
      %1281 = vrot.lane.b32.xlu0 %v775, 64
      %v1282 = vpop.permute.xlu0 %1281
      %1283 = vrot.lane.b32.xlu0 %v776, 64
      %v1284 = vpop.permute.xlu0 %1283
      %1285 = vrot.lane.b32.xlu0 %v777, 64
      %v1286 = vpop.permute.xlu0 %1285
      %1287 = vrot.lane.b32.xlu0 %v778, 64
      %v1288 = vpop.permute.xlu0 %1287
      %1289 = vrot.lane.b32.xlu0 %v779, 64
      %v1290 = vpop.permute.xlu0 %1289
      %1291 = vrot.lane.b32.xlu0 %v780, 64
      %v1292 = vpop.permute.xlu0 %1291
      %1357 = vrot.lane.b32.xlu0 %v1037, 96
      %v1358 = vpop.permute.xlu0 %1357
      %1359 = vrot.lane.b32.xlu0 %v1038, 96
      %v1360 = vpop.permute.xlu0 %1359
      %1361 = vrot.lane.b32.xlu0 %v1039, 96
      %v1362 = vpop.permute.xlu0 %1361
      %1363 = vrot.lane.b32.xlu0 %v1040, 96
      %v1364 = vpop.permute.xlu0 %1363
      %1365 = vrot.lane.b32.xlu0 %v1041, 96
      %v1366 = vpop.permute.xlu0 %1365
      %1367 = vrot.lane.b32.xlu0 %v1042, 96
      %v1368 = vpop.permute.xlu0 %1367
      %1369 = vrot.lane.b32.xlu0 %v1043, 96
      %v1370 = vpop.permute.xlu0 %1369
      %1371 = vrot.lane.b32.xlu0 %v1044, 96
      %v1372 = vpop.permute.xlu0 %1371
      %1373 = vrot.lane.b32.xlu0 %v1045, 96
      %v1374 = vpop.permute.xlu0 %1373
      %1375 = vrot.lane.b32.xlu0 %v1046, 96
      %v1376 = vpop.permute.xlu0 %1375
      %1377 = vrot.lane.b32.xlu0 %v1047, 96
      %v1378 = vpop.permute.xlu0 %1377
      %1379 = vrot.lane.b32.xlu0 %v1048, 96
      %v1380 = vpop.permute.xlu0 %1379
      %1381 = vrot.lane.b32.xlu0 %v1049, 96
      %v1382 = vpop.permute.xlu0 %1381
      %1383 = vrot.lane.b32.xlu0 %v1050, 96
      %v1384 = vpop.permute.xlu0 %1383
      %1385 = vrot.lane.b32.xlu0 %v1051, 96
      %v1386 = vpop.permute.xlu0 %1385
      %1387 = vrot.lane.b32.xlu0 %v1052, 96
      %v1388 = vpop.permute.xlu0 %1387
      %1389 = vrot.lane.b32.xlu0 %v1053, 96
      %v1390 = vpop.permute.xlu0 %1389
      %1391 = vrot.lane.b32.xlu0 %v1054, 96
      %v1392 = vpop.permute.xlu0 %1391
      %1393 = vrot.lane.b32.xlu0 %v1055, 96
      %v1394 = vpop.permute.xlu0 %1393
      %1395 = vrot.lane.b32.xlu0 %v1056, 96
      %v1396 = vpop.permute.xlu0 %1395
      %1397 = vrot.lane.b32.xlu0 %v1057, 96
      %v1398 = vpop.permute.xlu0 %1397
      %1399 = vrot.lane.b32.xlu0 %v1058, 96
      %v1400 = vpop.permute.xlu0 %1399
      %1401 = vrot.lane.b32.xlu0 %v1059, 96
      %v1402 = vpop.permute.xlu0 %1401
      %1403 = vrot.lane.b32.xlu0 %v1060, 96
      %v1404 = vpop.permute.xlu0 %1403
      %1405 = vrot.lane.b32.xlu0 %v1061, 96
      %v1406 = vpop.permute.xlu0 %1405
      %1407 = vrot.lane.b32.xlu0 %v1062, 96
      %v1408 = vpop.permute.xlu0 %1407
      %1409 = vrot.lane.b32.xlu0 %v1063, 96
      %v1410 = vpop.permute.xlu0 %1409
      %1411 = vrot.lane.b32.xlu0 %v1064, 96
      %v1412 = vpop.permute.xlu0 %1411
      %1413 = vrot.lane.b32.xlu0 %v1065, 96
      %v1414 = vpop.permute.xlu0 %1413
      %1415 = vrot.lane.b32.xlu0 %v1066, 96
      %v1416 = vpop.permute.xlu0 %1415
      %1417 = vrot.lane.b32.xlu0 %v1067, 96
      %v1418 = vpop.permute.xlu0 %1417
      %1419 = vrot.lane.b32.xlu0 %v1068, 96
      %v1420 = vpop.permute.xlu0 %1419
      %vm1453 = vcmask 261120
      %v1454 = vsel %vm1453, %v589, %v1102
      %v1455 = vsel %vm1453, %v590, %v1104
      %v1456 = vsel %vm1453, %v591, %v1106
      %v1457 = vsel %vm1453, %v592, %v1108
      %v1458 = vsel %vm1453, %v593, %v1110
      %v1459 = vsel %vm1453, %v594, %v1112
      %v1460 = vsel %vm1453, %v595, %v1114
      %v1461 = vsel %vm1453, %v596, %v1116
      %v1462 = vsel %vm1453, %v597, %v1118
      %v1463 = vsel %vm1453, %v598, %v1120
      %v1464 = vsel %vm1453, %v599, %v1122
      %v1465 = vsel %vm1453, %v600, %v1124
      %v1466 = vsel %vm1453, %v601, %v1126
      %v1467 = vsel %vm1453, %v602, %v1128
      %v1468 = vsel %vm1453, %v603, %v1130
      %v1469 = vsel %vm1453, %v604, %v1132
      %v1470 = vsel %vm1453, %v605, %v1134
      %v1471 = vsel %vm1453, %v606, %v1136
      %v1472 = vsel %vm1453, %v607, %v1138
      %v1473 = vsel %vm1453, %v608, %v1140
      %v1474 = vsel %vm1453, %v609, %v1142
      %v1475 = vsel %vm1453, %v610, %v1144
      %v1476 = vsel %vm1453, %v611, %v1146
      %v1477 = vsel %vm1453, %v612, %v1148
      %v1478 = vsel %vm1453, %v613, %v1150
      %v1479 = vsel %vm1453, %v614, %v1152
      %v1480 = vsel %vm1453, %v615, %v1154
      %v1481 = vsel %vm1453, %v616, %v1156
      %v1482 = vsel %vm1453, %v617, %v1158
      %v1483 = vsel %vm1453, %v618, %v1160
      %v1484 = vsel %vm1453, %v619, %v1162
      %v1485 = vsel %vm1453, %v620, %v1164
      %vm1486 = vcmask 523264
      %v1487 = vsel %vm1486, %v1454, %v1230
      %v1488 = vsel %vm1486, %v1455, %v1232
      %v1489 = vsel %vm1486, %v1456, %v1234
      %v1490 = vsel %vm1486, %v1457, %v1236
      %v1491 = vsel %vm1486, %v1458, %v1238
      %v1492 = vsel %vm1486, %v1459, %v1240
      %v1493 = vsel %vm1486, %v1460, %v1242
      %v1494 = vsel %vm1486, %v1461, %v1244
      %v1495 = vsel %vm1486, %v1462, %v1246
      %v1496 = vsel %vm1486, %v1463, %v1248
      %v1497 = vsel %vm1486, %v1464, %v1250
      %v1498 = vsel %vm1486, %v1465, %v1252
      %v1499 = vsel %vm1486, %v1466, %v1254
      %v1500 = vsel %vm1486, %v1467, %v1256
      %v1501 = vsel %vm1486, %v1468, %v1258
      %v1502 = vsel %vm1486, %v1469, %v1260
      %v1503 = vsel %vm1486, %v1470, %v1262
      %v1504 = vsel %vm1486, %v1471, %v1264
      %v1505 = vsel %vm1486, %v1472, %v1266
      %v1506 = vsel %vm1486, %v1473, %v1268
      %v1507 = vsel %vm1486, %v1474, %v1270
      %v1508 = vsel %vm1486, %v1475, %v1272
      %v1509 = vsel %vm1486, %v1476, %v1274
      %v1510 = vsel %vm1486, %v1477, %v1276
      %v1511 = vsel %vm1486, %v1478, %v1278
      %v1512 = vsel %vm1486, %v1479, %v1280
      %v1513 = vsel %vm1486, %v1480, %v1282
      %v1514 = vsel %vm1486, %v1481, %v1284
      %v1515 = vsel %vm1486, %v1482, %v1286
      %v1516 = vsel %vm1486, %v1483, %v1288
      %v1517 = vsel %vm1486, %v1484, %v1290
      %v1518 = vsel %vm1486, %v1485, %v1292
      %vm1519 = vcmask 785408
      %v1520 = vsel %vm1519, %v1487, %v1358
      %v1521 = vsel %vm1519, %v1488, %v1360
      %v1522 = vsel %vm1519, %v1489, %v1362
      %v1523 = vsel %vm1519, %v1490, %v1364
      %v1524 = vsel %vm1519, %v1491, %v1366
      %v1525 = vsel %vm1519, %v1492, %v1368
      %v1526 = vsel %vm1519, %v1493, %v1370
      %v1527 = vsel %vm1519, %v1494, %v1372
      %v1528 = vsel %vm1519, %v1495, %v1374
      %v1529 = vsel %vm1519, %v1496, %v1376
      %v1530 = vsel %vm1519, %v1497, %v1378
      %v1531 = vsel %vm1519, %v1498, %v1380
      %v1532 = vsel %vm1519, %v1499, %v1382
      %v1533 = vsel %vm1519, %v1500, %v1384
      %v1534 = vsel %vm1519, %v1501, %v1386
      %v1535 = vsel %vm1519, %v1502, %v1388
      %v1536 = vsel %vm1519, %v1503, %v1390
      %v1537 = vsel %vm1519, %v1504, %v1392
      %v1538 = vsel %vm1519, %v1505, %v1394
      %v1539 = vsel %vm1519, %v1506, %v1396
      %v1540 = vsel %vm1519, %v1507, %v1398
      %v1541 = vsel %vm1519, %v1508, %v1400
      %v1542 = vsel %vm1519, %v1509, %v1402
      %v1543 = vsel %vm1519, %v1510, %v1404
      %v1544 = vsel %vm1519, %v1511, %v1406
      %v1545 = vsel %vm1519, %v1512, %v1408
      %v1546 = vsel %vm1519, %v1513, %v1410
      %v1547 = vsel %vm1519, %v1514, %v1412
      %v1548 = vsel %vm1519, %v1515, %v1414
      %v1549 = vsel %vm1519, %v1516, %v1416
      %v1550 = vsel %vm1519, %v1517, %v1418
      %v1551 = vsel %vm1519, %v1518, %v1420
      %v1552 = vmax.f32 %v1520, 0.0
      %v1553 = vmax.f32 %v1521, 0.0
      %v1554 = vmax.f32 %v1522, 0.0
      %v1555 = vmax.f32 %v1523, 0.0
      %v1556 = vmax.f32 %v1524, 0.0
      %v1557 = vmax.f32 %v1525, 0.0
      %v1558 = vmax.f32 %v1526, 0.0
      %v1559 = vmax.f32 %v1527, 0.0
      %v1560 = vmax.f32 %v1528, 0.0
      %v1561 = vmax.f32 %v1529, 0.0
      %v1562 = vmax.f32 %v1530, 0.0
      %v1563 = vmax.f32 %v1531, 0.0
      %v1564 = vmax.f32 %v1532, 0.0
      %v1565 = vmax.f32 %v1533, 0.0
      %v1566 = vmax.f32 %v1534, 0.0
      %v1567 = vmax.f32 %v1535, 0.0
      %v1568 = vmax.f32 %v1536, 0.0
      %v1569 = vmax.f32 %v1537, 0.0
      %v1570 = vmax.f32 %v1538, 0.0
      %v1571 = vmax.f32 %v1539, 0.0
      %v1572 = vmax.f32 %v1540, 0.0
      %v1573 = vmax.f32 %v1541, 0.0
      %v1574 = vmax.f32 %v1542, 0.0
      %v1575 = vmax.f32 %v1543, 0.0
      %v1576 = vmax.f32 %v1544, 0.0
      %v1577 = vmax.f32 %v1545, 0.0
      %v1578 = vmax.f32 %v1546, 0.0
      %v1579 = vmax.f32 %v1547, 0.0
      %v1580 = vmax.f32 %v1548, 0.0
      %v1581 = vmax.f32 %v1549, 0.0
      %v1582 = vmax.f32 %v1550, 0.0
      %v1583 = vmax.f32 %v1551, 0.0
      %1584 = vst [vmem:[%s211] sm:$0xf] %v1552
      %1585 = vst [vmem:[%s211 + $0x4] sm:$0xf] %v1553
      %1586 = vst [vmem:[%s211 + $0x8] sm:$0xf] %v1554
      %1587 = vst [vmem:[%s211 + $0xc] sm:$0xf] %v1555
      %1588 = vst [vmem:[%s211 + $0x10] sm:$0xf] %v1556
      %1589 = vst [vmem:[%s211 + $0x14] sm:$0xf] %v1557
      %1590 = vst [vmem:[%s211 + $0x18] sm:$0xf] %v1558
      %1591 = vst [vmem:[%s211 + $0x1c] sm:$0xf] %v1559
      %1592 = vst [vmem:[%s211 + $0x20] sm:$0xf] %v1560
      %1593 = vst [vmem:[%s211 + $0x24] sm:$0xf] %v1561
      %1594 = vst [vmem:[%s211 + $0x28] sm:$0xf] %v1562
      %1595 = vst [vmem:[%s211 + $0x2c] sm:$0xf] %v1563
      %1596 = vst [vmem:[%s211 + $0x30] sm:$0xf] %v1564
      %1597 = vst [vmem:[%s211 + $0x34] sm:$0xf] %v1565
      %1598 = vst [vmem:[%s211 + $0x38] sm:$0xf] %v1566
      %1599 = vst [vmem:[%s211 + $0x3c] sm:$0xf] %v1567
      %1600 = vst [vmem:[%s211 + $0x40] sm:$0xf] %v1568
      %1601 = vst [vmem:[%s211 + $0x44] sm:$0xf] %v1569
      %1602 = vst [vmem:[%s211 + $0x48] sm:$0xf] %v1570
      %1603 = vst [vmem:[%s211 + $0x4c] sm:$0xf] %v1571
      %1604 = vst [vmem:[%s211 + $0x50] sm:$0xf] %v1572
      %1605 = vst [vmem:[%s211 + $0x54] sm:$0xf] %v1573
      %1606 = vst [vmem:[%s211 + $0x58] sm:$0xf] %v1574
      %1607 = vst [vmem:[%s211 + $0x5c] sm:$0xf] %v1575
      %1608 = vst [vmem:[%s211 + $0x60] sm:$0xf] %v1576
      %1609 = vst [vmem:[%s211 + $0x64] sm:$0xf] %v1577
      %1610 = vst [vmem:[%s211 + $0x68] sm:$0xf] %v1578
      %1611 = vst [vmem:[%s211 + $0x6c] sm:$0xf] %v1579
      %1612 = vst [vmem:[%s211 + $0x70] sm:$0xf] %v1580
      %1613 = vst [vmem:[%s211 + $0x74] sm:$0xf] %v1581
      %1614 = vst [vmem:[%s211 + $0x78] sm:$0xf] %v1582
      %1615 = vst [vmem:[%s211 + $0x7c] sm:$0xf] %v1583
      %s1616 = smul.u32 2, %s14
      %p1617 = scmp.lt.s32.totalorder %s1616, 7
      %s1618 = scalar_select %p1617, %s1616, 7
      %s1619 = smul.addr %s1618, 16
      %s1620 = smul.addr %s1619, 4
      %s1621 = scalar_lea.vmem %s3, %s1620
      // Predicated region
      $region33: #{batch_ensemble_cnn_forward.6} parent=31 // pred_check
        %p1622 = pneg %p110
      $region34: #{batch_ensemble_cnn_forward.6} parent=31 // pred_check_branch
        %1624 = sbr.rel (%p1622) target = $region36
      $region35: #{batch_ensemble_cnn_forward.6} parent=31 // pred_region
        %s1625 = smul.u32 2, %s14
      $region36: #{batch_ensemble_cnn_forward.6} parent=31 // pred_fallthru
        _
    $region32: #{batch_ensemble_cnn_forward.6} parent=5 // pred_fallthru
      _
    %p1626 = scmp.le.s32.totalorder 2, %s9
    // Predicated region
    $region37: #{batch_ensemble_cnn_forward.6} parent=5 // pred_check
      %p1627 = pneg %p1626
    $region38: #{batch_ensemble_cnn_forward.6} parent=5 // pred_check_branch
      %1629 = sbr.rel (%p1627) target = $region40
    $region39: #{batch_ensemble_cnn_forward.6} parent=5 // pred_region
      %s1630 = ssub.s32 %s9, 2
      // Predicated region
      $region41: #{batch_ensemble_cnn_forward.6} parent=39 // pred_check
        %p1631 = pneg %p116
      $region42: #{batch_ensemble_cnn_forward.6} parent=39 // pred_check_branch
        %1633 = sbr.rel (%p1631) target = $region44
      $region43: #{batch_ensemble_cnn_forward.6} parent=39 // pred_region
        %s1634 = smul.u32 2, %s15
        %p1635 = scmp.lt.s32.totalorder %s1634, 7
        %s1636 = scalar_select %p1635, %s1634, 7
        %s1637 = smul.addr %s1636, 16
        %s1638 = smul.addr %s1637, 4
        %s1639 = scalar_lea.vmem %s3, %s1638
      $region44: #{batch_ensemble_cnn_forward.6} parent=39 // pred_fallthru
        _
    $region40: #{batch_ensemble_cnn_forward.6} parent=5 // pred_fallthru
      _
  $region6: #{batch_ensemble_cnn_forward.6} parent=0 // loop_footer
    %s13 = sadd.s32 1, %s9
  $region7: #{batch_ensemble_cnn_forward.6} parent=0 // loop_footer_branch
    %8 = sbr.rel target = $region3
  $region8: #{batch_ensemble_cnn_forward.6} parent=0 // loop_exit
    _

// kernel: batch_ensemble_cnn_forward.5
$region0: #{batch_ensemble_cnn_forward.5}
  #allocation0 [shape = 'u32[]', space=smem, size = 0x4, offset = 0x4, fixed_abs, tag = 'smem constant byte address 0x4 - core index']
  #allocation1 [shape = 'u32[144,128]{1,0:T(1,128)}', space=vmem, size = 0x12000, scoped, tag = 'internal scratch']
  %s0 = inlined_call_operand.vmem [shape: f32[4,2048,27], index: 0, kind: input, shape index: {}]
  %s1 = inlined_call_operand.vmem [shape: f32[4,27,32], index: 1, kind: input, shape index: {}]
  %s2 = inlined_call_operand.vmem [shape: f32[4,1,32], index: 2, kind: input, shape index: {}]
  %s3 = inlined_call_operand.vmem [shape: f32[4,2048,32], index: 3, kind: output, shape index: {0}]
  %s4 = inlined_call_operand.vmem [shape: f32[4,1,32], index: 4, kind: output, shape index: {1}]
  %s5 = inlined_call_operand.vmem [shape: f32[4,1,32], index: 5, kind: output, shape index: {2}]
  %6 = xla_tuple %s3, %s4, %s5
  %s7 = sld [smem:[#allocation0]]
  $region61: #{batch_ensemble_cnn_forward.5} parent=0
    _
  %s9 = ssub.s32 1, %s7
  %s10 = scalar_select 0, %s9, %s7
  loop: start=0, step=1, limit=6
  $region2: #{batch_ensemble_cnn_forward.5} parent=0 // loop_pre_header
    _
  $region3: #{batch_ensemble_cnn_forward.5} parent=0 // loop_header
    %s12 = sphi 0, %s16
    %p13 = scmp.ge.s32.totalorder %s12, 6
    %s22 = sphi 0, %s24
    %s25 = sphi 0, %s22
    %s26 = sphi 0, %s25
    %s42 = sphi 0, %s26
    %s48 = sphi 0, %s50
    %s51 = sphi 0, %s48
    %s52 = sphi 0, %s51
    %s68 = sphi 0, %s52
    %s74 = sphi 0, %s76
    %s77 = sphi 0, %s74
    %s78 = sphi 0, %s77
    %s94 = sphi 0, %s78
    %s100 = sphi 0, %s102
    %s103 = sphi 0, %s100
    %s104 = sphi 0, %s103
    %s120 = sphi 0, %s104
    %s126 = sphi 0, %s128
    %s129 = sphi 0, %s126
    %s130 = sphi 0, %s129
    %s146 = sphi 0, %s130
    %s152 = sphi 0, %s154
    %s155 = sphi 0, %s152
    %s156 = sphi 0, %s155
    %s172 = sphi 0, %s156
  $region4: #{batch_ensemble_cnn_forward.5} parent=0 // loop_header_branch
    %15 = sbr.rel (%p13) target = $region8
  $region5: #{batch_ensemble_cnn_forward.5} parent=0 // loop_body
    %s17 = ssub.s32 %s12, 1
    %s18 = ssub.s32 %s12, 2
    %s19 = sadd.s32 %s12, 1
    %s20 = ssub.s32 %s12, %s19
    %p21 = scmp.eq.s32.totalorder %s20, 0
    %s23 = sadd.s32 %s22, 1
    %s24 = scalar_select %p21, %s22, %s23
    %p27 = pneg %p21
    %p28 = scmp.eq.s32.totalorder %s12, 3
    %p29 = por %p27, %p28
    %p30 = scmp.ne.s32.totalorder %s22, %s25
    %p31 = scmp.eq.s32.totalorder %s12, 0
    %p32 = por %p30, %p31
    %p33 = scmp.ne.s32.totalorder %s22, %s25
    %p34 = scmp.eq.s32.totalorder %s17, 3
    %p35 = por %p33, %p34
    %p36 = scmp.ne.s32.totalorder %s25, %s26
    %p37 = scmp.eq.s32.totalorder %s17, 0
    %p38 = por %p36, %p37
    %p39 = scmp.ne.s32.totalorder %s25, %s26
    %p40 = scmp.eq.s32.totalorder %s18, 3
    %p41 = por %p39, %p40
    %p43 = scmp.ne.s32.totalorder %s26, %s42
    %p44 = scmp.eq.s32.totalorder %s18, 0
    %p45 = por %p43, %p44
    %s46 = ssub.s32 %s12, %s19
    %p47 = scmp.eq.s32.totalorder %s46, 0
    %s49 = sadd.s32 %s48, 1
    %s50 = scalar_select %p47, %s48, %s49
    %p53 = pneg %p47
    %p54 = scmp.eq.s32.totalorder %s12, 3
    %p55 = por %p53, %p54
    %p56 = scmp.ne.s32.totalorder %s48, %s51
    %p57 = scmp.eq.s32.totalorder %s12, 0
    %p58 = por %p56, %p57
    %p59 = scmp.ne.s32.totalorder %s48, %s51
    %p60 = scmp.eq.s32.totalorder %s17, 3
    %p61 = por %p59, %p60
    %p62 = scmp.ne.s32.totalorder %s51, %s52
    %p63 = scmp.eq.s32.totalorder %s17, 0
    %p64 = por %p62, %p63
    %p65 = scmp.ne.s32.totalorder %s51, %s52
    %p66 = scmp.eq.s32.totalorder %s18, 3
    %p67 = por %p65, %p66
    %p69 = scmp.ne.s32.totalorder %s52, %s68
    %p70 = scmp.eq.s32.totalorder %s18, 0
    %p71 = por %p69, %p70
    %s72 = ssub.s32 %s12, %s19
    %p73 = scmp.eq.s32.totalorder %s72, 0
    %s75 = sadd.s32 %s74, 1
    %s76 = scalar_select %p73, %s74, %s75
    %p79 = pneg %p73
    %p80 = scmp.eq.s32.totalorder %s12, 3
    %p81 = por %p79, %p80
    %p82 = scmp.ne.s32.totalorder %s74, %s77
    %p83 = scmp.eq.s32.totalorder %s12, 0
    %p84 = por %p82, %p83
    %p85 = scmp.ne.s32.totalorder %s74, %s77
    %p86 = scmp.eq.s32.totalorder %s17, 3
    %p87 = por %p85, %p86
    %p88 = scmp.ne.s32.totalorder %s77, %s78
    %p89 = scmp.eq.s32.totalorder %s17, 0
    %p90 = por %p88, %p89
    %p91 = scmp.ne.s32.totalorder %s77, %s78
    %p92 = scmp.eq.s32.totalorder %s18, 3
    %p93 = por %p91, %p92
    %p95 = scmp.ne.s32.totalorder %s78, %s94
    %p96 = scmp.eq.s32.totalorder %s18, 0
    %p97 = por %p95, %p96
    %s98 = ssub.s32 %s12, %s19
    %p99 = scmp.eq.s32.totalorder %s98, 0
    %s101 = sadd.s32 %s100, 1
    %s102 = scalar_select %p99, %s100, %s101
    %p105 = pneg %p99
    %p106 = scmp.eq.s32.totalorder %s12, 3
    %p107 = por %p105, %p106
    %p108 = scmp.ne.s32.totalorder %s100, %s103
    %p109 = scmp.eq.s32.totalorder %s12, 0
    %p110 = por %p108, %p109
    %p111 = scmp.ne.s32.totalorder %s100, %s103
    %p112 = scmp.eq.s32.totalorder %s17, 3
    %p113 = por %p111, %p112
    %p114 = scmp.ne.s32.totalorder %s103, %s104
    %p115 = scmp.eq.s32.totalorder %s17, 0
    %p116 = por %p114, %p115
    %p117 = scmp.ne.s32.totalorder %s103, %s104
    %p118 = scmp.eq.s32.totalorder %s18, 3
    %p119 = por %p117, %p118
    %p121 = scmp.ne.s32.totalorder %s104, %s120
    %p122 = scmp.eq.s32.totalorder %s18, 0
    %p123 = por %p121, %p122
    %s124 = ssub.s32 %s12, %s19
    %p125 = scmp.eq.s32.totalorder %s124, 0
    %s127 = sadd.s32 %s126, 1
    %s128 = scalar_select %p125, %s126, %s127
    %p131 = pneg %p125
    %p132 = scmp.eq.s32.totalorder %s12, 3
    %p133 = por %p131, %p132
    %p134 = scmp.ne.s32.totalorder %s126, %s129
    %p135 = scmp.eq.s32.totalorder %s12, 0
    %p136 = por %p134, %p135
    %p137 = scmp.ne.s32.totalorder %s126, %s129
    %p138 = scmp.eq.s32.totalorder %s17, 3
    %p139 = por %p137, %p138
    %p140 = scmp.ne.s32.totalorder %s129, %s130
    %p141 = scmp.eq.s32.totalorder %s17, 0
    %p142 = por %p140, %p141
    %p143 = scmp.ne.s32.totalorder %s129, %s130
    %p144 = scmp.eq.s32.totalorder %s18, 3
    %p145 = por %p143, %p144
    %p147 = scmp.ne.s32.totalorder %s130, %s146
    %p148 = scmp.eq.s32.totalorder %s18, 0
    %p149 = por %p147, %p148
    %s150 = ssub.s32 %s12, %s19
    %p151 = scmp.eq.s32.totalorder %s150, 0
    %s153 = sadd.s32 %s152, 1
    %s154 = scalar_select %p151, %s152, %s153
    %p157 = pneg %p151
    %p158 = scmp.eq.s32.totalorder %s12, 3
    %p159 = por %p157, %p158
    %p160 = scmp.ne.s32.totalorder %s152, %s155
    %p161 = scmp.eq.s32.totalorder %s12, 0
    %p162 = por %p160, %p161
    %p163 = scmp.ne.s32.totalorder %s152, %s155
    %p164 = scmp.eq.s32.totalorder %s17, 3
    %p165 = por %p163, %p164
    %p166 = scmp.ne.s32.totalorder %s155, %s156
    %p167 = scmp.eq.s32.totalorder %s17, 0
    %p168 = por %p166, %p167
    %p169 = scmp.ne.s32.totalorder %s155, %s156
    %p170 = scmp.eq.s32.totalorder %s18, 3
    %p171 = por %p169, %p170
    %p173 = scmp.ne.s32.totalorder %s156, %s172
    %p174 = scmp.eq.s32.totalorder %s18, 0
    %p175 = por %p173, %p174
    %p176 = scmp.le.s32.totalorder 1, %s12
    %p177 = scmp.lt.s32.totalorder %s12, 5
    %p178 = pnand %p176, %p177
    %p179 = pneg %p178
    // Predicated region
    $region9: #{batch_ensemble_cnn_forward.5} parent=5 // pred_check
      _
    $region10: #{batch_ensemble_cnn_forward.5} parent=5 // pred_check_branch
      %181 = sbr.rel (%p178) target = $region12
    $region11: #{batch_ensemble_cnn_forward.5} parent=5 // pred_region
      %s182 = ssub.s32 %s12, 1
    $region12: #{batch_ensemble_cnn_forward.5} parent=5 // pred_fallthru
      _
    %p183 = scmp.lt.s32.totalorder %s12, 4
    // Predicated region
    $region13: #{batch_ensemble_cnn_forward.5} parent=5 // pred_check
      %p184 = pneg %p183
    $region14: #{batch_ensemble_cnn_forward.5} parent=5 // pred_check_branch
      %186 = sbr.rel (%p184) target = $region16
    $region15: #{batch_ensemble_cnn_forward.5} parent=5 // pred_region
      // Predicated region
      $region17: #{batch_ensemble_cnn_forward.5} parent=15 // pred_check
        %p187 = pneg %p32
      $region18: #{batch_ensemble_cnn_forward.5} parent=15 // pred_check_branch
        %189 = sbr.rel (%p187) target = $region20
      $region19: #{batch_ensemble_cnn_forward.5} parent=15 // pred_region
        %p190 = scmp.lt.s32.totalorder %s12, 3
        %s191 = scalar_select %p190, %s12, 3
        %s192 = smul.addr %s191, 256
        %s193 = smul.addr %s192, 8
        %s194 = scalar_lea.vmem %s0, %s193
      $region20: #{batch_ensemble_cnn_forward.5} parent=15 // pred_fallthru
        _
      // Predicated region
      $region21: #{batch_ensemble_cnn_forward.5} parent=15 // pred_check
        %p195 = pneg %p58
      $region22: #{batch_ensemble_cnn_forward.5} parent=15 // pred_check_branch
        %197 = sbr.rel (%p195) target = $region24
      $region23: #{batch_ensemble_cnn_forward.5} parent=15 // pred_region
        %p198 = scmp.lt.s32.totalorder %s12, 3
        %s199 = scalar_select %p198, %s12, 3
        %s200 = smul.addr %s199, 4
        %s201 = smul.addr %s200, 8
        %s202 = scalar_lea.vmem %s1, %s201
      $region24: #{batch_ensemble_cnn_forward.5} parent=15 // pred_fallthru
        _
      // Predicated region
      $region25: #{batch_ensemble_cnn_forward.5} parent=15 // pred_check
        %p203 = pneg %p84
      $region26: #{batch_ensemble_cnn_forward.5} parent=15 // pred_check_branch
        %205 = sbr.rel (%p203) target = $region28
      $region27: #{batch_ensemble_cnn_forward.5} parent=15 // pred_region
        %p206 = scmp.lt.s32.totalorder %s12, 3
        %s207 = scalar_select %p206, %s12, 3
        %s208 = scalar_lea.vmem %s2, %s207
      $region28: #{batch_ensemble_cnn_forward.5} parent=15 // pred_fallthru
        _
    $region16: #{batch_ensemble_cnn_forward.5} parent=5 // pred_fallthru
      _
    %p209 = scmp.le.s32.totalorder 1, %s12
    %p210 = scmp.lt.s32.totalorder %s12, 5
    %p211 = pnand %p209, %p210
    %p212 = pneg %p211
    // Predicated region
    $region29: #{batch_ensemble_cnn_forward.5} parent=5 // pred_check
      _
    $region30: #{batch_ensemble_cnn_forward.5} parent=5 // pred_check_branch
      %214 = sbr.rel (%p211) target = $region32
    $region31: #{batch_ensemble_cnn_forward.5} parent=5 // pred_region
      %s215 = ssub.s32 %s12, 1
      %p216 = scmp.lt.s32.totalorder %s17, 3
      %s217 = scalar_select %p216, %s17, 3
      %s218 = smul.addr %s217, 256
      %s219 = smul.addr %s218, 8
      %s220 = scalar_lea.vmem %s0, %s219
      %p221 = pneg %p38
      %p222 = pneg %p35
      %p223 = scmp.lt.s32.totalorder %s17, 3
      %s224 = scalar_select %p223, %s17, 3
      %s225 = smul.addr %s224, 4
      %s226 = smul.addr %s225, 8
      %s227 = scalar_lea.vmem %s1, %s226
      %p228 = pneg %p64
      %p229 = pneg %p61
      %p230 = scmp.lt.s32.totalorder %s17, 3
      %s231 = scalar_select %p230, %s17, 3
      %s232 = scalar_lea.vmem %s2, %s231
      %p233 = pneg %p90
      %p234 = pneg %p87
      %p235 = pneg %p116
      %p236 = pneg %p113
      %p237 = scmp.lt.s32.totalorder %s17, 3
      %s238 = scalar_select %p237, %s17, 3
      %s239 = smul.addr %s238, 256
      %s240 = smul.addr %s239, 8
      %s241 = scalar_lea.vmem %s3, %s240
      %p242 = pneg %p142
      %p243 = pneg %p139
      %p244 = scmp.lt.s32.totalorder %s17, 3
      %s245 = scalar_select %p244, %s17, 3
      %s246 = scalar_lea.vmem %s4, %s245
      %p247 = pneg %p168
      %p248 = pneg %p165
      %p249 = scmp.lt.s32.totalorder %s17, 3
      %s250 = scalar_select %p249, %s17, 3
      %s251 = scalar_lea.vmem %s5, %s250
      %p252 = scmp.lt.s32.totalorder %s17, 3
      %s253 = scalar_select %p252, %s17, 3
      %s254 = smul.addr %s253, 256
      %s255 = smul.addr %s254, 8
      %s256 = scalar_lea.vmem %s0, %s255
      %p257 = scmp.lt.s32.totalorder %s17, 3
      %s258 = scalar_select %p257, %s17, 3
      %s259 = smul.addr %s258, 4
      %s260 = smul.addr %s259, 8
      %s261 = scalar_lea.vmem %s1, %s260
      %p262 = scmp.lt.s32.totalorder %s17, 3
      %s263 = scalar_select %p262, %s17, 3
      %s264 = scalar_lea.vmem %s2, %s263
      %p265 = scmp.lt.s32.totalorder %s17, 3
      %s266 = scalar_select %p265, %s17, 3
      %s267 = smul.addr %s266, 256
      %s268 = smul.addr %s267, 8
      %s269 = scalar_lea.vmem %s3, %s268
      %p270 = scmp.lt.s32.totalorder %s17, 3
      %s271 = scalar_select %p270, %s17, 3
      %s272 = scalar_lea.vmem %s4, %s271
      %p273 = scmp.lt.s32.totalorder %s17, 3
      %s274 = scalar_select %p273, %s17, 3
      %s275 = scalar_lea.vmem %s5, %s274
      %v276 = vld [vmem:[%s256] sm:$0xff]
      %v277 = vld [vmem:[%s256 + $0x8] sm:$0xff]
      %v278 = vld [vmem:[%s256 + $0x10] sm:$0xff]
      %v279 = vld [vmem:[%s256 + $0x18] sm:$0xff]
      %v280 = vld [vmem:[%s256 + $0x20] sm:$0xff]
      %v281 = vld [vmem:[%s256 + $0x28] sm:$0xff]
      %v282 = vld [vmem:[%s256 + $0x30] sm:$0xff]
      %v283 = vld [vmem:[%s256 + $0x38] sm:$0xff]
      %v284 = vld [vmem:[%s256 + $0x40] sm:$0xff]
      %v285 = vld [vmem:[%s256 + $0x48] sm:$0xff]
      %v286 = vld [vmem:[%s256 + $0x50] sm:$0xff]
      %v287 = vld [vmem:[%s256 + $0x58] sm:$0xff]
      %v288 = vld [vmem:[%s256 + $0x60] sm:$0xff]
      %v289 = vld [vmem:[%s256 + $0x68] sm:$0xff]
      %v290 = vld [vmem:[%s256 + $0x70] sm:$0xff]
      %v291 = vld [vmem:[%s256 + $0x78] sm:$0xff]
      %v292 = vld [vmem:[%s256 + $0x80] sm:$0xff]
      %v293 = vld [vmem:[%s256 + $0x88] sm:$0xff]
      %v294 = vld [vmem:[%s256 + $0x90] sm:$0xff]
      %v295 = vld [vmem:[%s256 + $0x98] sm:$0xff]
      %v296 = vld [vmem:[%s256 + $0xa0] sm:$0xff]
      %v297 = vld [vmem:[%s256 + $0xa8] sm:$0xff]
      %v298 = vld [vmem:[%s256 + $0xb0] sm:$0xff]
      %v299 = vld [vmem:[%s256 + $0xb8] sm:$0xff]
      %v300 = vld [vmem:[%s256 + $0xc0] sm:$0xff]
      %v301 = vld [vmem:[%s256 + $0xc8] sm:$0xff]
      %v302 = vld [vmem:[%s256 + $0xd0] sm:$0xff]
      %v303 = vld [vmem:[%s256 + $0xd8] sm:$0xff]
      %v304 = vld [vmem:[%s256 + $0xe0] sm:$0xff]
      %v305 = vld [vmem:[%s256 + $0xe8] sm:$0xff]
      %v306 = vld [vmem:[%s256 + $0xf0] sm:$0xff]
      %v307 = vld [vmem:[%s256 + $0xf8] sm:$0xff]
      %v308 = vld [vmem:[%s256 + $0x100] sm:$0xff]
      %v309 = vld [vmem:[%s256 + $0x108] sm:$0xff]
      %v310 = vld [vmem:[%s256 + $0x110] sm:$0xff]
      %v311 = vld [vmem:[%s256 + $0x118] sm:$0xff]
      %v312 = vld [vmem:[%s256 + $0x120] sm:$0xff]
      %v313 = vld [vmem:[%s256 + $0x128] sm:$0xff]
      %v314 = vld [vmem:[%s256 + $0x130] sm:$0xff]
      %v315 = vld [vmem:[%s256 + $0x138] sm:$0xff]
      %v316 = vld [vmem:[%s256 + $0x140] sm:$0xff]
      %v317 = vld [vmem:[%s256 + $0x148] sm:$0xff]
      %v318 = vld [vmem:[%s256 + $0x150] sm:$0xff]
      %v319 = vld [vmem:[%s256 + $0x158] sm:$0xff]
      %v320 = vld [vmem:[%s256 + $0x160] sm:$0xff]
      %v321 = vld [vmem:[%s256 + $0x168] sm:$0xff]
      %v322 = vld [vmem:[%s256 + $0x170] sm:$0xff]
      %v323 = vld [vmem:[%s256 + $0x178] sm:$0xff]
      %v324 = vld [vmem:[%s256 + $0x180] sm:$0xff]
      %v325 = vld [vmem:[%s256 + $0x188] sm:$0xff]
      %v326 = vld [vmem:[%s256 + $0x190] sm:$0xff]
      %v327 = vld [vmem:[%s256 + $0x198] sm:$0xff]
      %v328 = vld [vmem:[%s256 + $0x1a0] sm:$0xff]
      %v329 = vld [vmem:[%s256 + $0x1a8] sm:$0xff]
      %v330 = vld [vmem:[%s256 + $0x1b0] sm:$0xff]
      %v331 = vld [vmem:[%s256 + $0x1b8] sm:$0xff]
      %v332 = vld [vmem:[%s256 + $0x1c0] sm:$0xff]
      %v333 = vld [vmem:[%s256 + $0x1c8] sm:$0xff]
      %v334 = vld [vmem:[%s256 + $0x1d0] sm:$0xff]
      %v335 = vld [vmem:[%s256 + $0x1d8] sm:$0xff]
      %v336 = vld [vmem:[%s256 + $0x1e0] sm:$0xff]
      %v337 = vld [vmem:[%s256 + $0x1e8] sm:$0xff]
      %v338 = vld [vmem:[%s256 + $0x1f0] sm:$0xff]
      %v339 = vld [vmem:[%s256 + $0x1f8] sm:$0xff]
      %v340 = vld [vmem:[%s256 + $0x200] sm:$0xff]
      %v341 = vld [vmem:[%s256 + $0x208] sm:$0xff]
      %v342 = vld [vmem:[%s256 + $0x210] sm:$0xff]
      %v343 = vld [vmem:[%s256 + $0x218] sm:$0xff]
      %v344 = vld [vmem:[%s256 + $0x220] sm:$0xff]
      %v345 = vld [vmem:[%s256 + $0x228] sm:$0xff]
      %v346 = vld [vmem:[%s256 + $0x230] sm:$0xff]
      %v347 = vld [vmem:[%s256 + $0x238] sm:$0xff]
      %v348 = vld [vmem:[%s256 + $0x240] sm:$0xff]
      %v349 = vld [vmem:[%s256 + $0x248] sm:$0xff]
      %v350 = vld [vmem:[%s256 + $0x250] sm:$0xff]
      %v351 = vld [vmem:[%s256 + $0x258] sm:$0xff]
      %v352 = vld [vmem:[%s256 + $0x260] sm:$0xff]
      %v353 = vld [vmem:[%s256 + $0x268] sm:$0xff]
      %v354 = vld [vmem:[%s256 + $0x270] sm:$0xff]
      %v355 = vld [vmem:[%s256 + $0x278] sm:$0xff]
      %v356 = vld [vmem:[%s256 + $0x280] sm:$0xff]
      %v357 = vld [vmem:[%s256 + $0x288] sm:$0xff]
      %v358 = vld [vmem:[%s256 + $0x290] sm:$0xff]
      %v359 = vld [vmem:[%s256 + $0x298] sm:$0xff]
      %v360 = vld [vmem:[%s256 + $0x2a0] sm:$0xff]
      %v361 = vld [vmem:[%s256 + $0x2a8] sm:$0xff]
      %v362 = vld [vmem:[%s256 + $0x2b0] sm:$0xff]
      %v363 = vld [vmem:[%s256 + $0x2b8] sm:$0xff]
      %v364 = vld [vmem:[%s256 + $0x2c0] sm:$0xff]
      %v365 = vld [vmem:[%s256 + $0x2c8] sm:$0xff]
      %v366 = vld [vmem:[%s256 + $0x2d0] sm:$0xff]
      %v367 = vld [vmem:[%s256 + $0x2d8] sm:$0xff]
      %v368 = vld [vmem:[%s256 + $0x2e0] sm:$0xff]
      %v369 = vld [vmem:[%s256 + $0x2e8] sm:$0xff]
      %v370 = vld [vmem:[%s256 + $0x2f0] sm:$0xff]
      %v371 = vld [vmem:[%s256 + $0x2f8] sm:$0xff]
      %v372 = vld [vmem:[%s256 + $0x300] sm:$0xff]
      %v373 = vld [vmem:[%s256 + $0x308] sm:$0xff]
      %v374 = vld [vmem:[%s256 + $0x310] sm:$0xff]
      %v375 = vld [vmem:[%s256 + $0x318] sm:$0xff]
      %v376 = vld [vmem:[%s256 + $0x320] sm:$0xff]
      %v377 = vld [vmem:[%s256 + $0x328] sm:$0xff]
      %v378 = vld [vmem:[%s256 + $0x330] sm:$0xff]
      %v379 = vld [vmem:[%s256 + $0x338] sm:$0xff]
      %v380 = vld [vmem:[%s256 + $0x340] sm:$0xff]
      %v381 = vld [vmem:[%s256 + $0x348] sm:$0xff]
      %v382 = vld [vmem:[%s256 + $0x350] sm:$0xff]
      %v383 = vld [vmem:[%s256 + $0x358] sm:$0xff]
      %v384 = vld [vmem:[%s256 + $0x360] sm:$0xff]
      %v385 = vld [vmem:[%s256 + $0x368] sm:$0xff]
      %v386 = vld [vmem:[%s256 + $0x370] sm:$0xff]
      %v387 = vld [vmem:[%s256 + $0x378] sm:$0xff]
      %v388 = vld [vmem:[%s256 + $0x380] sm:$0xff]
      %v389 = vld [vmem:[%s256 + $0x388] sm:$0xff]
      %v390 = vld [vmem:[%s256 + $0x390] sm:$0xff]
      %v391 = vld [vmem:[%s256 + $0x398] sm:$0xff]
      %v392 = vld [vmem:[%s256 + $0x3a0] sm:$0xff]
      %v393 = vld [vmem:[%s256 + $0x3a8] sm:$0xff]
      %v394 = vld [vmem:[%s256 + $0x3b0] sm:$0xff]
      %v395 = vld [vmem:[%s256 + $0x3b8] sm:$0xff]
      %v396 = vld [vmem:[%s256 + $0x3c0] sm:$0xff]
      %v397 = vld [vmem:[%s256 + $0x3c8] sm:$0xff]
      %v398 = vld [vmem:[%s256 + $0x3d0] sm:$0xff]
      %v399 = vld [vmem:[%s256 + $0x3d8] sm:$0xff]
      %v400 = vld [vmem:[%s256 + $0x3e0] sm:$0xff]
      %v401 = vld [vmem:[%s256 + $0x3e8] sm:$0xff]
      %v402 = vld [vmem:[%s256 + $0x3f0] sm:$0xff]
      %v403 = vld [vmem:[%s256 + $0x3f8] sm:$0xff]
      %v404 = vld [vmem:[%s256 + $0x400] sm:$0xff]
      %v405 = vld [vmem:[%s256 + $0x408] sm:$0xff]
      %v406 = vld [vmem:[%s256 + $0x410] sm:$0xff]
      %v407 = vld [vmem:[%s256 + $0x418] sm:$0xff]
      %v408 = vld [vmem:[%s256 + $0x420] sm:$0xff]
      %v409 = vld [vmem:[%s256 + $0x428] sm:$0xff]
      %v410 = vld [vmem:[%s256 + $0x430] sm:$0xff]
      %v411 = vld [vmem:[%s256 + $0x438] sm:$0xff]
      %v412 = vld [vmem:[%s256 + $0x440] sm:$0xff]
      %v413 = vld [vmem:[%s256 + $0x448] sm:$0xff]
      %v414 = vld [vmem:[%s256 + $0x450] sm:$0xff]
      %v415 = vld [vmem:[%s256 + $0x458] sm:$0xff]
      %v416 = vld [vmem:[%s256 + $0x460] sm:$0xff]
      %v417 = vld [vmem:[%s256 + $0x468] sm:$0xff]
      %v418 = vld [vmem:[%s256 + $0x470] sm:$0xff]
      %v419 = vld [vmem:[%s256 + $0x478] sm:$0xff]
      %v420 = vld [vmem:[%s256 + $0x480] sm:$0xff]
      %v421 = vld [vmem:[%s256 + $0x488] sm:$0xff]
      %v422 = vld [vmem:[%s256 + $0x490] sm:$0xff]
      %v423 = vld [vmem:[%s256 + $0x498] sm:$0xff]
      %v424 = vld [vmem:[%s256 + $0x4a0] sm:$0xff]
      %v425 = vld [vmem:[%s256 + $0x4a8] sm:$0xff]
      %v426 = vld [vmem:[%s256 + $0x4b0] sm:$0xff]
      %v427 = vld [vmem:[%s256 + $0x4b8] sm:$0xff]
      %v428 = vld [vmem:[%s256 + $0x4c0] sm:$0xff]
      %v429 = vld [vmem:[%s256 + $0x4c8] sm:$0xff]
      %v430 = vld [vmem:[%s256 + $0x4d0] sm:$0xff]
      %v431 = vld [vmem:[%s256 + $0x4d8] sm:$0xff]
      %v432 = vld [vmem:[%s256 + $0x4e0] sm:$0xff]
      %v433 = vld [vmem:[%s256 + $0x4e8] sm:$0xff]
      %v434 = vld [vmem:[%s256 + $0x4f0] sm:$0xff]
      %v435 = vld [vmem:[%s256 + $0x4f8] sm:$0xff]
      %v436 = vld [vmem:[%s256 + $0x500] sm:$0xff]
      %v437 = vld [vmem:[%s256 + $0x508] sm:$0xff]
      %v438 = vld [vmem:[%s256 + $0x510] sm:$0xff]
      %v439 = vld [vmem:[%s256 + $0x518] sm:$0xff]
      %v440 = vld [vmem:[%s256 + $0x520] sm:$0xff]
      %v441 = vld [vmem:[%s256 + $0x528] sm:$0xff]
      %v442 = vld [vmem:[%s256 + $0x530] sm:$0xff]
      %v443 = vld [vmem:[%s256 + $0x538] sm:$0xff]
      %v444 = vld [vmem:[%s256 + $0x540] sm:$0xff]
      %v445 = vld [vmem:[%s256 + $0x548] sm:$0xff]
      %v446 = vld [vmem:[%s256 + $0x550] sm:$0xff]
      %v447 = vld [vmem:[%s256 + $0x558] sm:$0xff]
      %v448 = vld [vmem:[%s256 + $0x560] sm:$0xff]
      %v449 = vld [vmem:[%s256 + $0x568] sm:$0xff]
      %v450 = vld [vmem:[%s256 + $0x570] sm:$0xff]
      %v451 = vld [vmem:[%s256 + $0x578] sm:$0xff]
      %v452 = vld [vmem:[%s256 + $0x580] sm:$0xff]
      %v453 = vld [vmem:[%s256 + $0x588] sm:$0xff]
      %v454 = vld [vmem:[%s256 + $0x590] sm:$0xff]
      %v455 = vld [vmem:[%s256 + $0x598] sm:$0xff]
      %v456 = vld [vmem:[%s256 + $0x5a0] sm:$0xff]
      %v457 = vld [vmem:[%s256 + $0x5a8] sm:$0xff]
      %v458 = vld [vmem:[%s256 + $0x5b0] sm:$0xff]
      %v459 = vld [vmem:[%s256 + $0x5b8] sm:$0xff]
      %v460 = vld [vmem:[%s256 + $0x5c0] sm:$0xff]
      %v461 = vld [vmem:[%s256 + $0x5c8] sm:$0xff]
      %v462 = vld [vmem:[%s256 + $0x5d0] sm:$0xff]
      %v463 = vld [vmem:[%s256 + $0x5d8] sm:$0xff]
      %v464 = vld [vmem:[%s256 + $0x5e0] sm:$0xff]
      %v465 = vld [vmem:[%s256 + $0x5e8] sm:$0xff]
      %v466 = vld [vmem:[%s256 + $0x5f0] sm:$0xff]
      %v467 = vld [vmem:[%s256 + $0x5f8] sm:$0xff]
      %v468 = vld [vmem:[%s256 + $0x600] sm:$0xff]
      %v469 = vld [vmem:[%s256 + $0x608] sm:$0xff]
      %v470 = vld [vmem:[%s256 + $0x610] sm:$0xff]
      %v471 = vld [vmem:[%s256 + $0x618] sm:$0xff]
      %v472 = vld [vmem:[%s256 + $0x620] sm:$0xff]
      %v473 = vld [vmem:[%s256 + $0x628] sm:$0xff]
      %v474 = vld [vmem:[%s256 + $0x630] sm:$0xff]
      %v475 = vld [vmem:[%s256 + $0x638] sm:$0xff]
      %v476 = vld [vmem:[%s256 + $0x640] sm:$0xff]
      %v477 = vld [vmem:[%s256 + $0x648] sm:$0xff]
      %v478 = vld [vmem:[%s256 + $0x650] sm:$0xff]
      %v479 = vld [vmem:[%s256 + $0x658] sm:$0xff]
      %v480 = vld [vmem:[%s256 + $0x660] sm:$0xff]
      %v481 = vld [vmem:[%s256 + $0x668] sm:$0xff]
      %v482 = vld [vmem:[%s256 + $0x670] sm:$0xff]
      %v483 = vld [vmem:[%s256 + $0x678] sm:$0xff]
      %v484 = vld [vmem:[%s256 + $0x680] sm:$0xff]
      %v485 = vld [vmem:[%s256 + $0x688] sm:$0xff]
      %v486 = vld [vmem:[%s256 + $0x690] sm:$0xff]
      %v487 = vld [vmem:[%s256 + $0x698] sm:$0xff]
      %v488 = vld [vmem:[%s256 + $0x6a0] sm:$0xff]
      %v489 = vld [vmem:[%s256 + $0x6a8] sm:$0xff]
      %v490 = vld [vmem:[%s256 + $0x6b0] sm:$0xff]
      %v491 = vld [vmem:[%s256 + $0x6b8] sm:$0xff]
      %v492 = vld [vmem:[%s256 + $0x6c0] sm:$0xff]
      %v493 = vld [vmem:[%s256 + $0x6c8] sm:$0xff]
      %v494 = vld [vmem:[%s256 + $0x6d0] sm:$0xff]
      %v495 = vld [vmem:[%s256 + $0x6d8] sm:$0xff]
      %v496 = vld [vmem:[%s256 + $0x6e0] sm:$0xff]
      %v497 = vld [vmem:[%s256 + $0x6e8] sm:$0xff]
      %v498 = vld [vmem:[%s256 + $0x6f0] sm:$0xff]
      %v499 = vld [vmem:[%s256 + $0x6f8] sm:$0xff]
      %v500 = vld [vmem:[%s256 + $0x700] sm:$0xff]
      %v501 = vld [vmem:[%s256 + $0x708] sm:$0xff]
      %v502 = vld [vmem:[%s256 + $0x710] sm:$0xff]
      %v503 = vld [vmem:[%s256 + $0x718] sm:$0xff]
      %v504 = vld [vmem:[%s256 + $0x720] sm:$0xff]
      %v505 = vld [vmem:[%s256 + $0x728] sm:$0xff]
      %v506 = vld [vmem:[%s256 + $0x730] sm:$0xff]
      %v507 = vld [vmem:[%s256 + $0x738] sm:$0xff]
      %v508 = vld [vmem:[%s256 + $0x740] sm:$0xff]
      %v509 = vld [vmem:[%s256 + $0x748] sm:$0xff]
      %v510 = vld [vmem:[%s256 + $0x750] sm:$0xff]
      %v511 = vld [vmem:[%s256 + $0x758] sm:$0xff]
      %v512 = vld [vmem:[%s256 + $0x760] sm:$0xff]
      %v513 = vld [vmem:[%s256 + $0x768] sm:$0xff]
      %v514 = vld [vmem:[%s256 + $0x770] sm:$0xff]
      %v515 = vld [vmem:[%s256 + $0x778] sm:$0xff]
      %v516 = vld [vmem:[%s256 + $0x780] sm:$0xff]
      %v517 = vld [vmem:[%s256 + $0x788] sm:$0xff]
      %v518 = vld [vmem:[%s256 + $0x790] sm:$0xff]
      %v519 = vld [vmem:[%s256 + $0x798] sm:$0xff]
      %v520 = vld [vmem:[%s256 + $0x7a0] sm:$0xff]
      %v521 = vld [vmem:[%s256 + $0x7a8] sm:$0xff]
      %v522 = vld [vmem:[%s256 + $0x7b0] sm:$0xff]
      %v523 = vld [vmem:[%s256 + $0x7b8] sm:$0xff]
      %v524 = vld [vmem:[%s256 + $0x7c0] sm:$0xff]
      %v525 = vld [vmem:[%s256 + $0x7c8] sm:$0xff]
      %v526 = vld [vmem:[%s256 + $0x7d0] sm:$0xff]
      %v527 = vld [vmem:[%s256 + $0x7d8] sm:$0xff]
      %v528 = vld [vmem:[%s256 + $0x7e0] sm:$0xff]
      %v529 = vld [vmem:[%s256 + $0x7e8] sm:$0xff]
      %v530 = vld [vmem:[%s256 + $0x7f0] sm:$0xff]
      %v531 = vld [vmem:[%s256 + $0x7f8] sm:$0xff]
      %v532 = vld [vmem:[%s261] sm:$0xff]
      %v533 = vld [vmem:[%s261 + $0x8] sm:$0xff]
      %v534 = vld [vmem:[%s261 + $0x10] sm:$0xff]
      %v535 = vld [vmem:[%s261 + $0x18] sm:$0x7]
      %v536 = vld [vmem:[%s264] sm:$0x1]
      %v538 = vlaneseq
      %v539 = vshrl.u32 %v538, 7
      %v540 = vsub.s32 0, %v539
      %v541 = vrot.slane %v536, %v540
      %vm543 = vcmask 220160
      %v545 = vsel %vm543, %v276, 0
      %v548 = vsel %vm543, %v277, 0
      %v551 = vsel %vm543, %v278, 0
      %v554 = vsel %vm543, %v279, 0
      %v557 = vsel %vm543, %v280, 0
      %v560 = vsel %vm543, %v281, 0
      %v563 = vsel %vm543, %v282, 0
      %v566 = vsel %vm543, %v283, 0
      %v569 = vsel %vm543, %v284, 0
      %v572 = vsel %vm543, %v285, 0
      %v575 = vsel %vm543, %v286, 0
      %v578 = vsel %vm543, %v287, 0
      %v581 = vsel %vm543, %v288, 0
      %v584 = vsel %vm543, %v289, 0
      %v587 = vsel %vm543, %v290, 0
      %v590 = vsel %vm543, %v291, 0
      %v593 = vsel %vm543, %v292, 0
      %v596 = vsel %vm543, %v293, 0
      %v599 = vsel %vm543, %v294, 0
      %v602 = vsel %vm543, %v295, 0
      %v605 = vsel %vm543, %v296, 0
      %v608 = vsel %vm543, %v297, 0
      %v611 = vsel %vm543, %v298, 0
      %v614 = vsel %vm543, %v299, 0
      %v617 = vsel %vm543, %v300, 0
      %v620 = vsel %vm543, %v301, 0
      %v623 = vsel %vm543, %v302, 0
      %v626 = vsel %vm543, %v303, 0
      %v629 = vsel %vm543, %v304, 0
      %v632 = vsel %vm543, %v305, 0
      %v635 = vsel %vm543, %v306, 0
      %v638 = vsel %vm543, %v307, 0
      %v641 = vsel %vm543, %v308, 0
      %v644 = vsel %vm543, %v309, 0
      %v647 = vsel %vm543, %v310, 0
      %v650 = vsel %vm543, %v311, 0
      %v653 = vsel %vm543, %v312, 0
      %v656 = vsel %vm543, %v313, 0
      %v659 = vsel %vm543, %v314, 0
      %v662 = vsel %vm543, %v315, 0
      %v665 = vsel %vm543, %v316, 0
      %v668 = vsel %vm543, %v317, 0
      %v671 = vsel %vm543, %v318, 0
      %v674 = vsel %vm543, %v319, 0
      %v677 = vsel %vm543, %v320, 0
      %v680 = vsel %vm543, %v321, 0
      %v683 = vsel %vm543, %v322, 0
      %v686 = vsel %vm543, %v323, 0
      %v689 = vsel %vm543, %v324, 0
      %v692 = vsel %vm543, %v325, 0
      %v695 = vsel %vm543, %v326, 0
      %v698 = vsel %vm543, %v327, 0
      %v701 = vsel %vm543, %v328, 0
      %v704 = vsel %vm543, %v329, 0
      %v707 = vsel %vm543, %v330, 0
      %v710 = vsel %vm543, %v331, 0
      %v713 = vsel %vm543, %v332, 0
      %v716 = vsel %vm543, %v333, 0
      %v719 = vsel %vm543, %v334, 0
      %v722 = vsel %vm543, %v335, 0
      %v725 = vsel %vm543, %v336, 0
      %v728 = vsel %vm543, %v337, 0
      %v731 = vsel %vm543, %v338, 0
      %v734 = vsel %vm543, %v339, 0
      %v737 = vsel %vm543, %v340, 0
      %v740 = vsel %vm543, %v341, 0
      %v743 = vsel %vm543, %v342, 0
      %v746 = vsel %vm543, %v343, 0
      %v749 = vsel %vm543, %v344, 0
      %v752 = vsel %vm543, %v345, 0
      %v755 = vsel %vm543, %v346, 0
      %v758 = vsel %vm543, %v347, 0
      %v761 = vsel %vm543, %v348, 0
      %v764 = vsel %vm543, %v349, 0
      %v767 = vsel %vm543, %v350, 0
      %v770 = vsel %vm543, %v351, 0
      %v773 = vsel %vm543, %v352, 0
      %v776 = vsel %vm543, %v353, 0
      %v779 = vsel %vm543, %v354, 0
      %v782 = vsel %vm543, %v355, 0
      %v785 = vsel %vm543, %v356, 0
      %v788 = vsel %vm543, %v357, 0
      %v791 = vsel %vm543, %v358, 0
      %v794 = vsel %vm543, %v359, 0
      %v797 = vsel %vm543, %v360, 0
      %v800 = vsel %vm543, %v361, 0
      %v803 = vsel %vm543, %v362, 0
      %v806 = vsel %vm543, %v363, 0
      %v809 = vsel %vm543, %v364, 0
      %v812 = vsel %vm543, %v365, 0
      %v815 = vsel %vm543, %v366, 0
      %v818 = vsel %vm543, %v367, 0
      %v821 = vsel %vm543, %v368, 0
      %v824 = vsel %vm543, %v369, 0
      %v827 = vsel %vm543, %v370, 0
      %v830 = vsel %vm543, %v371, 0
      %v833 = vsel %vm543, %v372, 0
      %v836 = vsel %vm543, %v373, 0
      %v839 = vsel %vm543, %v374, 0
      %v842 = vsel %vm543, %v375, 0
      %v845 = vsel %vm543, %v376, 0
      %v848 = vsel %vm543, %v377, 0
      %v851 = vsel %vm543, %v378, 0
      %v854 = vsel %vm543, %v379, 0
      %v857 = vsel %vm543, %v380, 0
      %v860 = vsel %vm543, %v381, 0
      %v863 = vsel %vm543, %v382, 0
      %v866 = vsel %vm543, %v383, 0
      %v869 = vsel %vm543, %v384, 0
      %v872 = vsel %vm543, %v385, 0
      %v875 = vsel %vm543, %v386, 0
      %v878 = vsel %vm543, %v387, 0
      %v881 = vsel %vm543, %v388, 0
      %v884 = vsel %vm543, %v389, 0
      %v887 = vsel %vm543, %v390, 0
      %v890 = vsel %vm543, %v391, 0
      %v893 = vsel %vm543, %v392, 0
      %v896 = vsel %vm543, %v393, 0
      %v899 = vsel %vm543, %v394, 0
      %v902 = vsel %vm543, %v395, 0
      %v905 = vsel %vm543, %v396, 0
      %v908 = vsel %vm543, %v397, 0
      %v911 = vsel %vm543, %v398, 0
      %v914 = vsel %vm543, %v399, 0
      %v917 = vsel %vm543, %v400, 0
      %v920 = vsel %vm543, %v401, 0
      %v923 = vsel %vm543, %v402, 0
      %v926 = vsel %vm543, %v403, 0
      %v929 = vsel %vm543, %v404, 0
      %v932 = vsel %vm543, %v405, 0
      %v935 = vsel %vm543, %v406, 0
      %v938 = vsel %vm543, %v407, 0
      %v941 = vsel %vm543, %v408, 0
      %v944 = vsel %vm543, %v409, 0
      %v947 = vsel %vm543, %v410, 0
      %v950 = vsel %vm543, %v411, 0
      %v953 = vsel %vm543, %v412, 0
      %v956 = vsel %vm543, %v413, 0
      %v959 = vsel %vm543, %v414, 0
      %v962 = vsel %vm543, %v415, 0
      %v965 = vsel %vm543, %v416, 0
      %v968 = vsel %vm543, %v417, 0
      %v971 = vsel %vm543, %v418, 0
      %v974 = vsel %vm543, %v419, 0
      %v977 = vsel %vm543, %v420, 0
      %v980 = vsel %vm543, %v421, 0
      %v983 = vsel %vm543, %v422, 0
      %v986 = vsel %vm543, %v423, 0
      %v989 = vsel %vm543, %v424, 0
      %v992 = vsel %vm543, %v425, 0
      %v995 = vsel %vm543, %v426, 0
      %v998 = vsel %vm543, %v427, 0
      %v1001 = vsel %vm543, %v428, 0
      %v1004 = vsel %vm543, %v429, 0
      %v1007 = vsel %vm543, %v430, 0
      %v1010 = vsel %vm543, %v431, 0
      %v1013 = vsel %vm543, %v432, 0
      %v1016 = vsel %vm543, %v433, 0
      %v1019 = vsel %vm543, %v434, 0
      %v1022 = vsel %vm543, %v435, 0
      %v1025 = vsel %vm543, %v436, 0
      %v1028 = vsel %vm543, %v437, 0
      %v1031 = vsel %vm543, %v438, 0
      %v1034 = vsel %vm543, %v439, 0
      %v1037 = vsel %vm543, %v440, 0
      %v1040 = vsel %vm543, %v441, 0
      %v1043 = vsel %vm543, %v442, 0
      %v1046 = vsel %vm543, %v443, 0
      %v1049 = vsel %vm543, %v444, 0
      %v1052 = vsel %vm543, %v445, 0
      %v1055 = vsel %vm543, %v446, 0
      %v1058 = vsel %vm543, %v447, 0
      %v1061 = vsel %vm543, %v448, 0
      %v1064 = vsel %vm543, %v449, 0
      %v1067 = vsel %vm543, %v450, 0
      %v1070 = vsel %vm543, %v451, 0
      %v1073 = vsel %vm543, %v452, 0
      %v1076 = vsel %vm543, %v453, 0
      %v1079 = vsel %vm543, %v454, 0
      %v1082 = vsel %vm543, %v455, 0
      %v1085 = vsel %vm543, %v456, 0
      %v1088 = vsel %vm543, %v457, 0
      %v1091 = vsel %vm543, %v458, 0
      %v1094 = vsel %vm543, %v459, 0
      %v1097 = vsel %vm543, %v460, 0
      %v1100 = vsel %vm543, %v461, 0
      %v1103 = vsel %vm543, %v462, 0
      %v1106 = vsel %vm543, %v463, 0
      %v1109 = vsel %vm543, %v464, 0
      %v1112 = vsel %vm543, %v465, 0
      %v1115 = vsel %vm543, %v466, 0
      %v1118 = vsel %vm543, %v467, 0
      %v1121 = vsel %vm543, %v468, 0
      %v1124 = vsel %vm543, %v469, 0
      %v1127 = vsel %vm543, %v470, 0
      %v1130 = vsel %vm543, %v471, 0
      %v1133 = vsel %vm543, %v472, 0
      %v1136 = vsel %vm543, %v473, 0
      %v1139 = vsel %vm543, %v474, 0
      %v1142 = vsel %vm543, %v475, 0
      %v1145 = vsel %vm543, %v476, 0
      %v1148 = vsel %vm543, %v477, 0
      %v1151 = vsel %vm543, %v478, 0
      %v1154 = vsel %vm543, %v479, 0
      %v1157 = vsel %vm543, %v480, 0
      %v1160 = vsel %vm543, %v481, 0
      %v1163 = vsel %vm543, %v482, 0
      %v1166 = vsel %vm543, %v483, 0
      %v1169 = vsel %vm543, %v484, 0
      %v1172 = vsel %vm543, %v485, 0
      %v1175 = vsel %vm543, %v486, 0
      %v1178 = vsel %vm543, %v487, 0
      %v1181 = vsel %vm543, %v488, 0
      %v1184 = vsel %vm543, %v489, 0
      %v1187 = vsel %vm543, %v490, 0
      %v1190 = vsel %vm543, %v491, 0
      %v1193 = vsel %vm543, %v492, 0
      %v1196 = vsel %vm543, %v493, 0
      %v1199 = vsel %vm543, %v494, 0
      %v1202 = vsel %vm543, %v495, 0
      %v1205 = vsel %vm543, %v496, 0
      %v1208 = vsel %vm543, %v497, 0
      %v1211 = vsel %vm543, %v498, 0
      %v1214 = vsel %vm543, %v499, 0
      %v1217 = vsel %vm543, %v500, 0
      %v1220 = vsel %vm543, %v501, 0
      %v1223 = vsel %vm543, %v502, 0
      %v1226 = vsel %vm543, %v503, 0
      %v1229 = vsel %vm543, %v504, 0
      %v1232 = vsel %vm543, %v505, 0
      %v1235 = vsel %vm543, %v506, 0
      %v1238 = vsel %vm543, %v507, 0
      %v1241 = vsel %vm543, %v508, 0
      %v1244 = vsel %vm543, %v509, 0
      %v1247 = vsel %vm543, %v510, 0
      %v1250 = vsel %vm543, %v511, 0
      %v1253 = vsel %vm543, %v512, 0
      %v1256 = vsel %vm543, %v513, 0
      %v1259 = vsel %vm543, %v514, 0
      %v1262 = vsel %vm543, %v515, 0
      %v1265 = vsel %vm543, %v516, 0
      %v1268 = vsel %vm543, %v517, 0
      %v1271 = vsel %vm543, %v518, 0
      %v1274 = vsel %vm543, %v519, 0
      %v1277 = vsel %vm543, %v520, 0
      %v1280 = vsel %vm543, %v521, 0
      %v1283 = vsel %vm543, %v522, 0
      %v1286 = vsel %vm543, %v523, 0
      %v1289 = vsel %vm543, %v524, 0
      %v1292 = vsel %vm543, %v525, 0
      %v1295 = vsel %vm543, %v526, 0
      %v1298 = vsel %vm543, %v527, 0
      %v1301 = vsel %vm543, %v528, 0
      %v1304 = vsel %vm543, %v529, 0
      %v1307 = vsel %vm543, %v530, 0
      %v1310 = vsel %vm543, %v531, 0
      %vm1312 = vcmask 1042432
      %v1314 = vsel %vm1312, %v535, 0
      %1316 = vmatprep.subr.mxu0 0.0
      %1317 = vmatpush1.msra.mxu0 %v532
      %1318 = vmatprep.subr.mxu0 0.0
      %1319 = vmatpush1.msra.mxu0 %v533
      %1320 = vmatprep.subr.mxu0 0.0
      %1321 = vmatpush1.msra.mxu0 %v534
      %1322 = vmatprep.subr.mxu0 0.0
      %1323 = vmatpush1.msra.mxu0 %v1314
      %1324 = vmatprep.subr.mxu0 0.0
      %1325 = vmatpush1.msra.mxu0 0.0
      %1326 = vmatprep.subr.mxu0 0.0
      %1327 = vmatpush1.msra.mxu0 0.0
      %1328 = vmatprep.subr.mxu0 0.0
      %1329 = vmatpush1.msra.mxu0 0.0
      %1330 = vmatprep.subr.mxu0 0.0
      %1331 = vmatpush1.msra.mxu0 0.0
      %1332 = vmatprep.subr.mxu0 0.0
      %1333 = vmatpush1.msra.mxu0 0.0
      %1334 = vmatprep.subr.mxu0 0.0
      %1335 = vmatpush1.msra.mxu0 0.0
      %1336 = vmatprep.subr.mxu0 0.0
      %1337 = vmatpush1.msra.mxu0 0.0
      %1338 = vmatprep.subr.mxu0 0.0
      %1339 = vmatpush1.msra.mxu0 0.0
      %1340 = vmatprep.subr.mxu0 0.0
      %1341 = vmatpush1.msra.mxu0 0.0
      %1342 = vmatprep.subr.mxu0 0.0
      %1343 = vmatpush1.msra.mxu0 0.0
      %1344 = vmatprep.subr.mxu0 0.0
      %1345 = vmatpush1.msra.mxu0 0.0
      %1346 = vmatprep.subr.mxu0 0.0
      %1347 = vmatpush1.msra.mxu0 0.0
      %1348 = vmatprep.subr.mxu0 0.0
      %1349 = vmatpush1.msra.mxu0 0.0
      %1350 = vmatprep.subr.mxu0 0.0
      %1351 = vmatpush1.msra.mxu0 0.0
      %1352 = vmatprep.subr.mxu0 0.0
      %1353 = vmatpush1.msra.mxu0 0.0
      %1354 = vmatprep.subr.mxu0 0.0
      %1355 = vmatpush1.msra.mxu0 0.0
      %1356 = vmatprep.subr.mxu0 0.0
      %1357 = vmatpush1.msra.mxu0 0.0
      %1358 = vmatprep.subr.mxu0 0.0
      %1359 = vmatpush1.msra.mxu0 0.0
      %1360 = vmatprep.subr.mxu0 0.0
      %1361 = vmatpush1.msra.mxu0 0.0
      %1362 = vmatprep.subr.mxu0 0.0
      %1363 = vmatpush1.msra.mxu0 0.0
      %1364 = vmatprep.subr.mxu0 0.0
      %1365 = vmatpush1.msra.mxu0 0.0
      %1366 = vmatprep.subr.mxu0 0.0
      %1367 = vmatpush1.msra.mxu0 0.0
      %1368 = vmatprep.subr.mxu0 0.0
      %1369 = vmatpush1.msra.mxu0 0.0
      %1370 = vmatprep.subr.mxu0 0.0
      %1371 = vmatpush1.msra.mxu0 0.0
      %1372 = vmatprep.subr.mxu0 0.0
      %1373 = vmatpush1.msra.mxu0 0.0
      %1374 = vmatprep.subr.mxu0 0.0
      %1375 = vmatpush1.msra.mxu0 0.0
      %1376 = vmatprep.subr.mxu0 0.0
      %1377 = vmatpush1.msra.mxu0 0.0
      %1378 = vmatprep.subr.mxu0 0.0
      %1379 = vmatpush1.msra.mxu0 0.0
      %1380 = vmatprep.mubr.f32.mxu0 0.0
      %1381 = vmatmul.mubr.f32.gmra.mrb[0].mxu0 %v545
      %v1382 = vpop.f32.mrb[0].mxu0
      %v1383 = vadd.f32 %v541, %v1382
      %v1384 = vpop.f32.mrb[0].mxu0
      %1385 = vmatprep.mubr.f32.mxu0 0.0
      %1386 = vmatmul.mubr.f32.gmra.mrb[0].mxu0 %v548
      %v1387 = vpop.f32.mrb[0].mxu0
      %v1388 = vadd.f32 %v541, %v1387
      %v1389 = vpop.f32.mrb[0].mxu0
      %1390 = vmatprep.mubr.f32.mxu0 0.0
      %1391 = vmatmul.mubr.f32.gmra.mrb[0].mxu0 %v551
      %v1392 = vpop.f32.mrb[0].mxu0
      %v1393 = vadd.f32 %v541, %v1392
      %v1394 = vpop.f32.mrb[0].mxu0
      %1395 = vmatprep.mubr.f32.mxu0 0.0
      %1396 = vmatmul.mubr.f32.gmra.mrb[0].mxu0 %v554
      %v1397 = vpop.f32.mrb[0].mxu0
      %v1398 = vadd.f32 %v541, %v1397
      %v1399 = vpop.f32.mrb[0].mxu0
      %1400 = vmatprep.mubr.f32.mxu0 0.0
      %1401 = vmatmul.mubr.f32.gmra.mrb[0].mxu0 %v557
      %v1402 = vpop.f32.mrb[0].mxu0
      %v1403 = vadd.f32 %v541, %v1402
      %v1404 = vpop.f32.mrb[0].mxu0
      %1405 = vmatprep.mubr.f32.mxu0 0.0
      %1406 = vmatmul.mubr.f32.gmra.mrb[0].mxu0 %v560
      %v1407 = vpop.f32.mrb[0].mxu0
      %v1408 = vadd.f32 %v541, %v1407
      %v1409 = vpop.f32.mrb[0].mxu0
      %1410 = vmatprep.mubr.f32.mxu0 0.0
      %1411 = vmatmul.mubr.f32.gmra.mrb[0].mxu0 %v563
      %v1412 = vpop.f32.mrb[0].mxu0
      %v1413 = vadd.f32 %v541, %v1412
      %v1414 = vpop.f32.mrb[0].mxu0
      %1415 = vmatprep.mubr.f32.mxu0 0.0
      %1416 = vmatmul.mubr.f32.gmra.mrb[0].mxu0 %v566
      %v1417 = vpop.f32.mrb[0].mxu0
      %v1418 = vadd.f32 %v541, %v1417
      %v1419 = vpop.f32.mrb[0].mxu0
      %1420 = vmatprep.mubr.f32.mxu0 0.0
      %1421 = vmatmul.mubr.f32.gmra.mrb[0].mxu0 %v569
      %v1422 = vpop.f32.mrb[0].mxu0
      %v1423 = vadd.f32 %v541, %v1422
      %v1424 = vpop.f32.mrb[0].mxu0
      %1425 = vmatprep.mubr.f32.mxu0 0.0
      %1426 = vmatmul.mubr.f32.gmra.mrb[0].mxu0 %v572
      %v1427 = vpop.f32.mrb[0].mxu0
      %v1428 = vadd.f32 %v541, %v1427
      %v1429 = vpop.f32.mrb[0].mxu0
      %1430 = vmatprep.mubr.f32.mxu0 0.0
      %1431 = vmatmul.mubr.f32.gmra.mrb[0].mxu0 %v575
      %v1432 = vpop.f32.mrb[0].mxu0
      %v1433 = vadd.f32 %v541, %v1432
      %v1434 = vpop.f32.mrb[0].mxu0
      %1435 = vmatprep.mubr.f32.mxu0 0.0
      %1436 = vmatmul.mubr.f32.gmra.mrb[0].mxu0 %v578
      %v1437 = vpop.f32.mrb[0].mxu0
      %v1438 = vadd.f32 %v541, %v1437
      %v1439 = vpop.f32.mrb[0].mxu0
      %1440 = vmatprep.mubr.f32.mxu0 0.0
      %1441 = vmatmul.mubr.f32.gmra.mrb[0].mxu0 %v581
      %v1442 = vpop.f32.mrb[0].mxu0
      %v1443 = vadd.f32 %v541, %v1442
      %v1444 = vpop.f32.mrb[0].mxu0
      %1445 = vmatprep.mubr.f32.mxu0 0.0
      %1446 = vmatmul.mubr.f32.gmra.mrb[0].mxu0 %v584
      %v1447 = vpop.f32.mrb[0].mxu0
      %v1448 = vadd.f32 %v541, %v1447
      %v1449 = vpop.f32.mrb[0].mxu0
      %1450 = vmatprep.mubr.f32.mxu0 0.0
      %1451 = vmatmul.mubr.f32.gmra.mrb[0].mxu0 %v587
      %v1452 = vpop.f32.mrb[0].mxu0
      %v1453 = vadd.f32 %v541, %v1452
      %v1454 = vpop.f32.mrb[0].mxu0
      %1455 = vmatprep.mubr.f32.mxu0 0.0
      %1456 = vmatmul.mubr.f32.gmra.mrb[0].mxu0 %v590
      %v1457 = vpop.f32.mrb[0].mxu0
      %v1458 = vadd.f32 %v541, %v1457
      %v1459 = vpop.f32.mrb[0].mxu0
      %1460 = vmatprep.mubr.f32.mxu0 0.0
      %1461 = vmatmul.mubr.f32.gmra.mrb[0].mxu0 %v593
      %v1462 = vpop.f32.mrb[0].mxu0
      %v1463 = vadd.f32 %v541, %v1462
      %v1464 = vpop.f32.mrb[0].mxu0
      %1465 = vmatprep.mubr.f32.mxu0 0.0
      %1466 = vmatmul.mubr.f32.gmra.mrb[0].mxu0 %v596
      %v1467 = vpop.f32.mrb[0].mxu0
      %v1468 = vadd.f32 %v541, %v1467
      %v1469 = vpop.f32.mrb[0].mxu0
      %1470 = vmatprep.mubr.f32.mxu0 0.0
      %1471 = vmatmul.mubr.f32.gmra.mrb[0].mxu0 %v599
      %v1472 = vpop.f32.mrb[0].mxu0
      %v1473 = vadd.f32 %v541, %v1472
      %v1474 = vpop.f32.mrb[0].mxu0
      %1475 = vmatprep.mubr.f32.mxu0 0.0
      %1476 = vmatmul.mubr.f32.gmra.mrb[0].mxu0 %v602
      %v1477 = vpop.f32.mrb[0].mxu0
      %v1478 = vadd.f32 %v541, %v1477
      %v1479 = vpop.f32.mrb[0].mxu0
      %1480 = vmatprep.mubr.f32.mxu0 0.0
      %1481 = vmatmul.mubr.f32.gmra.mrb[0].mxu0 %v605
      %v1482 = vpop.f32.mrb[0].mxu0
      %v1483 = vadd.f32 %v541, %v1482
      %v1484 = vpop.f32.mrb[0].mxu0
      %1485 = vmatprep.mubr.f32.mxu0 0.0
      %1486 = vmatmul.mubr.f32.gmra.mrb[0].mxu0 %v608
      %v1487 = vpop.f32.mrb[0].mxu0
      %v1488 = vadd.f32 %v541, %v1487
      %v1489 = vpop.f32.mrb[0].mxu0
      %1490 = vmatprep.mubr.f32.mxu0 0.0
      %1491 = vmatmul.mubr.f32.gmra.mrb[0].mxu0 %v611
      %v1492 = vpop.f32.mrb[0].mxu0
      %v1493 = vadd.f32 %v541, %v1492
      %v1494 = vpop.f32.mrb[0].mxu0
      %1495 = vmatprep.mubr.f32.mxu0 0.0
      %1496 = vmatmul.mubr.f32.gmra.mrb[0].mxu0 %v614
      %v1497 = vpop.f32.mrb[0].mxu0
      %v1498 = vadd.f32 %v541, %v1497
      %v1499 = vpop.f32.mrb[0].mxu0
      %1500 = vmatprep.mubr.f32.mxu0 0.0
      %1501 = vmatmul.mubr.f32.gmra.mrb[0].mxu0 %v617
      %v1502 = vpop.f32.mrb[0].mxu0
      %v1503 = vadd.f32 %v541, %v1502
      %v1504 = vpop.f32.mrb[0].mxu0
      %1505 = vmatprep.mubr.f32.mxu0 0.0
      %1506 = vmatmul.mubr.f32.gmra.mrb[0].mxu0 %v620
      %v1507 = vpop.f32.mrb[0].mxu0
      %v1508 = vadd.f32 %v541, %v1507
      %v1509 = vpop.f32.mrb[0].mxu0
      %1510 = vmatprep.mubr.f32.mxu0 0.0
      %1511 = vmatmul.mubr.f32.gmra.mrb[0].mxu0 %v623
      %v1512 = vpop.f32.mrb[0].mxu0
      %v1513 = vadd.f32 %v541, %v1512
      %v1514 = vpop.f32.mrb[0].mxu0
      %1515 = vmatprep.mubr.f32.mxu0 0.0
      %1516 = vmatmul.mubr.f32.gmra.mrb[0].mxu0 %v626
      %v1517 = vpop.f32.mrb[0].mxu0
      %v1518 = vadd.f32 %v541, %v1517
      %v1519 = vpop.f32.mrb[0].mxu0
      %1520 = vmatprep.mubr.f32.mxu0 0.0
      %1521 = vmatmul.mubr.f32.gmra.mrb[0].mxu0 %v629
      %v1522 = vpop.f32.mrb[0].mxu0
      %v1523 = vadd.f32 %v541, %v1522
      %v1524 = vpop.f32.mrb[0].mxu0
      %1525 = vmatprep.mubr.f32.mxu0 0.0
      %1526 = vmatmul.mubr.f32.gmra.mrb[0].mxu0 %v632
      %v1527 = vpop.f32.mrb[0].mxu0
      %v1528 = vadd.f32 %v541, %v1527
      %v1529 = vpop.f32.mrb[0].mxu0
      %1530 = vmatprep.mubr.f32.mxu0 0.0
      %1531 = vmatmul.mubr.f32.gmra.mrb[0].mxu0 %v635
      %v1532 = vpop.f32.mrb[0].mxu0
      %v1533 = vadd.f32 %v541, %v1532
      %v1534 = vpop.f32.mrb[0].mxu0
      %1535 = vmatprep.mubr.f32.mxu0 0.0
      %1536 = vmatmul.mubr.f32.gmra.mrb[0].mxu0 %v638
      %v1537 = vpop.f32.mrb[0].mxu0
      %v1538 = vadd.f32 %v541, %v1537
      %v1539 = vpop.f32.mrb[0].mxu0
      %1540 = vmatprep.mubr.f32.mxu0 0.0
      %1541 = vmatmul.mubr.f32.gmra.mrb[0].mxu0 %v641
      %v1542 = vpop.f32.mrb[0].mxu0
      %v1543 = vadd.f32 %v541, %v1542
      %v1544 = vpop.f32.mrb[0].mxu0
      %1545 = vmatprep.mubr.f32.mxu0 0.0
      %1546 = vmatmul.mubr.f32.gmra.mrb[0].mxu0 %v644
      %v1547 = vpop.f32.mrb[0].mxu0
      %v1548 = vadd.f32 %v541, %v1547
      %v1549 = vpop.f32.mrb[0].mxu0
      %1550 = vmatprep.mubr.f32.mxu0 0.0
      %1551 = vmatmul.mubr.f32.gmra.mrb[0].mxu0 %v647
      %v1552 = vpop.f32.mrb[0].mxu0
      %v1553 = vadd.f32 %v541, %v1552
      %v1554 = vpop.f32.mrb[0].mxu0
      %1555 = vmatprep.mubr.f32.mxu0 0.0
      %1556 = vmatmul.mubr.f32.gmra.mrb[0].mxu0 %v650
      %v1557 = vpop.f32.mrb[0].mxu0
      %v1558 = vadd.f32 %v541, %v1557
      %v1559 = vpop.f32.mrb[0].mxu0
      %1560 = vmatprep.mubr.f32.mxu0 0.0
      %1561 = vmatmul.mubr.f32.gmra.mrb[0].mxu0 %v653
      %v1562 = vpop.f32.mrb[0].mxu0
      %v1563 = vadd.f32 %v541, %v1562
      %v1564 = vpop.f32.mrb[0].mxu0
      %1565 = vmatprep.mubr.f32.mxu0 0.0
      %1566 = vmatmul.mubr.f32.gmra.mrb[0].mxu0 %v656
      %v1567 = vpop.f32.mrb[0].mxu0
      %v1568 = vadd.f32 %v541, %v1567
      %v1569 = vpop.f32.mrb[0].mxu0
      %1570 = vmatprep.mubr.f32.mxu0 0.0
      %1571 = vmatmul.mubr.f32.gmra.mrb[0].mxu0 %v659
      %v1572 = vpop.f32.mrb[0].mxu0
      %v1573 = vadd.f32 %v541, %v1572
      %v1574 = vpop.f32.mrb[0].mxu0
      %1575 = vmatprep.mubr.f32.mxu0 0.0
      %1576 = vmatmul.mubr.f32.gmra.mrb[0].mxu0 %v662
      %v1577 = vpop.f32.mrb[0].mxu0
      %v1578 = vadd.f32 %v541, %v1577
      %v1579 = vpop.f32.mrb[0].mxu0
      %1580 = vmatprep.mubr.f32.mxu0 0.0
      %1581 = vmatmul.mubr.f32.gmra.mrb[0].mxu0 %v665
      %v1582 = vpop.f32.mrb[0].mxu0
      %v1583 = vadd.f32 %v541, %v1582
      %v1584 = vpop.f32.mrb[0].mxu0
      %1585 = vmatprep.mubr.f32.mxu0 0.0
      %1586 = vmatmul.mubr.f32.gmra.mrb[0].mxu0 %v668
      %v1587 = vpop.f32.mrb[0].mxu0
      %v1588 = vadd.f32 %v541, %v1587
      %v1589 = vpop.f32.mrb[0].mxu0
      %1590 = vmatprep.mubr.f32.mxu0 0.0
      %1591 = vmatmul.mubr.f32.gmra.mrb[0].mxu0 %v671
      %v1592 = vpop.f32.mrb[0].mxu0
      %v1593 = vadd.f32 %v541, %v1592
      %v1594 = vpop.f32.mrb[0].mxu0
      %1595 = vmatprep.mubr.f32.mxu0 0.0
      %1596 = vmatmul.mubr.f32.gmra.mrb[0].mxu0 %v674
      %v1597 = vpop.f32.mrb[0].mxu0
      %v1598 = vadd.f32 %v541, %v1597
      %v1599 = vpop.f32.mrb[0].mxu0
      %1600 = vmatprep.mubr.f32.mxu0 0.0
      %1601 = vmatmul.mubr.f32.gmra.mrb[0].mxu0 %v677
      %v1602 = vpop.f32.mrb[0].mxu0
      %v1603 = vadd.f32 %v541, %v1602
      %v1604 = vpop.f32.mrb[0].mxu0
      %1605 = vmatprep.mubr.f32.mxu0 0.0
      %1606 = vmatmul.mubr.f32.gmra.mrb[0].mxu0 %v680
      %v1607 = vpop.f32.mrb[0].mxu0
      %v1608 = vadd.f32 %v541, %v1607
      %v1609 = vpop.f32.mrb[0].mxu0
      %1610 = vmatprep.mubr.f32.mxu0 0.0
      %1611 = vmatmul.mubr.f32.gmra.mrb[0].mxu0 %v683
      %v1612 = vpop.f32.mrb[0].mxu0
      %v1613 = vadd.f32 %v541, %v1612
      %v1614 = vpop.f32.mrb[0].mxu0
      %1615 = vmatprep.mubr.f32.mxu0 0.0
      %1616 = vmatmul.mubr.f32.gmra.mrb[0].mxu0 %v686
      %v1617 = vpop.f32.mrb[0].mxu0
      %v1618 = vadd.f32 %v541, %v1617
      %v1619 = vpop.f32.mrb[0].mxu0
      %1620 = vmatprep.mubr.f32.mxu0 0.0
      %1621 = vmatmul.mubr.f32.gmra.mrb[0].mxu0 %v689
      %v1622 = vpop.f32.mrb[0].mxu0
      %v1623 = vadd.f32 %v541, %v1622
      %v1624 = vpop.f32.mrb[0].mxu0
      %1625 = vmatprep.mubr.f32.mxu0 0.0
      %1626 = vmatmul.mubr.f32.gmra.mrb[0].mxu0 %v692
      %v1627 = vpop.f32.mrb[0].mxu0
      %v1628 = vadd.f32 %v541, %v1627
      %v1629 = vpop.f32.mrb[0].mxu0
      %1630 = vmatprep.mubr.f32.mxu0 0.0
      %1631 = vmatmul.mubr.f32.gmra.mrb[0].mxu0 %v695
      %v1632 = vpop.f32.mrb[0].mxu0
      %v1633 = vadd.f32 %v541, %v1632
      %v1634 = vpop.f32.mrb[0].mxu0
      %1635 = vmatprep.mubr.f32.mxu0 0.0
      %1636 = vmatmul.mubr.f32.gmra.mrb[0].mxu0 %v698
      %v1637 = vpop.f32.mrb[0].mxu0
      %v1638 = vadd.f32 %v541, %v1637
      %v1639 = vpop.f32.mrb[0].mxu0
      %1640 = vmatprep.mubr.f32.mxu0 0.0
      %1641 = vmatmul.mubr.f32.gmra.mrb[0].mxu0 %v701
      %v1642 = vpop.f32.mrb[0].mxu0
      %v1643 = vadd.f32 %v541, %v1642
      %v1644 = vpop.f32.mrb[0].mxu0
      %1645 = vmatprep.mubr.f32.mxu0 0.0
      %1646 = vmatmul.mubr.f32.gmra.mrb[0].mxu0 %v704
      %v1647 = vpop.f32.mrb[0].mxu0
      %v1648 = vadd.f32 %v541, %v1647
      %v1649 = vpop.f32.mrb[0].mxu0
      %1650 = vmatprep.mubr.f32.mxu0 0.0
      %1651 = vmatmul.mubr.f32.gmra.mrb[0].mxu0 %v707
      %v1652 = vpop.f32.mrb[0].mxu0
      %v1653 = vadd.f32 %v541, %v1652
      %v1654 = vpop.f32.mrb[0].mxu0
      %1655 = vmatprep.mubr.f32.mxu0 0.0
      %1656 = vmatmul.mubr.f32.gmra.mrb[0].mxu0 %v710
      %v1657 = vpop.f32.mrb[0].mxu0
      %v1658 = vadd.f32 %v541, %v1657
      %v1659 = vpop.f32.mrb[0].mxu0
      %1660 = vmatprep.mubr.f32.mxu0 0.0
      %1661 = vmatmul.mubr.f32.gmra.mrb[0].mxu0 %v713
      %v1662 = vpop.f32.mrb[0].mxu0
      %v1663 = vadd.f32 %v541, %v1662
      %v1664 = vpop.f32.mrb[0].mxu0
      %1665 = vmatprep.mubr.f32.mxu0 0.0
      %1666 = vmatmul.mubr.f32.gmra.mrb[0].mxu0 %v716
      %v1667 = vpop.f32.mrb[0].mxu0
      %v1668 = vadd.f32 %v541, %v1667
      %v1669 = vpop.f32.mrb[0].mxu0
      %1670 = vmatprep.mubr.f32.mxu0 0.0
      %1671 = vmatmul.mubr.f32.gmra.mrb[0].mxu0 %v719
      %v1672 = vpop.f32.mrb[0].mxu0
      %v1673 = vadd.f32 %v541, %v1672
      %v1674 = vpop.f32.mrb[0].mxu0
      %1675 = vmatprep.mubr.f32.mxu0 0.0
      %1676 = vmatmul.mubr.f32.gmra.mrb[0].mxu0 %v722
      %v1677 = vpop.f32.mrb[0].mxu0
      %v1678 = vadd.f32 %v541, %v1677
      %v1679 = vpop.f32.mrb[0].mxu0
      %1680 = vmatprep.mubr.f32.mxu0 0.0
      %1681 = vmatmul.mubr.f32.gmra.mrb[0].mxu0 %v725
      %v1682 = vpop.f32.mrb[0].mxu0
      %v1683 = vadd.f32 %v541, %v1682
      %v1684 = vpop.f32.mrb[0].mxu0
      %1685 = vmatprep.mubr.f32.mxu0 0.0
      %1686 = vmatmul.mubr.f32.gmra.mrb[0].mxu0 %v728
      %v1687 = vpop.f32.mrb[0].mxu0
      %v1688 = vadd.f32 %v541, %v1687
      %v1689 = vpop.f32.mrb[0].mxu0
      %1690 = vmatprep.mubr.f32.mxu0 0.0
      %1691 = vmatmul.mubr.f32.gmra.mrb[0].mxu0 %v731
      %v1692 = vpop.f32.mrb[0].mxu0
      %v1693 = vadd.f32 %v541, %v1692
      %v1694 = vpop.f32.mrb[0].mxu0
      %1695 = vmatprep.mubr.f32.mxu0 0.0
      %1696 = vmatmul.mubr.f32.gmra.mrb[0].mxu0 %v734
      %v1697 = vpop.f32.mrb[0].mxu0
      %v1698 = vadd.f32 %v541, %v1697
      %v1699 = vpop.f32.mrb[0].mxu0
      %1700 = vmatprep.mubr.f32.mxu0 0.0
      %1701 = vmatmul.mubr.f32.gmra.mrb[0].mxu0 %v737
      %v1702 = vpop.f32.mrb[0].mxu0
      %v1703 = vadd.f32 %v541, %v1702
      %v1704 = vpop.f32.mrb[0].mxu0
      %1705 = vmatprep.mubr.f32.mxu0 0.0
      %1706 = vmatmul.mubr.f32.gmra.mrb[0].mxu0 %v740
      %v1707 = vpop.f32.mrb[0].mxu0
      %v1708 = vadd.f32 %v541, %v1707
      %v1709 = vpop.f32.mrb[0].mxu0
      %1710 = vmatprep.mubr.f32.mxu0 0.0
      %1711 = vmatmul.mubr.f32.gmra.mrb[0].mxu0 %v743
      %v1712 = vpop.f32.mrb[0].mxu0
      %v1713 = vadd.f32 %v541, %v1712
      %v1714 = vpop.f32.mrb[0].mxu0
      %1715 = vmatprep.mubr.f32.mxu0 0.0
      %1716 = vmatmul.mubr.f32.gmra.mrb[0].mxu0 %v746
      %v1717 = vpop.f32.mrb[0].mxu0
      %v1718 = vadd.f32 %v541, %v1717
      %v1719 = vpop.f32.mrb[0].mxu0
      %1720 = vmatprep.mubr.f32.mxu0 0.0
      %1721 = vmatmul.mubr.f32.gmra.mrb[0].mxu0 %v749
      %v1722 = vpop.f32.mrb[0].mxu0
      %v1723 = vadd.f32 %v541, %v1722
      %v1724 = vpop.f32.mrb[0].mxu0
      %1725 = vmatprep.mubr.f32.mxu0 0.0
      %1726 = vmatmul.mubr.f32.gmra.mrb[0].mxu0 %v752
      %v1727 = vpop.f32.mrb[0].mxu0
      %v1728 = vadd.f32 %v541, %v1727
      %v1729 = vpop.f32.mrb[0].mxu0
      %1730 = vmatprep.mubr.f32.mxu0 0.0
      %1731 = vmatmul.mubr.f32.gmra.mrb[0].mxu0 %v755
      %v1732 = vpop.f32.mrb[0].mxu0
      %v1733 = vadd.f32 %v541, %v1732
      %v1734 = vpop.f32.mrb[0].mxu0
      %1735 = vmatprep.mubr.f32.mxu0 0.0
      %1736 = vmatmul.mubr.f32.gmra.mrb[0].mxu0 %v758
      %v1737 = vpop.f32.mrb[0].mxu0
      %v1738 = vadd.f32 %v541, %v1737
      %v1739 = vpop.f32.mrb[0].mxu0
      %1740 = vmatprep.mubr.f32.mxu0 0.0
      %1741 = vmatmul.mubr.f32.gmra.mrb[0].mxu0 %v761
      %v1742 = vpop.f32.mrb[0].mxu0
      %v1743 = vadd.f32 %v541, %v1742
      %v1744 = vpop.f32.mrb[0].mxu0
      %1745 = vmatprep.mubr.f32.mxu0 0.0
      %1746 = vmatmul.mubr.f32.gmra.mrb[0].mxu0 %v764
      %v1747 = vpop.f32.mrb[0].mxu0
      %v1748 = vadd.f32 %v541, %v1747
      %v1749 = vpop.f32.mrb[0].mxu0
      %1750 = vmatprep.mubr.f32.mxu0 0.0
      %1751 = vmatmul.mubr.f32.gmra.mrb[0].mxu0 %v767
      %v1752 = vpop.f32.mrb[0].mxu0
      %v1753 = vadd.f32 %v541, %v1752
      %v1754 = vpop.f32.mrb[0].mxu0
      %1755 = vmatprep.mubr.f32.mxu0 0.0
      %1756 = vmatmul.mubr.f32.gmra.mrb[0].mxu0 %v770
      %v1757 = vpop.f32.mrb[0].mxu0
      %v1758 = vadd.f32 %v541, %v1757
      %v1759 = vpop.f32.mrb[0].mxu0
      %1760 = vmatprep.mubr.f32.mxu0 0.0
      %1761 = vmatmul.mubr.f32.gmra.mrb[0].mxu0 %v773
      %v1762 = vpop.f32.mrb[0].mxu0
      %v1763 = vadd.f32 %v541, %v1762
      %v1764 = vpop.f32.mrb[0].mxu0
      %1765 = vmatprep.mubr.f32.mxu0 0.0
      %1766 = vmatmul.mubr.f32.gmra.mrb[0].mxu0 %v776
      %v1767 = vpop.f32.mrb[0].mxu0
      %v1768 = vadd.f32 %v541, %v1767
      %v1769 = vpop.f32.mrb[0].mxu0
      %1770 = vmatprep.mubr.f32.mxu0 0.0
      %1771 = vmatmul.mubr.f32.gmra.mrb[0].mxu0 %v779
      %v1772 = vpop.f32.mrb[0].mxu0
      %v1773 = vadd.f32 %v541, %v1772
      %v1774 = vpop.f32.mrb[0].mxu0
      %1775 = vmatprep.mubr.f32.mxu0 0.0
      %1776 = vmatmul.mubr.f32.gmra.mrb[0].mxu0 %v782
      %v1777 = vpop.f32.mrb[0].mxu0
      %v1778 = vadd.f32 %v541, %v1777
      %v1779 = vpop.f32.mrb[0].mxu0
      %1780 = vmatprep.mubr.f32.mxu0 0.0
      %1781 = vmatmul.mubr.f32.gmra.mrb[0].mxu0 %v785
      %v1782 = vpop.f32.mrb[0].mxu0
      %v1783 = vadd.f32 %v541, %v1782
      %v1784 = vpop.f32.mrb[0].mxu0
      %1785 = vmatprep.mubr.f32.mxu0 0.0
      %1786 = vmatmul.mubr.f32.gmra.mrb[0].mxu0 %v788
      %v1787 = vpop.f32.mrb[0].mxu0
      %v1788 = vadd.f32 %v541, %v1787
      %v1789 = vpop.f32.mrb[0].mxu0
      %1790 = vmatprep.mubr.f32.mxu0 0.0
      %1791 = vmatmul.mubr.f32.gmra.mrb[0].mxu0 %v791
      %v1792 = vpop.f32.mrb[0].mxu0
      %v1793 = vadd.f32 %v541, %v1792
      %v1794 = vpop.f32.mrb[0].mxu0
      %1795 = vmatprep.mubr.f32.mxu0 0.0
      %1796 = vmatmul.mubr.f32.gmra.mrb[0].mxu0 %v794
      %v1797 = vpop.f32.mrb[0].mxu0
      %v1798 = vadd.f32 %v541, %v1797
      %v1799 = vpop.f32.mrb[0].mxu0
      %1800 = vmatprep.mubr.f32.mxu0 0.0
      %1801 = vmatmul.mubr.f32.gmra.mrb[0].mxu0 %v797
      %v1802 = vpop.f32.mrb[0].mxu0
      %v1803 = vadd.f32 %v541, %v1802
      %v1804 = vpop.f32.mrb[0].mxu0
      %1805 = vmatprep.mubr.f32.mxu0 0.0
      %1806 = vmatmul.mubr.f32.gmra.mrb[0].mxu0 %v800
      %v1807 = vpop.f32.mrb[0].mxu0
      %v1808 = vadd.f32 %v541, %v1807
      %v1809 = vpop.f32.mrb[0].mxu0
      %1810 = vmatprep.mubr.f32.mxu0 0.0
      %1811 = vmatmul.mubr.f32.gmra.mrb[0].mxu0 %v803
      %v1812 = vpop.f32.mrb[0].mxu0
      %v1813 = vadd.f32 %v541, %v1812
      %v1814 = vpop.f32.mrb[0].mxu0
      %1815 = vmatprep.mubr.f32.mxu0 0.0
      %1816 = vmatmul.mubr.f32.gmra.mrb[0].mxu0 %v806
      %v1817 = vpop.f32.mrb[0].mxu0
      %v1818 = vadd.f32 %v541, %v1817
      %v1819 = vpop.f32.mrb[0].mxu0
      %1820 = vmatprep.mubr.f32.mxu0 0.0
      %1821 = vmatmul.mubr.f32.gmra.mrb[0].mxu0 %v809
      %v1822 = vpop.f32.mrb[0].mxu0
      %v1823 = vadd.f32 %v541, %v1822
      %v1824 = vpop.f32.mrb[0].mxu0
      %1825 = vmatprep.mubr.f32.mxu0 0.0
      %1826 = vmatmul.mubr.f32.gmra.mrb[0].mxu0 %v812
      %v1827 = vpop.f32.mrb[0].mxu0
      %v1828 = vadd.f32 %v541, %v1827
      %v1829 = vpop.f32.mrb[0].mxu0
      %1830 = vmatprep.mubr.f32.mxu0 0.0
      %1831 = vmatmul.mubr.f32.gmra.mrb[0].mxu0 %v815
      %v1832 = vpop.f32.mrb[0].mxu0
      %v1833 = vadd.f32 %v541, %v1832
      %v1834 = vpop.f32.mrb[0].mxu0
      %1835 = vmatprep.mubr.f32.mxu0 0.0
      %1836 = vmatmul.mubr.f32.gmra.mrb[0].mxu0 %v818
      %v1837 = vpop.f32.mrb[0].mxu0
      %v1838 = vadd.f32 %v541, %v1837
      %v1839 = vpop.f32.mrb[0].mxu0
      %1840 = vmatprep.mubr.f32.mxu0 0.0
      %1841 = vmatmul.mubr.f32.gmra.mrb[0].mxu0 %v821
      %v1842 = vpop.f32.mrb[0].mxu0
      %v1843 = vadd.f32 %v541, %v1842
      %v1844 = vpop.f32.mrb[0].mxu0
      %1845 = vmatprep.mubr.f32.mxu0 0.0
      %1846 = vmatmul.mubr.f32.gmra.mrb[0].mxu0 %v824
      %v1847 = vpop.f32.mrb[0].mxu0
      %v1848 = vadd.f32 %v541, %v1847
      %v1849 = vpop.f32.mrb[0].mxu0
      %1850 = vmatprep.mubr.f32.mxu0 0.0
      %1851 = vmatmul.mubr.f32.gmra.mrb[0].mxu0 %v827
      %v1852 = vpop.f32.mrb[0].mxu0
      %v1853 = vadd.f32 %v541, %v1852
      %v1854 = vpop.f32.mrb[0].mxu0
      %1855 = vmatprep.mubr.f32.mxu0 0.0
      %1856 = vmatmul.mubr.f32.gmra.mrb[0].mxu0 %v830
      %v1857 = vpop.f32.mrb[0].mxu0
      %v1858 = vadd.f32 %v541, %v1857
      %v1859 = vpop.f32.mrb[0].mxu0
      %1860 = vmatprep.mubr.f32.mxu0 0.0
      %1861 = vmatmul.mubr.f32.gmra.mrb[0].mxu0 %v833
      %v1862 = vpop.f32.mrb[0].mxu0
      %v1863 = vadd.f32 %v541, %v1862
      %v1864 = vpop.f32.mrb[0].mxu0
      %1865 = vmatprep.mubr.f32.mxu0 0.0
      %1866 = vmatmul.mubr.f32.gmra.mrb[0].mxu0 %v836
      %v1867 = vpop.f32.mrb[0].mxu0
      %v1868 = vadd.f32 %v541, %v1867
      %v1869 = vpop.f32.mrb[0].mxu0
      %1870 = vmatprep.mubr.f32.mxu0 0.0
      %1871 = vmatmul.mubr.f32.gmra.mrb[0].mxu0 %v839
      %v1872 = vpop.f32.mrb[0].mxu0
      %v1873 = vadd.f32 %v541, %v1872
      %v1874 = vpop.f32.mrb[0].mxu0
      %1875 = vmatprep.mubr.f32.mxu0 0.0
      %1876 = vmatmul.mubr.f32.gmra.mrb[0].mxu0 %v842
      %v1877 = vpop.f32.mrb[0].mxu0
      %v1878 = vadd.f32 %v541, %v1877
      %v1879 = vpop.f32.mrb[0].mxu0
      %1880 = vmatprep.mubr.f32.mxu0 0.0
      %1881 = vmatmul.mubr.f32.gmra.mrb[0].mxu0 %v845
      %v1882 = vpop.f32.mrb[0].mxu0
      %v1883 = vadd.f32 %v541, %v1882
      %v1884 = vpop.f32.mrb[0].mxu0
      %1885 = vmatprep.mubr.f32.mxu0 0.0
      %1886 = vmatmul.mubr.f32.gmra.mrb[0].mxu0 %v848
      %v1887 = vpop.f32.mrb[0].mxu0
      %v1888 = vadd.f32 %v541, %v1887
      %v1889 = vpop.f32.mrb[0].mxu0
      %1890 = vmatprep.mubr.f32.mxu0 0.0
      %1891 = vmatmul.mubr.f32.gmra.mrb[0].mxu0 %v851
      %v1892 = vpop.f32.mrb[0].mxu0
      %v1893 = vadd.f32 %v541, %v1892
      %v1894 = vpop.f32.mrb[0].mxu0
      %1895 = vmatprep.mubr.f32.mxu0 0.0
      %1896 = vmatmul.mubr.f32.gmra.mrb[0].mxu0 %v854
      %v1897 = vpop.f32.mrb[0].mxu0
      %v1898 = vadd.f32 %v541, %v1897
      %v1899 = vpop.f32.mrb[0].mxu0
      %1900 = vmatprep.mubr.f32.mxu0 0.0
      %1901 = vmatmul.mubr.f32.gmra.mrb[0].mxu0 %v857
      %v1902 = vpop.f32.mrb[0].mxu0
      %v1903 = vadd.f32 %v541, %v1902
      %v1904 = vpop.f32.mrb[0].mxu0
      %1905 = vmatprep.mubr.f32.mxu0 0.0
      %1906 = vmatmul.mubr.f32.gmra.mrb[0].mxu0 %v860
      %v1907 = vpop.f32.mrb[0].mxu0
      %v1908 = vadd.f32 %v541, %v1907
      %v1909 = vpop.f32.mrb[0].mxu0
      %1910 = vmatprep.mubr.f32.mxu0 0.0
      %1911 = vmatmul.mubr.f32.gmra.mrb[0].mxu0 %v863
      %v1912 = vpop.f32.mrb[0].mxu0
      %v1913 = vadd.f32 %v541, %v1912
      %v1914 = vpop.f32.mrb[0].mxu0
      %1915 = vmatprep.mubr.f32.mxu0 0.0
      %1916 = vmatmul.mubr.f32.gmra.mrb[0].mxu0 %v866
      %v1917 = vpop.f32.mrb[0].mxu0
      %v1918 = vadd.f32 %v541, %v1917
      %v1919 = vpop.f32.mrb[0].mxu0
      %1920 = vmatprep.mubr.f32.mxu0 0.0
      %1921 = vmatmul.mubr.f32.gmra.mrb[0].mxu0 %v869
      %v1922 = vpop.f32.mrb[0].mxu0
      %v1923 = vadd.f32 %v541, %v1922
      %v1924 = vpop.f32.mrb[0].mxu0
      %1925 = vmatprep.mubr.f32.mxu0 0.0
      %1926 = vmatmul.mubr.f32.gmra.mrb[0].mxu0 %v872
      %v1927 = vpop.f32.mrb[0].mxu0
      %v1928 = vadd.f32 %v541, %v1927
      %v1929 = vpop.f32.mrb[0].mxu0
      %1930 = vmatprep.mubr.f32.mxu0 0.0
      %1931 = vmatmul.mubr.f32.gmra.mrb[0].mxu0 %v875
      %v1932 = vpop.f32.mrb[0].mxu0
      %v1933 = vadd.f32 %v541, %v1932
      %v1934 = vpop.f32.mrb[0].mxu0
      %1935 = vmatprep.mubr.f32.mxu0 0.0
      %1936 = vmatmul.mubr.f32.gmra.mrb[0].mxu0 %v878
      %v1937 = vpop.f32.mrb[0].mxu0
      %v1938 = vadd.f32 %v541, %v1937
      %v1939 = vpop.f32.mrb[0].mxu0
      %1940 = vmatprep.mubr.f32.mxu0 0.0
      %1941 = vmatmul.mubr.f32.gmra.mrb[0].mxu0 %v881
      %v1942 = vpop.f32.mrb[0].mxu0
      %v1943 = vadd.f32 %v541, %v1942
      %v1944 = vpop.f32.mrb[0].mxu0
      %1945 = vmatprep.mubr.f32.mxu0 0.0
      %1946 = vmatmul.mubr.f32.gmra.mrb[0].mxu0 %v884
      %v1947 = vpop.f32.mrb[0].mxu0
      %v1948 = vadd.f32 %v541, %v1947
      %v1949 = vpop.f32.mrb[0].mxu0
      %1950 = vmatprep.mubr.f32.mxu0 0.0
      %1951 = vmatmul.mubr.f32.gmra.mrb[0].mxu0 %v887
      %v1952 = vpop.f32.mrb[0].mxu0
      %v1953 = vadd.f32 %v541, %v1952
      %v1954 = vpop.f32.mrb[0].mxu0
      %1955 = vmatprep.mubr.f32.mxu0 0.0
      %1956 = vmatmul.mubr.f32.gmra.mrb[0].mxu0 %v890
      %v1957 = vpop.f32.mrb[0].mxu0
      %v1958 = vadd.f32 %v541, %v1957
      %v1959 = vpop.f32.mrb[0].mxu0
      %1960 = vmatprep.mubr.f32.mxu0 0.0
      %1961 = vmatmul.mubr.f32.gmra.mrb[0].mxu0 %v893
      %v1962 = vpop.f32.mrb[0].mxu0
      %v1963 = vadd.f32 %v541, %v1962
      %v1964 = vpop.f32.mrb[0].mxu0
      %1965 = vmatprep.mubr.f32.mxu0 0.0
      %1966 = vmatmul.mubr.f32.gmra.mrb[0].mxu0 %v896
      %v1967 = vpop.f32.mrb[0].mxu0
      %v1968 = vadd.f32 %v541, %v1967
      %v1969 = vpop.f32.mrb[0].mxu0
      %1970 = vmatprep.mubr.f32.mxu0 0.0
      %1971 = vmatmul.mubr.f32.gmra.mrb[0].mxu0 %v899
      %v1972 = vpop.f32.mrb[0].mxu0
      %v1973 = vadd.f32 %v541, %v1972
      %v1974 = vpop.f32.mrb[0].mxu0
      %1975 = vmatprep.mubr.f32.mxu0 0.0
      %1976 = vmatmul.mubr.f32.gmra.mrb[0].mxu0 %v902
      %v1977 = vpop.f32.mrb[0].mxu0
      %v1978 = vadd.f32 %v541, %v1977
      %v1979 = vpop.f32.mrb[0].mxu0
      %1980 = vmatprep.mubr.f32.mxu0 0.0
      %1981 = vmatmul.mubr.f32.gmra.mrb[0].mxu0 %v905
      %v1982 = vpop.f32.mrb[0].mxu0
      %v1983 = vadd.f32 %v541, %v1982
      %v1984 = vpop.f32.mrb[0].mxu0
      %1985 = vmatprep.mubr.f32.mxu0 0.0
      %1986 = vmatmul.mubr.f32.gmra.mrb[0].mxu0 %v908
      %v1987 = vpop.f32.mrb[0].mxu0
      %v1988 = vadd.f32 %v541, %v1987
      %v1989 = vpop.f32.mrb[0].mxu0
      %1990 = vmatprep.mubr.f32.mxu0 0.0
      %1991 = vmatmul.mubr.f32.gmra.mrb[0].mxu0 %v911
      %v1992 = vpop.f32.mrb[0].mxu0
      %v1993 = vadd.f32 %v541, %v1992
      %v1994 = vpop.f32.mrb[0].mxu0
      %1995 = vmatprep.mubr.f32.mxu0 0.0
      %1996 = vmatmul.mubr.f32.gmra.mrb[0].mxu0 %v914
      %v1997 = vpop.f32.mrb[0].mxu0
      %v1998 = vadd.f32 %v541, %v1997
      %v1999 = vpop.f32.mrb[0].mxu0
      %2000 = vmatprep.mubr.f32.mxu0 0.0
      %2001 = vmatmul.mubr.f32.gmra.mrb[0].mxu0 %v917
      %v2002 = vpop.f32.mrb[0].mxu0
      %v2003 = vadd.f32 %v541, %v2002
      %v2004 = vpop.f32.mrb[0].mxu0
      %2005 = vmatprep.mubr.f32.mxu0 0.0
      %2006 = vmatmul.mubr.f32.gmra.mrb[0].mxu0 %v920
      %v2007 = vpop.f32.mrb[0].mxu0
      %v2008 = vadd.f32 %v541, %v2007
      %v2009 = vpop.f32.mrb[0].mxu0
      %2010 = vmatprep.mubr.f32.mxu0 0.0
      %2011 = vmatmul.mubr.f32.gmra.mrb[0].mxu0 %v923
      %v2012 = vpop.f32.mrb[0].mxu0
      %v2013 = vadd.f32 %v541, %v2012
      %v2014 = vpop.f32.mrb[0].mxu0
      %2015 = vmatprep.mubr.f32.mxu0 0.0
      %2016 = vmatmul.mubr.f32.gmra.mrb[0].mxu0 %v926
      %v2017 = vpop.f32.mrb[0].mxu0
      %v2018 = vadd.f32 %v541, %v2017
      %v2019 = vpop.f32.mrb[0].mxu0
      %2020 = vmatprep.mubr.f32.mxu0 0.0
      %2021 = vmatmul.mubr.f32.gmra.mrb[0].mxu0 %v929
      %v2022 = vpop.f32.mrb[0].mxu0
      %v2023 = vadd.f32 %v541, %v2022
      %v2024 = vpop.f32.mrb[0].mxu0
      %2025 = vmatprep.mubr.f32.mxu0 0.0
      %2026 = vmatmul.mubr.f32.gmra.mrb[0].mxu0 %v932
      %v2027 = vpop.f32.mrb[0].mxu0
      %v2028 = vadd.f32 %v541, %v2027
      %v2029 = vpop.f32.mrb[0].mxu0
      %2030 = vmatprep.mubr.f32.mxu0 0.0
      %2031 = vmatmul.mubr.f32.gmra.mrb[0].mxu0 %v935
      %v2032 = vpop.f32.mrb[0].mxu0
      %v2033 = vadd.f32 %v541, %v2032
      %v2034 = vpop.f32.mrb[0].mxu0
      %2035 = vmatprep.mubr.f32.mxu0 0.0
      %2036 = vmatmul.mubr.f32.gmra.mrb[0].mxu0 %v938
      %v2037 = vpop.f32.mrb[0].mxu0
      %v2038 = vadd.f32 %v541, %v2037
      %v2039 = vpop.f32.mrb[0].mxu0
      %2040 = vmatprep.mubr.f32.mxu0 0.0
      %2041 = vmatmul.mubr.f32.gmra.mrb[0].mxu0 %v941
      %v2042 = vpop.f32.mrb[0].mxu0
      %v2043 = vadd.f32 %v541, %v2042
      %v2044 = vpop.f32.mrb[0].mxu0
      %2045 = vmatprep.mubr.f32.mxu0 0.0
      %2046 = vmatmul.mubr.f32.gmra.mrb[0].mxu0 %v944
      %v2047 = vpop.f32.mrb[0].mxu0
      %v2048 = vadd.f32 %v541, %v2047
      %v2049 = vpop.f32.mrb[0].mxu0
      %2050 = vmatprep.mubr.f32.mxu0 0.0
      %2051 = vmatmul.mubr.f32.gmra.mrb[0].mxu0 %v947
      %v2052 = vpop.f32.mrb[0].mxu0
      %v2053 = vadd.f32 %v541, %v2052
      %v2054 = vpop.f32.mrb[0].mxu0
      %2055 = vmatprep.mubr.f32.mxu0 0.0
      %2056 = vmatmul.mubr.f32.gmra.mrb[0].mxu0 %v950
      %v2057 = vpop.f32.mrb[0].mxu0
      %v2058 = vadd.f32 %v541, %v2057
      %v2059 = vpop.f32.mrb[0].mxu0
      %2060 = vmatprep.mubr.f32.mxu0 0.0
      %2061 = vmatmul.mubr.f32.gmra.mrb[0].mxu0 %v953
      %v2062 = vpop.f32.mrb[0].mxu0
      %v2063 = vadd.f32 %v541, %v2062
      %v2064 = vpop.f32.mrb[0].mxu0
      %2065 = vmatprep.mubr.f32.mxu0 0.0
      %2066 = vmatmul.mubr.f32.gmra.mrb[0].mxu0 %v956
      %v2067 = vpop.f32.mrb[0].mxu0
      %v2068 = vadd.f32 %v541, %v2067
      %v2069 = vpop.f32.mrb[0].mxu0
      %2070 = vmatprep.mubr.f32.mxu0 0.0
      %2071 = vmatmul.mubr.f32.gmra.mrb[0].mxu0 %v959
      %v2072 = vpop.f32.mrb[0].mxu0
      %v2073 = vadd.f32 %v541, %v2072
      %v2074 = vpop.f32.mrb[0].mxu0
      %2075 = vmatprep.mubr.f32.mxu0 0.0
      %2076 = vmatmul.mubr.f32.gmra.mrb[0].mxu0 %v962
      %v2077 = vpop.f32.mrb[0].mxu0
      %v2078 = vadd.f32 %v541, %v2077
      %v2079 = vpop.f32.mrb[0].mxu0
      %2080 = vmatprep.mubr.f32.mxu0 0.0
      %2081 = vmatmul.mubr.f32.gmra.mrb[0].mxu0 %v965
      %v2082 = vpop.f32.mrb[0].mxu0
      %v2083 = vadd.f32 %v541, %v2082
      %v2084 = vpop.f32.mrb[0].mxu0
      %2085 = vmatprep.mubr.f32.mxu0 0.0
      %2086 = vmatmul.mubr.f32.gmra.mrb[0].mxu0 %v968
      %v2087 = vpop.f32.mrb[0].mxu0
      %v2088 = vadd.f32 %v541, %v2087
      %v2089 = vpop.f32.mrb[0].mxu0
      %2090 = vmatprep.mubr.f32.mxu0 0.0
      %2091 = vmatmul.mubr.f32.gmra.mrb[0].mxu0 %v971
      %v2092 = vpop.f32.mrb[0].mxu0
      %v2093 = vadd.f32 %v541, %v2092
      %v2094 = vpop.f32.mrb[0].mxu0
      %2095 = vmatprep.mubr.f32.mxu0 0.0
      %2096 = vmatmul.mubr.f32.gmra.mrb[0].mxu0 %v974
      %v2097 = vpop.f32.mrb[0].mxu0
      %v2098 = vadd.f32 %v541, %v2097
      %v2099 = vpop.f32.mrb[0].mxu0
      %2100 = vmatprep.mubr.f32.mxu0 0.0
      %2101 = vmatmul.mubr.f32.gmra.mrb[0].mxu0 %v977
      %v2102 = vpop.f32.mrb[0].mxu0
      %v2103 = vadd.f32 %v541, %v2102
      %v2104 = vpop.f32.mrb[0].mxu0
      %2105 = vmatprep.mubr.f32.mxu0 0.0
      %2106 = vmatmul.mubr.f32.gmra.mrb[0].mxu0 %v980
      %v2107 = vpop.f32.mrb[0].mxu0
      %v2108 = vadd.f32 %v541, %v2107
      %v2109 = vpop.f32.mrb[0].mxu0
      %2110 = vmatprep.mubr.f32.mxu0 0.0
      %2111 = vmatmul.mubr.f32.gmra.mrb[0].mxu0 %v983
      %v2112 = vpop.f32.mrb[0].mxu0
      %v2113 = vadd.f32 %v541, %v2112
      %v2114 = vpop.f32.mrb[0].mxu0
      %2115 = vmatprep.mubr.f32.mxu0 0.0
      %2116 = vmatmul.mubr.f32.gmra.mrb[0].mxu0 %v986
      %v2117 = vpop.f32.mrb[0].mxu0
      %v2118 = vadd.f32 %v541, %v2117
      %v2119 = vpop.f32.mrb[0].mxu0
      %2120 = vmatprep.mubr.f32.mxu0 0.0
      %2121 = vmatmul.mubr.f32.gmra.mrb[0].mxu0 %v989
      %v2122 = vpop.f32.mrb[0].mxu0
      %v2123 = vadd.f32 %v541, %v2122
      %v2124 = vpop.f32.mrb[0].mxu0
      %2125 = vmatprep.mubr.f32.mxu0 0.0
      %2126 = vmatmul.mubr.f32.gmra.mrb[0].mxu0 %v992
      %v2127 = vpop.f32.mrb[0].mxu0
      %v2128 = vadd.f32 %v541, %v2127
      %v2129 = vpop.f32.mrb[0].mxu0
      %2130 = vmatprep.mubr.f32.mxu0 0.0
      %2131 = vmatmul.mubr.f32.gmra.mrb[0].mxu0 %v995
      %v2132 = vpop.f32.mrb[0].mxu0
      %v2133 = vadd.f32 %v541, %v2132
      %v2134 = vpop.f32.mrb[0].mxu0
      %2135 = vmatprep.mubr.f32.mxu0 0.0
      %2136 = vmatmul.mubr.f32.gmra.mrb[0].mxu0 %v998
      %v2137 = vpop.f32.mrb[0].mxu0
      %v2138 = vadd.f32 %v541, %v2137
      %v2139 = vpop.f32.mrb[0].mxu0
      %2140 = vmatprep.mubr.f32.mxu0 0.0
      %2141 = vmatmul.mubr.f32.gmra.mrb[0].mxu0 %v1001
      %v2142 = vpop.f32.mrb[0].mxu0
      %v2143 = vadd.f32 %v541, %v2142
      %v2144 = vpop.f32.mrb[0].mxu0
      %2145 = vmatprep.mubr.f32.mxu0 0.0
      %2146 = vmatmul.mubr.f32.gmra.mrb[0].mxu0 %v1004
      %v2147 = vpop.f32.mrb[0].mxu0
      %v2148 = vadd.f32 %v541, %v2147
      %v2149 = vpop.f32.mrb[0].mxu0
      %2150 = vmatprep.mubr.f32.mxu0 0.0
      %2151 = vmatmul.mubr.f32.gmra.mrb[0].mxu0 %v1007
      %v2152 = vpop.f32.mrb[0].mxu0
      %v2153 = vadd.f32 %v541, %v2152
      %v2154 = vpop.f32.mrb[0].mxu0
      %2155 = vmatprep.mubr.f32.mxu0 0.0
      %2156 = vmatmul.mubr.f32.gmra.mrb[0].mxu0 %v1010
      %v2157 = vpop.f32.mrb[0].mxu0
      %v2158 = vadd.f32 %v541, %v2157
      %v2159 = vpop.f32.mrb[0].mxu0
      %2160 = vmatprep.mubr.f32.mxu0 0.0
      %2161 = vmatmul.mubr.f32.gmra.mrb[0].mxu0 %v1013
      %v2162 = vpop.f32.mrb[0].mxu0
      %v2163 = vadd.f32 %v541, %v2162
      %v2164 = vpop.f32.mrb[0].mxu0
      %2165 = vmatprep.mubr.f32.mxu0 0.0
      %2166 = vmatmul.mubr.f32.gmra.mrb[0].mxu0 %v1016
      %v2167 = vpop.f32.mrb[0].mxu0
      %v2168 = vadd.f32 %v541, %v2167
      %v2169 = vpop.f32.mrb[0].mxu0
      %2170 = vmatprep.mubr.f32.mxu0 0.0
      %2171 = vmatmul.mubr.f32.gmra.mrb[0].mxu0 %v1019
      %v2172 = vpop.f32.mrb[0].mxu0
      %v2173 = vadd.f32 %v541, %v2172
      %v2174 = vpop.f32.mrb[0].mxu0
      %2175 = vmatprep.mubr.f32.mxu0 0.0
      %2176 = vmatmul.mubr.f32.gmra.mrb[0].mxu0 %v1022
      %v2177 = vpop.f32.mrb[0].mxu0
      %v2178 = vadd.f32 %v541, %v2177
      %v2179 = vpop.f32.mrb[0].mxu0
      %2180 = vmatprep.mubr.f32.mxu0 0.0
      %2181 = vmatmul.mubr.f32.gmra.mrb[0].mxu0 %v1025
      %v2182 = vpop.f32.mrb[0].mxu0
      %v2183 = vadd.f32 %v541, %v2182
      %v2184 = vpop.f32.mrb[0].mxu0
      %2185 = vmatprep.mubr.f32.mxu0 0.0
      %2186 = vmatmul.mubr.f32.gmra.mrb[0].mxu0 %v1028
      %v2187 = vpop.f32.mrb[0].mxu0
      %v2188 = vadd.f32 %v541, %v2187
      %v2189 = vpop.f32.mrb[0].mxu0
      %2190 = vmatprep.mubr.f32.mxu0 0.0
      %2191 = vmatmul.mubr.f32.gmra.mrb[0].mxu0 %v1031
      %v2192 = vpop.f32.mrb[0].mxu0
      %v2193 = vadd.f32 %v541, %v2192
      %v2194 = vpop.f32.mrb[0].mxu0
      %2195 = vmatprep.mubr.f32.mxu0 0.0
      %2196 = vmatmul.mubr.f32.gmra.mrb[0].mxu0 %v1034
      %v2197 = vpop.f32.mrb[0].mxu0
      %v2198 = vadd.f32 %v541, %v2197
      %v2199 = vpop.f32.mrb[0].mxu0
      %2200 = vmatprep.mubr.f32.mxu0 0.0
      %2201 = vmatmul.mubr.f32.gmra.mrb[0].mxu0 %v1037
      %v2202 = vpop.f32.mrb[0].mxu0
      %v2203 = vadd.f32 %v541, %v2202
      %v2204 = vpop.f32.mrb[0].mxu0
      %2205 = vmatprep.mubr.f32.mxu0 0.0
      %2206 = vmatmul.mubr.f32.gmra.mrb[0].mxu0 %v1040
      %v2207 = vpop.f32.mrb[0].mxu0
      %v2208 = vadd.f32 %v541, %v2207
      %v2209 = vpop.f32.mrb[0].mxu0
      %2210 = vmatprep.mubr.f32.mxu0 0.0
      %2211 = vmatmul.mubr.f32.gmra.mrb[0].mxu0 %v1043
      %v2212 = vpop.f32.mrb[0].mxu0
      %v2213 = vadd.f32 %v541, %v2212
      %v2214 = vpop.f32.mrb[0].mxu0
      %2215 = vmatprep.mubr.f32.mxu0 0.0
      %2216 = vmatmul.mubr.f32.gmra.mrb[0].mxu0 %v1046
      %v2217 = vpop.f32.mrb[0].mxu0
      %v2218 = vadd.f32 %v541, %v2217
      %v2219 = vpop.f32.mrb[0].mxu0
      %2220 = vmatprep.mubr.f32.mxu0 0.0
      %2221 = vmatmul.mubr.f32.gmra.mrb[0].mxu0 %v1049
      %v2222 = vpop.f32.mrb[0].mxu0
      %v2223 = vadd.f32 %v541, %v2222
      %v2224 = vpop.f32.mrb[0].mxu0
      %2225 = vmatprep.mubr.f32.mxu0 0.0
      %2226 = vmatmul.mubr.f32.gmra.mrb[0].mxu0 %v1052
      %v2227 = vpop.f32.mrb[0].mxu0
      %v2228 = vadd.f32 %v541, %v2227
      %v2229 = vpop.f32.mrb[0].mxu0
      %2230 = vmatprep.mubr.f32.mxu0 0.0
      %2231 = vmatmul.mubr.f32.gmra.mrb[0].mxu0 %v1055
      %v2232 = vpop.f32.mrb[0].mxu0
      %v2233 = vadd.f32 %v541, %v2232
      %v2234 = vpop.f32.mrb[0].mxu0
      %2235 = vmatprep.mubr.f32.mxu0 0.0
      %2236 = vmatmul.mubr.f32.gmra.mrb[0].mxu0 %v1058
      %v2237 = vpop.f32.mrb[0].mxu0
      %v2238 = vadd.f32 %v541, %v2237
      %v2239 = vpop.f32.mrb[0].mxu0
      %2240 = vmatprep.mubr.f32.mxu0 0.0
      %2241 = vmatmul.mubr.f32.gmra.mrb[0].mxu0 %v1061
      %v2242 = vpop.f32.mrb[0].mxu0
      %v2243 = vadd.f32 %v541, %v2242
      %v2244 = vpop.f32.mrb[0].mxu0
      %2245 = vmatprep.mubr.f32.mxu0 0.0
      %2246 = vmatmul.mubr.f32.gmra.mrb[0].mxu0 %v1064
      %v2247 = vpop.f32.mrb[0].mxu0
      %v2248 = vadd.f32 %v541, %v2247
      %v2249 = vpop.f32.mrb[0].mxu0
      %2250 = vmatprep.mubr.f32.mxu0 0.0
      %2251 = vmatmul.mubr.f32.gmra.mrb[0].mxu0 %v1067
      %v2252 = vpop.f32.mrb[0].mxu0
      %v2253 = vadd.f32 %v541, %v2252
      %v2254 = vpop.f32.mrb[0].mxu0
      %2255 = vmatprep.mubr.f32.mxu0 0.0
      %2256 = vmatmul.mubr.f32.gmra.mrb[0].mxu0 %v1070
      %v2257 = vpop.f32.mrb[0].mxu0
      %v2258 = vadd.f32 %v541, %v2257
      %v2259 = vpop.f32.mrb[0].mxu0
      %2260 = vmatprep.mubr.f32.mxu0 0.0
      %2261 = vmatmul.mubr.f32.gmra.mrb[0].mxu0 %v1073
      %v2262 = vpop.f32.mrb[0].mxu0
      %v2263 = vadd.f32 %v541, %v2262
      %v2264 = vpop.f32.mrb[0].mxu0
      %2265 = vmatprep.mubr.f32.mxu0 0.0
      %2266 = vmatmul.mubr.f32.gmra.mrb[0].mxu0 %v1076
      %v2267 = vpop.f32.mrb[0].mxu0
      %v2268 = vadd.f32 %v541, %v2267
      %v2269 = vpop.f32.mrb[0].mxu0
      %2270 = vmatprep.mubr.f32.mxu0 0.0
      %2271 = vmatmul.mubr.f32.gmra.mrb[0].mxu0 %v1079
      %v2272 = vpop.f32.mrb[0].mxu0
      %v2273 = vadd.f32 %v541, %v2272
      %v2274 = vpop.f32.mrb[0].mxu0
      %2275 = vmatprep.mubr.f32.mxu0 0.0
      %2276 = vmatmul.mubr.f32.gmra.mrb[0].mxu0 %v1082
      %v2277 = vpop.f32.mrb[0].mxu0
      %v2278 = vadd.f32 %v541, %v2277
      %v2279 = vpop.f32.mrb[0].mxu0
      %2280 = vmatprep.mubr.f32.mxu0 0.0
      %2281 = vmatmul.mubr.f32.gmra.mrb[0].mxu0 %v1085
      %v2282 = vpop.f32.mrb[0].mxu0
      %v2283 = vadd.f32 %v541, %v2282
      %v2284 = vpop.f32.mrb[0].mxu0
      %2285 = vmatprep.mubr.f32.mxu0 0.0
      %2286 = vmatmul.mubr.f32.gmra.mrb[0].mxu0 %v1088
      %v2287 = vpop.f32.mrb[0].mxu0
      %v2288 = vadd.f32 %v541, %v2287
      %v2289 = vpop.f32.mrb[0].mxu0
      %2290 = vmatprep.mubr.f32.mxu0 0.0
      %2291 = vmatmul.mubr.f32.gmra.mrb[0].mxu0 %v1091
      %v2292 = vpop.f32.mrb[0].mxu0
      %v2293 = vadd.f32 %v541, %v2292
      %v2294 = vpop.f32.mrb[0].mxu0
      %2295 = vmatprep.mubr.f32.mxu0 0.0
      %2296 = vmatmul.mubr.f32.gmra.mrb[0].mxu0 %v1094
      %v2297 = vpop.f32.mrb[0].mxu0
      %v2298 = vadd.f32 %v541, %v2297
      %v2299 = vpop.f32.mrb[0].mxu0
      %2300 = vmatprep.mubr.f32.mxu0 0.0
      %2301 = vmatmul.mubr.f32.gmra.mrb[0].mxu0 %v1097
      %v2302 = vpop.f32.mrb[0].mxu0
      %v2303 = vadd.f32 %v541, %v2302
      %v2304 = vpop.f32.mrb[0].mxu0
      %2305 = vmatprep.mubr.f32.mxu0 0.0
      %2306 = vmatmul.mubr.f32.gmra.mrb[0].mxu0 %v1100
      %v2307 = vpop.f32.mrb[0].mxu0
      %v2308 = vadd.f32 %v541, %v2307
      %v2309 = vpop.f32.mrb[0].mxu0
      %2310 = vmatprep.mubr.f32.mxu0 0.0
      %2311 = vmatmul.mubr.f32.gmra.mrb[0].mxu0 %v1103
      %v2312 = vpop.f32.mrb[0].mxu0
      %v2313 = vadd.f32 %v541, %v2312
      %v2314 = vpop.f32.mrb[0].mxu0
      %2315 = vmatprep.mubr.f32.mxu0 0.0
      %2316 = vmatmul.mubr.f32.gmra.mrb[0].mxu0 %v1106
      %v2317 = vpop.f32.mrb[0].mxu0
      %v2318 = vadd.f32 %v541, %v2317
      %v2319 = vpop.f32.mrb[0].mxu0
      %2320 = vmatprep.mubr.f32.mxu0 0.0
      %2321 = vmatmul.mubr.f32.gmra.mrb[0].mxu0 %v1109
      %v2322 = vpop.f32.mrb[0].mxu0
      %v2323 = vadd.f32 %v541, %v2322
      %v2324 = vpop.f32.mrb[0].mxu0
      %2325 = vmatprep.mubr.f32.mxu0 0.0
      %2326 = vmatmul.mubr.f32.gmra.mrb[0].mxu0 %v1112
      %v2327 = vpop.f32.mrb[0].mxu0
      %v2328 = vadd.f32 %v541, %v2327
      %v2329 = vpop.f32.mrb[0].mxu0
      %2330 = vmatprep.mubr.f32.mxu0 0.0
      %2331 = vmatmul.mubr.f32.gmra.mrb[0].mxu0 %v1115
      %v2332 = vpop.f32.mrb[0].mxu0
      %v2333 = vadd.f32 %v541, %v2332
      %v2334 = vpop.f32.mrb[0].mxu0
      %2335 = vmatprep.mubr.f32.mxu0 0.0
      %2336 = vmatmul.mubr.f32.gmra.mrb[0].mxu0 %v1118
      %v2337 = vpop.f32.mrb[0].mxu0
      %v2338 = vadd.f32 %v541, %v2337
      %v2339 = vpop.f32.mrb[0].mxu0
      %2340 = vmatprep.mubr.f32.mxu0 0.0
      %2341 = vmatmul.mubr.f32.gmra.mrb[0].mxu0 %v1121
      %v2342 = vpop.f32.mrb[0].mxu0
      %v2343 = vadd.f32 %v541, %v2342
      %v2344 = vpop.f32.mrb[0].mxu0
      %2345 = vmatprep.mubr.f32.mxu0 0.0
      %2346 = vmatmul.mubr.f32.gmra.mrb[0].mxu0 %v1124
      %v2347 = vpop.f32.mrb[0].mxu0
      %v2348 = vadd.f32 %v541, %v2347
      %v2349 = vpop.f32.mrb[0].mxu0
      %2350 = vmatprep.mubr.f32.mxu0 0.0
      %2351 = vmatmul.mubr.f32.gmra.mrb[0].mxu0 %v1127
      %v2352 = vpop.f32.mrb[0].mxu0
      %v2353 = vadd.f32 %v541, %v2352
      %v2354 = vpop.f32.mrb[0].mxu0
      %2355 = vmatprep.mubr.f32.mxu0 0.0
      %2356 = vmatmul.mubr.f32.gmra.mrb[0].mxu0 %v1130
      %v2357 = vpop.f32.mrb[0].mxu0
      %v2358 = vadd.f32 %v541, %v2357
      %v2359 = vpop.f32.mrb[0].mxu0
      %2360 = vmatprep.mubr.f32.mxu0 0.0
      %2361 = vmatmul.mubr.f32.gmra.mrb[0].mxu0 %v1133
      %v2362 = vpop.f32.mrb[0].mxu0
      %v2363 = vadd.f32 %v541, %v2362
      %v2364 = vpop.f32.mrb[0].mxu0
      %2365 = vmatprep.mubr.f32.mxu0 0.0
      %2366 = vmatmul.mubr.f32.gmra.mrb[0].mxu0 %v1136
      %v2367 = vpop.f32.mrb[0].mxu0
      %v2368 = vadd.f32 %v541, %v2367
      %v2369 = vpop.f32.mrb[0].mxu0
      %2370 = vmatprep.mubr.f32.mxu0 0.0
      %2371 = vmatmul.mubr.f32.gmra.mrb[0].mxu0 %v1139
      %v2372 = vpop.f32.mrb[0].mxu0
      %v2373 = vadd.f32 %v541, %v2372
      %v2374 = vpop.f32.mrb[0].mxu0
      %2375 = vmatprep.mubr.f32.mxu0 0.0
      %2376 = vmatmul.mubr.f32.gmra.mrb[0].mxu0 %v1142
      %v2377 = vpop.f32.mrb[0].mxu0
      %v2378 = vadd.f32 %v541, %v2377
      %v2379 = vpop.f32.mrb[0].mxu0
      %2380 = vmatprep.mubr.f32.mxu0 0.0
      %2381 = vmatmul.mubr.f32.gmra.mrb[0].mxu0 %v1145
      %v2382 = vpop.f32.mrb[0].mxu0
      %v2383 = vadd.f32 %v541, %v2382
      %v2384 = vpop.f32.mrb[0].mxu0
      %2385 = vmatprep.mubr.f32.mxu0 0.0
      %2386 = vmatmul.mubr.f32.gmra.mrb[0].mxu0 %v1148
      %v2387 = vpop.f32.mrb[0].mxu0
      %v2388 = vadd.f32 %v541, %v2387
      %v2389 = vpop.f32.mrb[0].mxu0
      %2390 = vmatprep.mubr.f32.mxu0 0.0
      %2391 = vmatmul.mubr.f32.gmra.mrb[0].mxu0 %v1151
      %v2392 = vpop.f32.mrb[0].mxu0
      %v2393 = vadd.f32 %v541, %v2392
      %v2394 = vpop.f32.mrb[0].mxu0
      %2395 = vmatprep.mubr.f32.mxu0 0.0
      %2396 = vmatmul.mubr.f32.gmra.mrb[0].mxu0 %v1154
      %v2397 = vpop.f32.mrb[0].mxu0
      %v2398 = vadd.f32 %v541, %v2397
      %v2399 = vpop.f32.mrb[0].mxu0
      %2400 = vmatprep.mubr.f32.mxu0 0.0
      %2401 = vmatmul.mubr.f32.gmra.mrb[0].mxu0 %v1157
      %v2402 = vpop.f32.mrb[0].mxu0
      %v2403 = vadd.f32 %v541, %v2402
      %v2404 = vpop.f32.mrb[0].mxu0
      %2405 = vmatprep.mubr.f32.mxu0 0.0
      %2406 = vmatmul.mubr.f32.gmra.mrb[0].mxu0 %v1160
      %v2407 = vpop.f32.mrb[0].mxu0
      %v2408 = vadd.f32 %v541, %v2407
      %v2409 = vpop.f32.mrb[0].mxu0
      %2410 = vmatprep.mubr.f32.mxu0 0.0
      %2411 = vmatmul.mubr.f32.gmra.mrb[0].mxu0 %v1163
      %v2412 = vpop.f32.mrb[0].mxu0
      %v2413 = vadd.f32 %v541, %v2412
      %v2414 = vpop.f32.mrb[0].mxu0
      %2415 = vmatprep.mubr.f32.mxu0 0.0
      %2416 = vmatmul.mubr.f32.gmra.mrb[0].mxu0 %v1166
      %v2417 = vpop.f32.mrb[0].mxu0
      %v2418 = vadd.f32 %v541, %v2417
      %v2419 = vpop.f32.mrb[0].mxu0
      %2420 = vmatprep.mubr.f32.mxu0 0.0
      %2421 = vmatmul.mubr.f32.gmra.mrb[0].mxu0 %v1169
      %v2422 = vpop.f32.mrb[0].mxu0
      %v2423 = vadd.f32 %v541, %v2422
      %v2424 = vpop.f32.mrb[0].mxu0
      %2425 = vmatprep.mubr.f32.mxu0 0.0
      %2426 = vmatmul.mubr.f32.gmra.mrb[0].mxu0 %v1172
      %v2427 = vpop.f32.mrb[0].mxu0
      %v2428 = vadd.f32 %v541, %v2427
      %v2429 = vpop.f32.mrb[0].mxu0
      %2430 = vmatprep.mubr.f32.mxu0 0.0
      %2431 = vmatmul.mubr.f32.gmra.mrb[0].mxu0 %v1175
      %v2432 = vpop.f32.mrb[0].mxu0
      %v2433 = vadd.f32 %v541, %v2432
      %v2434 = vpop.f32.mrb[0].mxu0
      %2435 = vmatprep.mubr.f32.mxu0 0.0
      %2436 = vmatmul.mubr.f32.gmra.mrb[0].mxu0 %v1178
      %v2437 = vpop.f32.mrb[0].mxu0
      %v2438 = vadd.f32 %v541, %v2437
      %v2439 = vpop.f32.mrb[0].mxu0
      %2440 = vmatprep.mubr.f32.mxu0 0.0
      %2441 = vmatmul.mubr.f32.gmra.mrb[0].mxu0 %v1181
      %v2442 = vpop.f32.mrb[0].mxu0
      %v2443 = vadd.f32 %v541, %v2442
      %v2444 = vpop.f32.mrb[0].mxu0
      %2445 = vmatprep.mubr.f32.mxu0 0.0
      %2446 = vmatmul.mubr.f32.gmra.mrb[0].mxu0 %v1184
      %v2447 = vpop.f32.mrb[0].mxu0
      %v2448 = vadd.f32 %v541, %v2447
      %v2449 = vpop.f32.mrb[0].mxu0
      %2450 = vmatprep.mubr.f32.mxu0 0.0
      %2451 = vmatmul.mubr.f32.gmra.mrb[0].mxu0 %v1187
      %v2452 = vpop.f32.mrb[0].mxu0
      %v2453 = vadd.f32 %v541, %v2452
      %v2454 = vpop.f32.mrb[0].mxu0
      %2455 = vmatprep.mubr.f32.mxu0 0.0
      %2456 = vmatmul.mubr.f32.gmra.mrb[0].mxu0 %v1190
      %v2457 = vpop.f32.mrb[0].mxu0
      %v2458 = vadd.f32 %v541, %v2457
      %v2459 = vpop.f32.mrb[0].mxu0
      %2460 = vmatprep.mubr.f32.mxu0 0.0
      %2461 = vmatmul.mubr.f32.gmra.mrb[0].mxu0 %v1193
      %v2462 = vpop.f32.mrb[0].mxu0
      %v2463 = vadd.f32 %v541, %v2462
      %v2464 = vpop.f32.mrb[0].mxu0
      %2465 = vmatprep.mubr.f32.mxu0 0.0
      %2466 = vmatmul.mubr.f32.gmra.mrb[0].mxu0 %v1196
      %v2467 = vpop.f32.mrb[0].mxu0
      %v2468 = vadd.f32 %v541, %v2467
      %v2469 = vpop.f32.mrb[0].mxu0
      %2470 = vmatprep.mubr.f32.mxu0 0.0
      %2471 = vmatmul.mubr.f32.gmra.mrb[0].mxu0 %v1199
      %v2472 = vpop.f32.mrb[0].mxu0
      %v2473 = vadd.f32 %v541, %v2472
      %v2474 = vpop.f32.mrb[0].mxu0
      %2475 = vmatprep.mubr.f32.mxu0 0.0
      %2476 = vmatmul.mubr.f32.gmra.mrb[0].mxu0 %v1202
      %v2477 = vpop.f32.mrb[0].mxu0
      %v2478 = vadd.f32 %v541, %v2477
      %v2479 = vpop.f32.mrb[0].mxu0
      %2480 = vmatprep.mubr.f32.mxu0 0.0
      %2481 = vmatmul.mubr.f32.gmra.mrb[0].mxu0 %v1205
      %v2482 = vpop.f32.mrb[0].mxu0
      %v2483 = vadd.f32 %v541, %v2482
      %v2484 = vpop.f32.mrb[0].mxu0
      %2485 = vmatprep.mubr.f32.mxu0 0.0
      %2486 = vmatmul.mubr.f32.gmra.mrb[0].mxu0 %v1208
      %v2487 = vpop.f32.mrb[0].mxu0
      %v2488 = vadd.f32 %v541, %v2487
      %v2489 = vpop.f32.mrb[0].mxu0
      %2490 = vmatprep.mubr.f32.mxu0 0.0
      %2491 = vmatmul.mubr.f32.gmra.mrb[0].mxu0 %v1211
      %v2492 = vpop.f32.mrb[0].mxu0
      %v2493 = vadd.f32 %v541, %v2492
      %v2494 = vpop.f32.mrb[0].mxu0
      %2495 = vmatprep.mubr.f32.mxu0 0.0
      %2496 = vmatmul.mubr.f32.gmra.mrb[0].mxu0 %v1214
      %v2497 = vpop.f32.mrb[0].mxu0
      %v2498 = vadd.f32 %v541, %v2497
      %v2499 = vpop.f32.mrb[0].mxu0
      %2500 = vmatprep.mubr.f32.mxu0 0.0
      %2501 = vmatmul.mubr.f32.gmra.mrb[0].mxu0 %v1217
      %v2502 = vpop.f32.mrb[0].mxu0
      %v2503 = vadd.f32 %v541, %v2502
      %v2504 = vpop.f32.mrb[0].mxu0
      %2505 = vmatprep.mubr.f32.mxu0 0.0
      %2506 = vmatmul.mubr.f32.gmra.mrb[0].mxu0 %v1220
      %v2507 = vpop.f32.mrb[0].mxu0
      %v2508 = vadd.f32 %v541, %v2507
      %v2509 = vpop.f32.mrb[0].mxu0
      %2510 = vmatprep.mubr.f32.mxu0 0.0
      %2511 = vmatmul.mubr.f32.gmra.mrb[0].mxu0 %v1223
      %v2512 = vpop.f32.mrb[0].mxu0
      %v2513 = vadd.f32 %v541, %v2512
      %v2514 = vpop.f32.mrb[0].mxu0
      %2515 = vmatprep.mubr.f32.mxu0 0.0
      %2516 = vmatmul.mubr.f32.gmra.mrb[0].mxu0 %v1226
      %v2517 = vpop.f32.mrb[0].mxu0
      %v2518 = vadd.f32 %v541, %v2517
      %v2519 = vpop.f32.mrb[0].mxu0
      %2520 = vmatprep.mubr.f32.mxu0 0.0
      %2521 = vmatmul.mubr.f32.gmra.mrb[0].mxu0 %v1229
      %v2522 = vpop.f32.mrb[0].mxu0
      %v2523 = vadd.f32 %v541, %v2522
      %v2524 = vpop.f32.mrb[0].mxu0
      %2525 = vmatprep.mubr.f32.mxu0 0.0
      %2526 = vmatmul.mubr.f32.gmra.mrb[0].mxu0 %v1232
      %v2527 = vpop.f32.mrb[0].mxu0
      %v2528 = vadd.f32 %v541, %v2527
      %v2529 = vpop.f32.mrb[0].mxu0
      %2530 = vmatprep.mubr.f32.mxu0 0.0
      %2531 = vmatmul.mubr.f32.gmra.mrb[0].mxu0 %v1235
      %v2532 = vpop.f32.mrb[0].mxu0
      %v2533 = vadd.f32 %v541, %v2532
      %v2534 = vpop.f32.mrb[0].mxu0
      %2535 = vmatprep.mubr.f32.mxu0 0.0
      %2536 = vmatmul.mubr.f32.gmra.mrb[0].mxu0 %v1238
      %v2537 = vpop.f32.mrb[0].mxu0
      %v2538 = vadd.f32 %v541, %v2537
      %v2539 = vpop.f32.mrb[0].mxu0
      %2540 = vmatprep.mubr.f32.mxu0 0.0
      %2541 = vmatmul.mubr.f32.gmra.mrb[0].mxu0 %v1241
      %v2542 = vpop.f32.mrb[0].mxu0
      %v2543 = vadd.f32 %v541, %v2542
      %v2544 = vpop.f32.mrb[0].mxu0
      %2545 = vmatprep.mubr.f32.mxu0 0.0
      %2546 = vmatmul.mubr.f32.gmra.mrb[0].mxu0 %v1244
      %v2547 = vpop.f32.mrb[0].mxu0
      %v2548 = vadd.f32 %v541, %v2547
      %v2549 = vpop.f32.mrb[0].mxu0
      %2550 = vmatprep.mubr.f32.mxu0 0.0
      %2551 = vmatmul.mubr.f32.gmra.mrb[0].mxu0 %v1247
      %v2552 = vpop.f32.mrb[0].mxu0
      %v2553 = vadd.f32 %v541, %v2552
      %v2554 = vpop.f32.mrb[0].mxu0
      %2555 = vmatprep.mubr.f32.mxu0 0.0
      %2556 = vmatmul.mubr.f32.gmra.mrb[0].mxu0 %v1250
      %v2557 = vpop.f32.mrb[0].mxu0
      %v2558 = vadd.f32 %v541, %v2557
      %v2559 = vpop.f32.mrb[0].mxu0
      %2560 = vmatprep.mubr.f32.mxu0 0.0
      %2561 = vmatmul.mubr.f32.gmra.mrb[0].mxu0 %v1253
      %v2562 = vpop.f32.mrb[0].mxu0
      %v2563 = vadd.f32 %v541, %v2562
      %v2564 = vpop.f32.mrb[0].mxu0
      %2565 = vmatprep.mubr.f32.mxu0 0.0
      %2566 = vmatmul.mubr.f32.gmra.mrb[0].mxu0 %v1256
      %v2567 = vpop.f32.mrb[0].mxu0
      %v2568 = vadd.f32 %v541, %v2567
      %v2569 = vpop.f32.mrb[0].mxu0
      %2570 = vmatprep.mubr.f32.mxu0 0.0
      %2571 = vmatmul.mubr.f32.gmra.mrb[0].mxu0 %v1259
      %v2572 = vpop.f32.mrb[0].mxu0
      %v2573 = vadd.f32 %v541, %v2572
      %v2574 = vpop.f32.mrb[0].mxu0
      %2575 = vmatprep.mubr.f32.mxu0 0.0
      %2576 = vmatmul.mubr.f32.gmra.mrb[0].mxu0 %v1262
      %v2577 = vpop.f32.mrb[0].mxu0
      %v2578 = vadd.f32 %v541, %v2577
      %v2579 = vpop.f32.mrb[0].mxu0
      %2580 = vmatprep.mubr.f32.mxu0 0.0
      %2581 = vmatmul.mubr.f32.gmra.mrb[0].mxu0 %v1265
      %v2582 = vpop.f32.mrb[0].mxu0
      %v2583 = vadd.f32 %v541, %v2582
      %v2584 = vpop.f32.mrb[0].mxu0
      %2585 = vmatprep.mubr.f32.mxu0 0.0
      %2586 = vmatmul.mubr.f32.gmra.mrb[0].mxu0 %v1268
      %v2587 = vpop.f32.mrb[0].mxu0
      %v2588 = vadd.f32 %v541, %v2587
      %v2589 = vpop.f32.mrb[0].mxu0
      %2590 = vmatprep.mubr.f32.mxu0 0.0
      %2591 = vmatmul.mubr.f32.gmra.mrb[0].mxu0 %v1271
      %v2592 = vpop.f32.mrb[0].mxu0
      %v2593 = vadd.f32 %v541, %v2592
      %v2594 = vpop.f32.mrb[0].mxu0
      %2595 = vmatprep.mubr.f32.mxu0 0.0
      %2596 = vmatmul.mubr.f32.gmra.mrb[0].mxu0 %v1274
      %v2597 = vpop.f32.mrb[0].mxu0
      %v2598 = vadd.f32 %v541, %v2597
      %v2599 = vpop.f32.mrb[0].mxu0
      %2600 = vmatprep.mubr.f32.mxu0 0.0
      %2601 = vmatmul.mubr.f32.gmra.mrb[0].mxu0 %v1277
      %v2602 = vpop.f32.mrb[0].mxu0
      %v2603 = vadd.f32 %v541, %v2602
      %v2604 = vpop.f32.mrb[0].mxu0
      %2605 = vmatprep.mubr.f32.mxu0 0.0
      %2606 = vmatmul.mubr.f32.gmra.mrb[0].mxu0 %v1280
      %v2607 = vpop.f32.mrb[0].mxu0
      %v2608 = vadd.f32 %v541, %v2607
      %v2609 = vpop.f32.mrb[0].mxu0
      %2610 = vmatprep.mubr.f32.mxu0 0.0
      %2611 = vmatmul.mubr.f32.gmra.mrb[0].mxu0 %v1283
      %v2612 = vpop.f32.mrb[0].mxu0
      %v2613 = vadd.f32 %v541, %v2612
      %v2614 = vpop.f32.mrb[0].mxu0
      %2615 = vmatprep.mubr.f32.mxu0 0.0
      %2616 = vmatmul.mubr.f32.gmra.mrb[0].mxu0 %v1286
      %v2617 = vpop.f32.mrb[0].mxu0
      %v2618 = vadd.f32 %v541, %v2617
      %v2619 = vpop.f32.mrb[0].mxu0
      %2620 = vmatprep.mubr.f32.mxu0 0.0
      %2621 = vmatmul.mubr.f32.gmra.mrb[0].mxu0 %v1289
      %v2622 = vpop.f32.mrb[0].mxu0
      %v2623 = vadd.f32 %v541, %v2622
      %v2624 = vpop.f32.mrb[0].mxu0
      %2625 = vmatprep.mubr.f32.mxu0 0.0
      %2626 = vmatmul.mubr.f32.gmra.mrb[0].mxu0 %v1292
      %v2627 = vpop.f32.mrb[0].mxu0
      %v2628 = vadd.f32 %v541, %v2627
      %v2629 = vpop.f32.mrb[0].mxu0
      %2630 = vmatprep.mubr.f32.mxu0 0.0
      %2631 = vmatmul.mubr.f32.gmra.mrb[0].mxu0 %v1295
      %v2632 = vpop.f32.mrb[0].mxu0
      %v2633 = vadd.f32 %v541, %v2632
      %v2634 = vpop.f32.mrb[0].mxu0
      %2635 = vmatprep.mubr.f32.mxu0 0.0
      %2636 = vmatmul.mubr.f32.gmra.mrb[0].mxu0 %v1298
      %v2637 = vpop.f32.mrb[0].mxu0
      %v2638 = vadd.f32 %v541, %v2637
      %v2639 = vpop.f32.mrb[0].mxu0
      %2640 = vmatprep.mubr.f32.mxu0 0.0
      %2641 = vmatmul.mubr.f32.gmra.mrb[0].mxu0 %v1301
      %v2642 = vpop.f32.mrb[0].mxu0
      %v2643 = vadd.f32 %v541, %v2642
      %v2644 = vpop.f32.mrb[0].mxu0
      %2645 = vmatprep.mubr.f32.mxu0 0.0
      %2646 = vmatmul.mubr.f32.gmra.mrb[0].mxu0 %v1304
      %v2647 = vpop.f32.mrb[0].mxu0
      %v2648 = vadd.f32 %v541, %v2647
      %v2649 = vpop.f32.mrb[0].mxu0
      %2650 = vmatprep.mubr.f32.mxu0 0.0
      %2651 = vmatmul.mubr.f32.gmra.mrb[0].mxu0 %v1307
      %v2652 = vpop.f32.mrb[0].mxu0
      %v2653 = vadd.f32 %v541, %v2652
      %v2654 = vpop.f32.mrb[0].mxu0
      %2655 = vmatprep.mubr.f32.mxu0 0.0
      %2656 = vmatmul.mubr.f32.gmra.mrb[0].mxu0 %v1310
      %v2657 = vpop.f32.mrb[0].mxu0
      %v2658 = vadd.f32 %v541, %v2657
      %v2659 = vpop.f32.mrb[0].mxu0
      %2660 = vdwg.mxu0
      %vm2661 = vcmask 261120
      %2662 = vst.msk [vmem:[%s269] sm:$0xff] %vm2661, %v1383
      %2663 = vst.msk [vmem:[%s269 + $0x8] sm:$0xff] %vm2661, %v1388
      %2664 = vst.msk [vmem:[%s269 + $0x10] sm:$0xff] %vm2661, %v1393
      %2665 = vst.msk [vmem:[%s269 + $0x18] sm:$0xff] %vm2661, %v1398
      %2666 = vst.msk [vmem:[%s269 + $0x20] sm:$0xff] %vm2661, %v1403
      %2667 = vst.msk [vmem:[%s269 + $0x28] sm:$0xff] %vm2661, %v1408
      %2668 = vst.msk [vmem:[%s269 + $0x30] sm:$0xff] %vm2661, %v1413
      %2669 = vst.msk [vmem:[%s269 + $0x38] sm:$0xff] %vm2661, %v1418
      %2670 = vst.msk [vmem:[%s269 + $0x40] sm:$0xff] %vm2661, %v1423
      %2671 = vst.msk [vmem:[%s269 + $0x48] sm:$0xff] %vm2661, %v1428
      %2672 = vst.msk [vmem:[%s269 + $0x50] sm:$0xff] %vm2661, %v1433
      %2673 = vst.msk [vmem:[%s269 + $0x58] sm:$0xff] %vm2661, %v1438
      %2674 = vst.msk [vmem:[%s269 + $0x60] sm:$0xff] %vm2661, %v1443
      %2675 = vst.msk [vmem:[%s269 + $0x68] sm:$0xff] %vm2661, %v1448
      %2676 = vst.msk [vmem:[%s269 + $0x70] sm:$0xff] %vm2661, %v1453
      %2677 = vst.msk [vmem:[%s269 + $0x78] sm:$0xff] %vm2661, %v1458
      %2678 = vst.msk [vmem:[%s269 + $0x80] sm:$0xff] %vm2661, %v1463
      %2679 = vst.msk [vmem:[%s269 + $0x88] sm:$0xff] %vm2661, %v1468
      %2680 = vst.msk [vmem:[%s269 + $0x90] sm:$0xff] %vm2661, %v1473
      %2681 = vst.msk [vmem:[%s269 + $0x98] sm:$0xff] %vm2661, %v1478
      %2682 = vst.msk [vmem:[%s269 + $0xa0] sm:$0xff] %vm2661, %v1483
      %2683 = vst.msk [vmem:[%s269 + $0xa8] sm:$0xff] %vm2661, %v1488
      %2684 = vst.msk [vmem:[%s269 + $0xb0] sm:$0xff] %vm2661, %v1493
      %2685 = vst.msk [vmem:[%s269 + $0xb8] sm:$0xff] %vm2661, %v1498
      %2686 = vst.msk [vmem:[%s269 + $0xc0] sm:$0xff] %vm2661, %v1503
      %2687 = vst.msk [vmem:[%s269 + $0xc8] sm:$0xff] %vm2661, %v1508
      %2688 = vst.msk [vmem:[%s269 + $0xd0] sm:$0xff] %vm2661, %v1513
      %2689 = vst.msk [vmem:[%s269 + $0xd8] sm:$0xff] %vm2661, %v1518
      %2690 = vst.msk [vmem:[%s269 + $0xe0] sm:$0xff] %vm2661, %v1523
      %2691 = vst.msk [vmem:[%s269 + $0xe8] sm:$0xff] %vm2661, %v1528
      %2692 = vst.msk [vmem:[%s269 + $0xf0] sm:$0xff] %vm2661, %v1533
      %2693 = vst.msk [vmem:[%s269 + $0xf8] sm:$0xff] %vm2661, %v1538
      %2694 = vst.msk [vmem:[%s269 + $0x100] sm:$0xff] %vm2661, %v1543
      %2695 = vst.msk [vmem:[%s269 + $0x108] sm:$0xff] %vm2661, %v1548
      %2696 = vst.msk [vmem:[%s269 + $0x110] sm:$0xff] %vm2661, %v1553
      %2697 = vst.msk [vmem:[%s269 + $0x118] sm:$0xff] %vm2661, %v1558
      %2698 = vst.msk [vmem:[%s269 + $0x120] sm:$0xff] %vm2661, %v1563
      %2699 = vst.msk [vmem:[%s269 + $0x128] sm:$0xff] %vm2661, %v1568
      %2700 = vst.msk [vmem:[%s269 + $0x130] sm:$0xff] %vm2661, %v1573
      %2701 = vst.msk [vmem:[%s269 + $0x138] sm:$0xff] %vm2661, %v1578
      %2702 = vst.msk [vmem:[%s269 + $0x140] sm:$0xff] %vm2661, %v1583
      %2703 = vst.msk [vmem:[%s269 + $0x148] sm:$0xff] %vm2661, %v1588
      %2704 = vst.msk [vmem:[%s269 + $0x150] sm:$0xff] %vm2661, %v1593
      %2705 = vst.msk [vmem:[%s269 + $0x158] sm:$0xff] %vm2661, %v1598
      %2706 = vst.msk [vmem:[%s269 + $0x160] sm:$0xff] %vm2661, %v1603
      %2707 = vst.msk [vmem:[%s269 + $0x168] sm:$0xff] %vm2661, %v1608
      %2708 = vst.msk [vmem:[%s269 + $0x170] sm:$0xff] %vm2661, %v1613
      %2709 = vst.msk [vmem:[%s269 + $0x178] sm:$0xff] %vm2661, %v1618
      %2710 = vst.msk [vmem:[%s269 + $0x180] sm:$0xff] %vm2661, %v1623
      %2711 = vst.msk [vmem:[%s269 + $0x188] sm:$0xff] %vm2661, %v1628
      %2712 = vst.msk [vmem:[%s269 + $0x190] sm:$0xff] %vm2661, %v1633
      %2713 = vst.msk [vmem:[%s269 + $0x198] sm:$0xff] %vm2661, %v1638
      %2714 = vst.msk [vmem:[%s269 + $0x1a0] sm:$0xff] %vm2661, %v1643
      %2715 = vst.msk [vmem:[%s269 + $0x1a8] sm:$0xff] %vm2661, %v1648
      %2716 = vst.msk [vmem:[%s269 + $0x1b0] sm:$0xff] %vm2661, %v1653
      %2717 = vst.msk [vmem:[%s269 + $0x1b8] sm:$0xff] %vm2661, %v1658
      %2718 = vst.msk [vmem:[%s269 + $0x1c0] sm:$0xff] %vm2661, %v1663
      %2719 = vst.msk [vmem:[%s269 + $0x1c8] sm:$0xff] %vm2661, %v1668
      %2720 = vst.msk [vmem:[%s269 + $0x1d0] sm:$0xff] %vm2661, %v1673
      %2721 = vst.msk [vmem:[%s269 + $0x1d8] sm:$0xff] %vm2661, %v1678
      %2722 = vst.msk [vmem:[%s269 + $0x1e0] sm:$0xff] %vm2661, %v1683
      %2723 = vst.msk [vmem:[%s269 + $0x1e8] sm:$0xff] %vm2661, %v1688
      %2724 = vst.msk [vmem:[%s269 + $0x1f0] sm:$0xff] %vm2661, %v1693
      %2725 = vst.msk [vmem:[%s269 + $0x1f8] sm:$0xff] %vm2661, %v1698
      %2726 = vst.msk [vmem:[%s269 + $0x200] sm:$0xff] %vm2661, %v1703
      %2727 = vst.msk [vmem:[%s269 + $0x208] sm:$0xff] %vm2661, %v1708
      %2728 = vst.msk [vmem:[%s269 + $0x210] sm:$0xff] %vm2661, %v1713
      %2729 = vst.msk [vmem:[%s269 + $0x218] sm:$0xff] %vm2661, %v1718
      %2730 = vst.msk [vmem:[%s269 + $0x220] sm:$0xff] %vm2661, %v1723
      %2731 = vst.msk [vmem:[%s269 + $0x228] sm:$0xff] %vm2661, %v1728
      %2732 = vst.msk [vmem:[%s269 + $0x230] sm:$0xff] %vm2661, %v1733
      %2733 = vst.msk [vmem:[%s269 + $0x238] sm:$0xff] %vm2661, %v1738
      %2734 = vst.msk [vmem:[%s269 + $0x240] sm:$0xff] %vm2661, %v1743
      %2735 = vst.msk [vmem:[%s269 + $0x248] sm:$0xff] %vm2661, %v1748
      %2736 = vst.msk [vmem:[%s269 + $0x250] sm:$0xff] %vm2661, %v1753
      %2737 = vst.msk [vmem:[%s269 + $0x258] sm:$0xff] %vm2661, %v1758
      %2738 = vst.msk [vmem:[%s269 + $0x260] sm:$0xff] %vm2661, %v1763
      %2739 = vst.msk [vmem:[%s269 + $0x268] sm:$0xff] %vm2661, %v1768
      %2740 = vst.msk [vmem:[%s269 + $0x270] sm:$0xff] %vm2661, %v1773
      %2741 = vst.msk [vmem:[%s269 + $0x278] sm:$0xff] %vm2661, %v1778
      %2742 = vst.msk [vmem:[%s269 + $0x280] sm:$0xff] %vm2661, %v1783
      %2743 = vst.msk [vmem:[%s269 + $0x288] sm:$0xff] %vm2661, %v1788
      %2744 = vst.msk [vmem:[%s269 + $0x290] sm:$0xff] %vm2661, %v1793
      %2745 = vst.msk [vmem:[%s269 + $0x298] sm:$0xff] %vm2661, %v1798
      %2746 = vst.msk [vmem:[%s269 + $0x2a0] sm:$0xff] %vm2661, %v1803
      %2747 = vst.msk [vmem:[%s269 + $0x2a8] sm:$0xff] %vm2661, %v1808
      %2748 = vst.msk [vmem:[%s269 + $0x2b0] sm:$0xff] %vm2661, %v1813
      %2749 = vst.msk [vmem:[%s269 + $0x2b8] sm:$0xff] %vm2661, %v1818
      %2750 = vst.msk [vmem:[%s269 + $0x2c0] sm:$0xff] %vm2661, %v1823
      %2751 = vst.msk [vmem:[%s269 + $0x2c8] sm:$0xff] %vm2661, %v1828
      %2752 = vst.msk [vmem:[%s269 + $0x2d0] sm:$0xff] %vm2661, %v1833
      %2753 = vst.msk [vmem:[%s269 + $0x2d8] sm:$0xff] %vm2661, %v1838
      %2754 = vst.msk [vmem:[%s269 + $0x2e0] sm:$0xff] %vm2661, %v1843
      %2755 = vst.msk [vmem:[%s269 + $0x2e8] sm:$0xff] %vm2661, %v1848
      %2756 = vst.msk [vmem:[%s269 + $0x2f0] sm:$0xff] %vm2661, %v1853
      %2757 = vst.msk [vmem:[%s269 + $0x2f8] sm:$0xff] %vm2661, %v1858
      %2758 = vst.msk [vmem:[%s269 + $0x300] sm:$0xff] %vm2661, %v1863
      %2759 = vst.msk [vmem:[%s269 + $0x308] sm:$0xff] %vm2661, %v1868
      %2760 = vst.msk [vmem:[%s269 + $0x310] sm:$0xff] %vm2661, %v1873
      %2761 = vst.msk [vmem:[%s269 + $0x318] sm:$0xff] %vm2661, %v1878
      %2762 = vst.msk [vmem:[%s269 + $0x320] sm:$0xff] %vm2661, %v1883
      %2763 = vst.msk [vmem:[%s269 + $0x328] sm:$0xff] %vm2661, %v1888
      %2764 = vst.msk [vmem:[%s269 + $0x330] sm:$0xff] %vm2661, %v1893
      %2765 = vst.msk [vmem:[%s269 + $0x338] sm:$0xff] %vm2661, %v1898
      %2766 = vst.msk [vmem:[%s269 + $0x340] sm:$0xff] %vm2661, %v1903
      %2767 = vst.msk [vmem:[%s269 + $0x348] sm:$0xff] %vm2661, %v1908
      %2768 = vst.msk [vmem:[%s269 + $0x350] sm:$0xff] %vm2661, %v1913
      %2769 = vst.msk [vmem:[%s269 + $0x358] sm:$0xff] %vm2661, %v1918
      %2770 = vst.msk [vmem:[%s269 + $0x360] sm:$0xff] %vm2661, %v1923
      %2771 = vst.msk [vmem:[%s269 + $0x368] sm:$0xff] %vm2661, %v1928
      %2772 = vst.msk [vmem:[%s269 + $0x370] sm:$0xff] %vm2661, %v1933
      %2773 = vst.msk [vmem:[%s269 + $0x378] sm:$0xff] %vm2661, %v1938
      %2774 = vst.msk [vmem:[%s269 + $0x380] sm:$0xff] %vm2661, %v1943
      %2775 = vst.msk [vmem:[%s269 + $0x388] sm:$0xff] %vm2661, %v1948
      %2776 = vst.msk [vmem:[%s269 + $0x390] sm:$0xff] %vm2661, %v1953
      %2777 = vst.msk [vmem:[%s269 + $0x398] sm:$0xff] %vm2661, %v1958
      %2778 = vst.msk [vmem:[%s269 + $0x3a0] sm:$0xff] %vm2661, %v1963
      %2779 = vst.msk [vmem:[%s269 + $0x3a8] sm:$0xff] %vm2661, %v1968
      %2780 = vst.msk [vmem:[%s269 + $0x3b0] sm:$0xff] %vm2661, %v1973
      %2781 = vst.msk [vmem:[%s269 + $0x3b8] sm:$0xff] %vm2661, %v1978
      %2782 = vst.msk [vmem:[%s269 + $0x3c0] sm:$0xff] %vm2661, %v1983
      %2783 = vst.msk [vmem:[%s269 + $0x3c8] sm:$0xff] %vm2661, %v1988
      %2784 = vst.msk [vmem:[%s269 + $0x3d0] sm:$0xff] %vm2661, %v1993
      %2785 = vst.msk [vmem:[%s269 + $0x3d8] sm:$0xff] %vm2661, %v1998
      %2786 = vst.msk [vmem:[%s269 + $0x3e0] sm:$0xff] %vm2661, %v2003
      %2787 = vst.msk [vmem:[%s269 + $0x3e8] sm:$0xff] %vm2661, %v2008
      %2788 = vst.msk [vmem:[%s269 + $0x3f0] sm:$0xff] %vm2661, %v2013
      %2789 = vst.msk [vmem:[%s269 + $0x3f8] sm:$0xff] %vm2661, %v2018
      %2790 = vst.msk [vmem:[%s269 + $0x400] sm:$0xff] %vm2661, %v2023
      %2791 = vst.msk [vmem:[%s269 + $0x408] sm:$0xff] %vm2661, %v2028
      %2792 = vst.msk [vmem:[%s269 + $0x410] sm:$0xff] %vm2661, %v2033
      %2793 = vst.msk [vmem:[%s269 + $0x418] sm:$0xff] %vm2661, %v2038
      %2794 = vst.msk [vmem:[%s269 + $0x420] sm:$0xff] %vm2661, %v2043
      %2795 = vst.msk [vmem:[%s269 + $0x428] sm:$0xff] %vm2661, %v2048
      %2796 = vst.msk [vmem:[%s269 + $0x430] sm:$0xff] %vm2661, %v2053
      %2797 = vst.msk [vmem:[%s269 + $0x438] sm:$0xff] %vm2661, %v2058
      %2798 = vst.msk [vmem:[%s269 + $0x440] sm:$0xff] %vm2661, %v2063
      %2799 = vst.msk [vmem:[%s269 + $0x448] sm:$0xff] %vm2661, %v2068
      %2800 = vst.msk [vmem:[%s269 + $0x450] sm:$0xff] %vm2661, %v2073
      %2801 = vst.msk [vmem:[%s269 + $0x458] sm:$0xff] %vm2661, %v2078
      %2802 = vst.msk [vmem:[%s269 + $0x460] sm:$0xff] %vm2661, %v2083
      %2803 = vst.msk [vmem:[%s269 + $0x468] sm:$0xff] %vm2661, %v2088
      %2804 = vst.msk [vmem:[%s269 + $0x470] sm:$0xff] %vm2661, %v2093
      %2805 = vst.msk [vmem:[%s269 + $0x478] sm:$0xff] %vm2661, %v2098
      %2806 = vst.msk [vmem:[%s269 + $0x480] sm:$0xff] %vm2661, %v2103
      %2807 = vst.msk [vmem:[%s269 + $0x488] sm:$0xff] %vm2661, %v2108
      %2808 = vst.msk [vmem:[%s269 + $0x490] sm:$0xff] %vm2661, %v2113
      %2809 = vst.msk [vmem:[%s269 + $0x498] sm:$0xff] %vm2661, %v2118
      %2810 = vst.msk [vmem:[%s269 + $0x4a0] sm:$0xff] %vm2661, %v2123
      %2811 = vst.msk [vmem:[%s269 + $0x4a8] sm:$0xff] %vm2661, %v2128
      %2812 = vst.msk [vmem:[%s269 + $0x4b0] sm:$0xff] %vm2661, %v2133
      %2813 = vst.msk [vmem:[%s269 + $0x4b8] sm:$0xff] %vm2661, %v2138
      %2814 = vst.msk [vmem:[%s269 + $0x4c0] sm:$0xff] %vm2661, %v2143
      %2815 = vst.msk [vmem:[%s269 + $0x4c8] sm:$0xff] %vm2661, %v2148
      %2816 = vst.msk [vmem:[%s269 + $0x4d0] sm:$0xff] %vm2661, %v2153
      %2817 = vst.msk [vmem:[%s269 + $0x4d8] sm:$0xff] %vm2661, %v2158
      %2818 = vst.msk [vmem:[%s269 + $0x4e0] sm:$0xff] %vm2661, %v2163
      %2819 = vst.msk [vmem:[%s269 + $0x4e8] sm:$0xff] %vm2661, %v2168
      %2820 = vst.msk [vmem:[%s269 + $0x4f0] sm:$0xff] %vm2661, %v2173
      %2821 = vst.msk [vmem:[%s269 + $0x4f8] sm:$0xff] %vm2661, %v2178
      %2822 = vst.msk [vmem:[%s269 + $0x500] sm:$0xff] %vm2661, %v2183
      %2823 = vst.msk [vmem:[%s269 + $0x508] sm:$0xff] %vm2661, %v2188
      %2824 = vst.msk [vmem:[%s269 + $0x510] sm:$0xff] %vm2661, %v2193
      %2825 = vst.msk [vmem:[%s269 + $0x518] sm:$0xff] %vm2661, %v2198
      %2826 = vst.msk [vmem:[%s269 + $0x520] sm:$0xff] %vm2661, %v2203
      %2827 = vst.msk [vmem:[%s269 + $0x528] sm:$0xff] %vm2661, %v2208
      %2828 = vst.msk [vmem:[%s269 + $0x530] sm:$0xff] %vm2661, %v2213
      %2829 = vst.msk [vmem:[%s269 + $0x538] sm:$0xff] %vm2661, %v2218
      %2830 = vst.msk [vmem:[%s269 + $0x540] sm:$0xff] %vm2661, %v2223
      %2831 = vst.msk [vmem:[%s269 + $0x548] sm:$0xff] %vm2661, %v2228
      %2832 = vst.msk [vmem:[%s269 + $0x550] sm:$0xff] %vm2661, %v2233
      %2833 = vst.msk [vmem:[%s269 + $0x558] sm:$0xff] %vm2661, %v2238
      %2834 = vst.msk [vmem:[%s269 + $0x560] sm:$0xff] %vm2661, %v2243
      %2835 = vst.msk [vmem:[%s269 + $0x568] sm:$0xff] %vm2661, %v2248
      %2836 = vst.msk [vmem:[%s269 + $0x570] sm:$0xff] %vm2661, %v2253
      %2837 = vst.msk [vmem:[%s269 + $0x578] sm:$0xff] %vm2661, %v2258
      %2838 = vst.msk [vmem:[%s269 + $0x580] sm:$0xff] %vm2661, %v2263
      %2839 = vst.msk [vmem:[%s269 + $0x588] sm:$0xff] %vm2661, %v2268
      %2840 = vst.msk [vmem:[%s269 + $0x590] sm:$0xff] %vm2661, %v2273
      %2841 = vst.msk [vmem:[%s269 + $0x598] sm:$0xff] %vm2661, %v2278
      %2842 = vst.msk [vmem:[%s269 + $0x5a0] sm:$0xff] %vm2661, %v2283
      %2843 = vst.msk [vmem:[%s269 + $0x5a8] sm:$0xff] %vm2661, %v2288
      %2844 = vst.msk [vmem:[%s269 + $0x5b0] sm:$0xff] %vm2661, %v2293
      %2845 = vst.msk [vmem:[%s269 + $0x5b8] sm:$0xff] %vm2661, %v2298
      %2846 = vst.msk [vmem:[%s269 + $0x5c0] sm:$0xff] %vm2661, %v2303
      %2847 = vst.msk [vmem:[%s269 + $0x5c8] sm:$0xff] %vm2661, %v2308
      %2848 = vst.msk [vmem:[%s269 + $0x5d0] sm:$0xff] %vm2661, %v2313
      %2849 = vst.msk [vmem:[%s269 + $0x5d8] sm:$0xff] %vm2661, %v2318
      %2850 = vst.msk [vmem:[%s269 + $0x5e0] sm:$0xff] %vm2661, %v2323
      %2851 = vst.msk [vmem:[%s269 + $0x5e8] sm:$0xff] %vm2661, %v2328
      %2852 = vst.msk [vmem:[%s269 + $0x5f0] sm:$0xff] %vm2661, %v2333
      %2853 = vst.msk [vmem:[%s269 + $0x5f8] sm:$0xff] %vm2661, %v2338
      %2854 = vst.msk [vmem:[%s269 + $0x600] sm:$0xff] %vm2661, %v2343
      %2855 = vst.msk [vmem:[%s269 + $0x608] sm:$0xff] %vm2661, %v2348
      %2856 = vst.msk [vmem:[%s269 + $0x610] sm:$0xff] %vm2661, %v2353
      %2857 = vst.msk [vmem:[%s269 + $0x618] sm:$0xff] %vm2661, %v2358
      %2858 = vst.msk [vmem:[%s269 + $0x620] sm:$0xff] %vm2661, %v2363
      %2859 = vst.msk [vmem:[%s269 + $0x628] sm:$0xff] %vm2661, %v2368
      %2860 = vst.msk [vmem:[%s269 + $0x630] sm:$0xff] %vm2661, %v2373
      %2861 = vst.msk [vmem:[%s269 + $0x638] sm:$0xff] %vm2661, %v2378
      %2862 = vst.msk [vmem:[%s269 + $0x640] sm:$0xff] %vm2661, %v2383
      %2863 = vst.msk [vmem:[%s269 + $0x648] sm:$0xff] %vm2661, %v2388
      %2864 = vst.msk [vmem:[%s269 + $0x650] sm:$0xff] %vm2661, %v2393
      %2865 = vst.msk [vmem:[%s269 + $0x658] sm:$0xff] %vm2661, %v2398
      %2866 = vst.msk [vmem:[%s269 + $0x660] sm:$0xff] %vm2661, %v2403
      %2867 = vst.msk [vmem:[%s269 + $0x668] sm:$0xff] %vm2661, %v2408
      %2868 = vst.msk [vmem:[%s269 + $0x670] sm:$0xff] %vm2661, %v2413
      %2869 = vst.msk [vmem:[%s269 + $0x678] sm:$0xff] %vm2661, %v2418
      %2870 = vst.msk [vmem:[%s269 + $0x680] sm:$0xff] %vm2661, %v2423
      %2871 = vst.msk [vmem:[%s269 + $0x688] sm:$0xff] %vm2661, %v2428
      %2872 = vst.msk [vmem:[%s269 + $0x690] sm:$0xff] %vm2661, %v2433
      %2873 = vst.msk [vmem:[%s269 + $0x698] sm:$0xff] %vm2661, %v2438
      %2874 = vst.msk [vmem:[%s269 + $0x6a0] sm:$0xff] %vm2661, %v2443
      %2875 = vst.msk [vmem:[%s269 + $0x6a8] sm:$0xff] %vm2661, %v2448
      %2876 = vst.msk [vmem:[%s269 + $0x6b0] sm:$0xff] %vm2661, %v2453
      %2877 = vst.msk [vmem:[%s269 + $0x6b8] sm:$0xff] %vm2661, %v2458
      %2878 = vst.msk [vmem:[%s269 + $0x6c0] sm:$0xff] %vm2661, %v2463
      %2879 = vst.msk [vmem:[%s269 + $0x6c8] sm:$0xff] %vm2661, %v2468
      %2880 = vst.msk [vmem:[%s269 + $0x6d0] sm:$0xff] %vm2661, %v2473
      %2881 = vst.msk [vmem:[%s269 + $0x6d8] sm:$0xff] %vm2661, %v2478
      %2882 = vst.msk [vmem:[%s269 + $0x6e0] sm:$0xff] %vm2661, %v2483
      %2883 = vst.msk [vmem:[%s269 + $0x6e8] sm:$0xff] %vm2661, %v2488
      %2884 = vst.msk [vmem:[%s269 + $0x6f0] sm:$0xff] %vm2661, %v2493
      %2885 = vst.msk [vmem:[%s269 + $0x6f8] sm:$0xff] %vm2661, %v2498
      %2886 = vst.msk [vmem:[%s269 + $0x700] sm:$0xff] %vm2661, %v2503
      %2887 = vst.msk [vmem:[%s269 + $0x708] sm:$0xff] %vm2661, %v2508
      %2888 = vst.msk [vmem:[%s269 + $0x710] sm:$0xff] %vm2661, %v2513
      %2889 = vst.msk [vmem:[%s269 + $0x718] sm:$0xff] %vm2661, %v2518
      %2890 = vst.msk [vmem:[%s269 + $0x720] sm:$0xff] %vm2661, %v2523
      %2891 = vst.msk [vmem:[%s269 + $0x728] sm:$0xff] %vm2661, %v2528
      %2892 = vst.msk [vmem:[%s269 + $0x730] sm:$0xff] %vm2661, %v2533
      %2893 = vst.msk [vmem:[%s269 + $0x738] sm:$0xff] %vm2661, %v2538
      %2894 = vst.msk [vmem:[%s269 + $0x740] sm:$0xff] %vm2661, %v2543
      %2895 = vst.msk [vmem:[%s269 + $0x748] sm:$0xff] %vm2661, %v2548
      %2896 = vst.msk [vmem:[%s269 + $0x750] sm:$0xff] %vm2661, %v2553
      %2897 = vst.msk [vmem:[%s269 + $0x758] sm:$0xff] %vm2661, %v2558
      %2898 = vst.msk [vmem:[%s269 + $0x760] sm:$0xff] %vm2661, %v2563
      %2899 = vst.msk [vmem:[%s269 + $0x768] sm:$0xff] %vm2661, %v2568
      %2900 = vst.msk [vmem:[%s269 + $0x770] sm:$0xff] %vm2661, %v2573
      %2901 = vst.msk [vmem:[%s269 + $0x778] sm:$0xff] %vm2661, %v2578
      %2902 = vst.msk [vmem:[%s269 + $0x780] sm:$0xff] %vm2661, %v2583
      %2903 = vst.msk [vmem:[%s269 + $0x788] sm:$0xff] %vm2661, %v2588
      %2904 = vst.msk [vmem:[%s269 + $0x790] sm:$0xff] %vm2661, %v2593
      %2905 = vst.msk [vmem:[%s269 + $0x798] sm:$0xff] %vm2661, %v2598
      %2906 = vst.msk [vmem:[%s269 + $0x7a0] sm:$0xff] %vm2661, %v2603
      %2907 = vst.msk [vmem:[%s269 + $0x7a8] sm:$0xff] %vm2661, %v2608
      %2908 = vst.msk [vmem:[%s269 + $0x7b0] sm:$0xff] %vm2661, %v2613
      %2909 = vst.msk [vmem:[%s269 + $0x7b8] sm:$0xff] %vm2661, %v2618
      %2910 = vst.msk [vmem:[%s269 + $0x7c0] sm:$0xff] %vm2661, %v2623
      %2911 = vst.msk [vmem:[%s269 + $0x7c8] sm:$0xff] %vm2661, %v2628
      %2912 = vst.msk [vmem:[%s269 + $0x7d0] sm:$0xff] %vm2661, %v2633
      %2913 = vst.msk [vmem:[%s269 + $0x7d8] sm:$0xff] %vm2661, %v2638
      %2914 = vst.msk [vmem:[%s269 + $0x7e0] sm:$0xff] %vm2661, %v2643
      %2915 = vst.msk [vmem:[%s269 + $0x7e8] sm:$0xff] %vm2661, %v2648
      %2916 = vst.msk [vmem:[%s269 + $0x7f0] sm:$0xff] %vm2661, %v2653
      %2917 = vst.msk [vmem:[%s269 + $0x7f8] sm:$0xff] %vm2661, %v2658
      %v2918 = vsel %vm2661, %v1383, 0.0
      %v2919 = vsel %vm2661, %v1388, 0.0
      %v2920 = vadd.f32 %v2918, %v2919
      %v2921 = vsel %vm2661, %v1393, 0.0
      %v2922 = vadd.f32 %v2920, %v2921
      %v2923 = vsel %vm2661, %v1398, 0.0
      %v2924 = vadd.f32 %v2922, %v2923
      %v2925 = vsel %vm2661, %v1403, 0.0
      %v2926 = vadd.f32 %v2924, %v2925
      %v2927 = vsel %vm2661, %v1408, 0.0
      %v2928 = vadd.f32 %v2926, %v2927
      %v2929 = vsel %vm2661, %v1413, 0.0
      %v2930 = vadd.f32 %v2928, %v2929
      %v2931 = vsel %vm2661, %v1418, 0.0
      %v2932 = vadd.f32 %v2930, %v2931
      %v2933 = vsel %vm2661, %v1423, 0.0
      %v2934 = vadd.f32 %v2932, %v2933
      %v2935 = vsel %vm2661, %v1428, 0.0
      %v2936 = vadd.f32 %v2934, %v2935
      %v2937 = vsel %vm2661, %v1433, 0.0
      %v2938 = vadd.f32 %v2936, %v2937
      %v2939 = vsel %vm2661, %v1438, 0.0
      %v2940 = vadd.f32 %v2938, %v2939
      %v2941 = vsel %vm2661, %v1443, 0.0
      %v2942 = vadd.f32 %v2940, %v2941
      %v2943 = vsel %vm2661, %v1448, 0.0
      %v2944 = vadd.f32 %v2942, %v2943
      %v2945 = vsel %vm2661, %v1453, 0.0
      %v2946 = vadd.f32 %v2944, %v2945
      %v2947 = vsel %vm2661, %v1458, 0.0
      %v2948 = vadd.f32 %v2946, %v2947
      %v2949 = vsel %vm2661, %v1463, 0.0
      %v2950 = vadd.f32 %v2948, %v2949
      %v2951 = vsel %vm2661, %v1468, 0.0
      %v2952 = vadd.f32 %v2950, %v2951
      %v2953 = vsel %vm2661, %v1473, 0.0
      %v2954 = vadd.f32 %v2952, %v2953
      %v2955 = vsel %vm2661, %v1478, 0.0
      %v2956 = vadd.f32 %v2954, %v2955
      %v2957 = vsel %vm2661, %v1483, 0.0
      %v2958 = vadd.f32 %v2956, %v2957
      %v2959 = vsel %vm2661, %v1488, 0.0
      %v2960 = vadd.f32 %v2958, %v2959
      %v2961 = vsel %vm2661, %v1493, 0.0
      %v2962 = vadd.f32 %v2960, %v2961
      %v2963 = vsel %vm2661, %v1498, 0.0
      %v2964 = vadd.f32 %v2962, %v2963
      %v2965 = vsel %vm2661, %v1503, 0.0
      %v2966 = vadd.f32 %v2964, %v2965
      %v2967 = vsel %vm2661, %v1508, 0.0
      %v2968 = vadd.f32 %v2966, %v2967
      %v2969 = vsel %vm2661, %v1513, 0.0
      %v2970 = vadd.f32 %v2968, %v2969
      %v2971 = vsel %vm2661, %v1518, 0.0
      %v2972 = vadd.f32 %v2970, %v2971
      %v2973 = vsel %vm2661, %v1523, 0.0
      %v2974 = vadd.f32 %v2972, %v2973
      %v2975 = vsel %vm2661, %v1528, 0.0
      %v2976 = vadd.f32 %v2974, %v2975
      %v2977 = vsel %vm2661, %v1533, 0.0
      %v2978 = vadd.f32 %v2976, %v2977
      %v2979 = vsel %vm2661, %v1538, 0.0
      %v2980 = vadd.f32 %v2978, %v2979
      %v2981 = vsel %vm2661, %v1543, 0.0
      %v2982 = vadd.f32 %v2980, %v2981
      %v2983 = vsel %vm2661, %v1548, 0.0
      %v2984 = vadd.f32 %v2982, %v2983
      %v2985 = vsel %vm2661, %v1553, 0.0
      %v2986 = vadd.f32 %v2984, %v2985
      %v2987 = vsel %vm2661, %v1558, 0.0
      %v2988 = vadd.f32 %v2986, %v2987
      %v2989 = vsel %vm2661, %v1563, 0.0
      %v2990 = vadd.f32 %v2988, %v2989
      %v2991 = vsel %vm2661, %v1568, 0.0
      %v2992 = vadd.f32 %v2990, %v2991
      %v2993 = vsel %vm2661, %v1573, 0.0
      %v2994 = vadd.f32 %v2992, %v2993
      %v2995 = vsel %vm2661, %v1578, 0.0
      %v2996 = vadd.f32 %v2994, %v2995
      %v2997 = vsel %vm2661, %v1583, 0.0
      %v2998 = vadd.f32 %v2996, %v2997
      %v2999 = vsel %vm2661, %v1588, 0.0
      %v3000 = vadd.f32 %v2998, %v2999
      %v3001 = vsel %vm2661, %v1593, 0.0
      %v3002 = vadd.f32 %v3000, %v3001
      %v3003 = vsel %vm2661, %v1598, 0.0
      %v3004 = vadd.f32 %v3002, %v3003
      %v3005 = vsel %vm2661, %v1603, 0.0
      %v3006 = vadd.f32 %v3004, %v3005
      %v3007 = vsel %vm2661, %v1608, 0.0
      %v3008 = vadd.f32 %v3006, %v3007
      %v3009 = vsel %vm2661, %v1613, 0.0
      %v3010 = vadd.f32 %v3008, %v3009
      %v3011 = vsel %vm2661, %v1618, 0.0
      %v3012 = vadd.f32 %v3010, %v3011
      %v3013 = vsel %vm2661, %v1623, 0.0
      %v3014 = vadd.f32 %v3012, %v3013
      %v3015 = vsel %vm2661, %v1628, 0.0
      %v3016 = vadd.f32 %v3014, %v3015
      %v3017 = vsel %vm2661, %v1633, 0.0
      %v3018 = vadd.f32 %v3016, %v3017
      %v3019 = vsel %vm2661, %v1638, 0.0
      %v3020 = vadd.f32 %v3018, %v3019
      %v3021 = vsel %vm2661, %v1643, 0.0
      %v3022 = vadd.f32 %v3020, %v3021
      %v3023 = vsel %vm2661, %v1648, 0.0
      %v3024 = vadd.f32 %v3022, %v3023
      %v3025 = vsel %vm2661, %v1653, 0.0
      %v3026 = vadd.f32 %v3024, %v3025
      %v3027 = vsel %vm2661, %v1658, 0.0
      %v3028 = vadd.f32 %v3026, %v3027
      %v3029 = vsel %vm2661, %v1663, 0.0
      %v3030 = vadd.f32 %v3028, %v3029
      %v3031 = vsel %vm2661, %v1668, 0.0
      %v3032 = vadd.f32 %v3030, %v3031
      %v3033 = vsel %vm2661, %v1673, 0.0
      %v3034 = vadd.f32 %v3032, %v3033
      %v3035 = vsel %vm2661, %v1678, 0.0
      %v3036 = vadd.f32 %v3034, %v3035
      %v3037 = vsel %vm2661, %v1683, 0.0
      %v3038 = vadd.f32 %v3036, %v3037
      %v3039 = vsel %vm2661, %v1688, 0.0
      %v3040 = vadd.f32 %v3038, %v3039
      %v3041 = vsel %vm2661, %v1693, 0.0
      %v3042 = vadd.f32 %v3040, %v3041
      %v3043 = vsel %vm2661, %v1698, 0.0
      %v3044 = vadd.f32 %v3042, %v3043
      %v3045 = vsel %vm2661, %v1703, 0.0
      %v3046 = vadd.f32 %v3044, %v3045
      %v3047 = vsel %vm2661, %v1708, 0.0
      %v3048 = vadd.f32 %v3046, %v3047
      %v3049 = vsel %vm2661, %v1713, 0.0
      %v3050 = vadd.f32 %v3048, %v3049
      %v3051 = vsel %vm2661, %v1718, 0.0
      %v3052 = vadd.f32 %v3050, %v3051
      %v3053 = vsel %vm2661, %v1723, 0.0
      %v3054 = vadd.f32 %v3052, %v3053
      %v3055 = vsel %vm2661, %v1728, 0.0
      %v3056 = vadd.f32 %v3054, %v3055
      %v3057 = vsel %vm2661, %v1733, 0.0
      %v3058 = vadd.f32 %v3056, %v3057
      %v3059 = vsel %vm2661, %v1738, 0.0
      %v3060 = vadd.f32 %v3058, %v3059
      %v3061 = vsel %vm2661, %v1743, 0.0
      %v3062 = vadd.f32 %v3060, %v3061
      %v3063 = vsel %vm2661, %v1748, 0.0
      %v3064 = vadd.f32 %v3062, %v3063
      %v3065 = vsel %vm2661, %v1753, 0.0
      %v3066 = vadd.f32 %v3064, %v3065
      %v3067 = vsel %vm2661, %v1758, 0.0
      %v3068 = vadd.f32 %v3066, %v3067
      %v3069 = vsel %vm2661, %v1763, 0.0
      %v3070 = vadd.f32 %v3068, %v3069
      %v3071 = vsel %vm2661, %v1768, 0.0
      %v3072 = vadd.f32 %v3070, %v3071
      %v3073 = vsel %vm2661, %v1773, 0.0
      %v3074 = vadd.f32 %v3072, %v3073
      %v3075 = vsel %vm2661, %v1778, 0.0
      %v3076 = vadd.f32 %v3074, %v3075
      %v3077 = vsel %vm2661, %v1783, 0.0
      %v3078 = vadd.f32 %v3076, %v3077
      %v3079 = vsel %vm2661, %v1788, 0.0
      %v3080 = vadd.f32 %v3078, %v3079
      %v3081 = vsel %vm2661, %v1793, 0.0
      %v3082 = vadd.f32 %v3080, %v3081
      %v3083 = vsel %vm2661, %v1798, 0.0
      %v3084 = vadd.f32 %v3082, %v3083
      %v3085 = vsel %vm2661, %v1803, 0.0
      %v3086 = vadd.f32 %v3084, %v3085
      %v3087 = vsel %vm2661, %v1808, 0.0
      %v3088 = vadd.f32 %v3086, %v3087
      %v3089 = vsel %vm2661, %v1813, 0.0
      %v3090 = vadd.f32 %v3088, %v3089
      %v3091 = vsel %vm2661, %v1818, 0.0
      %v3092 = vadd.f32 %v3090, %v3091
      %v3093 = vsel %vm2661, %v1823, 0.0
      %v3094 = vadd.f32 %v3092, %v3093
      %v3095 = vsel %vm2661, %v1828, 0.0
      %v3096 = vadd.f32 %v3094, %v3095
      %v3097 = vsel %vm2661, %v1833, 0.0
      %v3098 = vadd.f32 %v3096, %v3097
      %v3099 = vsel %vm2661, %v1838, 0.0
      %v3100 = vadd.f32 %v3098, %v3099
      %v3101 = vsel %vm2661, %v1843, 0.0
      %v3102 = vadd.f32 %v3100, %v3101
      %v3103 = vsel %vm2661, %v1848, 0.0
      %v3104 = vadd.f32 %v3102, %v3103
      %v3105 = vsel %vm2661, %v1853, 0.0
      %v3106 = vadd.f32 %v3104, %v3105
      %v3107 = vsel %vm2661, %v1858, 0.0
      %v3108 = vadd.f32 %v3106, %v3107
      %v3109 = vsel %vm2661, %v1863, 0.0
      %v3110 = vadd.f32 %v3108, %v3109
      %v3111 = vsel %vm2661, %v1868, 0.0
      %v3112 = vadd.f32 %v3110, %v3111
      %v3113 = vsel %vm2661, %v1873, 0.0
      %v3114 = vadd.f32 %v3112, %v3113
      %v3115 = vsel %vm2661, %v1878, 0.0
      %v3116 = vadd.f32 %v3114, %v3115
      %v3117 = vsel %vm2661, %v1883, 0.0
      %v3118 = vadd.f32 %v3116, %v3117
      %v3119 = vsel %vm2661, %v1888, 0.0
      %v3120 = vadd.f32 %v3118, %v3119
      %v3121 = vsel %vm2661, %v1893, 0.0
      %v3122 = vadd.f32 %v3120, %v3121
      %v3123 = vsel %vm2661, %v1898, 0.0
      %v3124 = vadd.f32 %v3122, %v3123
      %v3125 = vsel %vm2661, %v1903, 0.0
      %v3126 = vadd.f32 %v3124, %v3125
      %v3127 = vsel %vm2661, %v1908, 0.0
      %v3128 = vadd.f32 %v3126, %v3127
      %v3129 = vsel %vm2661, %v1913, 0.0
      %v3130 = vadd.f32 %v3128, %v3129
      %v3131 = vsel %vm2661, %v1918, 0.0
      %v3132 = vadd.f32 %v3130, %v3131
      %v3133 = vsel %vm2661, %v1923, 0.0
      %v3134 = vadd.f32 %v3132, %v3133
      %v3135 = vsel %vm2661, %v1928, 0.0
      %v3136 = vadd.f32 %v3134, %v3135
      %v3137 = vsel %vm2661, %v1933, 0.0
      %v3138 = vadd.f32 %v3136, %v3137
      %v3139 = vsel %vm2661, %v1938, 0.0
      %v3140 = vadd.f32 %v3138, %v3139
      %v3141 = vsel %vm2661, %v1943, 0.0
      %v3142 = vadd.f32 %v3140, %v3141
      %v3143 = vsel %vm2661, %v1948, 0.0
      %v3144 = vadd.f32 %v3142, %v3143
      %v3145 = vsel %vm2661, %v1953, 0.0
      %v3146 = vadd.f32 %v3144, %v3145
      %v3147 = vsel %vm2661, %v1958, 0.0
      %v3148 = vadd.f32 %v3146, %v3147
      %v3149 = vsel %vm2661, %v1963, 0.0
      %v3150 = vadd.f32 %v3148, %v3149
      %v3151 = vsel %vm2661, %v1968, 0.0
      %v3152 = vadd.f32 %v3150, %v3151
      %v3153 = vsel %vm2661, %v1973, 0.0
      %v3154 = vadd.f32 %v3152, %v3153
      %v3155 = vsel %vm2661, %v1978, 0.0
      %v3156 = vadd.f32 %v3154, %v3155
      %v3157 = vsel %vm2661, %v1983, 0.0
      %v3158 = vadd.f32 %v3156, %v3157
      %v3159 = vsel %vm2661, %v1988, 0.0
      %v3160 = vadd.f32 %v3158, %v3159
      %v3161 = vsel %vm2661, %v1993, 0.0
      %v3162 = vadd.f32 %v3160, %v3161
      %v3163 = vsel %vm2661, %v1998, 0.0
      %v3164 = vadd.f32 %v3162, %v3163
      %v3165 = vsel %vm2661, %v2003, 0.0
      %v3166 = vadd.f32 %v3164, %v3165
      %v3167 = vsel %vm2661, %v2008, 0.0
      %v3168 = vadd.f32 %v3166, %v3167
      %v3169 = vsel %vm2661, %v2013, 0.0
      %v3170 = vadd.f32 %v3168, %v3169
      %v3171 = vsel %vm2661, %v2018, 0.0
      %v3172 = vadd.f32 %v3170, %v3171
      %v3173 = vsel %vm2661, %v2023, 0.0
      %v3174 = vadd.f32 %v3172, %v3173
      %v3175 = vsel %vm2661, %v2028, 0.0
      %v3176 = vadd.f32 %v3174, %v3175
      %v3177 = vsel %vm2661, %v2033, 0.0
      %v3178 = vadd.f32 %v3176, %v3177
      %v3179 = vsel %vm2661, %v2038, 0.0
      %v3180 = vadd.f32 %v3178, %v3179
      %v3181 = vsel %vm2661, %v2043, 0.0
      %v3182 = vadd.f32 %v3180, %v3181
      %v3183 = vsel %vm2661, %v2048, 0.0
      %v3184 = vadd.f32 %v3182, %v3183
      %v3185 = vsel %vm2661, %v2053, 0.0
      %v3186 = vadd.f32 %v3184, %v3185
      %v3187 = vsel %vm2661, %v2058, 0.0
      %v3188 = vadd.f32 %v3186, %v3187
      %v3189 = vsel %vm2661, %v2063, 0.0
      %v3190 = vadd.f32 %v3188, %v3189
      %v3191 = vsel %vm2661, %v2068, 0.0
      %v3192 = vadd.f32 %v3190, %v3191
      %v3193 = vsel %vm2661, %v2073, 0.0
      %v3194 = vadd.f32 %v3192, %v3193
      %v3195 = vsel %vm2661, %v2078, 0.0
      %v3196 = vadd.f32 %v3194, %v3195
      %v3197 = vsel %vm2661, %v2083, 0.0
      %v3198 = vadd.f32 %v3196, %v3197
      %v3199 = vsel %vm2661, %v2088, 0.0
      %v3200 = vadd.f32 %v3198, %v3199
      %v3201 = vsel %vm2661, %v2093, 0.0
      %v3202 = vadd.f32 %v3200, %v3201
      %v3203 = vsel %vm2661, %v2098, 0.0
      %v3204 = vadd.f32 %v3202, %v3203
      %v3205 = vsel %vm2661, %v2103, 0.0
      %v3206 = vadd.f32 %v3204, %v3205
      %v3207 = vsel %vm2661, %v2108, 0.0
      %v3208 = vadd.f32 %v3206, %v3207
      %v3209 = vsel %vm2661, %v2113, 0.0
      %v3210 = vadd.f32 %v3208, %v3209
      %v3211 = vsel %vm2661, %v2118, 0.0
      %v3212 = vadd.f32 %v3210, %v3211
      %v3213 = vsel %vm2661, %v2123, 0.0
      %v3214 = vadd.f32 %v3212, %v3213
      %v3215 = vsel %vm2661, %v2128, 0.0
      %v3216 = vadd.f32 %v3214, %v3215
      %v3217 = vsel %vm2661, %v2133, 0.0
      %v3218 = vadd.f32 %v3216, %v3217
      %v3219 = vsel %vm2661, %v2138, 0.0
      %v3220 = vadd.f32 %v3218, %v3219
      %v3221 = vsel %vm2661, %v2143, 0.0
      %v3222 = vadd.f32 %v3220, %v3221
      %v3223 = vsel %vm2661, %v2148, 0.0
      %v3224 = vadd.f32 %v3222, %v3223
      %v3225 = vsel %vm2661, %v2153, 0.0
      %v3226 = vadd.f32 %v3224, %v3225
      %v3227 = vsel %vm2661, %v2158, 0.0
      %v3228 = vadd.f32 %v3226, %v3227
      %v3229 = vsel %vm2661, %v2163, 0.0
      %v3230 = vadd.f32 %v3228, %v3229
      %v3231 = vsel %vm2661, %v2168, 0.0
      %v3232 = vadd.f32 %v3230, %v3231
      %v3233 = vsel %vm2661, %v2173, 0.0
      %v3234 = vadd.f32 %v3232, %v3233
      %v3235 = vsel %vm2661, %v2178, 0.0
      %v3236 = vadd.f32 %v3234, %v3235
      %v3237 = vsel %vm2661, %v2183, 0.0
      %v3238 = vadd.f32 %v3236, %v3237
      %v3239 = vsel %vm2661, %v2188, 0.0
      %v3240 = vadd.f32 %v3238, %v3239
      %v3241 = vsel %vm2661, %v2193, 0.0
      %v3242 = vadd.f32 %v3240, %v3241
      %v3243 = vsel %vm2661, %v2198, 0.0
      %v3244 = vadd.f32 %v3242, %v3243
      %v3245 = vsel %vm2661, %v2203, 0.0
      %v3246 = vadd.f32 %v3244, %v3245
      %v3247 = vsel %vm2661, %v2208, 0.0
      %v3248 = vadd.f32 %v3246, %v3247
      %v3249 = vsel %vm2661, %v2213, 0.0
      %v3250 = vadd.f32 %v3248, %v3249
      %v3251 = vsel %vm2661, %v2218, 0.0
      %v3252 = vadd.f32 %v3250, %v3251
      %v3253 = vsel %vm2661, %v2223, 0.0
      %v3254 = vadd.f32 %v3252, %v3253
      %v3255 = vsel %vm2661, %v2228, 0.0
      %v3256 = vadd.f32 %v3254, %v3255
      %v3257 = vsel %vm2661, %v2233, 0.0
      %v3258 = vadd.f32 %v3256, %v3257
      %v3259 = vsel %vm2661, %v2238, 0.0
      %v3260 = vadd.f32 %v3258, %v3259
      %v3261 = vsel %vm2661, %v2243, 0.0
      %v3262 = vadd.f32 %v3260, %v3261
      %v3263 = vsel %vm2661, %v2248, 0.0
      %v3264 = vadd.f32 %v3262, %v3263
      %v3265 = vsel %vm2661, %v2253, 0.0
      %v3266 = vadd.f32 %v3264, %v3265
      %v3267 = vsel %vm2661, %v2258, 0.0
      %v3268 = vadd.f32 %v3266, %v3267
      %v3269 = vsel %vm2661, %v2263, 0.0
      %v3270 = vadd.f32 %v3268, %v3269
      %v3271 = vsel %vm2661, %v2268, 0.0
      %v3272 = vadd.f32 %v3270, %v3271
      %v3273 = vsel %vm2661, %v2273, 0.0
      %v3274 = vadd.f32 %v3272, %v3273
      %v3275 = vsel %vm2661, %v2278, 0.0
      %v3276 = vadd.f32 %v3274, %v3275
      %v3277 = vsel %vm2661, %v2283, 0.0
      %v3278 = vadd.f32 %v3276, %v3277
      %v3279 = vsel %vm2661, %v2288, 0.0
      %v3280 = vadd.f32 %v3278, %v3279
      %v3281 = vsel %vm2661, %v2293, 0.0
      %v3282 = vadd.f32 %v3280, %v3281
      %v3283 = vsel %vm2661, %v2298, 0.0
      %v3284 = vadd.f32 %v3282, %v3283
      %v3285 = vsel %vm2661, %v2303, 0.0
      %v3286 = vadd.f32 %v3284, %v3285
      %v3287 = vsel %vm2661, %v2308, 0.0
      %v3288 = vadd.f32 %v3286, %v3287
      %v3289 = vsel %vm2661, %v2313, 0.0
      %v3290 = vadd.f32 %v3288, %v3289
      %v3291 = vsel %vm2661, %v2318, 0.0
      %v3292 = vadd.f32 %v3290, %v3291
      %v3293 = vsel %vm2661, %v2323, 0.0
      %v3294 = vadd.f32 %v3292, %v3293
      %v3295 = vsel %vm2661, %v2328, 0.0
      %v3296 = vadd.f32 %v3294, %v3295
      %v3297 = vsel %vm2661, %v2333, 0.0
      %v3298 = vadd.f32 %v3296, %v3297
      %v3299 = vsel %vm2661, %v2338, 0.0
      %v3300 = vadd.f32 %v3298, %v3299
      %v3301 = vsel %vm2661, %v2343, 0.0
      %v3302 = vadd.f32 %v3300, %v3301
      %v3303 = vsel %vm2661, %v2348, 0.0
      %v3304 = vadd.f32 %v3302, %v3303
      %v3305 = vsel %vm2661, %v2353, 0.0
      %v3306 = vadd.f32 %v3304, %v3305
      %v3307 = vsel %vm2661, %v2358, 0.0
      %v3308 = vadd.f32 %v3306, %v3307
      %v3309 = vsel %vm2661, %v2363, 0.0
      %v3310 = vadd.f32 %v3308, %v3309
      %v3311 = vsel %vm2661, %v2368, 0.0
      %v3312 = vadd.f32 %v3310, %v3311
      %v3313 = vsel %vm2661, %v2373, 0.0
      %v3314 = vadd.f32 %v3312, %v3313
      %v3315 = vsel %vm2661, %v2378, 0.0
      %v3316 = vadd.f32 %v3314, %v3315
      %v3317 = vsel %vm2661, %v2383, 0.0
      %v3318 = vadd.f32 %v3316, %v3317
      %v3319 = vsel %vm2661, %v2388, 0.0
      %v3320 = vadd.f32 %v3318, %v3319
      %v3321 = vsel %vm2661, %v2393, 0.0
      %v3322 = vadd.f32 %v3320, %v3321
      %v3323 = vsel %vm2661, %v2398, 0.0
      %v3324 = vadd.f32 %v3322, %v3323
      %v3325 = vsel %vm2661, %v2403, 0.0
      %v3326 = vadd.f32 %v3324, %v3325
      %v3327 = vsel %vm2661, %v2408, 0.0
      %v3328 = vadd.f32 %v3326, %v3327
      %v3329 = vsel %vm2661, %v2413, 0.0
      %v3330 = vadd.f32 %v3328, %v3329
      %v3331 = vsel %vm2661, %v2418, 0.0
      %v3332 = vadd.f32 %v3330, %v3331
      %v3333 = vsel %vm2661, %v2423, 0.0
      %v3334 = vadd.f32 %v3332, %v3333
      %v3335 = vsel %vm2661, %v2428, 0.0
      %v3336 = vadd.f32 %v3334, %v3335
      %v3337 = vsel %vm2661, %v2433, 0.0
      %v3338 = vadd.f32 %v3336, %v3337
      %v3339 = vsel %vm2661, %v2438, 0.0
      %v3340 = vadd.f32 %v3338, %v3339
      %v3341 = vsel %vm2661, %v2443, 0.0
      %v3342 = vadd.f32 %v3340, %v3341
      %v3343 = vsel %vm2661, %v2448, 0.0
      %v3344 = vadd.f32 %v3342, %v3343
      %v3345 = vsel %vm2661, %v2453, 0.0
      %v3346 = vadd.f32 %v3344, %v3345
      %v3347 = vsel %vm2661, %v2458, 0.0
      %v3348 = vadd.f32 %v3346, %v3347
      %v3349 = vsel %vm2661, %v2463, 0.0
      %v3350 = vadd.f32 %v3348, %v3349
      %v3351 = vsel %vm2661, %v2468, 0.0
      %v3352 = vadd.f32 %v3350, %v3351
      %v3353 = vsel %vm2661, %v2473, 0.0
      %v3354 = vadd.f32 %v3352, %v3353
      %v3355 = vsel %vm2661, %v2478, 0.0
      %v3356 = vadd.f32 %v3354, %v3355
      %v3357 = vsel %vm2661, %v2483, 0.0
      %v3358 = vadd.f32 %v3356, %v3357
      %v3359 = vsel %vm2661, %v2488, 0.0
      %v3360 = vadd.f32 %v3358, %v3359
      %v3361 = vsel %vm2661, %v2493, 0.0
      %v3362 = vadd.f32 %v3360, %v3361
      %v3363 = vsel %vm2661, %v2498, 0.0
      %v3364 = vadd.f32 %v3362, %v3363
      %v3365 = vsel %vm2661, %v2503, 0.0
      %v3366 = vadd.f32 %v3364, %v3365
      %v3367 = vsel %vm2661, %v2508, 0.0
      %v3368 = vadd.f32 %v3366, %v3367
      %v3369 = vsel %vm2661, %v2513, 0.0
      %v3370 = vadd.f32 %v3368, %v3369
      %v3371 = vsel %vm2661, %v2518, 0.0
      %v3372 = vadd.f32 %v3370, %v3371
      %v3373 = vsel %vm2661, %v2523, 0.0
      %v3374 = vadd.f32 %v3372, %v3373
      %v3375 = vsel %vm2661, %v2528, 0.0
      %v3376 = vadd.f32 %v3374, %v3375
      %v3377 = vsel %vm2661, %v2533, 0.0
      %v3378 = vadd.f32 %v3376, %v3377
      %v3379 = vsel %vm2661, %v2538, 0.0
      %v3380 = vadd.f32 %v3378, %v3379
      %v3381 = vsel %vm2661, %v2543, 0.0
      %v3382 = vadd.f32 %v3380, %v3381
      %v3383 = vsel %vm2661, %v2548, 0.0
      %v3384 = vadd.f32 %v3382, %v3383
      %v3385 = vsel %vm2661, %v2553, 0.0
      %v3386 = vadd.f32 %v3384, %v3385
      %v3387 = vsel %vm2661, %v2558, 0.0
      %v3388 = vadd.f32 %v3386, %v3387
      %v3389 = vsel %vm2661, %v2563, 0.0
      %v3390 = vadd.f32 %v3388, %v3389
      %v3391 = vsel %vm2661, %v2568, 0.0
      %v3392 = vadd.f32 %v3390, %v3391
      %v3393 = vsel %vm2661, %v2573, 0.0
      %v3394 = vadd.f32 %v3392, %v3393
      %v3395 = vsel %vm2661, %v2578, 0.0
      %v3396 = vadd.f32 %v3394, %v3395
      %v3397 = vsel %vm2661, %v2583, 0.0
      %v3398 = vadd.f32 %v3396, %v3397
      %v3399 = vsel %vm2661, %v2588, 0.0
      %v3400 = vadd.f32 %v3398, %v3399
      %v3401 = vsel %vm2661, %v2593, 0.0
      %v3402 = vadd.f32 %v3400, %v3401
      %v3403 = vsel %vm2661, %v2598, 0.0
      %v3404 = vadd.f32 %v3402, %v3403
      %v3405 = vsel %vm2661, %v2603, 0.0
      %v3406 = vadd.f32 %v3404, %v3405
      %v3407 = vsel %vm2661, %v2608, 0.0
      %v3408 = vadd.f32 %v3406, %v3407
      %v3409 = vsel %vm2661, %v2613, 0.0
      %v3410 = vadd.f32 %v3408, %v3409
      %v3411 = vsel %vm2661, %v2618, 0.0
      %v3412 = vadd.f32 %v3410, %v3411
      %v3413 = vsel %vm2661, %v2623, 0.0
      %v3414 = vadd.f32 %v3412, %v3413
      %v3415 = vsel %vm2661, %v2628, 0.0
      %v3416 = vadd.f32 %v3414, %v3415
      %v3417 = vsel %vm2661, %v2633, 0.0
      %v3418 = vadd.f32 %v3416, %v3417
      %v3419 = vsel %vm2661, %v2638, 0.0
      %v3420 = vadd.f32 %v3418, %v3419
      %v3421 = vsel %vm2661, %v2643, 0.0
      %v3422 = vadd.f32 %v3420, %v3421
      %v3423 = vsel %vm2661, %v2648, 0.0
      %v3424 = vadd.f32 %v3422, %v3423
      %v3425 = vsel %vm2661, %v2653, 0.0
      %v3426 = vadd.f32 %v3424, %v3425
      %v3427 = vsel %vm2661, %v2658, 0.0
      %v3428 = vadd.f32 %v3426, %v3427
      %v3429 = vrot.slane %v3428, 4
      %v3430 = vadd.f32 %v3428, %v3429
      %v3431 = vrot.slane %v3430, 2
      %v3432 = vadd.f32 %v3430, %v3431
      %v3433 = vrot.slane %v3432, 1
      %v3434 = vadd.f32 %v3432, %v3433
      %vm3435 = vcmask 253952
      %3436 = vst.msk [vmem:[%s272] sm:$0x1] %vm3435, %v3434
      %v3437 = vmul.f32 %v1383, %v1383
      %v3438 = vmul.f32 %v1388, %v1388
      %v3439 = vmul.f32 %v1393, %v1393
      %v3440 = vmul.f32 %v1398, %v1398
      %v3441 = vmul.f32 %v1403, %v1403
      %v3442 = vmul.f32 %v1408, %v1408
      %v3443 = vmul.f32 %v1413, %v1413
      %v3444 = vmul.f32 %v1418, %v1418
      %v3445 = vmul.f32 %v1423, %v1423
      %v3446 = vmul.f32 %v1428, %v1428
      %v3447 = vmul.f32 %v1433, %v1433
      %v3448 = vmul.f32 %v1438, %v1438
      %v3449 = vmul.f32 %v1443, %v1443
      %v3450 = vmul.f32 %v1448, %v1448
      %v3451 = vmul.f32 %v1453, %v1453
      %v3452 = vmul.f32 %v1458, %v1458
      %v3453 = vmul.f32 %v1463, %v1463
      %v3454 = vmul.f32 %v1468, %v1468
      %v3455 = vmul.f32 %v1473, %v1473
      %v3456 = vmul.f32 %v1478, %v1478
      %v3457 = vmul.f32 %v1483, %v1483
      %v3458 = vmul.f32 %v1488, %v1488
      %v3459 = vmul.f32 %v1493, %v1493
      %v3460 = vmul.f32 %v1498, %v1498
      %v3461 = vmul.f32 %v1503, %v1503
      %v3462 = vmul.f32 %v1508, %v1508
      %v3463 = vmul.f32 %v1513, %v1513
      %v3464 = vmul.f32 %v1518, %v1518
      %v3465 = vmul.f32 %v1523, %v1523
      %v3466 = vmul.f32 %v1528, %v1528
      %v3467 = vmul.f32 %v1533, %v1533
      %v3468 = vmul.f32 %v1538, %v1538
      %v3469 = vmul.f32 %v1543, %v1543
      %v3470 = vmul.f32 %v1548, %v1548
      %v3471 = vmul.f32 %v1553, %v1553
      %v3472 = vmul.f32 %v1558, %v1558
      %v3473 = vmul.f32 %v1563, %v1563
      %v3474 = vmul.f32 %v1568, %v1568
      %v3475 = vmul.f32 %v1573, %v1573
      %v3476 = vmul.f32 %v1578, %v1578
      %v3477 = vmul.f32 %v1583, %v1583
      %v3478 = vmul.f32 %v1588, %v1588
      %v3479 = vmul.f32 %v1593, %v1593
      %v3480 = vmul.f32 %v1598, %v1598
      %v3481 = vmul.f32 %v1603, %v1603
      %v3482 = vmul.f32 %v1608, %v1608
      %v3483 = vmul.f32 %v1613, %v1613
      %v3484 = vmul.f32 %v1618, %v1618
      %v3485 = vmul.f32 %v1623, %v1623
      %v3486 = vmul.f32 %v1628, %v1628
      %v3487 = vmul.f32 %v1633, %v1633
      %v3488 = vmul.f32 %v1638, %v1638
      %v3489 = vmul.f32 %v1643, %v1643
      %v3490 = vmul.f32 %v1648, %v1648
      %v3491 = vmul.f32 %v1653, %v1653
      %v3492 = vmul.f32 %v1658, %v1658
      %v3493 = vmul.f32 %v1663, %v1663
      %v3494 = vmul.f32 %v1668, %v1668
      %v3495 = vmul.f32 %v1673, %v1673
      %v3496 = vmul.f32 %v1678, %v1678
      %v3497 = vmul.f32 %v1683, %v1683
      %v3498 = vmul.f32 %v1688, %v1688
      %v3499 = vmul.f32 %v1693, %v1693
      %v3500 = vmul.f32 %v1698, %v1698
      %v3501 = vmul.f32 %v1703, %v1703
      %v3502 = vmul.f32 %v1708, %v1708
      %v3503 = vmul.f32 %v1713, %v1713
      %v3504 = vmul.f32 %v1718, %v1718
      %v3505 = vmul.f32 %v1723, %v1723
      %v3506 = vmul.f32 %v1728, %v1728
      %v3507 = vmul.f32 %v1733, %v1733
      %v3508 = vmul.f32 %v1738, %v1738
      %v3509 = vmul.f32 %v1743, %v1743
      %v3510 = vmul.f32 %v1748, %v1748
      %v3511 = vmul.f32 %v1753, %v1753
      %v3512 = vmul.f32 %v1758, %v1758
      %v3513 = vmul.f32 %v1763, %v1763
      %v3514 = vmul.f32 %v1768, %v1768
      %v3515 = vmul.f32 %v1773, %v1773
      %v3516 = vmul.f32 %v1778, %v1778
      %v3517 = vmul.f32 %v1783, %v1783
      %v3518 = vmul.f32 %v1788, %v1788
      %v3519 = vmul.f32 %v1793, %v1793
      %v3520 = vmul.f32 %v1798, %v1798
      %v3521 = vmul.f32 %v1803, %v1803
      %v3522 = vmul.f32 %v1808, %v1808
      %v3523 = vmul.f32 %v1813, %v1813
      %v3524 = vmul.f32 %v1818, %v1818
      %v3525 = vmul.f32 %v1823, %v1823
      %v3526 = vmul.f32 %v1828, %v1828
      %v3527 = vmul.f32 %v1833, %v1833
      %v3528 = vmul.f32 %v1838, %v1838
      %v3529 = vmul.f32 %v1843, %v1843
      %v3530 = vmul.f32 %v1848, %v1848
      %v3531 = vmul.f32 %v1853, %v1853
      %v3532 = vmul.f32 %v1858, %v1858
      %v3533 = vmul.f32 %v1863, %v1863
      %v3534 = vmul.f32 %v1868, %v1868
      %v3535 = vmul.f32 %v1873, %v1873
      %v3536 = vmul.f32 %v1878, %v1878
      %v3537 = vmul.f32 %v1883, %v1883
      %v3538 = vmul.f32 %v1888, %v1888
      %v3539 = vmul.f32 %v1893, %v1893
      %v3540 = vmul.f32 %v1898, %v1898
      %v3541 = vmul.f32 %v1903, %v1903
      %v3542 = vmul.f32 %v1908, %v1908
      %v3543 = vmul.f32 %v1913, %v1913
      %v3544 = vmul.f32 %v1918, %v1918
      %v3545 = vmul.f32 %v1923, %v1923
      %v3546 = vmul.f32 %v1928, %v1928
      %v3547 = vmul.f32 %v1933, %v1933
      %v3548 = vmul.f32 %v1938, %v1938
      %v3549 = vmul.f32 %v1943, %v1943
      %v3550 = vmul.f32 %v1948, %v1948
      %v3551 = vmul.f32 %v1953, %v1953
      %v3552 = vmul.f32 %v1958, %v1958
      %v3553 = vmul.f32 %v1963, %v1963
      %v3554 = vmul.f32 %v1968, %v1968
      %v3555 = vmul.f32 %v1973, %v1973
      %v3556 = vmul.f32 %v1978, %v1978
      %v3557 = vmul.f32 %v1983, %v1983
      %v3558 = vmul.f32 %v1988, %v1988
      %v3559 = vmul.f32 %v1993, %v1993
      %v3560 = vmul.f32 %v1998, %v1998
      %v3561 = vmul.f32 %v2003, %v2003
      %v3562 = vmul.f32 %v2008, %v2008
      %v3563 = vmul.f32 %v2013, %v2013
      %v3564 = vmul.f32 %v2018, %v2018
      %v3565 = vmul.f32 %v2023, %v2023
      %v3566 = vmul.f32 %v2028, %v2028
      %v3567 = vmul.f32 %v2033, %v2033
      %v3568 = vmul.f32 %v2038, %v2038
      %v3569 = vmul.f32 %v2043, %v2043
      %v3570 = vmul.f32 %v2048, %v2048
      %v3571 = vmul.f32 %v2053, %v2053
      %v3572 = vmul.f32 %v2058, %v2058
      %v3573 = vmul.f32 %v2063, %v2063
      %v3574 = vmul.f32 %v2068, %v2068
      %v3575 = vmul.f32 %v2073, %v2073
      %v3576 = vmul.f32 %v2078, %v2078
      %v3577 = vmul.f32 %v2083, %v2083
      %v3578 = vmul.f32 %v2088, %v2088
      %v3579 = vmul.f32 %v2093, %v2093
      %v3580 = vmul.f32 %v2098, %v2098
      %v3581 = vmul.f32 %v2103, %v2103
      %v3582 = vmul.f32 %v2108, %v2108
      %v3583 = vmul.f32 %v2113, %v2113
      %v3584 = vmul.f32 %v2118, %v2118
      %v3585 = vmul.f32 %v2123, %v2123
      %v3586 = vmul.f32 %v2128, %v2128
      %v3587 = vmul.f32 %v2133, %v2133
      %v3588 = vmul.f32 %v2138, %v2138
      %v3589 = vmul.f32 %v2143, %v2143
      %v3590 = vmul.f32 %v2148, %v2148
      %v3591 = vmul.f32 %v2153, %v2153
      %v3592 = vmul.f32 %v2158, %v2158
      %v3593 = vmul.f32 %v2163, %v2163
      %v3594 = vmul.f32 %v2168, %v2168
      %v3595 = vmul.f32 %v2173, %v2173
      %v3596 = vmul.f32 %v2178, %v2178
      %v3597 = vmul.f32 %v2183, %v2183
      %v3598 = vmul.f32 %v2188, %v2188
      %v3599 = vmul.f32 %v2193, %v2193
      %v3600 = vmul.f32 %v2198, %v2198
      %v3601 = vmul.f32 %v2203, %v2203
      %v3602 = vmul.f32 %v2208, %v2208
      %v3603 = vmul.f32 %v2213, %v2213
      %v3604 = vmul.f32 %v2218, %v2218
      %v3605 = vmul.f32 %v2223, %v2223
      %v3606 = vmul.f32 %v2228, %v2228
      %v3607 = vmul.f32 %v2233, %v2233
      %v3608 = vmul.f32 %v2238, %v2238
      %v3609 = vmul.f32 %v2243, %v2243
      %v3610 = vmul.f32 %v2248, %v2248
      %v3611 = vmul.f32 %v2253, %v2253
      %v3612 = vmul.f32 %v2258, %v2258
      %v3613 = vmul.f32 %v2263, %v2263
      %v3614 = vmul.f32 %v2268, %v2268
      %v3615 = vmul.f32 %v2273, %v2273
      %v3616 = vmul.f32 %v2278, %v2278
      %v3617 = vmul.f32 %v2283, %v2283
      %v3618 = vmul.f32 %v2288, %v2288
      %v3619 = vmul.f32 %v2293, %v2293
      %v3620 = vmul.f32 %v2298, %v2298
      %v3621 = vmul.f32 %v2303, %v2303
      %v3622 = vmul.f32 %v2308, %v2308
      %v3623 = vmul.f32 %v2313, %v2313
      %v3624 = vmul.f32 %v2318, %v2318
      %v3625 = vmul.f32 %v2323, %v2323
      %v3626 = vmul.f32 %v2328, %v2328
      %v3627 = vmul.f32 %v2333, %v2333
      %v3628 = vmul.f32 %v2338, %v2338
      %v3629 = vmul.f32 %v2343, %v2343
      %v3630 = vmul.f32 %v2348, %v2348
      %v3631 = vmul.f32 %v2353, %v2353
      %v3632 = vmul.f32 %v2358, %v2358
      %v3633 = vmul.f32 %v2363, %v2363
      %v3634 = vmul.f32 %v2368, %v2368
      %v3635 = vmul.f32 %v2373, %v2373
      %v3636 = vmul.f32 %v2378, %v2378
      %v3637 = vmul.f32 %v2383, %v2383
      %v3638 = vmul.f32 %v2388, %v2388
      %v3639 = vmul.f32 %v2393, %v2393
      %v3640 = vmul.f32 %v2398, %v2398
      %v3641 = vmul.f32 %v2403, %v2403
      %v3642 = vmul.f32 %v2408, %v2408
      %v3643 = vmul.f32 %v2413, %v2413
      %v3644 = vmul.f32 %v2418, %v2418
      %v3645 = vmul.f32 %v2423, %v2423
      %v3646 = vmul.f32 %v2428, %v2428
      %v3647 = vmul.f32 %v2433, %v2433
      %v3648 = vmul.f32 %v2438, %v2438
      %v3649 = vmul.f32 %v2443, %v2443
      %v3650 = vmul.f32 %v2448, %v2448
      %v3651 = vmul.f32 %v2453, %v2453
      %v3652 = vmul.f32 %v2458, %v2458
      %v3653 = vmul.f32 %v2463, %v2463
      %v3654 = vmul.f32 %v2468, %v2468
      %v3655 = vmul.f32 %v2473, %v2473
      %v3656 = vmul.f32 %v2478, %v2478
      %v3657 = vmul.f32 %v2483, %v2483
      %v3658 = vmul.f32 %v2488, %v2488
      %v3659 = vmul.f32 %v2493, %v2493
      %v3660 = vmul.f32 %v2498, %v2498
      %v3661 = vmul.f32 %v2503, %v2503
      %v3662 = vmul.f32 %v2508, %v2508
      %v3663 = vmul.f32 %v2513, %v2513
      %v3664 = vmul.f32 %v2518, %v2518
      %v3665 = vmul.f32 %v2523, %v2523
      %v3666 = vmul.f32 %v2528, %v2528
      %v3667 = vmul.f32 %v2533, %v2533
      %v3668 = vmul.f32 %v2538, %v2538
      %v3669 = vmul.f32 %v2543, %v2543
      %v3670 = vmul.f32 %v2548, %v2548
      %v3671 = vmul.f32 %v2553, %v2553
      %v3672 = vmul.f32 %v2558, %v2558
      %v3673 = vmul.f32 %v2563, %v2563
      %v3674 = vmul.f32 %v2568, %v2568
      %v3675 = vmul.f32 %v2573, %v2573
      %v3676 = vmul.f32 %v2578, %v2578
      %v3677 = vmul.f32 %v2583, %v2583
      %v3678 = vmul.f32 %v2588, %v2588
      %v3679 = vmul.f32 %v2593, %v2593
      %v3680 = vmul.f32 %v2598, %v2598
      %v3681 = vmul.f32 %v2603, %v2603
      %v3682 = vmul.f32 %v2608, %v2608
      %v3683 = vmul.f32 %v2613, %v2613
      %v3684 = vmul.f32 %v2618, %v2618
      %v3685 = vmul.f32 %v2623, %v2623
      %v3686 = vmul.f32 %v2628, %v2628
      %v3687 = vmul.f32 %v2633, %v2633
      %v3688 = vmul.f32 %v2638, %v2638
      %v3689 = vmul.f32 %v2643, %v2643
      %v3690 = vmul.f32 %v2648, %v2648
      %v3691 = vmul.f32 %v2653, %v2653
      %v3692 = vmul.f32 %v2658, %v2658
      %v3693 = vsel %vm2661, %v3437, 0.0
      %v3694 = vsel %vm2661, %v3438, 0.0
      %v3695 = vadd.f32 %v3693, %v3694
      %v3696 = vsel %vm2661, %v3439, 0.0
      %v3697 = vadd.f32 %v3695, %v3696
      %v3698 = vsel %vm2661, %v3440, 0.0
      %v3699 = vadd.f32 %v3697, %v3698
      %v3700 = vsel %vm2661, %v3441, 0.0
      %v3701 = vadd.f32 %v3699, %v3700
      %v3702 = vsel %vm2661, %v3442, 0.0
      %v3703 = vadd.f32 %v3701, %v3702
      %v3704 = vsel %vm2661, %v3443, 0.0
      %v3705 = vadd.f32 %v3703, %v3704
      %v3706 = vsel %vm2661, %v3444, 0.0
      %v3707 = vadd.f32 %v3705, %v3706
      %v3708 = vsel %vm2661, %v3445, 0.0
      %v3709 = vadd.f32 %v3707, %v3708
      %v3710 = vsel %vm2661, %v3446, 0.0
      %v3711 = vadd.f32 %v3709, %v3710
      %v3712 = vsel %vm2661, %v3447, 0.0
      %v3713 = vadd.f32 %v3711, %v3712
      %v3714 = vsel %vm2661, %v3448, 0.0
      %v3715 = vadd.f32 %v3713, %v3714
      %v3716 = vsel %vm2661, %v3449, 0.0
      %v3717 = vadd.f32 %v3715, %v3716
      %v3718 = vsel %vm2661, %v3450, 0.0
      %v3719 = vadd.f32 %v3717, %v3718
      %v3720 = vsel %vm2661, %v3451, 0.0
      %v3721 = vadd.f32 %v3719, %v3720
      %v3722 = vsel %vm2661, %v3452, 0.0
      %v3723 = vadd.f32 %v3721, %v3722
      %v3724 = vsel %vm2661, %v3453, 0.0
      %v3725 = vadd.f32 %v3723, %v3724
      %v3726 = vsel %vm2661, %v3454, 0.0
      %v3727 = vadd.f32 %v3725, %v3726
      %v3728 = vsel %vm2661, %v3455, 0.0
      %v3729 = vadd.f32 %v3727, %v3728
      %v3730 = vsel %vm2661, %v3456, 0.0
      %v3731 = vadd.f32 %v3729, %v3730
      %v3732 = vsel %vm2661, %v3457, 0.0
      %v3733 = vadd.f32 %v3731, %v3732
      %v3734 = vsel %vm2661, %v3458, 0.0
      %v3735 = vadd.f32 %v3733, %v3734
      %v3736 = vsel %vm2661, %v3459, 0.0
      %v3737 = vadd.f32 %v3735, %v3736
      %v3738 = vsel %vm2661, %v3460, 0.0
      %v3739 = vadd.f32 %v3737, %v3738
      %v3740 = vsel %vm2661, %v3461, 0.0
      %v3741 = vadd.f32 %v3739, %v3740
      %v3742 = vsel %vm2661, %v3462, 0.0
      %v3743 = vadd.f32 %v3741, %v3742
      %v3744 = vsel %vm2661, %v3463, 0.0
      %v3745 = vadd.f32 %v3743, %v3744
      %v3746 = vsel %vm2661, %v3464, 0.0
      %v3747 = vadd.f32 %v3745, %v3746
      %v3748 = vsel %vm2661, %v3465, 0.0
      %v3749 = vadd.f32 %v3747, %v3748
      %v3750 = vsel %vm2661, %v3466, 0.0
      %v3751 = vadd.f32 %v3749, %v3750
      %v3752 = vsel %vm2661, %v3467, 0.0
      %v3753 = vadd.f32 %v3751, %v3752
      %v3754 = vsel %vm2661, %v3468, 0.0
      %v3755 = vadd.f32 %v3753, %v3754
      %v3756 = vsel %vm2661, %v3469, 0.0
      %v3757 = vadd.f32 %v3755, %v3756
      %v3758 = vsel %vm2661, %v3470, 0.0
      %v3759 = vadd.f32 %v3757, %v3758
      %v3760 = vsel %vm2661, %v3471, 0.0
      %v3761 = vadd.f32 %v3759, %v3760
      %v3762 = vsel %vm2661, %v3472, 0.0
      %v3763 = vadd.f32 %v3761, %v3762
      %v3764 = vsel %vm2661, %v3473, 0.0
      %v3765 = vadd.f32 %v3763, %v3764
      %v3766 = vsel %vm2661, %v3474, 0.0
      %v3767 = vadd.f32 %v3765, %v3766
      %v3768 = vsel %vm2661, %v3475, 0.0
      %v3769 = vadd.f32 %v3767, %v3768
      %v3770 = vsel %vm2661, %v3476, 0.0
      %v3771 = vadd.f32 %v3769, %v3770
      %v3772 = vsel %vm2661, %v3477, 0.0
      %v3773 = vadd.f32 %v3771, %v3772
      %v3774 = vsel %vm2661, %v3478, 0.0
      %v3775 = vadd.f32 %v3773, %v3774
      %v3776 = vsel %vm2661, %v3479, 0.0
      %v3777 = vadd.f32 %v3775, %v3776
      %v3778 = vsel %vm2661, %v3480, 0.0
      %v3779 = vadd.f32 %v3777, %v3778
      %v3780 = vsel %vm2661, %v3481, 0.0
      %v3781 = vadd.f32 %v3779, %v3780
      %v3782 = vsel %vm2661, %v3482, 0.0
      %v3783 = vadd.f32 %v3781, %v3782
      %v3784 = vsel %vm2661, %v3483, 0.0
      %v3785 = vadd.f32 %v3783, %v3784
      %v3786 = vsel %vm2661, %v3484, 0.0
      %v3787 = vadd.f32 %v3785, %v3786
      %v3788 = vsel %vm2661, %v3485, 0.0
      %v3789 = vadd.f32 %v3787, %v3788
      %v3790 = vsel %vm2661, %v3486, 0.0
      %v3791 = vadd.f32 %v3789, %v3790
      %v3792 = vsel %vm2661, %v3487, 0.0
      %v3793 = vadd.f32 %v3791, %v3792
      %v3794 = vsel %vm2661, %v3488, 0.0
      %v3795 = vadd.f32 %v3793, %v3794
      %v3796 = vsel %vm2661, %v3489, 0.0
      %v3797 = vadd.f32 %v3795, %v3796
      %v3798 = vsel %vm2661, %v3490, 0.0
      %v3799 = vadd.f32 %v3797, %v3798
      %v3800 = vsel %vm2661, %v3491, 0.0
      %v3801 = vadd.f32 %v3799, %v3800
      %v3802 = vsel %vm2661, %v3492, 0.0
      %v3803 = vadd.f32 %v3801, %v3802
      %v3804 = vsel %vm2661, %v3493, 0.0
      %v3805 = vadd.f32 %v3803, %v3804
      %v3806 = vsel %vm2661, %v3494, 0.0
      %v3807 = vadd.f32 %v3805, %v3806
      %v3808 = vsel %vm2661, %v3495, 0.0
      %v3809 = vadd.f32 %v3807, %v3808
      %v3810 = vsel %vm2661, %v3496, 0.0
      %v3811 = vadd.f32 %v3809, %v3810
      %v3812 = vsel %vm2661, %v3497, 0.0
      %v3813 = vadd.f32 %v3811, %v3812
      %v3814 = vsel %vm2661, %v3498, 0.0
      %v3815 = vadd.f32 %v3813, %v3814
      %v3816 = vsel %vm2661, %v3499, 0.0
      %v3817 = vadd.f32 %v3815, %v3816
      %v3818 = vsel %vm2661, %v3500, 0.0
      %v3819 = vadd.f32 %v3817, %v3818
      %v3820 = vsel %vm2661, %v3501, 0.0
      %v3821 = vadd.f32 %v3819, %v3820
      %v3822 = vsel %vm2661, %v3502, 0.0
      %v3823 = vadd.f32 %v3821, %v3822
      %v3824 = vsel %vm2661, %v3503, 0.0
      %v3825 = vadd.f32 %v3823, %v3824
      %v3826 = vsel %vm2661, %v3504, 0.0
      %v3827 = vadd.f32 %v3825, %v3826
      %v3828 = vsel %vm2661, %v3505, 0.0
      %v3829 = vadd.f32 %v3827, %v3828
      %v3830 = vsel %vm2661, %v3506, 0.0
      %v3831 = vadd.f32 %v3829, %v3830
      %v3832 = vsel %vm2661, %v3507, 0.0
      %v3833 = vadd.f32 %v3831, %v3832
      %v3834 = vsel %vm2661, %v3508, 0.0
      %v3835 = vadd.f32 %v3833, %v3834
      %v3836 = vsel %vm2661, %v3509, 0.0
      %v3837 = vadd.f32 %v3835, %v3836
      %v3838 = vsel %vm2661, %v3510, 0.0
      %v3839 = vadd.f32 %v3837, %v3838
      %v3840 = vsel %vm2661, %v3511, 0.0
      %v3841 = vadd.f32 %v3839, %v3840
      %v3842 = vsel %vm2661, %v3512, 0.0
      %v3843 = vadd.f32 %v3841, %v3842
      %v3844 = vsel %vm2661, %v3513, 0.0
      %v3845 = vadd.f32 %v3843, %v3844
      %v3846 = vsel %vm2661, %v3514, 0.0
      %v3847 = vadd.f32 %v3845, %v3846
      %v3848 = vsel %vm2661, %v3515, 0.0
      %v3849 = vadd.f32 %v3847, %v3848
      %v3850 = vsel %vm2661, %v3516, 0.0
      %v3851 = vadd.f32 %v3849, %v3850
      %v3852 = vsel %vm2661, %v3517, 0.0
      %v3853 = vadd.f32 %v3851, %v3852
      %v3854 = vsel %vm2661, %v3518, 0.0
      %v3855 = vadd.f32 %v3853, %v3854
      %v3856 = vsel %vm2661, %v3519, 0.0
      %v3857 = vadd.f32 %v3855, %v3856
      %v3858 = vsel %vm2661, %v3520, 0.0
      %v3859 = vadd.f32 %v3857, %v3858
      %v3860 = vsel %vm2661, %v3521, 0.0
      %v3861 = vadd.f32 %v3859, %v3860
      %v3862 = vsel %vm2661, %v3522, 0.0
      %v3863 = vadd.f32 %v3861, %v3862
      %v3864 = vsel %vm2661, %v3523, 0.0
      %v3865 = vadd.f32 %v3863, %v3864
      %v3866 = vsel %vm2661, %v3524, 0.0
      %v3867 = vadd.f32 %v3865, %v3866
      %v3868 = vsel %vm2661, %v3525, 0.0
      %v3869 = vadd.f32 %v3867, %v3868
      %v3870 = vsel %vm2661, %v3526, 0.0
      %v3871 = vadd.f32 %v3869, %v3870
      %v3872 = vsel %vm2661, %v3527, 0.0
      %v3873 = vadd.f32 %v3871, %v3872
      %v3874 = vsel %vm2661, %v3528, 0.0
      %v3875 = vadd.f32 %v3873, %v3874
      %v3876 = vsel %vm2661, %v3529, 0.0
      %v3877 = vadd.f32 %v3875, %v3876
      %v3878 = vsel %vm2661, %v3530, 0.0
      %v3879 = vadd.f32 %v3877, %v3878
      %v3880 = vsel %vm2661, %v3531, 0.0
      %v3881 = vadd.f32 %v3879, %v3880
      %v3882 = vsel %vm2661, %v3532, 0.0
      %v3883 = vadd.f32 %v3881, %v3882
      %v3884 = vsel %vm2661, %v3533, 0.0
      %v3885 = vadd.f32 %v3883, %v3884
      %v3886 = vsel %vm2661, %v3534, 0.0
      %v3887 = vadd.f32 %v3885, %v3886
      %v3888 = vsel %vm2661, %v3535, 0.0
      %v3889 = vadd.f32 %v3887, %v3888
      %v3890 = vsel %vm2661, %v3536, 0.0
      %v3891 = vadd.f32 %v3889, %v3890
      %v3892 = vsel %vm2661, %v3537, 0.0
      %v3893 = vadd.f32 %v3891, %v3892
      %v3894 = vsel %vm2661, %v3538, 0.0
      %v3895 = vadd.f32 %v3893, %v3894
      %v3896 = vsel %vm2661, %v3539, 0.0
      %v3897 = vadd.f32 %v3895, %v3896
      %v3898 = vsel %vm2661, %v3540, 0.0
      %v3899 = vadd.f32 %v3897, %v3898
      %v3900 = vsel %vm2661, %v3541, 0.0
      %v3901 = vadd.f32 %v3899, %v3900
      %v3902 = vsel %vm2661, %v3542, 0.0
      %v3903 = vadd.f32 %v3901, %v3902
      %v3904 = vsel %vm2661, %v3543, 0.0
      %v3905 = vadd.f32 %v3903, %v3904
      %v3906 = vsel %vm2661, %v3544, 0.0
      %v3907 = vadd.f32 %v3905, %v3906
      %v3908 = vsel %vm2661, %v3545, 0.0
      %v3909 = vadd.f32 %v3907, %v3908
      %v3910 = vsel %vm2661, %v3546, 0.0
      %v3911 = vadd.f32 %v3909, %v3910
      %v3912 = vsel %vm2661, %v3547, 0.0
      %v3913 = vadd.f32 %v3911, %v3912
      %v3914 = vsel %vm2661, %v3548, 0.0
      %v3915 = vadd.f32 %v3913, %v3914
      %v3916 = vsel %vm2661, %v3549, 0.0
      %v3917 = vadd.f32 %v3915, %v3916
      %v3918 = vsel %vm2661, %v3550, 0.0
      %v3919 = vadd.f32 %v3917, %v3918
      %v3920 = vsel %vm2661, %v3551, 0.0
      %v3921 = vadd.f32 %v3919, %v3920
      %v3922 = vsel %vm2661, %v3552, 0.0
      %v3923 = vadd.f32 %v3921, %v3922
      %v3924 = vsel %vm2661, %v3553, 0.0
      %v3925 = vadd.f32 %v3923, %v3924
      %v3926 = vsel %vm2661, %v3554, 0.0
      %v3927 = vadd.f32 %v3925, %v3926
      %v3928 = vsel %vm2661, %v3555, 0.0
      %v3929 = vadd.f32 %v3927, %v3928
      %v3930 = vsel %vm2661, %v3556, 0.0
      %v3931 = vadd.f32 %v3929, %v3930
      %v3932 = vsel %vm2661, %v3557, 0.0
      %v3933 = vadd.f32 %v3931, %v3932
      %v3934 = vsel %vm2661, %v3558, 0.0
      %v3935 = vadd.f32 %v3933, %v3934
      %v3936 = vsel %vm2661, %v3559, 0.0
      %v3937 = vadd.f32 %v3935, %v3936
      %v3938 = vsel %vm2661, %v3560, 0.0
      %v3939 = vadd.f32 %v3937, %v3938
      %v3940 = vsel %vm2661, %v3561, 0.0
      %v3941 = vadd.f32 %v3939, %v3940
      %v3942 = vsel %vm2661, %v3562, 0.0
      %v3943 = vadd.f32 %v3941, %v3942
      %v3944 = vsel %vm2661, %v3563, 0.0
      %v3945 = vadd.f32 %v3943, %v3944
      %v3946 = vsel %vm2661, %v3564, 0.0
      %v3947 = vadd.f32 %v3945, %v3946
      %v3948 = vsel %vm2661, %v3565, 0.0
      %v3949 = vadd.f32 %v3947, %v3948
      %v3950 = vsel %vm2661, %v3566, 0.0
      %v3951 = vadd.f32 %v3949, %v3950
      %v3952 = vsel %vm2661, %v3567, 0.0
      %v3953 = vadd.f32 %v3951, %v3952
      %v3954 = vsel %vm2661, %v3568, 0.0
      %v3955 = vadd.f32 %v3953, %v3954
      %v3956 = vsel %vm2661, %v3569, 0.0
      %v3957 = vadd.f32 %v3955, %v3956
      %v3958 = vsel %vm2661, %v3570, 0.0
      %v3959 = vadd.f32 %v3957, %v3958
      %v3960 = vsel %vm2661, %v3571, 0.0
      %v3961 = vadd.f32 %v3959, %v3960
      %v3962 = vsel %vm2661, %v3572, 0.0
      %v3963 = vadd.f32 %v3961, %v3962
      %v3964 = vsel %vm2661, %v3573, 0.0
      %v3965 = vadd.f32 %v3963, %v3964
      %v3966 = vsel %vm2661, %v3574, 0.0
      %v3967 = vadd.f32 %v3965, %v3966
      %v3968 = vsel %vm2661, %v3575, 0.0
      %v3969 = vadd.f32 %v3967, %v3968
      %v3970 = vsel %vm2661, %v3576, 0.0
      %v3971 = vadd.f32 %v3969, %v3970
      %v3972 = vsel %vm2661, %v3577, 0.0
      %v3973 = vadd.f32 %v3971, %v3972
      %v3974 = vsel %vm2661, %v3578, 0.0
      %v3975 = vadd.f32 %v3973, %v3974
      %v3976 = vsel %vm2661, %v3579, 0.0
      %v3977 = vadd.f32 %v3975, %v3976
      %v3978 = vsel %vm2661, %v3580, 0.0
      %v3979 = vadd.f32 %v3977, %v3978
      %v3980 = vsel %vm2661, %v3581, 0.0
      %v3981 = vadd.f32 %v3979, %v3980
      %v3982 = vsel %vm2661, %v3582, 0.0
      %v3983 = vadd.f32 %v3981, %v3982
      %v3984 = vsel %vm2661, %v3583, 0.0
      %v3985 = vadd.f32 %v3983, %v3984
      %v3986 = vsel %vm2661, %v3584, 0.0
      %v3987 = vadd.f32 %v3985, %v3986
      %v3988 = vsel %vm2661, %v3585, 0.0
      %v3989 = vadd.f32 %v3987, %v3988
      %v3990 = vsel %vm2661, %v3586, 0.0
      %v3991 = vadd.f32 %v3989, %v3990
      %v3992 = vsel %vm2661, %v3587, 0.0
      %v3993 = vadd.f32 %v3991, %v3992
      %v3994 = vsel %vm2661, %v3588, 0.0
      %v3995 = vadd.f32 %v3993, %v3994
      %v3996 = vsel %vm2661, %v3589, 0.0
      %v3997 = vadd.f32 %v3995, %v3996
      %v3998 = vsel %vm2661, %v3590, 0.0
      %v3999 = vadd.f32 %v3997, %v3998
      %v4000 = vsel %vm2661, %v3591, 0.0
      %v4001 = vadd.f32 %v3999, %v4000
      %v4002 = vsel %vm2661, %v3592, 0.0
      %v4003 = vadd.f32 %v4001, %v4002
      %v4004 = vsel %vm2661, %v3593, 0.0
      %v4005 = vadd.f32 %v4003, %v4004
      %v4006 = vsel %vm2661, %v3594, 0.0
      %v4007 = vadd.f32 %v4005, %v4006
      %v4008 = vsel %vm2661, %v3595, 0.0
      %v4009 = vadd.f32 %v4007, %v4008
      %v4010 = vsel %vm2661, %v3596, 0.0
      %v4011 = vadd.f32 %v4009, %v4010
      %v4012 = vsel %vm2661, %v3597, 0.0
      %v4013 = vadd.f32 %v4011, %v4012
      %v4014 = vsel %vm2661, %v3598, 0.0
      %v4015 = vadd.f32 %v4013, %v4014
      %v4016 = vsel %vm2661, %v3599, 0.0
      %v4017 = vadd.f32 %v4015, %v4016
      %v4018 = vsel %vm2661, %v3600, 0.0
      %v4019 = vadd.f32 %v4017, %v4018
      %v4020 = vsel %vm2661, %v3601, 0.0
      %v4021 = vadd.f32 %v4019, %v4020
      %v4022 = vsel %vm2661, %v3602, 0.0
      %v4023 = vadd.f32 %v4021, %v4022
      %v4024 = vsel %vm2661, %v3603, 0.0
      %v4025 = vadd.f32 %v4023, %v4024
      %v4026 = vsel %vm2661, %v3604, 0.0
      %v4027 = vadd.f32 %v4025, %v4026
      %v4028 = vsel %vm2661, %v3605, 0.0
      %v4029 = vadd.f32 %v4027, %v4028
      %v4030 = vsel %vm2661, %v3606, 0.0
      %v4031 = vadd.f32 %v4029, %v4030
      %v4032 = vsel %vm2661, %v3607, 0.0
      %v4033 = vadd.f32 %v4031, %v4032
      %v4034 = vsel %vm2661, %v3608, 0.0
      %v4035 = vadd.f32 %v4033, %v4034
      %v4036 = vsel %vm2661, %v3609, 0.0
      %v4037 = vadd.f32 %v4035, %v4036
      %v4038 = vsel %vm2661, %v3610, 0.0
      %v4039 = vadd.f32 %v4037, %v4038
      %v4040 = vsel %vm2661, %v3611, 0.0
      %v4041 = vadd.f32 %v4039, %v4040
      %v4042 = vsel %vm2661, %v3612, 0.0
      %v4043 = vadd.f32 %v4041, %v4042
      %v4044 = vsel %vm2661, %v3613, 0.0
      %v4045 = vadd.f32 %v4043, %v4044
      %v4046 = vsel %vm2661, %v3614, 0.0
      %v4047 = vadd.f32 %v4045, %v4046
      %v4048 = vsel %vm2661, %v3615, 0.0
      %v4049 = vadd.f32 %v4047, %v4048
      %v4050 = vsel %vm2661, %v3616, 0.0
      %v4051 = vadd.f32 %v4049, %v4050
      %v4052 = vsel %vm2661, %v3617, 0.0
      %v4053 = vadd.f32 %v4051, %v4052
      %v4054 = vsel %vm2661, %v3618, 0.0
      %v4055 = vadd.f32 %v4053, %v4054
      %v4056 = vsel %vm2661, %v3619, 0.0
      %v4057 = vadd.f32 %v4055, %v4056
      %v4058 = vsel %vm2661, %v3620, 0.0
      %v4059 = vadd.f32 %v4057, %v4058
      %v4060 = vsel %vm2661, %v3621, 0.0
      %v4061 = vadd.f32 %v4059, %v4060
      %v4062 = vsel %vm2661, %v3622, 0.0
      %v4063 = vadd.f32 %v4061, %v4062
      %v4064 = vsel %vm2661, %v3623, 0.0
      %v4065 = vadd.f32 %v4063, %v4064
      %v4066 = vsel %vm2661, %v3624, 0.0
      %v4067 = vadd.f32 %v4065, %v4066
      %v4068 = vsel %vm2661, %v3625, 0.0
      %v4069 = vadd.f32 %v4067, %v4068
      %v4070 = vsel %vm2661, %v3626, 0.0
      %v4071 = vadd.f32 %v4069, %v4070
      %v4072 = vsel %vm2661, %v3627, 0.0
      %v4073 = vadd.f32 %v4071, %v4072
      %v4074 = vsel %vm2661, %v3628, 0.0
      %v4075 = vadd.f32 %v4073, %v4074
      %v4076 = vsel %vm2661, %v3629, 0.0
      %v4077 = vadd.f32 %v4075, %v4076
      %v4078 = vsel %vm2661, %v3630, 0.0
      %v4079 = vadd.f32 %v4077, %v4078
      %v4080 = vsel %vm2661, %v3631, 0.0
      %v4081 = vadd.f32 %v4079, %v4080
      %v4082 = vsel %vm2661, %v3632, 0.0
      %v4083 = vadd.f32 %v4081, %v4082
      %v4084 = vsel %vm2661, %v3633, 0.0
      %v4085 = vadd.f32 %v4083, %v4084
      %v4086 = vsel %vm2661, %v3634, 0.0
      %v4087 = vadd.f32 %v4085, %v4086
      %v4088 = vsel %vm2661, %v3635, 0.0
      %v4089 = vadd.f32 %v4087, %v4088
      %v4090 = vsel %vm2661, %v3636, 0.0
      %v4091 = vadd.f32 %v4089, %v4090
      %v4092 = vsel %vm2661, %v3637, 0.0
      %v4093 = vadd.f32 %v4091, %v4092
      %v4094 = vsel %vm2661, %v3638, 0.0
      %v4095 = vadd.f32 %v4093, %v4094
      %v4096 = vsel %vm2661, %v3639, 0.0
      %v4097 = vadd.f32 %v4095, %v4096
      %v4098 = vsel %vm2661, %v3640, 0.0
      %v4099 = vadd.f32 %v4097, %v4098
      %v4100 = vsel %vm2661, %v3641, 0.0
      %v4101 = vadd.f32 %v4099, %v4100
      %v4102 = vsel %vm2661, %v3642, 0.0
      %v4103 = vadd.f32 %v4101, %v4102
      %v4104 = vsel %vm2661, %v3643, 0.0
      %v4105 = vadd.f32 %v4103, %v4104
      %v4106 = vsel %vm2661, %v3644, 0.0
      %v4107 = vadd.f32 %v4105, %v4106
      %v4108 = vsel %vm2661, %v3645, 0.0
      %v4109 = vadd.f32 %v4107, %v4108
      %v4110 = vsel %vm2661, %v3646, 0.0
      %v4111 = vadd.f32 %v4109, %v4110
      %v4112 = vsel %vm2661, %v3647, 0.0
      %v4113 = vadd.f32 %v4111, %v4112
      %v4114 = vsel %vm2661, %v3648, 0.0
      %v4115 = vadd.f32 %v4113, %v4114
      %v4116 = vsel %vm2661, %v3649, 0.0
      %v4117 = vadd.f32 %v4115, %v4116
      %v4118 = vsel %vm2661, %v3650, 0.0
      %v4119 = vadd.f32 %v4117, %v4118
      %v4120 = vsel %vm2661, %v3651, 0.0
      %v4121 = vadd.f32 %v4119, %v4120
      %v4122 = vsel %vm2661, %v3652, 0.0
      %v4123 = vadd.f32 %v4121, %v4122
      %v4124 = vsel %vm2661, %v3653, 0.0
      %v4125 = vadd.f32 %v4123, %v4124
      %v4126 = vsel %vm2661, %v3654, 0.0
      %v4127 = vadd.f32 %v4125, %v4126
      %v4128 = vsel %vm2661, %v3655, 0.0
      %v4129 = vadd.f32 %v4127, %v4128
      %v4130 = vsel %vm2661, %v3656, 0.0
      %v4131 = vadd.f32 %v4129, %v4130
      %v4132 = vsel %vm2661, %v3657, 0.0
      %v4133 = vadd.f32 %v4131, %v4132
      %v4134 = vsel %vm2661, %v3658, 0.0
      %v4135 = vadd.f32 %v4133, %v4134
      %v4136 = vsel %vm2661, %v3659, 0.0
      %v4137 = vadd.f32 %v4135, %v4136
      %v4138 = vsel %vm2661, %v3660, 0.0
      %v4139 = vadd.f32 %v4137, %v4138
      %v4140 = vsel %vm2661, %v3661, 0.0
      %v4141 = vadd.f32 %v4139, %v4140
      %v4142 = vsel %vm2661, %v3662, 0.0
      %v4143 = vadd.f32 %v4141, %v4142
      %v4144 = vsel %vm2661, %v3663, 0.0
      %v4145 = vadd.f32 %v4143, %v4144
      %v4146 = vsel %vm2661, %v3664, 0.0
      %v4147 = vadd.f32 %v4145, %v4146
      %v4148 = vsel %vm2661, %v3665, 0.0
      %v4149 = vadd.f32 %v4147, %v4148
      %v4150 = vsel %vm2661, %v3666, 0.0
      %v4151 = vadd.f32 %v4149, %v4150
      %v4152 = vsel %vm2661, %v3667, 0.0
      %v4153 = vadd.f32 %v4151, %v4152
      %v4154 = vsel %vm2661, %v3668, 0.0
      %v4155 = vadd.f32 %v4153, %v4154
      %v4156 = vsel %vm2661, %v3669, 0.0
      %v4157 = vadd.f32 %v4155, %v4156
      %v4158 = vsel %vm2661, %v3670, 0.0
      %v4159 = vadd.f32 %v4157, %v4158
      %v4160 = vsel %vm2661, %v3671, 0.0
      %v4161 = vadd.f32 %v4159, %v4160
      %v4162 = vsel %vm2661, %v3672, 0.0
      %v4163 = vadd.f32 %v4161, %v4162
      %v4164 = vsel %vm2661, %v3673, 0.0
      %v4165 = vadd.f32 %v4163, %v4164
      %v4166 = vsel %vm2661, %v3674, 0.0
      %v4167 = vadd.f32 %v4165, %v4166
      %v4168 = vsel %vm2661, %v3675, 0.0
      %v4169 = vadd.f32 %v4167, %v4168
      %v4170 = vsel %vm2661, %v3676, 0.0
      %v4171 = vadd.f32 %v4169, %v4170
      %v4172 = vsel %vm2661, %v3677, 0.0
      %v4173 = vadd.f32 %v4171, %v4172
      %v4174 = vsel %vm2661, %v3678, 0.0
      %v4175 = vadd.f32 %v4173, %v4174
      %v4176 = vsel %vm2661, %v3679, 0.0
      %v4177 = vadd.f32 %v4175, %v4176
      %v4178 = vsel %vm2661, %v3680, 0.0
      %v4179 = vadd.f32 %v4177, %v4178
      %v4180 = vsel %vm2661, %v3681, 0.0
      %v4181 = vadd.f32 %v4179, %v4180
      %v4182 = vsel %vm2661, %v3682, 0.0
      %v4183 = vadd.f32 %v4181, %v4182
      %v4184 = vsel %vm2661, %v3683, 0.0
      %v4185 = vadd.f32 %v4183, %v4184
      %v4186 = vsel %vm2661, %v3684, 0.0
      %v4187 = vadd.f32 %v4185, %v4186
      %v4188 = vsel %vm2661, %v3685, 0.0
      %v4189 = vadd.f32 %v4187, %v4188
      %v4190 = vsel %vm2661, %v3686, 0.0
      %v4191 = vadd.f32 %v4189, %v4190
      %v4192 = vsel %vm2661, %v3687, 0.0
      %v4193 = vadd.f32 %v4191, %v4192
      %v4194 = vsel %vm2661, %v3688, 0.0
      %v4195 = vadd.f32 %v4193, %v4194
      %v4196 = vsel %vm2661, %v3689, 0.0
      %v4197 = vadd.f32 %v4195, %v4196
      %v4198 = vsel %vm2661, %v3690, 0.0
      %v4199 = vadd.f32 %v4197, %v4198
      %v4200 = vsel %vm2661, %v3691, 0.0
      %v4201 = vadd.f32 %v4199, %v4200
      %v4202 = vsel %vm2661, %v3692, 0.0
      %v4203 = vadd.f32 %v4201, %v4202
      %v4204 = vrot.slane %v4203, 4
      %v4205 = vadd.f32 %v4203, %v4204
      %v4206 = vrot.slane %v4205, 2
      %v4207 = vadd.f32 %v4205, %v4206
      %v4208 = vrot.slane %v4207, 1
      %v4209 = vadd.f32 %v4207, %v4208
      %4210 = vst.msk [vmem:[%s275] sm:$0x1] %vm3435, %v4209
      %p4211 = scmp.lt.s32.totalorder %s17, 3
      %s4212 = scalar_select %p4211, %s17, 3
      %s4213 = smul.addr %s4212, 256
      %s4214 = smul.addr %s4213, 8
      %s4215 = scalar_lea.vmem %s3, %s4214
      %p4216 = scmp.lt.s32.totalorder %s17, 3
      %s4217 = scalar_select %p4216, %s17, 3
      %s4218 = scalar_lea.vmem %s4, %s4217
      %p4219 = scmp.lt.s32.totalorder %s17, 3
      %s4220 = scalar_select %p4219, %s17, 3
      %s4221 = scalar_lea.vmem %s5, %s4220
      // Predicated region
      $region33: #{batch_ensemble_cnn_forward.5} parent=31 // pred_check
        %p4222 = pneg %p113
      $region34: #{batch_ensemble_cnn_forward.5} parent=31 // pred_check_branch
        %4224 = sbr.rel (%p4222) target = $region36
      $region35: #{batch_ensemble_cnn_forward.5} parent=31 // pred_region
        _
      $region36: #{batch_ensemble_cnn_forward.5} parent=31 // pred_fallthru
        _
      // Predicated region
      $region37: #{batch_ensemble_cnn_forward.5} parent=31 // pred_check
        %p4225 = pneg %p139
      $region38: #{batch_ensemble_cnn_forward.5} parent=31 // pred_check_branch
        %4227 = sbr.rel (%p4225) target = $region40
      $region39: #{batch_ensemble_cnn_forward.5} parent=31 // pred_region
        _
      $region40: #{batch_ensemble_cnn_forward.5} parent=31 // pred_fallthru
        _
      // Predicated region
      $region41: #{batch_ensemble_cnn_forward.5} parent=31 // pred_check
        %p4228 = pneg %p165
      $region42: #{batch_ensemble_cnn_forward.5} parent=31 // pred_check_branch
        %4230 = sbr.rel (%p4228) target = $region44
      $region43: #{batch_ensemble_cnn_forward.5} parent=31 // pred_region
        _
      $region44: #{batch_ensemble_cnn_forward.5} parent=31 // pred_fallthru
        _
    $region32: #{batch_ensemble_cnn_forward.5} parent=5 // pred_fallthru
      _
    %p4231 = scmp.le.s32.totalorder 2, %s12
    // Predicated region
    $region45: #{batch_ensemble_cnn_forward.5} parent=5 // pred_check
      %p4232 = pneg %p4231
    $region46: #{batch_ensemble_cnn_forward.5} parent=5 // pred_check_branch
      %4234 = sbr.rel (%p4232) target = $region48
    $region47: #{batch_ensemble_cnn_forward.5} parent=5 // pred_region
      %s4235 = ssub.s32 %s12, 2
      // Predicated region
      $region49: #{batch_ensemble_cnn_forward.5} parent=47 // pred_check
        %p4236 = pneg %p119
      $region50: #{batch_ensemble_cnn_forward.5} parent=47 // pred_check_branch
        %4238 = sbr.rel (%p4236) target = $region52
      $region51: #{batch_ensemble_cnn_forward.5} parent=47 // pred_region
        %p4239 = scmp.lt.s32.totalorder %s18, 3
        %s4240 = scalar_select %p4239, %s18, 3
        %s4241 = smul.addr %s4240, 256
        %s4242 = smul.addr %s4241, 8
        %s4243 = scalar_lea.vmem %s3, %s4242
      $region52: #{batch_ensemble_cnn_forward.5} parent=47 // pred_fallthru
        _
      // Predicated region
      $region53: #{batch_ensemble_cnn_forward.5} parent=47 // pred_check
        %p4244 = pneg %p145
      $region54: #{batch_ensemble_cnn_forward.5} parent=47 // pred_check_branch
        %4246 = sbr.rel (%p4244) target = $region56
      $region55: #{batch_ensemble_cnn_forward.5} parent=47 // pred_region
        %p4247 = scmp.lt.s32.totalorder %s18, 3
        %s4248 = scalar_select %p4247, %s18, 3
        %s4249 = scalar_lea.vmem %s4, %s4248
      $region56: #{batch_ensemble_cnn_forward.5} parent=47 // pred_fallthru
        _
      // Predicated region
      $region57: #{batch_ensemble_cnn_forward.5} parent=47 // pred_check
        %p4250 = pneg %p171
      $region58: #{batch_ensemble_cnn_forward.5} parent=47 // pred_check_branch
        %4252 = sbr.rel (%p4250) target = $region60
      $region59: #{batch_ensemble_cnn_forward.5} parent=47 // pred_region
        %p4253 = scmp.lt.s32.totalorder %s18, 3
        %s4254 = scalar_select %p4253, %s18, 3
        %s4255 = scalar_lea.vmem %s5, %s4254
      $region60: #{batch_ensemble_cnn_forward.5} parent=47 // pred_fallthru
        _
    $region48: #{batch_ensemble_cnn_forward.5} parent=5 // pred_fallthru
      _
  $region6: #{batch_ensemble_cnn_forward.5} parent=0 // loop_footer
    %s16 = sadd.s32 1, %s12
  $region7: #{batch_ensemble_cnn_forward.5} parent=0 // loop_footer_branch
    %11 = sbr.rel target = $region3
  $region8: #{batch_ensemble_cnn_forward.5} parent=0 // loop_exit
    _

// kernel: batch_ensemble_cnn_forward.7
$region0: #{batch_ensemble_cnn_forward.7}
  #allocation0 [shape = 'u32[]', space=smem, size = 0x4, offset = 0x4, fixed_abs, tag = 'smem constant byte address 0x4 - core index']
  #allocation1 [shape = 'u32[144,128]{1,0:T(1,128)}', space=vmem, size = 0x12000, scoped, tag = 'internal scratch']
  %s0 = inlined_call_operand.vmem [shape: f32[4,512,288], index: 0, kind: input, shape index: {}]
  %s1 = inlined_call_operand.vmem [shape: f32[4,288,64], index: 1, kind: input, shape index: {}]
  %s2 = inlined_call_operand.vmem [shape: f32[4,1,64], index: 2, kind: input, shape index: {}]
  %s3 = inlined_call_operand.vmem [shape: f32[4,512,64], index: 3, kind: output, shape index: {0}]
  %s4 = inlined_call_operand.vmem [shape: f32[4,1,64], index: 4, kind: output, shape index: {1}]
  %s5 = inlined_call_operand.vmem [shape: f32[4,1,64], index: 5, kind: output, shape index: {2}]
  %6 = xla_tuple %s3, %s4, %s5
  %s7 = sld [smem:[#allocation0]]
  $region61: #{batch_ensemble_cnn_forward.7} parent=0
    _
  %s9 = ssub.s32 1, %s7
  %s10 = scalar_select 0, %s9, %s7
  loop: start=0, step=1, limit=6
  $region2: #{batch_ensemble_cnn_forward.7} parent=0 // loop_pre_header
    _
  $region3: #{batch_ensemble_cnn_forward.7} parent=0 // loop_header
    %s12 = sphi 0, %s16
    %p13 = scmp.ge.s32.totalorder %s12, 6
    %s22 = sphi 0, %s24
    %s25 = sphi 0, %s22
    %s26 = sphi 0, %s25
    %s42 = sphi 0, %s26
    %s48 = sphi 0, %s50
    %s51 = sphi 0, %s48
    %s52 = sphi 0, %s51
    %s68 = sphi 0, %s52
    %s74 = sphi 0, %s76
    %s77 = sphi 0, %s74
    %s78 = sphi 0, %s77
    %s94 = sphi 0, %s78
    %s100 = sphi 0, %s102
    %s103 = sphi 0, %s100
    %s104 = sphi 0, %s103
    %s120 = sphi 0, %s104
    %s126 = sphi 0, %s128
    %s129 = sphi 0, %s126
    %s130 = sphi 0, %s129
    %s146 = sphi 0, %s130
    %s152 = sphi 0, %s154
    %s155 = sphi 0, %s152
    %s156 = sphi 0, %s155
    %s172 = sphi 0, %s156
  $region4: #{batch_ensemble_cnn_forward.7} parent=0 // loop_header_branch
    %15 = sbr.rel (%p13) target = $region8
  $region5: #{batch_ensemble_cnn_forward.7} parent=0 // loop_body
    %s17 = ssub.s32 %s12, 1
    %s18 = ssub.s32 %s12, 2
    %s19 = sadd.s32 %s12, 1
    %s20 = ssub.s32 %s12, %s19
    %p21 = scmp.eq.s32.totalorder %s20, 0
    %s23 = sadd.s32 %s22, 1
    %s24 = scalar_select %p21, %s22, %s23
    %p27 = pneg %p21
    %p28 = scmp.eq.s32.totalorder %s12, 3
    %p29 = por %p27, %p28
    %p30 = scmp.ne.s32.totalorder %s22, %s25
    %p31 = scmp.eq.s32.totalorder %s12, 0
    %p32 = por %p30, %p31
    %p33 = scmp.ne.s32.totalorder %s22, %s25
    %p34 = scmp.eq.s32.totalorder %s17, 3
    %p35 = por %p33, %p34
    %p36 = scmp.ne.s32.totalorder %s25, %s26
    %p37 = scmp.eq.s32.totalorder %s17, 0
    %p38 = por %p36, %p37
    %p39 = scmp.ne.s32.totalorder %s25, %s26
    %p40 = scmp.eq.s32.totalorder %s18, 3
    %p41 = por %p39, %p40
    %p43 = scmp.ne.s32.totalorder %s26, %s42
    %p44 = scmp.eq.s32.totalorder %s18, 0
    %p45 = por %p43, %p44
    %s46 = ssub.s32 %s12, %s19
    %p47 = scmp.eq.s32.totalorder %s46, 0
    %s49 = sadd.s32 %s48, 1
    %s50 = scalar_select %p47, %s48, %s49
    %p53 = pneg %p47
    %p54 = scmp.eq.s32.totalorder %s12, 3
    %p55 = por %p53, %p54
    %p56 = scmp.ne.s32.totalorder %s48, %s51
    %p57 = scmp.eq.s32.totalorder %s12, 0
    %p58 = por %p56, %p57
    %p59 = scmp.ne.s32.totalorder %s48, %s51
    %p60 = scmp.eq.s32.totalorder %s17, 3
    %p61 = por %p59, %p60
    %p62 = scmp.ne.s32.totalorder %s51, %s52
    %p63 = scmp.eq.s32.totalorder %s17, 0
    %p64 = por %p62, %p63
    %p65 = scmp.ne.s32.totalorder %s51, %s52
    %p66 = scmp.eq.s32.totalorder %s18, 3
    %p67 = por %p65, %p66
    %p69 = scmp.ne.s32.totalorder %s52, %s68
    %p70 = scmp.eq.s32.totalorder %s18, 0
    %p71 = por %p69, %p70
    %s72 = ssub.s32 %s12, %s19
    %p73 = scmp.eq.s32.totalorder %s72, 0
    %s75 = sadd.s32 %s74, 1
    %s76 = scalar_select %p73, %s74, %s75
    %p79 = pneg %p73
    %p80 = scmp.eq.s32.totalorder %s12, 3
    %p81 = por %p79, %p80
    %p82 = scmp.ne.s32.totalorder %s74, %s77
    %p83 = scmp.eq.s32.totalorder %s12, 0
    %p84 = por %p82, %p83
    %p85 = scmp.ne.s32.totalorder %s74, %s77
    %p86 = scmp.eq.s32.totalorder %s17, 3
    %p87 = por %p85, %p86
    %p88 = scmp.ne.s32.totalorder %s77, %s78
    %p89 = scmp.eq.s32.totalorder %s17, 0
    %p90 = por %p88, %p89
    %p91 = scmp.ne.s32.totalorder %s77, %s78
    %p92 = scmp.eq.s32.totalorder %s18, 3
    %p93 = por %p91, %p92
    %p95 = scmp.ne.s32.totalorder %s78, %s94
    %p96 = scmp.eq.s32.totalorder %s18, 0
    %p97 = por %p95, %p96
    %s98 = ssub.s32 %s12, %s19
    %p99 = scmp.eq.s32.totalorder %s98, 0
    %s101 = sadd.s32 %s100, 1
    %s102 = scalar_select %p99, %s100, %s101
    %p105 = pneg %p99
    %p106 = scmp.eq.s32.totalorder %s12, 3
    %p107 = por %p105, %p106
    %p108 = scmp.ne.s32.totalorder %s100, %s103
    %p109 = scmp.eq.s32.totalorder %s12, 0
    %p110 = por %p108, %p109
    %p111 = scmp.ne.s32.totalorder %s100, %s103
    %p112 = scmp.eq.s32.totalorder %s17, 3
    %p113 = por %p111, %p112
    %p114 = scmp.ne.s32.totalorder %s103, %s104
    %p115 = scmp.eq.s32.totalorder %s17, 0
    %p116 = por %p114, %p115
    %p117 = scmp.ne.s32.totalorder %s103, %s104
    %p118 = scmp.eq.s32.totalorder %s18, 3
    %p119 = por %p117, %p118
    %p121 = scmp.ne.s32.totalorder %s104, %s120
    %p122 = scmp.eq.s32.totalorder %s18, 0
    %p123 = por %p121, %p122
    %s124 = ssub.s32 %s12, %s19
    %p125 = scmp.eq.s32.totalorder %s124, 0
    %s127 = sadd.s32 %s126, 1
    %s128 = scalar_select %p125, %s126, %s127
    %p131 = pneg %p125
    %p132 = scmp.eq.s32.totalorder %s12, 3
    %p133 = por %p131, %p132
    %p134 = scmp.ne.s32.totalorder %s126, %s129
    %p135 = scmp.eq.s32.totalorder %s12, 0
    %p136 = por %p134, %p135
    %p137 = scmp.ne.s32.totalorder %s126, %s129
    %p138 = scmp.eq.s32.totalorder %s17, 3
    %p139 = por %p137, %p138
    %p140 = scmp.ne.s32.totalorder %s129, %s130
    %p141 = scmp.eq.s32.totalorder %s17, 0
    %p142 = por %p140, %p141
    %p143 = scmp.ne.s32.totalorder %s129, %s130
    %p144 = scmp.eq.s32.totalorder %s18, 3
    %p145 = por %p143, %p144
    %p147 = scmp.ne.s32.totalorder %s130, %s146
    %p148 = scmp.eq.s32.totalorder %s18, 0
    %p149 = por %p147, %p148
    %s150 = ssub.s32 %s12, %s19
    %p151 = scmp.eq.s32.totalorder %s150, 0
    %s153 = sadd.s32 %s152, 1
    %s154 = scalar_select %p151, %s152, %s153
    %p157 = pneg %p151
    %p158 = scmp.eq.s32.totalorder %s12, 3
    %p159 = por %p157, %p158
    %p160 = scmp.ne.s32.totalorder %s152, %s155
    %p161 = scmp.eq.s32.totalorder %s12, 0
    %p162 = por %p160, %p161
    %p163 = scmp.ne.s32.totalorder %s152, %s155
    %p164 = scmp.eq.s32.totalorder %s17, 3
    %p165 = por %p163, %p164
    %p166 = scmp.ne.s32.totalorder %s155, %s156
    %p167 = scmp.eq.s32.totalorder %s17, 0
    %p168 = por %p166, %p167
    %p169 = scmp.ne.s32.totalorder %s155, %s156
    %p170 = scmp.eq.s32.totalorder %s18, 3
    %p171 = por %p169, %p170
    %p173 = scmp.ne.s32.totalorder %s156, %s172
    %p174 = scmp.eq.s32.totalorder %s18, 0
    %p175 = por %p173, %p174
    %p176 = scmp.le.s32.totalorder 1, %s12
    %p177 = scmp.lt.s32.totalorder %s12, 5
    %p178 = pnand %p176, %p177
    %p179 = pneg %p178
    // Predicated region
    $region9: #{batch_ensemble_cnn_forward.7} parent=5 // pred_check
      _
    $region10: #{batch_ensemble_cnn_forward.7} parent=5 // pred_check_branch
      %181 = sbr.rel (%p178) target = $region12
    $region11: #{batch_ensemble_cnn_forward.7} parent=5 // pred_region
      %s182 = ssub.s32 %s12, 1
    $region12: #{batch_ensemble_cnn_forward.7} parent=5 // pred_fallthru
      _
    %p183 = scmp.lt.s32.totalorder %s12, 4
    // Predicated region
    $region13: #{batch_ensemble_cnn_forward.7} parent=5 // pred_check
      %p184 = pneg %p183
    $region14: #{batch_ensemble_cnn_forward.7} parent=5 // pred_check_branch
      %186 = sbr.rel (%p184) target = $region16
    $region15: #{batch_ensemble_cnn_forward.7} parent=5 // pred_region
      // Predicated region
      $region17: #{batch_ensemble_cnn_forward.7} parent=15 // pred_check
        %p187 = pneg %p32
      $region18: #{batch_ensemble_cnn_forward.7} parent=15 // pred_check_branch
        %189 = sbr.rel (%p187) target = $region20
      $region19: #{batch_ensemble_cnn_forward.7} parent=15 // pred_region
        %p190 = scmp.lt.s32.totalorder %s12, 3
        %s191 = scalar_select %p190, %s12, 3
        %s192 = smul.addr %s191, 192
        %s193 = smul.addr %s192, 8
        %s194 = scalar_lea.vmem %s0, %s193
      $region20: #{batch_ensemble_cnn_forward.7} parent=15 // pred_fallthru
        _
      // Predicated region
      $region21: #{batch_ensemble_cnn_forward.7} parent=15 // pred_check
        %p195 = pneg %p58
      $region22: #{batch_ensemble_cnn_forward.7} parent=15 // pred_check_branch
        %197 = sbr.rel (%p195) target = $region24
      $region23: #{batch_ensemble_cnn_forward.7} parent=15 // pred_region
        %p198 = scmp.lt.s32.totalorder %s12, 3
        %s199 = scalar_select %p198, %s12, 3
        %s200 = smul.addr %s199, 36
        %s201 = smul.addr %s200, 8
        %s202 = scalar_lea.vmem %s1, %s201
      $region24: #{batch_ensemble_cnn_forward.7} parent=15 // pred_fallthru
        _
      // Predicated region
      $region25: #{batch_ensemble_cnn_forward.7} parent=15 // pred_check
        %p203 = pneg %p84
      $region26: #{batch_ensemble_cnn_forward.7} parent=15 // pred_check_branch
        %205 = sbr.rel (%p203) target = $region28
      $region27: #{batch_ensemble_cnn_forward.7} parent=15 // pred_region
        %p206 = scmp.lt.s32.totalorder %s12, 3
        %s207 = scalar_select %p206, %s12, 3
        %s208 = scalar_lea.vmem %s2, %s207
      $region28: #{batch_ensemble_cnn_forward.7} parent=15 // pred_fallthru
        _
    $region16: #{batch_ensemble_cnn_forward.7} parent=5 // pred_fallthru
      _
    %p209 = scmp.le.s32.totalorder 1, %s12
    %p210 = scmp.lt.s32.totalorder %s12, 5
    %p211 = pnand %p209, %p210
    %p212 = pneg %p211
    // Predicated region
    $region29: #{batch_ensemble_cnn_forward.7} parent=5 // pred_check
      _
    $region30: #{batch_ensemble_cnn_forward.7} parent=5 // pred_check_branch
      %214 = sbr.rel (%p211) target = $region32
    $region31: #{batch_ensemble_cnn_forward.7} parent=5 // pred_region
      %s215 = ssub.s32 %s12, 1
      %p216 = scmp.lt.s32.totalorder %s17, 3
      %s217 = scalar_select %p216, %s17, 3
      %s218 = smul.addr %s217, 192
      %s219 = smul.addr %s218, 8
      %s220 = scalar_lea.vmem %s0, %s219
      %p221 = pneg %p38
      %p222 = pneg %p35
      %p223 = scmp.lt.s32.totalorder %s17, 3
      %s224 = scalar_select %p223, %s17, 3
      %s225 = smul.addr %s224, 36
      %s226 = smul.addr %s225, 8
      %s227 = scalar_lea.vmem %s1, %s226
      %p228 = pneg %p64
      %p229 = pneg %p61
      %p230 = scmp.lt.s32.totalorder %s17, 3
      %s231 = scalar_select %p230, %s17, 3
      %s232 = scalar_lea.vmem %s2, %s231
      %p233 = pneg %p90
      %p234 = pneg %p87
      %p235 = pneg %p116
      %p236 = pneg %p113
      %p237 = scmp.lt.s32.totalorder %s17, 3
      %s238 = scalar_select %p237, %s17, 3
      %s239 = smul.addr %s238, 64
      %s240 = smul.addr %s239, 8
      %s241 = scalar_lea.vmem %s3, %s240
      %p242 = pneg %p142
      %p243 = pneg %p139
      %p244 = scmp.lt.s32.totalorder %s17, 3
      %s245 = scalar_select %p244, %s17, 3
      %s246 = scalar_lea.vmem %s4, %s245
      %p247 = pneg %p168
      %p248 = pneg %p165
      %p249 = scmp.lt.s32.totalorder %s17, 3
      %s250 = scalar_select %p249, %s17, 3
      %s251 = scalar_lea.vmem %s5, %s250
      %p252 = scmp.lt.s32.totalorder %s17, 3
      %s253 = scalar_select %p252, %s17, 3
      %s254 = smul.addr %s253, 192
      %s255 = smul.addr %s254, 8
      %s256 = scalar_lea.vmem %s0, %s255
      %p257 = scmp.lt.s32.totalorder %s17, 3
      %s258 = scalar_select %p257, %s17, 3
      %s259 = smul.addr %s258, 36
      %s260 = smul.addr %s259, 8
      %s261 = scalar_lea.vmem %s1, %s260
      %p262 = scmp.lt.s32.totalorder %s17, 3
      %s263 = scalar_select %p262, %s17, 3
      %s264 = scalar_lea.vmem %s2, %s263
      %p265 = scmp.lt.s32.totalorder %s17, 3
      %s266 = scalar_select %p265, %s17, 3
      %s267 = smul.addr %s266, 64
      %s268 = smul.addr %s267, 8
      %s269 = scalar_lea.vmem %s3, %s268
      %p270 = scmp.lt.s32.totalorder %s17, 3
      %s271 = scalar_select %p270, %s17, 3
      %s272 = scalar_lea.vmem %s4, %s271
      %p273 = scmp.lt.s32.totalorder %s17, 3
      %s274 = scalar_select %p273, %s17, 3
      %s275 = scalar_lea.vmem %s5, %s274
      %v276 = vld [vmem:[%s256] sm:$0xff]
      %v277 = vld [vmem:[%s256 + $0x8] sm:$0xff]
      %v278 = vld [vmem:[%s256 + $0x10] sm:$0xff]
      %v279 = vld [vmem:[%s256 + $0x18] sm:$0xff]
      %v280 = vld [vmem:[%s256 + $0x20] sm:$0xff]
      %v281 = vld [vmem:[%s256 + $0x28] sm:$0xff]
      %v282 = vld [vmem:[%s256 + $0x30] sm:$0xff]
      %v283 = vld [vmem:[%s256 + $0x38] sm:$0xff]
      %v284 = vld [vmem:[%s256 + $0x40] sm:$0xff]
      %v285 = vld [vmem:[%s256 + $0x48] sm:$0xff]
      %v286 = vld [vmem:[%s256 + $0x50] sm:$0xff]
      %v287 = vld [vmem:[%s256 + $0x58] sm:$0xff]
      %v288 = vld [vmem:[%s256 + $0x60] sm:$0xff]
      %v289 = vld [vmem:[%s256 + $0x68] sm:$0xff]
      %v290 = vld [vmem:[%s256 + $0x70] sm:$0xff]
      %v291 = vld [vmem:[%s256 + $0x78] sm:$0xff]
      %v292 = vld [vmem:[%s256 + $0x80] sm:$0xff]
      %v293 = vld [vmem:[%s256 + $0x88] sm:$0xff]
      %v294 = vld [vmem:[%s256 + $0x90] sm:$0xff]
      %v295 = vld [vmem:[%s256 + $0x98] sm:$0xff]
      %v296 = vld [vmem:[%s256 + $0xa0] sm:$0xff]
      %v297 = vld [vmem:[%s256 + $0xa8] sm:$0xff]
      %v298 = vld [vmem:[%s256 + $0xb0] sm:$0xff]
      %v299 = vld [vmem:[%s256 + $0xb8] sm:$0xff]
      %v300 = vld [vmem:[%s256 + $0xc0] sm:$0xff]
      %v301 = vld [vmem:[%s256 + $0xc8] sm:$0xff]
      %v302 = vld [vmem:[%s256 + $0xd0] sm:$0xff]
      %v303 = vld [vmem:[%s256 + $0xd8] sm:$0xff]
      %v304 = vld [vmem:[%s256 + $0xe0] sm:$0xff]
      %v305 = vld [vmem:[%s256 + $0xe8] sm:$0xff]
      %v306 = vld [vmem:[%s256 + $0xf0] sm:$0xff]
      %v307 = vld [vmem:[%s256 + $0xf8] sm:$0xff]
      %v308 = vld [vmem:[%s256 + $0x100] sm:$0xff]
      %v309 = vld [vmem:[%s256 + $0x108] sm:$0xff]
      %v310 = vld [vmem:[%s256 + $0x110] sm:$0xff]
      %v311 = vld [vmem:[%s256 + $0x118] sm:$0xff]
      %v312 = vld [vmem:[%s256 + $0x120] sm:$0xff]
      %v313 = vld [vmem:[%s256 + $0x128] sm:$0xff]
      %v314 = vld [vmem:[%s256 + $0x130] sm:$0xff]
      %v315 = vld [vmem:[%s256 + $0x138] sm:$0xff]
      %v316 = vld [vmem:[%s256 + $0x140] sm:$0xff]
      %v317 = vld [vmem:[%s256 + $0x148] sm:$0xff]
      %v318 = vld [vmem:[%s256 + $0x150] sm:$0xff]
      %v319 = vld [vmem:[%s256 + $0x158] sm:$0xff]
      %v320 = vld [vmem:[%s256 + $0x160] sm:$0xff]
      %v321 = vld [vmem:[%s256 + $0x168] sm:$0xff]
      %v322 = vld [vmem:[%s256 + $0x170] sm:$0xff]
      %v323 = vld [vmem:[%s256 + $0x178] sm:$0xff]
      %v324 = vld [vmem:[%s256 + $0x180] sm:$0xff]
      %v325 = vld [vmem:[%s256 + $0x188] sm:$0xff]
      %v326 = vld [vmem:[%s256 + $0x190] sm:$0xff]
      %v327 = vld [vmem:[%s256 + $0x198] sm:$0xff]
      %v328 = vld [vmem:[%s256 + $0x1a0] sm:$0xff]
      %v329 = vld [vmem:[%s256 + $0x1a8] sm:$0xff]
      %v330 = vld [vmem:[%s256 + $0x1b0] sm:$0xff]
      %v331 = vld [vmem:[%s256 + $0x1b8] sm:$0xff]
      %v332 = vld [vmem:[%s256 + $0x1c0] sm:$0xff]
      %v333 = vld [vmem:[%s256 + $0x1c8] sm:$0xff]
      %v334 = vld [vmem:[%s256 + $0x1d0] sm:$0xff]
      %v335 = vld [vmem:[%s256 + $0x1d8] sm:$0xff]
      %v336 = vld [vmem:[%s256 + $0x1e0] sm:$0xff]
      %v337 = vld [vmem:[%s256 + $0x1e8] sm:$0xff]
      %v338 = vld [vmem:[%s256 + $0x1f0] sm:$0xff]
      %v339 = vld [vmem:[%s256 + $0x1f8] sm:$0xff]
      %v340 = vld [vmem:[%s256 + $0x200] sm:$0xff]
      %v341 = vld [vmem:[%s256 + $0x208] sm:$0xff]
      %v342 = vld [vmem:[%s256 + $0x210] sm:$0xff]
      %v343 = vld [vmem:[%s256 + $0x218] sm:$0xff]
      %v344 = vld [vmem:[%s256 + $0x220] sm:$0xff]
      %v345 = vld [vmem:[%s256 + $0x228] sm:$0xff]
      %v346 = vld [vmem:[%s256 + $0x230] sm:$0xff]
      %v347 = vld [vmem:[%s256 + $0x238] sm:$0xff]
      %v348 = vld [vmem:[%s256 + $0x240] sm:$0xff]
      %v349 = vld [vmem:[%s256 + $0x248] sm:$0xff]
      %v350 = vld [vmem:[%s256 + $0x250] sm:$0xff]
      %v351 = vld [vmem:[%s256 + $0x258] sm:$0xff]
      %v352 = vld [vmem:[%s256 + $0x260] sm:$0xff]
      %v353 = vld [vmem:[%s256 + $0x268] sm:$0xff]
      %v354 = vld [vmem:[%s256 + $0x270] sm:$0xff]
      %v355 = vld [vmem:[%s256 + $0x278] sm:$0xff]
      %v356 = vld [vmem:[%s256 + $0x280] sm:$0xff]
      %v357 = vld [vmem:[%s256 + $0x288] sm:$0xff]
      %v358 = vld [vmem:[%s256 + $0x290] sm:$0xff]
      %v359 = vld [vmem:[%s256 + $0x298] sm:$0xff]
      %v360 = vld [vmem:[%s256 + $0x2a0] sm:$0xff]
      %v361 = vld [vmem:[%s256 + $0x2a8] sm:$0xff]
      %v362 = vld [vmem:[%s256 + $0x2b0] sm:$0xff]
      %v363 = vld [vmem:[%s256 + $0x2b8] sm:$0xff]
      %v364 = vld [vmem:[%s256 + $0x2c0] sm:$0xff]
      %v365 = vld [vmem:[%s256 + $0x2c8] sm:$0xff]
      %v366 = vld [vmem:[%s256 + $0x2d0] sm:$0xff]
      %v367 = vld [vmem:[%s256 + $0x2d8] sm:$0xff]
      %v368 = vld [vmem:[%s256 + $0x2e0] sm:$0xff]
      %v369 = vld [vmem:[%s256 + $0x2e8] sm:$0xff]
      %v370 = vld [vmem:[%s256 + $0x2f0] sm:$0xff]
      %v371 = vld [vmem:[%s256 + $0x2f8] sm:$0xff]
      %v372 = vld [vmem:[%s256 + $0x300] sm:$0xff]
      %v373 = vld [vmem:[%s256 + $0x308] sm:$0xff]
      %v374 = vld [vmem:[%s256 + $0x310] sm:$0xff]
      %v375 = vld [vmem:[%s256 + $0x318] sm:$0xff]
      %v376 = vld [vmem:[%s256 + $0x320] sm:$0xff]
      %v377 = vld [vmem:[%s256 + $0x328] sm:$0xff]
      %v378 = vld [vmem:[%s256 + $0x330] sm:$0xff]
      %v379 = vld [vmem:[%s256 + $0x338] sm:$0xff]
      %v380 = vld [vmem:[%s256 + $0x340] sm:$0xff]
      %v381 = vld [vmem:[%s256 + $0x348] sm:$0xff]
      %v382 = vld [vmem:[%s256 + $0x350] sm:$0xff]
      %v383 = vld [vmem:[%s256 + $0x358] sm:$0xff]
      %v384 = vld [vmem:[%s256 + $0x360] sm:$0xff]
      %v385 = vld [vmem:[%s256 + $0x368] sm:$0xff]
      %v386 = vld [vmem:[%s256 + $0x370] sm:$0xff]
      %v387 = vld [vmem:[%s256 + $0x378] sm:$0xff]
      %v388 = vld [vmem:[%s256 + $0x380] sm:$0xff]
      %v389 = vld [vmem:[%s256 + $0x388] sm:$0xff]
      %v390 = vld [vmem:[%s256 + $0x390] sm:$0xff]
      %v391 = vld [vmem:[%s256 + $0x398] sm:$0xff]
      %v392 = vld [vmem:[%s256 + $0x3a0] sm:$0xff]
      %v393 = vld [vmem:[%s256 + $0x3a8] sm:$0xff]
      %v394 = vld [vmem:[%s256 + $0x3b0] sm:$0xff]
      %v395 = vld [vmem:[%s256 + $0x3b8] sm:$0xff]
      %v396 = vld [vmem:[%s256 + $0x3c0] sm:$0xff]
      %v397 = vld [vmem:[%s256 + $0x3c8] sm:$0xff]
      %v398 = vld [vmem:[%s256 + $0x3d0] sm:$0xff]
      %v399 = vld [vmem:[%s256 + $0x3d8] sm:$0xff]
      %v400 = vld [vmem:[%s256 + $0x3e0] sm:$0xff]
      %v401 = vld [vmem:[%s256 + $0x3e8] sm:$0xff]
      %v402 = vld [vmem:[%s256 + $0x3f0] sm:$0xff]
      %v403 = vld [vmem:[%s256 + $0x3f8] sm:$0xff]
      %v404 = vld [vmem:[%s256 + $0x400] sm:$0xff]
      %v405 = vld [vmem:[%s256 + $0x408] sm:$0xff]
      %v406 = vld [vmem:[%s256 + $0x410] sm:$0xff]
      %v407 = vld [vmem:[%s256 + $0x418] sm:$0xff]
      %v408 = vld [vmem:[%s256 + $0x420] sm:$0xff]
      %v409 = vld [vmem:[%s256 + $0x428] sm:$0xff]
      %v410 = vld [vmem:[%s256 + $0x430] sm:$0xff]
      %v411 = vld [vmem:[%s256 + $0x438] sm:$0xff]
      %v412 = vld [vmem:[%s256 + $0x440] sm:$0xff]
      %v413 = vld [vmem:[%s256 + $0x448] sm:$0xff]
      %v414 = vld [vmem:[%s256 + $0x450] sm:$0xff]
      %v415 = vld [vmem:[%s256 + $0x458] sm:$0xff]
      %v416 = vld [vmem:[%s256 + $0x460] sm:$0xff]
      %v417 = vld [vmem:[%s256 + $0x468] sm:$0xff]
      %v418 = vld [vmem:[%s256 + $0x470] sm:$0xff]
      %v419 = vld [vmem:[%s256 + $0x478] sm:$0xff]
      %v420 = vld [vmem:[%s256 + $0x480] sm:$0xff]
      %v421 = vld [vmem:[%s256 + $0x488] sm:$0xff]
      %v422 = vld [vmem:[%s256 + $0x490] sm:$0xff]
      %v423 = vld [vmem:[%s256 + $0x498] sm:$0xff]
      %v424 = vld [vmem:[%s256 + $0x4a0] sm:$0xff]
      %v425 = vld [vmem:[%s256 + $0x4a8] sm:$0xff]
      %v426 = vld [vmem:[%s256 + $0x4b0] sm:$0xff]
      %v427 = vld [vmem:[%s256 + $0x4b8] sm:$0xff]
      %v428 = vld [vmem:[%s256 + $0x4c0] sm:$0xff]
      %v429 = vld [vmem:[%s256 + $0x4c8] sm:$0xff]
      %v430 = vld [vmem:[%s256 + $0x4d0] sm:$0xff]
      %v431 = vld [vmem:[%s256 + $0x4d8] sm:$0xff]
      %v432 = vld [vmem:[%s256 + $0x4e0] sm:$0xff]
      %v433 = vld [vmem:[%s256 + $0x4e8] sm:$0xff]
      %v434 = vld [vmem:[%s256 + $0x4f0] sm:$0xff]
      %v435 = vld [vmem:[%s256 + $0x4f8] sm:$0xff]
      %v436 = vld [vmem:[%s256 + $0x500] sm:$0xff]
      %v437 = vld [vmem:[%s256 + $0x508] sm:$0xff]
      %v438 = vld [vmem:[%s256 + $0x510] sm:$0xff]
      %v439 = vld [vmem:[%s256 + $0x518] sm:$0xff]
      %v440 = vld [vmem:[%s256 + $0x520] sm:$0xff]
      %v441 = vld [vmem:[%s256 + $0x528] sm:$0xff]
      %v442 = vld [vmem:[%s256 + $0x530] sm:$0xff]
      %v443 = vld [vmem:[%s256 + $0x538] sm:$0xff]
      %v444 = vld [vmem:[%s256 + $0x540] sm:$0xff]
      %v445 = vld [vmem:[%s256 + $0x548] sm:$0xff]
      %v446 = vld [vmem:[%s256 + $0x550] sm:$0xff]
      %v447 = vld [vmem:[%s256 + $0x558] sm:$0xff]
      %v448 = vld [vmem:[%s256 + $0x560] sm:$0xff]
      %v449 = vld [vmem:[%s256 + $0x568] sm:$0xff]
      %v450 = vld [vmem:[%s256 + $0x570] sm:$0xff]
      %v451 = vld [vmem:[%s256 + $0x578] sm:$0xff]
      %v452 = vld [vmem:[%s256 + $0x580] sm:$0xff]
      %v453 = vld [vmem:[%s256 + $0x588] sm:$0xff]
      %v454 = vld [vmem:[%s256 + $0x590] sm:$0xff]
      %v455 = vld [vmem:[%s256 + $0x598] sm:$0xff]
      %v456 = vld [vmem:[%s256 + $0x5a0] sm:$0xff]
      %v457 = vld [vmem:[%s256 + $0x5a8] sm:$0xff]
      %v458 = vld [vmem:[%s256 + $0x5b0] sm:$0xff]
      %v459 = vld [vmem:[%s256 + $0x5b8] sm:$0xff]
      %v460 = vld [vmem:[%s256 + $0x5c0] sm:$0xff]
      %v461 = vld [vmem:[%s256 + $0x5c8] sm:$0xff]
      %v462 = vld [vmem:[%s256 + $0x5d0] sm:$0xff]
      %v463 = vld [vmem:[%s256 + $0x5d8] sm:$0xff]
      %v464 = vld [vmem:[%s256 + $0x5e0] sm:$0xff]
      %v465 = vld [vmem:[%s256 + $0x5e8] sm:$0xff]
      %v466 = vld [vmem:[%s256 + $0x5f0] sm:$0xff]
      %v467 = vld [vmem:[%s256 + $0x5f8] sm:$0xff]
      %v468 = vld [vmem:[%s261] sm:$0xff]
      %v469 = vld [vmem:[%s261 + $0x8] sm:$0xff]
      %v470 = vld [vmem:[%s261 + $0x10] sm:$0xff]
      %v471 = vld [vmem:[%s261 + $0x18] sm:$0xff]
      %v472 = vld [vmem:[%s261 + $0x20] sm:$0xff]
      %v473 = vld [vmem:[%s261 + $0x28] sm:$0xff]
      %v474 = vld [vmem:[%s261 + $0x30] sm:$0xff]
      %v475 = vld [vmem:[%s261 + $0x38] sm:$0xff]
      %v476 = vld [vmem:[%s261 + $0x40] sm:$0xff]
      %v477 = vld [vmem:[%s261 + $0x48] sm:$0xff]
      %v478 = vld [vmem:[%s261 + $0x50] sm:$0xff]
      %v479 = vld [vmem:[%s261 + $0x58] sm:$0xff]
      %v480 = vld [vmem:[%s261 + $0x60] sm:$0xff]
      %v481 = vld [vmem:[%s261 + $0x68] sm:$0xff]
      %v482 = vld [vmem:[%s261 + $0x70] sm:$0xff]
      %v483 = vld [vmem:[%s261 + $0x78] sm:$0xff]
      %v484 = vld [vmem:[%s261 + $0x80] sm:$0xff]
      %v485 = vld [vmem:[%s261 + $0x88] sm:$0xff]
      %v486 = vld [vmem:[%s261 + $0x90] sm:$0xff]
      %v487 = vld [vmem:[%s261 + $0x98] sm:$0xff]
      %v488 = vld [vmem:[%s261 + $0xa0] sm:$0xff]
      %v489 = vld [vmem:[%s261 + $0xa8] sm:$0xff]
      %v490 = vld [vmem:[%s261 + $0xb0] sm:$0xff]
      %v491 = vld [vmem:[%s261 + $0xb8] sm:$0xff]
      %v492 = vld [vmem:[%s261 + $0xc0] sm:$0xff]
      %v493 = vld [vmem:[%s261 + $0xc8] sm:$0xff]
      %v494 = vld [vmem:[%s261 + $0xd0] sm:$0xff]
      %v495 = vld [vmem:[%s261 + $0xd8] sm:$0xff]
      %v496 = vld [vmem:[%s261 + $0xe0] sm:$0xff]
      %v497 = vld [vmem:[%s261 + $0xe8] sm:$0xff]
      %v498 = vld [vmem:[%s261 + $0xf0] sm:$0xff]
      %v499 = vld [vmem:[%s261 + $0xf8] sm:$0xff]
      %v500 = vld [vmem:[%s261 + $0x100] sm:$0xff]
      %v501 = vld [vmem:[%s261 + $0x108] sm:$0xff]
      %v502 = vld [vmem:[%s261 + $0x110] sm:$0xff]
      %v503 = vld [vmem:[%s261 + $0x118] sm:$0xff]
      %v504 = vld [vmem:[%s264] sm:$0x1]
      %v506 = vlaneseq
      %v507 = vshrl.u32 %v506, 7
      %v508 = vsub.s32 0, %v507
      %v509 = vrot.slane %v504, %v508
      %vm511 = vcmask 261120
      %v513 = vsel %vm511, %v278, 0
      %v516 = vsel %vm511, %v281, 0
      %v519 = vsel %vm511, %v284, 0
      %v522 = vsel %vm511, %v287, 0
      %v525 = vsel %vm511, %v290, 0
      %v528 = vsel %vm511, %v293, 0
      %v531 = vsel %vm511, %v296, 0
      %v534 = vsel %vm511, %v299, 0
      %v537 = vsel %vm511, %v302, 0
      %v540 = vsel %vm511, %v305, 0
      %v543 = vsel %vm511, %v308, 0
      %v546 = vsel %vm511, %v311, 0
      %v549 = vsel %vm511, %v314, 0
      %v552 = vsel %vm511, %v317, 0
      %v555 = vsel %vm511, %v320, 0
      %v558 = vsel %vm511, %v323, 0
      %v561 = vsel %vm511, %v326, 0
      %v564 = vsel %vm511, %v329, 0
      %v567 = vsel %vm511, %v332, 0
      %v570 = vsel %vm511, %v335, 0
      %v573 = vsel %vm511, %v338, 0
      %v576 = vsel %vm511, %v341, 0
      %v579 = vsel %vm511, %v344, 0
      %v582 = vsel %vm511, %v347, 0
      %v585 = vsel %vm511, %v350, 0
      %v588 = vsel %vm511, %v353, 0
      %v591 = vsel %vm511, %v356, 0
      %v594 = vsel %vm511, %v359, 0
      %v597 = vsel %vm511, %v362, 0
      %v600 = vsel %vm511, %v365, 0
      %v603 = vsel %vm511, %v368, 0
      %v606 = vsel %vm511, %v371, 0
      %v609 = vsel %vm511, %v374, 0
      %v612 = vsel %vm511, %v377, 0
      %v615 = vsel %vm511, %v380, 0
      %v618 = vsel %vm511, %v383, 0
      %v621 = vsel %vm511, %v386, 0
      %v624 = vsel %vm511, %v389, 0
      %v627 = vsel %vm511, %v392, 0
      %v630 = vsel %vm511, %v395, 0
      %v633 = vsel %vm511, %v398, 0
      %v636 = vsel %vm511, %v401, 0
      %v639 = vsel %vm511, %v404, 0
      %v642 = vsel %vm511, %v407, 0
      %v645 = vsel %vm511, %v410, 0
      %v648 = vsel %vm511, %v413, 0
      %v651 = vsel %vm511, %v416, 0
      %v654 = vsel %vm511, %v419, 0
      %v657 = vsel %vm511, %v422, 0
      %v660 = vsel %vm511, %v425, 0
      %v663 = vsel %vm511, %v428, 0
      %v666 = vsel %vm511, %v431, 0
      %v669 = vsel %vm511, %v434, 0
      %v672 = vsel %vm511, %v437, 0
      %v675 = vsel %vm511, %v440, 0
      %v678 = vsel %vm511, %v443, 0
      %v681 = vsel %vm511, %v446, 0
      %v684 = vsel %vm511, %v449, 0
      %v687 = vsel %vm511, %v452, 0
      %v690 = vsel %vm511, %v455, 0
      %v693 = vsel %vm511, %v458, 0
      %v696 = vsel %vm511, %v461, 0
      %v699 = vsel %vm511, %v464, 0
      %v702 = vsel %vm511, %v467, 0
      %704 = vmatprep.subr.mxu0 0.0
      %705 = vmatpush1.msra.mxu0 %v468
      %706 = vmatprep.subr.mxu0 0.0
      %707 = vmatpush1.msra.mxu0 %v469
      %708 = vmatprep.subr.mxu0 0.0
      %709 = vmatpush1.msra.mxu0 %v470
      %710 = vmatprep.subr.mxu0 0.0
      %711 = vmatpush1.msra.mxu0 %v471
      %712 = vmatprep.subr.mxu0 0.0
      %713 = vmatpush1.msra.mxu0 %v472
      %714 = vmatprep.subr.mxu0 0.0
      %715 = vmatpush1.msra.mxu0 %v473
      %716 = vmatprep.subr.mxu0 0.0
      %717 = vmatpush1.msra.mxu0 %v474
      %718 = vmatprep.subr.mxu0 0.0
      %719 = vmatpush1.msra.mxu0 %v475
      %720 = vmatprep.subr.mxu0 0.0
      %721 = vmatpush1.msra.mxu0 %v476
      %722 = vmatprep.subr.mxu0 0.0
      %723 = vmatpush1.msra.mxu0 %v477
      %724 = vmatprep.subr.mxu0 0.0
      %725 = vmatpush1.msra.mxu0 %v478
      %726 = vmatprep.subr.mxu0 0.0
      %727 = vmatpush1.msra.mxu0 %v479
      %728 = vmatprep.subr.mxu0 0.0
      %729 = vmatpush1.msra.mxu0 %v480
      %730 = vmatprep.subr.mxu0 0.0
      %731 = vmatpush1.msra.mxu0 %v481
      %732 = vmatprep.subr.mxu0 0.0
      %733 = vmatpush1.msra.mxu0 %v482
      %734 = vmatprep.subr.mxu0 0.0
      %735 = vmatpush1.msra.mxu0 %v483
      %736 = vmatprep.subr.mxu0 0.0
      %737 = vmatpush1.msra.mxu0 %v484
      %738 = vmatprep.subr.mxu0 0.0
      %739 = vmatpush1.msra.mxu0 %v485
      %740 = vmatprep.subr.mxu0 0.0
      %741 = vmatpush1.msra.mxu0 %v486
      %742 = vmatprep.subr.mxu0 0.0
      %743 = vmatpush1.msra.mxu0 %v487
      %744 = vmatprep.subr.mxu0 0.0
      %745 = vmatpush1.msra.mxu0 %v488
      %746 = vmatprep.subr.mxu0 0.0
      %747 = vmatpush1.msra.mxu0 %v489
      %748 = vmatprep.subr.mxu0 0.0
      %749 = vmatpush1.msra.mxu0 %v490
      %750 = vmatprep.subr.mxu0 0.0
      %751 = vmatpush1.msra.mxu0 %v491
      %752 = vmatprep.subr.mxu0 0.0
      %753 = vmatpush1.msra.mxu0 %v492
      %754 = vmatprep.subr.mxu0 0.0
      %755 = vmatpush1.msra.mxu0 %v493
      %756 = vmatprep.subr.mxu0 0.0
      %757 = vmatpush1.msra.mxu0 %v494
      %758 = vmatprep.subr.mxu0 0.0
      %759 = vmatpush1.msra.mxu0 %v495
      %760 = vmatprep.subr.mxu0 0.0
      %761 = vmatpush1.msra.mxu0 %v496
      %762 = vmatprep.subr.mxu0 0.0
      %763 = vmatpush1.msra.mxu0 %v497
      %764 = vmatprep.subr.mxu0 0.0
      %765 = vmatpush1.msra.mxu0 %v498
      %766 = vmatprep.subr.mxu0 0.0
      %767 = vmatpush1.msra.mxu0 %v499
      %768 = vmatprep.mubr.f32.mxu0 %v277
      %769 = vmatmul.mubr.f32.gmra.mrb[0].mxu0 %v276
      %v770 = vpop.f32.mrb[0].mxu0
      %v771 = vadd.f32 %v509, %v770
      %v772 = vpop.f32.mrb[0].mxu0
      %773 = vmatprep.mubr.f32.mxu0 %v280
      %774 = vmatmul.mubr.f32.gmra.mrb[0].mxu0 %v279
      %v775 = vpop.f32.mrb[0].mxu0
      %v776 = vadd.f32 %v509, %v775
      %v777 = vpop.f32.mrb[0].mxu0
      %778 = vmatprep.mubr.f32.mxu0 %v283
      %779 = vmatmul.mubr.f32.gmra.mrb[0].mxu0 %v282
      %v780 = vpop.f32.mrb[0].mxu0
      %v781 = vadd.f32 %v509, %v780
      %v782 = vpop.f32.mrb[0].mxu0
      %783 = vmatprep.mubr.f32.mxu0 %v286
      %784 = vmatmul.mubr.f32.gmra.mrb[0].mxu0 %v285
      %v785 = vpop.f32.mrb[0].mxu0
      %v786 = vadd.f32 %v509, %v785
      %v787 = vpop.f32.mrb[0].mxu0
      %788 = vmatprep.mubr.f32.mxu0 %v289
      %789 = vmatmul.mubr.f32.gmra.mrb[0].mxu0 %v288
      %v790 = vpop.f32.mrb[0].mxu0
      %v791 = vadd.f32 %v509, %v790
      %v792 = vpop.f32.mrb[0].mxu0
      %793 = vmatprep.mubr.f32.mxu0 %v292
      %794 = vmatmul.mubr.f32.gmra.mrb[0].mxu0 %v291
      %v795 = vpop.f32.mrb[0].mxu0
      %v796 = vadd.f32 %v509, %v795
      %v797 = vpop.f32.mrb[0].mxu0
      %798 = vmatprep.mubr.f32.mxu0 %v295
      %799 = vmatmul.mubr.f32.gmra.mrb[0].mxu0 %v294
      %v800 = vpop.f32.mrb[0].mxu0
      %v801 = vadd.f32 %v509, %v800
      %v802 = vpop.f32.mrb[0].mxu0
      %803 = vmatprep.mubr.f32.mxu0 %v298
      %804 = vmatmul.mubr.f32.gmra.mrb[0].mxu0 %v297
      %v805 = vpop.f32.mrb[0].mxu0
      %v806 = vadd.f32 %v509, %v805
      %v807 = vpop.f32.mrb[0].mxu0
      %808 = vmatprep.mubr.f32.mxu0 %v301
      %809 = vmatmul.mubr.f32.gmra.mrb[0].mxu0 %v300
      %v810 = vpop.f32.mrb[0].mxu0
      %v811 = vadd.f32 %v509, %v810
      %v812 = vpop.f32.mrb[0].mxu0
      %813 = vmatprep.mubr.f32.mxu0 %v304
      %814 = vmatmul.mubr.f32.gmra.mrb[0].mxu0 %v303
      %v815 = vpop.f32.mrb[0].mxu0
      %v816 = vadd.f32 %v509, %v815
      %v817 = vpop.f32.mrb[0].mxu0
      %818 = vmatprep.mubr.f32.mxu0 %v307
      %819 = vmatmul.mubr.f32.gmra.mrb[0].mxu0 %v306
      %v820 = vpop.f32.mrb[0].mxu0
      %v821 = vadd.f32 %v509, %v820
      %v822 = vpop.f32.mrb[0].mxu0
      %823 = vmatprep.mubr.f32.mxu0 %v310
      %824 = vmatmul.mubr.f32.gmra.mrb[0].mxu0 %v309
      %v825 = vpop.f32.mrb[0].mxu0
      %v826 = vadd.f32 %v509, %v825
      %v827 = vpop.f32.mrb[0].mxu0
      %828 = vmatprep.mubr.f32.mxu0 %v313
      %829 = vmatmul.mubr.f32.gmra.mrb[0].mxu0 %v312
      %v830 = vpop.f32.mrb[0].mxu0
      %v831 = vadd.f32 %v509, %v830
      %v832 = vpop.f32.mrb[0].mxu0
      %833 = vmatprep.mubr.f32.mxu0 %v316
      %834 = vmatmul.mubr.f32.gmra.mrb[0].mxu0 %v315
      %v835 = vpop.f32.mrb[0].mxu0
      %v836 = vadd.f32 %v509, %v835
      %v837 = vpop.f32.mrb[0].mxu0
      %838 = vmatprep.mubr.f32.mxu0 %v319
      %839 = vmatmul.mubr.f32.gmra.mrb[0].mxu0 %v318
      %v840 = vpop.f32.mrb[0].mxu0
      %v841 = vadd.f32 %v509, %v840
      %v842 = vpop.f32.mrb[0].mxu0
      %843 = vmatprep.mubr.f32.mxu0 %v322
      %844 = vmatmul.mubr.f32.gmra.mrb[0].mxu0 %v321
      %v845 = vpop.f32.mrb[0].mxu0
      %v846 = vadd.f32 %v509, %v845
      %v847 = vpop.f32.mrb[0].mxu0
      %848 = vmatprep.mubr.f32.mxu0 %v325
      %849 = vmatmul.mubr.f32.gmra.mrb[0].mxu0 %v324
      %v850 = vpop.f32.mrb[0].mxu0
      %v851 = vadd.f32 %v509, %v850
      %v852 = vpop.f32.mrb[0].mxu0
      %853 = vmatprep.mubr.f32.mxu0 %v328
      %854 = vmatmul.mubr.f32.gmra.mrb[0].mxu0 %v327
      %v855 = vpop.f32.mrb[0].mxu0
      %v856 = vadd.f32 %v509, %v855
      %v857 = vpop.f32.mrb[0].mxu0
      %858 = vmatprep.mubr.f32.mxu0 %v331
      %859 = vmatmul.mubr.f32.gmra.mrb[0].mxu0 %v330
      %v860 = vpop.f32.mrb[0].mxu0
      %v861 = vadd.f32 %v509, %v860
      %v862 = vpop.f32.mrb[0].mxu0
      %863 = vmatprep.mubr.f32.mxu0 %v334
      %864 = vmatmul.mubr.f32.gmra.mrb[0].mxu0 %v333
      %v865 = vpop.f32.mrb[0].mxu0
      %v866 = vadd.f32 %v509, %v865
      %v867 = vpop.f32.mrb[0].mxu0
      %868 = vmatprep.mubr.f32.mxu0 %v337
      %869 = vmatmul.mubr.f32.gmra.mrb[0].mxu0 %v336
      %v870 = vpop.f32.mrb[0].mxu0
      %v871 = vadd.f32 %v509, %v870
      %v872 = vpop.f32.mrb[0].mxu0
      %873 = vmatprep.mubr.f32.mxu0 %v340
      %874 = vmatmul.mubr.f32.gmra.mrb[0].mxu0 %v339
      %v875 = vpop.f32.mrb[0].mxu0
      %v876 = vadd.f32 %v509, %v875
      %v877 = vpop.f32.mrb[0].mxu0
      %878 = vmatprep.mubr.f32.mxu0 %v343
      %879 = vmatmul.mubr.f32.gmra.mrb[0].mxu0 %v342
      %v880 = vpop.f32.mrb[0].mxu0
      %v881 = vadd.f32 %v509, %v880
      %v882 = vpop.f32.mrb[0].mxu0
      %883 = vmatprep.mubr.f32.mxu0 %v346
      %884 = vmatmul.mubr.f32.gmra.mrb[0].mxu0 %v345
      %v885 = vpop.f32.mrb[0].mxu0
      %v886 = vadd.f32 %v509, %v885
      %v887 = vpop.f32.mrb[0].mxu0
      %888 = vmatprep.mubr.f32.mxu0 %v349
      %889 = vmatmul.mubr.f32.gmra.mrb[0].mxu0 %v348
      %v890 = vpop.f32.mrb[0].mxu0
      %v891 = vadd.f32 %v509, %v890
      %v892 = vpop.f32.mrb[0].mxu0
      %893 = vmatprep.mubr.f32.mxu0 %v352
      %894 = vmatmul.mubr.f32.gmra.mrb[0].mxu0 %v351
      %v895 = vpop.f32.mrb[0].mxu0
      %v896 = vadd.f32 %v509, %v895
      %v897 = vpop.f32.mrb[0].mxu0
      %898 = vmatprep.mubr.f32.mxu0 %v355
      %899 = vmatmul.mubr.f32.gmra.mrb[0].mxu0 %v354
      %v900 = vpop.f32.mrb[0].mxu0
      %v901 = vadd.f32 %v509, %v900
      %v902 = vpop.f32.mrb[0].mxu0
      %903 = vmatprep.mubr.f32.mxu0 %v358
      %904 = vmatmul.mubr.f32.gmra.mrb[0].mxu0 %v357
      %v905 = vpop.f32.mrb[0].mxu0
      %v906 = vadd.f32 %v509, %v905
      %v907 = vpop.f32.mrb[0].mxu0
      %908 = vmatprep.mubr.f32.mxu0 %v361
      %909 = vmatmul.mubr.f32.gmra.mrb[0].mxu0 %v360
      %v910 = vpop.f32.mrb[0].mxu0
      %v911 = vadd.f32 %v509, %v910
      %v912 = vpop.f32.mrb[0].mxu0
      %913 = vmatprep.mubr.f32.mxu0 %v364
      %914 = vmatmul.mubr.f32.gmra.mrb[0].mxu0 %v363
      %v915 = vpop.f32.mrb[0].mxu0
      %v916 = vadd.f32 %v509, %v915
      %v917 = vpop.f32.mrb[0].mxu0
      %918 = vmatprep.mubr.f32.mxu0 %v367
      %919 = vmatmul.mubr.f32.gmra.mrb[0].mxu0 %v366
      %v920 = vpop.f32.mrb[0].mxu0
      %v921 = vadd.f32 %v509, %v920
      %v922 = vpop.f32.mrb[0].mxu0
      %923 = vmatprep.mubr.f32.mxu0 %v370
      %924 = vmatmul.mubr.f32.gmra.mrb[0].mxu0 %v369
      %v925 = vpop.f32.mrb[0].mxu0
      %v926 = vadd.f32 %v509, %v925
      %v927 = vpop.f32.mrb[0].mxu0
      %928 = vmatprep.mubr.f32.mxu0 %v373
      %929 = vmatmul.mubr.f32.gmra.mrb[0].mxu0 %v372
      %v930 = vpop.f32.mrb[0].mxu0
      %v931 = vadd.f32 %v509, %v930
      %v932 = vpop.f32.mrb[0].mxu0
      %933 = vmatprep.mubr.f32.mxu0 %v376
      %934 = vmatmul.mubr.f32.gmra.mrb[0].mxu0 %v375
      %v935 = vpop.f32.mrb[0].mxu0
      %v936 = vadd.f32 %v509, %v935
      %v937 = vpop.f32.mrb[0].mxu0
      %938 = vmatprep.mubr.f32.mxu0 %v379
      %939 = vmatmul.mubr.f32.gmra.mrb[0].mxu0 %v378
      %v940 = vpop.f32.mrb[0].mxu0
      %v941 = vadd.f32 %v509, %v940
      %v942 = vpop.f32.mrb[0].mxu0
      %943 = vmatprep.mubr.f32.mxu0 %v382
      %944 = vmatmul.mubr.f32.gmra.mrb[0].mxu0 %v381
      %v945 = vpop.f32.mrb[0].mxu0
      %v946 = vadd.f32 %v509, %v945
      %v947 = vpop.f32.mrb[0].mxu0
      %948 = vmatprep.mubr.f32.mxu0 %v385
      %949 = vmatmul.mubr.f32.gmra.mrb[0].mxu0 %v384
      %v950 = vpop.f32.mrb[0].mxu0
      %v951 = vadd.f32 %v509, %v950
      %v952 = vpop.f32.mrb[0].mxu0
      %953 = vmatprep.mubr.f32.mxu0 %v388
      %954 = vmatmul.mubr.f32.gmra.mrb[0].mxu0 %v387
      %v955 = vpop.f32.mrb[0].mxu0
      %v956 = vadd.f32 %v509, %v955
      %v957 = vpop.f32.mrb[0].mxu0
      %958 = vmatprep.mubr.f32.mxu0 %v391
      %959 = vmatmul.mubr.f32.gmra.mrb[0].mxu0 %v390
      %v960 = vpop.f32.mrb[0].mxu0
      %v961 = vadd.f32 %v509, %v960
      %v962 = vpop.f32.mrb[0].mxu0
      %963 = vmatprep.mubr.f32.mxu0 %v394
      %964 = vmatmul.mubr.f32.gmra.mrb[0].mxu0 %v393
      %v965 = vpop.f32.mrb[0].mxu0
      %v966 = vadd.f32 %v509, %v965
      %v967 = vpop.f32.mrb[0].mxu0
      %968 = vmatprep.mubr.f32.mxu0 %v397
      %969 = vmatmul.mubr.f32.gmra.mrb[0].mxu0 %v396
      %v970 = vpop.f32.mrb[0].mxu0
      %v971 = vadd.f32 %v509, %v970
      %v972 = vpop.f32.mrb[0].mxu0
      %973 = vmatprep.mubr.f32.mxu0 %v400
      %974 = vmatmul.mubr.f32.gmra.mrb[0].mxu0 %v399
      %v975 = vpop.f32.mrb[0].mxu0
      %v976 = vadd.f32 %v509, %v975
      %v977 = vpop.f32.mrb[0].mxu0
      %978 = vmatprep.mubr.f32.mxu0 %v403
      %979 = vmatmul.mubr.f32.gmra.mrb[0].mxu0 %v402
      %v980 = vpop.f32.mrb[0].mxu0
      %v981 = vadd.f32 %v509, %v980
      %v982 = vpop.f32.mrb[0].mxu0
      %983 = vmatprep.mubr.f32.mxu0 %v406
      %984 = vmatmul.mubr.f32.gmra.mrb[0].mxu0 %v405
      %v985 = vpop.f32.mrb[0].mxu0
      %v986 = vadd.f32 %v509, %v985
      %v987 = vpop.f32.mrb[0].mxu0
      %988 = vmatprep.mubr.f32.mxu0 %v409
      %989 = vmatmul.mubr.f32.gmra.mrb[0].mxu0 %v408
      %v990 = vpop.f32.mrb[0].mxu0
      %v991 = vadd.f32 %v509, %v990
      %v992 = vpop.f32.mrb[0].mxu0
      %993 = vmatprep.mubr.f32.mxu0 %v412
      %994 = vmatmul.mubr.f32.gmra.mrb[0].mxu0 %v411
      %v995 = vpop.f32.mrb[0].mxu0
      %v996 = vadd.f32 %v509, %v995
      %v997 = vpop.f32.mrb[0].mxu0
      %998 = vmatprep.mubr.f32.mxu0 %v415
      %999 = vmatmul.mubr.f32.gmra.mrb[0].mxu0 %v414
      %v1000 = vpop.f32.mrb[0].mxu0
      %v1001 = vadd.f32 %v509, %v1000
      %v1002 = vpop.f32.mrb[0].mxu0
      %1003 = vmatprep.mubr.f32.mxu0 %v418
      %1004 = vmatmul.mubr.f32.gmra.mrb[0].mxu0 %v417
      %v1005 = vpop.f32.mrb[0].mxu0
      %v1006 = vadd.f32 %v509, %v1005
      %v1007 = vpop.f32.mrb[0].mxu0
      %1008 = vmatprep.mubr.f32.mxu0 %v421
      %1009 = vmatmul.mubr.f32.gmra.mrb[0].mxu0 %v420
      %v1010 = vpop.f32.mrb[0].mxu0
      %v1011 = vadd.f32 %v509, %v1010
      %v1012 = vpop.f32.mrb[0].mxu0
      %1013 = vmatprep.mubr.f32.mxu0 %v424
      %1014 = vmatmul.mubr.f32.gmra.mrb[0].mxu0 %v423
      %v1015 = vpop.f32.mrb[0].mxu0
      %v1016 = vadd.f32 %v509, %v1015
      %v1017 = vpop.f32.mrb[0].mxu0
      %1018 = vmatprep.mubr.f32.mxu0 %v427
      %1019 = vmatmul.mubr.f32.gmra.mrb[0].mxu0 %v426
      %v1020 = vpop.f32.mrb[0].mxu0
      %v1021 = vadd.f32 %v509, %v1020
      %v1022 = vpop.f32.mrb[0].mxu0
      %1023 = vmatprep.mubr.f32.mxu0 %v430
      %1024 = vmatmul.mubr.f32.gmra.mrb[0].mxu0 %v429
      %v1025 = vpop.f32.mrb[0].mxu0
      %v1026 = vadd.f32 %v509, %v1025
      %v1027 = vpop.f32.mrb[0].mxu0
      %1028 = vmatprep.mubr.f32.mxu0 %v433
      %1029 = vmatmul.mubr.f32.gmra.mrb[0].mxu0 %v432
      %v1030 = vpop.f32.mrb[0].mxu0
      %v1031 = vadd.f32 %v509, %v1030
      %v1032 = vpop.f32.mrb[0].mxu0
      %1033 = vmatprep.mubr.f32.mxu0 %v436
      %1034 = vmatmul.mubr.f32.gmra.mrb[0].mxu0 %v435
      %v1035 = vpop.f32.mrb[0].mxu0
      %v1036 = vadd.f32 %v509, %v1035
      %v1037 = vpop.f32.mrb[0].mxu0
      %1038 = vmatprep.mubr.f32.mxu0 %v439
      %1039 = vmatmul.mubr.f32.gmra.mrb[0].mxu0 %v438
      %v1040 = vpop.f32.mrb[0].mxu0
      %v1041 = vadd.f32 %v509, %v1040
      %v1042 = vpop.f32.mrb[0].mxu0
      %1043 = vmatprep.mubr.f32.mxu0 %v442
      %1044 = vmatmul.mubr.f32.gmra.mrb[0].mxu0 %v441
      %v1045 = vpop.f32.mrb[0].mxu0
      %v1046 = vadd.f32 %v509, %v1045
      %v1047 = vpop.f32.mrb[0].mxu0
      %1048 = vmatprep.mubr.f32.mxu0 %v445
      %1049 = vmatmul.mubr.f32.gmra.mrb[0].mxu0 %v444
      %v1050 = vpop.f32.mrb[0].mxu0
      %v1051 = vadd.f32 %v509, %v1050
      %v1052 = vpop.f32.mrb[0].mxu0
      %1053 = vmatprep.mubr.f32.mxu0 %v448
      %1054 = vmatmul.mubr.f32.gmra.mrb[0].mxu0 %v447
      %v1055 = vpop.f32.mrb[0].mxu0
      %v1056 = vadd.f32 %v509, %v1055
      %v1057 = vpop.f32.mrb[0].mxu0
      %1058 = vmatprep.mubr.f32.mxu0 %v451
      %1059 = vmatmul.mubr.f32.gmra.mrb[0].mxu0 %v450
      %v1060 = vpop.f32.mrb[0].mxu0
      %v1061 = vadd.f32 %v509, %v1060
      %v1062 = vpop.f32.mrb[0].mxu0
      %1063 = vmatprep.mubr.f32.mxu0 %v454
      %1064 = vmatmul.mubr.f32.gmra.mrb[0].mxu0 %v453
      %v1065 = vpop.f32.mrb[0].mxu0
      %v1066 = vadd.f32 %v509, %v1065
      %v1067 = vpop.f32.mrb[0].mxu0
      %1068 = vmatprep.mubr.f32.mxu0 %v457
      %1069 = vmatmul.mubr.f32.gmra.mrb[0].mxu0 %v456
      %v1070 = vpop.f32.mrb[0].mxu0
      %v1071 = vadd.f32 %v509, %v1070
      %v1072 = vpop.f32.mrb[0].mxu0
      %1073 = vmatprep.mubr.f32.mxu0 %v460
      %1074 = vmatmul.mubr.f32.gmra.mrb[0].mxu0 %v459
      %v1075 = vpop.f32.mrb[0].mxu0
      %v1076 = vadd.f32 %v509, %v1075
      %v1077 = vpop.f32.mrb[0].mxu0
      %1078 = vmatprep.mubr.f32.mxu0 %v463
      %1079 = vmatmul.mubr.f32.gmra.mrb[0].mxu0 %v462
      %v1080 = vpop.f32.mrb[0].mxu0
      %v1081 = vadd.f32 %v509, %v1080
      %v1082 = vpop.f32.mrb[0].mxu0
      %1083 = vmatprep.mubr.f32.mxu0 %v466
      %1084 = vmatmul.mubr.f32.gmra.mrb[0].mxu0 %v465
      %v1085 = vpop.f32.mrb[0].mxu0
      %v1086 = vadd.f32 %v509, %v1085
      %v1087 = vpop.f32.mrb[0].mxu0
      %1088 = vdwg.mxu0
      %1089 = vmatprep.subr.mxu0 0.0
      %1090 = vmatpush1.msra.mxu0 %v500
      %1091 = vmatprep.subr.mxu0 0.0
      %1092 = vmatpush1.msra.mxu0 %v501
      %1093 = vmatprep.subr.mxu0 0.0
      %1094 = vmatpush1.msra.mxu0 %v502
      %1095 = vmatprep.subr.mxu0 0.0
      %1096 = vmatpush1.msra.mxu0 %v503
      %1097 = vmatprep.subr.mxu0 0.0
      %1098 = vmatpush1.msra.mxu0 0.0
      %1099 = vmatprep.subr.mxu0 0.0
      %1100 = vmatpush1.msra.mxu0 0.0
      %1101 = vmatprep.subr.mxu0 0.0
      %1102 = vmatpush1.msra.mxu0 0.0
      %1103 = vmatprep.subr.mxu0 0.0
      %1104 = vmatpush1.msra.mxu0 0.0
      %1105 = vmatprep.subr.mxu0 0.0
      %1106 = vmatpush1.msra.mxu0 0.0
      %1107 = vmatprep.subr.mxu0 0.0
      %1108 = vmatpush1.msra.mxu0 0.0
      %1109 = vmatprep.subr.mxu0 0.0
      %1110 = vmatpush1.msra.mxu0 0.0
      %1111 = vmatprep.subr.mxu0 0.0
      %1112 = vmatpush1.msra.mxu0 0.0
      %1113 = vmatprep.subr.mxu0 0.0
      %1114 = vmatpush1.msra.mxu0 0.0
      %1115 = vmatprep.subr.mxu0 0.0
      %1116 = vmatpush1.msra.mxu0 0.0
      %1117 = vmatprep.subr.mxu0 0.0
      %1118 = vmatpush1.msra.mxu0 0.0
      %1119 = vmatprep.subr.mxu0 0.0
      %1120 = vmatpush1.msra.mxu0 0.0
      %1121 = vmatprep.subr.mxu0 0.0
      %1122 = vmatpush1.msra.mxu0 0.0
      %1123 = vmatprep.subr.mxu0 0.0
      %1124 = vmatpush1.msra.mxu0 0.0
      %1125 = vmatprep.subr.mxu0 0.0
      %1126 = vmatpush1.msra.mxu0 0.0
      %1127 = vmatprep.subr.mxu0 0.0
      %1128 = vmatpush1.msra.mxu0 0.0
      %1129 = vmatprep.subr.mxu0 0.0
      %1130 = vmatpush1.msra.mxu0 0.0
      %1131 = vmatprep.subr.mxu0 0.0
      %1132 = vmatpush1.msra.mxu0 0.0
      %1133 = vmatprep.subr.mxu0 0.0
      %1134 = vmatpush1.msra.mxu0 0.0
      %1135 = vmatprep.subr.mxu0 0.0
      %1136 = vmatpush1.msra.mxu0 0.0
      %1137 = vmatprep.subr.mxu0 0.0
      %1138 = vmatpush1.msra.mxu0 0.0
      %1139 = vmatprep.subr.mxu0 0.0
      %1140 = vmatpush1.msra.mxu0 0.0
      %1141 = vmatprep.subr.mxu0 0.0
      %1142 = vmatpush1.msra.mxu0 0.0
      %1143 = vmatprep.subr.mxu0 0.0
      %1144 = vmatpush1.msra.mxu0 0.0
      %1145 = vmatprep.subr.mxu0 0.0
      %1146 = vmatpush1.msra.mxu0 0.0
      %1147 = vmatprep.subr.mxu0 0.0
      %1148 = vmatpush1.msra.mxu0 0.0
      %1149 = vmatprep.subr.mxu0 0.0
      %1150 = vmatpush1.msra.mxu0 0.0
      %1151 = vmatprep.subr.mxu0 0.0
      %1152 = vmatpush1.msra.mxu0 0.0
      %1153 = vmatprep.mubr.f32.mxu0 0.0
      %1154 = vmatmul.mubr.f32.gmra.mrb[0].mxu0 %v513
      %v1155 = vpop.f32.mrb[0].mxu0
      %v1156 = vadd.f32 %v771, %v1155
      %v1157 = vpop.f32.mrb[0].mxu0
      %1158 = vmatprep.mubr.f32.mxu0 0.0
      %1159 = vmatmul.mubr.f32.gmra.mrb[0].mxu0 %v516
      %v1160 = vpop.f32.mrb[0].mxu0
      %v1161 = vadd.f32 %v776, %v1160
      %v1162 = vpop.f32.mrb[0].mxu0
      %1163 = vmatprep.mubr.f32.mxu0 0.0
      %1164 = vmatmul.mubr.f32.gmra.mrb[0].mxu0 %v519
      %v1165 = vpop.f32.mrb[0].mxu0
      %v1166 = vadd.f32 %v781, %v1165
      %v1167 = vpop.f32.mrb[0].mxu0
      %1168 = vmatprep.mubr.f32.mxu0 0.0
      %1169 = vmatmul.mubr.f32.gmra.mrb[0].mxu0 %v522
      %v1170 = vpop.f32.mrb[0].mxu0
      %v1171 = vadd.f32 %v786, %v1170
      %v1172 = vpop.f32.mrb[0].mxu0
      %1173 = vmatprep.mubr.f32.mxu0 0.0
      %1174 = vmatmul.mubr.f32.gmra.mrb[0].mxu0 %v525
      %v1175 = vpop.f32.mrb[0].mxu0
      %v1176 = vadd.f32 %v791, %v1175
      %v1177 = vpop.f32.mrb[0].mxu0
      %1178 = vmatprep.mubr.f32.mxu0 0.0
      %1179 = vmatmul.mubr.f32.gmra.mrb[0].mxu0 %v528
      %v1180 = vpop.f32.mrb[0].mxu0
      %v1181 = vadd.f32 %v796, %v1180
      %v1182 = vpop.f32.mrb[0].mxu0
      %1183 = vmatprep.mubr.f32.mxu0 0.0
      %1184 = vmatmul.mubr.f32.gmra.mrb[0].mxu0 %v531
      %v1185 = vpop.f32.mrb[0].mxu0
      %v1186 = vadd.f32 %v801, %v1185
      %v1187 = vpop.f32.mrb[0].mxu0
      %1188 = vmatprep.mubr.f32.mxu0 0.0
      %1189 = vmatmul.mubr.f32.gmra.mrb[0].mxu0 %v534
      %v1190 = vpop.f32.mrb[0].mxu0
      %v1191 = vadd.f32 %v806, %v1190
      %v1192 = vpop.f32.mrb[0].mxu0
      %1193 = vmatprep.mubr.f32.mxu0 0.0
      %1194 = vmatmul.mubr.f32.gmra.mrb[0].mxu0 %v537
      %v1195 = vpop.f32.mrb[0].mxu0
      %v1196 = vadd.f32 %v811, %v1195
      %v1197 = vpop.f32.mrb[0].mxu0
      %1198 = vmatprep.mubr.f32.mxu0 0.0
      %1199 = vmatmul.mubr.f32.gmra.mrb[0].mxu0 %v540
      %v1200 = vpop.f32.mrb[0].mxu0
      %v1201 = vadd.f32 %v816, %v1200
      %v1202 = vpop.f32.mrb[0].mxu0
      %1203 = vmatprep.mubr.f32.mxu0 0.0
      %1204 = vmatmul.mubr.f32.gmra.mrb[0].mxu0 %v543
      %v1205 = vpop.f32.mrb[0].mxu0
      %v1206 = vadd.f32 %v821, %v1205
      %v1207 = vpop.f32.mrb[0].mxu0
      %1208 = vmatprep.mubr.f32.mxu0 0.0
      %1209 = vmatmul.mubr.f32.gmra.mrb[0].mxu0 %v546
      %v1210 = vpop.f32.mrb[0].mxu0
      %v1211 = vadd.f32 %v826, %v1210
      %v1212 = vpop.f32.mrb[0].mxu0
      %1213 = vmatprep.mubr.f32.mxu0 0.0
      %1214 = vmatmul.mubr.f32.gmra.mrb[0].mxu0 %v549
      %v1215 = vpop.f32.mrb[0].mxu0
      %v1216 = vadd.f32 %v831, %v1215
      %v1217 = vpop.f32.mrb[0].mxu0
      %1218 = vmatprep.mubr.f32.mxu0 0.0
      %1219 = vmatmul.mubr.f32.gmra.mrb[0].mxu0 %v552
      %v1220 = vpop.f32.mrb[0].mxu0
      %v1221 = vadd.f32 %v836, %v1220
      %v1222 = vpop.f32.mrb[0].mxu0
      %1223 = vmatprep.mubr.f32.mxu0 0.0
      %1224 = vmatmul.mubr.f32.gmra.mrb[0].mxu0 %v555
      %v1225 = vpop.f32.mrb[0].mxu0
      %v1226 = vadd.f32 %v841, %v1225
      %v1227 = vpop.f32.mrb[0].mxu0
      %1228 = vmatprep.mubr.f32.mxu0 0.0
      %1229 = vmatmul.mubr.f32.gmra.mrb[0].mxu0 %v558
      %v1230 = vpop.f32.mrb[0].mxu0
      %v1231 = vadd.f32 %v846, %v1230
      %v1232 = vpop.f32.mrb[0].mxu0
      %1233 = vmatprep.mubr.f32.mxu0 0.0
      %1234 = vmatmul.mubr.f32.gmra.mrb[0].mxu0 %v561
      %v1235 = vpop.f32.mrb[0].mxu0
      %v1236 = vadd.f32 %v851, %v1235
      %v1237 = vpop.f32.mrb[0].mxu0
      %1238 = vmatprep.mubr.f32.mxu0 0.0
      %1239 = vmatmul.mubr.f32.gmra.mrb[0].mxu0 %v564
      %v1240 = vpop.f32.mrb[0].mxu0
      %v1241 = vadd.f32 %v856, %v1240
      %v1242 = vpop.f32.mrb[0].mxu0
      %1243 = vmatprep.mubr.f32.mxu0 0.0
      %1244 = vmatmul.mubr.f32.gmra.mrb[0].mxu0 %v567
      %v1245 = vpop.f32.mrb[0].mxu0
      %v1246 = vadd.f32 %v861, %v1245
      %v1247 = vpop.f32.mrb[0].mxu0
      %1248 = vmatprep.mubr.f32.mxu0 0.0
      %1249 = vmatmul.mubr.f32.gmra.mrb[0].mxu0 %v570
      %v1250 = vpop.f32.mrb[0].mxu0
      %v1251 = vadd.f32 %v866, %v1250
      %v1252 = vpop.f32.mrb[0].mxu0
      %1253 = vmatprep.mubr.f32.mxu0 0.0
      %1254 = vmatmul.mubr.f32.gmra.mrb[0].mxu0 %v573
      %v1255 = vpop.f32.mrb[0].mxu0
      %v1256 = vadd.f32 %v871, %v1255
      %v1257 = vpop.f32.mrb[0].mxu0
      %1258 = vmatprep.mubr.f32.mxu0 0.0
      %1259 = vmatmul.mubr.f32.gmra.mrb[0].mxu0 %v576
      %v1260 = vpop.f32.mrb[0].mxu0
      %v1261 = vadd.f32 %v876, %v1260
      %v1262 = vpop.f32.mrb[0].mxu0
      %1263 = vmatprep.mubr.f32.mxu0 0.0
      %1264 = vmatmul.mubr.f32.gmra.mrb[0].mxu0 %v579
      %v1265 = vpop.f32.mrb[0].mxu0
      %v1266 = vadd.f32 %v881, %v1265
      %v1267 = vpop.f32.mrb[0].mxu0
      %1268 = vmatprep.mubr.f32.mxu0 0.0
      %1269 = vmatmul.mubr.f32.gmra.mrb[0].mxu0 %v582
      %v1270 = vpop.f32.mrb[0].mxu0
      %v1271 = vadd.f32 %v886, %v1270
      %v1272 = vpop.f32.mrb[0].mxu0
      %1273 = vmatprep.mubr.f32.mxu0 0.0
      %1274 = vmatmul.mubr.f32.gmra.mrb[0].mxu0 %v585
      %v1275 = vpop.f32.mrb[0].mxu0
      %v1276 = vadd.f32 %v891, %v1275
      %v1277 = vpop.f32.mrb[0].mxu0
      %1278 = vmatprep.mubr.f32.mxu0 0.0
      %1279 = vmatmul.mubr.f32.gmra.mrb[0].mxu0 %v588
      %v1280 = vpop.f32.mrb[0].mxu0
      %v1281 = vadd.f32 %v896, %v1280
      %v1282 = vpop.f32.mrb[0].mxu0
      %1283 = vmatprep.mubr.f32.mxu0 0.0
      %1284 = vmatmul.mubr.f32.gmra.mrb[0].mxu0 %v591
      %v1285 = vpop.f32.mrb[0].mxu0
      %v1286 = vadd.f32 %v901, %v1285
      %v1287 = vpop.f32.mrb[0].mxu0
      %1288 = vmatprep.mubr.f32.mxu0 0.0
      %1289 = vmatmul.mubr.f32.gmra.mrb[0].mxu0 %v594
      %v1290 = vpop.f32.mrb[0].mxu0
      %v1291 = vadd.f32 %v906, %v1290
      %v1292 = vpop.f32.mrb[0].mxu0
      %1293 = vmatprep.mubr.f32.mxu0 0.0
      %1294 = vmatmul.mubr.f32.gmra.mrb[0].mxu0 %v597
      %v1295 = vpop.f32.mrb[0].mxu0
      %v1296 = vadd.f32 %v911, %v1295
      %v1297 = vpop.f32.mrb[0].mxu0
      %1298 = vmatprep.mubr.f32.mxu0 0.0
      %1299 = vmatmul.mubr.f32.gmra.mrb[0].mxu0 %v600
      %v1300 = vpop.f32.mrb[0].mxu0
      %v1301 = vadd.f32 %v916, %v1300
      %v1302 = vpop.f32.mrb[0].mxu0
      %1303 = vmatprep.mubr.f32.mxu0 0.0
      %1304 = vmatmul.mubr.f32.gmra.mrb[0].mxu0 %v603
      %v1305 = vpop.f32.mrb[0].mxu0
      %v1306 = vadd.f32 %v921, %v1305
      %v1307 = vpop.f32.mrb[0].mxu0
      %1308 = vmatprep.mubr.f32.mxu0 0.0
      %1309 = vmatmul.mubr.f32.gmra.mrb[0].mxu0 %v606
      %v1310 = vpop.f32.mrb[0].mxu0
      %v1311 = vadd.f32 %v926, %v1310
      %v1312 = vpop.f32.mrb[0].mxu0
      %1313 = vmatprep.mubr.f32.mxu0 0.0
      %1314 = vmatmul.mubr.f32.gmra.mrb[0].mxu0 %v609
      %v1315 = vpop.f32.mrb[0].mxu0
      %v1316 = vadd.f32 %v931, %v1315
      %v1317 = vpop.f32.mrb[0].mxu0
      %1318 = vmatprep.mubr.f32.mxu0 0.0
      %1319 = vmatmul.mubr.f32.gmra.mrb[0].mxu0 %v612
      %v1320 = vpop.f32.mrb[0].mxu0
      %v1321 = vadd.f32 %v936, %v1320
      %v1322 = vpop.f32.mrb[0].mxu0
      %1323 = vmatprep.mubr.f32.mxu0 0.0
      %1324 = vmatmul.mubr.f32.gmra.mrb[0].mxu0 %v615
      %v1325 = vpop.f32.mrb[0].mxu0
      %v1326 = vadd.f32 %v941, %v1325
      %v1327 = vpop.f32.mrb[0].mxu0
      %1328 = vmatprep.mubr.f32.mxu0 0.0
      %1329 = vmatmul.mubr.f32.gmra.mrb[0].mxu0 %v618
      %v1330 = vpop.f32.mrb[0].mxu0
      %v1331 = vadd.f32 %v946, %v1330
      %v1332 = vpop.f32.mrb[0].mxu0
      %1333 = vmatprep.mubr.f32.mxu0 0.0
      %1334 = vmatmul.mubr.f32.gmra.mrb[0].mxu0 %v621
      %v1335 = vpop.f32.mrb[0].mxu0
      %v1336 = vadd.f32 %v951, %v1335
      %v1337 = vpop.f32.mrb[0].mxu0
      %1338 = vmatprep.mubr.f32.mxu0 0.0
      %1339 = vmatmul.mubr.f32.gmra.mrb[0].mxu0 %v624
      %v1340 = vpop.f32.mrb[0].mxu0
      %v1341 = vadd.f32 %v956, %v1340
      %v1342 = vpop.f32.mrb[0].mxu0
      %1343 = vmatprep.mubr.f32.mxu0 0.0
      %1344 = vmatmul.mubr.f32.gmra.mrb[0].mxu0 %v627
      %v1345 = vpop.f32.mrb[0].mxu0
      %v1346 = vadd.f32 %v961, %v1345
      %v1347 = vpop.f32.mrb[0].mxu0
      %1348 = vmatprep.mubr.f32.mxu0 0.0
      %1349 = vmatmul.mubr.f32.gmra.mrb[0].mxu0 %v630
      %v1350 = vpop.f32.mrb[0].mxu0
      %v1351 = vadd.f32 %v966, %v1350
      %v1352 = vpop.f32.mrb[0].mxu0
      %1353 = vmatprep.mubr.f32.mxu0 0.0
      %1354 = vmatmul.mubr.f32.gmra.mrb[0].mxu0 %v633
      %v1355 = vpop.f32.mrb[0].mxu0
      %v1356 = vadd.f32 %v971, %v1355
      %v1357 = vpop.f32.mrb[0].mxu0
      %1358 = vmatprep.mubr.f32.mxu0 0.0
      %1359 = vmatmul.mubr.f32.gmra.mrb[0].mxu0 %v636
      %v1360 = vpop.f32.mrb[0].mxu0
      %v1361 = vadd.f32 %v976, %v1360
      %v1362 = vpop.f32.mrb[0].mxu0
      %1363 = vmatprep.mubr.f32.mxu0 0.0
      %1364 = vmatmul.mubr.f32.gmra.mrb[0].mxu0 %v639
      %v1365 = vpop.f32.mrb[0].mxu0
      %v1366 = vadd.f32 %v981, %v1365
      %v1367 = vpop.f32.mrb[0].mxu0
      %1368 = vmatprep.mubr.f32.mxu0 0.0
      %1369 = vmatmul.mubr.f32.gmra.mrb[0].mxu0 %v642
      %v1370 = vpop.f32.mrb[0].mxu0
      %v1371 = vadd.f32 %v986, %v1370
      %v1372 = vpop.f32.mrb[0].mxu0
      %1373 = vmatprep.mubr.f32.mxu0 0.0
      %1374 = vmatmul.mubr.f32.gmra.mrb[0].mxu0 %v645
      %v1375 = vpop.f32.mrb[0].mxu0
      %v1376 = vadd.f32 %v991, %v1375
      %v1377 = vpop.f32.mrb[0].mxu0
      %1378 = vmatprep.mubr.f32.mxu0 0.0
      %1379 = vmatmul.mubr.f32.gmra.mrb[0].mxu0 %v648
      %v1380 = vpop.f32.mrb[0].mxu0
      %v1381 = vadd.f32 %v996, %v1380
      %v1382 = vpop.f32.mrb[0].mxu0
      %1383 = vmatprep.mubr.f32.mxu0 0.0
      %1384 = vmatmul.mubr.f32.gmra.mrb[0].mxu0 %v651
      %v1385 = vpop.f32.mrb[0].mxu0
      %v1386 = vadd.f32 %v1001, %v1385
      %v1387 = vpop.f32.mrb[0].mxu0
      %1388 = vmatprep.mubr.f32.mxu0 0.0
      %1389 = vmatmul.mubr.f32.gmra.mrb[0].mxu0 %v654
      %v1390 = vpop.f32.mrb[0].mxu0
      %v1391 = vadd.f32 %v1006, %v1390
      %v1392 = vpop.f32.mrb[0].mxu0
      %1393 = vmatprep.mubr.f32.mxu0 0.0
      %1394 = vmatmul.mubr.f32.gmra.mrb[0].mxu0 %v657
      %v1395 = vpop.f32.mrb[0].mxu0
      %v1396 = vadd.f32 %v1011, %v1395
      %v1397 = vpop.f32.mrb[0].mxu0
      %1398 = vmatprep.mubr.f32.mxu0 0.0
      %1399 = vmatmul.mubr.f32.gmra.mrb[0].mxu0 %v660
      %v1400 = vpop.f32.mrb[0].mxu0
      %v1401 = vadd.f32 %v1016, %v1400
      %v1402 = vpop.f32.mrb[0].mxu0
      %1403 = vmatprep.mubr.f32.mxu0 0.0
      %1404 = vmatmul.mubr.f32.gmra.mrb[0].mxu0 %v663
      %v1405 = vpop.f32.mrb[0].mxu0
      %v1406 = vadd.f32 %v1021, %v1405
      %v1407 = vpop.f32.mrb[0].mxu0
      %1408 = vmatprep.mubr.f32.mxu0 0.0
      %1409 = vmatmul.mubr.f32.gmra.mrb[0].mxu0 %v666
      %v1410 = vpop.f32.mrb[0].mxu0
      %v1411 = vadd.f32 %v1026, %v1410
      %v1412 = vpop.f32.mrb[0].mxu0
      %1413 = vmatprep.mubr.f32.mxu0 0.0
      %1414 = vmatmul.mubr.f32.gmra.mrb[0].mxu0 %v669
      %v1415 = vpop.f32.mrb[0].mxu0
      %v1416 = vadd.f32 %v1031, %v1415
      %v1417 = vpop.f32.mrb[0].mxu0
      %1418 = vmatprep.mubr.f32.mxu0 0.0
      %1419 = vmatmul.mubr.f32.gmra.mrb[0].mxu0 %v672
      %v1420 = vpop.f32.mrb[0].mxu0
      %v1421 = vadd.f32 %v1036, %v1420
      %v1422 = vpop.f32.mrb[0].mxu0
      %1423 = vmatprep.mubr.f32.mxu0 0.0
      %1424 = vmatmul.mubr.f32.gmra.mrb[0].mxu0 %v675
      %v1425 = vpop.f32.mrb[0].mxu0
      %v1426 = vadd.f32 %v1041, %v1425
      %v1427 = vpop.f32.mrb[0].mxu0
      %1428 = vmatprep.mubr.f32.mxu0 0.0
      %1429 = vmatmul.mubr.f32.gmra.mrb[0].mxu0 %v678
      %v1430 = vpop.f32.mrb[0].mxu0
      %v1431 = vadd.f32 %v1046, %v1430
      %v1432 = vpop.f32.mrb[0].mxu0
      %1433 = vmatprep.mubr.f32.mxu0 0.0
      %1434 = vmatmul.mubr.f32.gmra.mrb[0].mxu0 %v681
      %v1435 = vpop.f32.mrb[0].mxu0
      %v1436 = vadd.f32 %v1051, %v1435
      %v1437 = vpop.f32.mrb[0].mxu0
      %1438 = vmatprep.mubr.f32.mxu0 0.0
      %1439 = vmatmul.mubr.f32.gmra.mrb[0].mxu0 %v684
      %v1440 = vpop.f32.mrb[0].mxu0
      %v1441 = vadd.f32 %v1056, %v1440
      %v1442 = vpop.f32.mrb[0].mxu0
      %1443 = vmatprep.mubr.f32.mxu0 0.0
      %1444 = vmatmul.mubr.f32.gmra.mrb[0].mxu0 %v687
      %v1445 = vpop.f32.mrb[0].mxu0
      %v1446 = vadd.f32 %v1061, %v1445
      %v1447 = vpop.f32.mrb[0].mxu0
      %1448 = vmatprep.mubr.f32.mxu0 0.0
      %1449 = vmatmul.mubr.f32.gmra.mrb[0].mxu0 %v690
      %v1450 = vpop.f32.mrb[0].mxu0
      %v1451 = vadd.f32 %v1066, %v1450
      %v1452 = vpop.f32.mrb[0].mxu0
      %1453 = vmatprep.mubr.f32.mxu0 0.0
      %1454 = vmatmul.mubr.f32.gmra.mrb[0].mxu0 %v693
      %v1455 = vpop.f32.mrb[0].mxu0
      %v1456 = vadd.f32 %v1071, %v1455
      %v1457 = vpop.f32.mrb[0].mxu0
      %1458 = vmatprep.mubr.f32.mxu0 0.0
      %1459 = vmatmul.mubr.f32.gmra.mrb[0].mxu0 %v696
      %v1460 = vpop.f32.mrb[0].mxu0
      %v1461 = vadd.f32 %v1076, %v1460
      %v1462 = vpop.f32.mrb[0].mxu0
      %1463 = vmatprep.mubr.f32.mxu0 0.0
      %1464 = vmatmul.mubr.f32.gmra.mrb[0].mxu0 %v699
      %v1465 = vpop.f32.mrb[0].mxu0
      %v1466 = vadd.f32 %v1081, %v1465
      %v1467 = vpop.f32.mrb[0].mxu0
      %1468 = vmatprep.mubr.f32.mxu0 0.0
      %1469 = vmatmul.mubr.f32.gmra.mrb[0].mxu0 %v702
      %v1470 = vpop.f32.mrb[0].mxu0
      %v1471 = vadd.f32 %v1086, %v1470
      %v1472 = vpop.f32.mrb[0].mxu0
      %1473 = vdwg.mxu0
      %vm1474 = vcmask 523264
      %1475 = vst.msk [vmem:[%s269] sm:$0xff] %vm1474, %v1156
      %1476 = vst.msk [vmem:[%s269 + $0x8] sm:$0xff] %vm1474, %v1161
      %1477 = vst.msk [vmem:[%s269 + $0x10] sm:$0xff] %vm1474, %v1166
      %1478 = vst.msk [vmem:[%s269 + $0x18] sm:$0xff] %vm1474, %v1171
      %1479 = vst.msk [vmem:[%s269 + $0x20] sm:$0xff] %vm1474, %v1176
      %1480 = vst.msk [vmem:[%s269 + $0x28] sm:$0xff] %vm1474, %v1181
      %1481 = vst.msk [vmem:[%s269 + $0x30] sm:$0xff] %vm1474, %v1186
      %1482 = vst.msk [vmem:[%s269 + $0x38] sm:$0xff] %vm1474, %v1191
      %1483 = vst.msk [vmem:[%s269 + $0x40] sm:$0xff] %vm1474, %v1196
      %1484 = vst.msk [vmem:[%s269 + $0x48] sm:$0xff] %vm1474, %v1201
      %1485 = vst.msk [vmem:[%s269 + $0x50] sm:$0xff] %vm1474, %v1206
      %1486 = vst.msk [vmem:[%s269 + $0x58] sm:$0xff] %vm1474, %v1211
      %1487 = vst.msk [vmem:[%s269 + $0x60] sm:$0xff] %vm1474, %v1216
      %1488 = vst.msk [vmem:[%s269 + $0x68] sm:$0xff] %vm1474, %v1221
      %1489 = vst.msk [vmem:[%s269 + $0x70] sm:$0xff] %vm1474, %v1226
      %1490 = vst.msk [vmem:[%s269 + $0x78] sm:$0xff] %vm1474, %v1231
      %1491 = vst.msk [vmem:[%s269 + $0x80] sm:$0xff] %vm1474, %v1236
      %1492 = vst.msk [vmem:[%s269 + $0x88] sm:$0xff] %vm1474, %v1241
      %1493 = vst.msk [vmem:[%s269 + $0x90] sm:$0xff] %vm1474, %v1246
      %1494 = vst.msk [vmem:[%s269 + $0x98] sm:$0xff] %vm1474, %v1251
      %1495 = vst.msk [vmem:[%s269 + $0xa0] sm:$0xff] %vm1474, %v1256
      %1496 = vst.msk [vmem:[%s269 + $0xa8] sm:$0xff] %vm1474, %v1261
      %1497 = vst.msk [vmem:[%s269 + $0xb0] sm:$0xff] %vm1474, %v1266
      %1498 = vst.msk [vmem:[%s269 + $0xb8] sm:$0xff] %vm1474, %v1271
      %1499 = vst.msk [vmem:[%s269 + $0xc0] sm:$0xff] %vm1474, %v1276
      %1500 = vst.msk [vmem:[%s269 + $0xc8] sm:$0xff] %vm1474, %v1281
      %1501 = vst.msk [vmem:[%s269 + $0xd0] sm:$0xff] %vm1474, %v1286
      %1502 = vst.msk [vmem:[%s269 + $0xd8] sm:$0xff] %vm1474, %v1291
      %1503 = vst.msk [vmem:[%s269 + $0xe0] sm:$0xff] %vm1474, %v1296
      %1504 = vst.msk [vmem:[%s269 + $0xe8] sm:$0xff] %vm1474, %v1301
      %1505 = vst.msk [vmem:[%s269 + $0xf0] sm:$0xff] %vm1474, %v1306
      %1506 = vst.msk [vmem:[%s269 + $0xf8] sm:$0xff] %vm1474, %v1311
      %1507 = vst.msk [vmem:[%s269 + $0x100] sm:$0xff] %vm1474, %v1316
      %1508 = vst.msk [vmem:[%s269 + $0x108] sm:$0xff] %vm1474, %v1321
      %1509 = vst.msk [vmem:[%s269 + $0x110] sm:$0xff] %vm1474, %v1326
      %1510 = vst.msk [vmem:[%s269 + $0x118] sm:$0xff] %vm1474, %v1331
      %1511 = vst.msk [vmem:[%s269 + $0x120] sm:$0xff] %vm1474, %v1336
      %1512 = vst.msk [vmem:[%s269 + $0x128] sm:$0xff] %vm1474, %v1341
      %1513 = vst.msk [vmem:[%s269 + $0x130] sm:$0xff] %vm1474, %v1346
      %1514 = vst.msk [vmem:[%s269 + $0x138] sm:$0xff] %vm1474, %v1351
      %1515 = vst.msk [vmem:[%s269 + $0x140] sm:$0xff] %vm1474, %v1356
      %1516 = vst.msk [vmem:[%s269 + $0x148] sm:$0xff] %vm1474, %v1361
      %1517 = vst.msk [vmem:[%s269 + $0x150] sm:$0xff] %vm1474, %v1366
      %1518 = vst.msk [vmem:[%s269 + $0x158] sm:$0xff] %vm1474, %v1371
      %1519 = vst.msk [vmem:[%s269 + $0x160] sm:$0xff] %vm1474, %v1376
      %1520 = vst.msk [vmem:[%s269 + $0x168] sm:$0xff] %vm1474, %v1381
      %1521 = vst.msk [vmem:[%s269 + $0x170] sm:$0xff] %vm1474, %v1386
      %1522 = vst.msk [vmem:[%s269 + $0x178] sm:$0xff] %vm1474, %v1391
      %1523 = vst.msk [vmem:[%s269 + $0x180] sm:$0xff] %vm1474, %v1396
      %1524 = vst.msk [vmem:[%s269 + $0x188] sm:$0xff] %vm1474, %v1401
      %1525 = vst.msk [vmem:[%s269 + $0x190] sm:$0xff] %vm1474, %v1406
      %1526 = vst.msk [vmem:[%s269 + $0x198] sm:$0xff] %vm1474, %v1411
      %1527 = vst.msk [vmem:[%s269 + $0x1a0] sm:$0xff] %vm1474, %v1416
      %1528 = vst.msk [vmem:[%s269 + $0x1a8] sm:$0xff] %vm1474, %v1421
      %1529 = vst.msk [vmem:[%s269 + $0x1b0] sm:$0xff] %vm1474, %v1426
      %1530 = vst.msk [vmem:[%s269 + $0x1b8] sm:$0xff] %vm1474, %v1431
      %1531 = vst.msk [vmem:[%s269 + $0x1c0] sm:$0xff] %vm1474, %v1436
      %1532 = vst.msk [vmem:[%s269 + $0x1c8] sm:$0xff] %vm1474, %v1441
      %1533 = vst.msk [vmem:[%s269 + $0x1d0] sm:$0xff] %vm1474, %v1446
      %1534 = vst.msk [vmem:[%s269 + $0x1d8] sm:$0xff] %vm1474, %v1451
      %1535 = vst.msk [vmem:[%s269 + $0x1e0] sm:$0xff] %vm1474, %v1456
      %1536 = vst.msk [vmem:[%s269 + $0x1e8] sm:$0xff] %vm1474, %v1461
      %1537 = vst.msk [vmem:[%s269 + $0x1f0] sm:$0xff] %vm1474, %v1466
      %1538 = vst.msk [vmem:[%s269 + $0x1f8] sm:$0xff] %vm1474, %v1471
      %v1539 = vsel %vm1474, %v1156, 0.0
      %v1540 = vsel %vm1474, %v1161, 0.0
      %v1541 = vadd.f32 %v1539, %v1540
      %v1542 = vsel %vm1474, %v1166, 0.0
      %v1543 = vadd.f32 %v1541, %v1542
      %v1544 = vsel %vm1474, %v1171, 0.0
      %v1545 = vadd.f32 %v1543, %v1544
      %v1546 = vsel %vm1474, %v1176, 0.0
      %v1547 = vadd.f32 %v1545, %v1546
      %v1548 = vsel %vm1474, %v1181, 0.0
      %v1549 = vadd.f32 %v1547, %v1548
      %v1550 = vsel %vm1474, %v1186, 0.0
      %v1551 = vadd.f32 %v1549, %v1550
      %v1552 = vsel %vm1474, %v1191, 0.0
      %v1553 = vadd.f32 %v1551, %v1552
      %v1554 = vsel %vm1474, %v1196, 0.0
      %v1555 = vadd.f32 %v1553, %v1554
      %v1556 = vsel %vm1474, %v1201, 0.0
      %v1557 = vadd.f32 %v1555, %v1556
      %v1558 = vsel %vm1474, %v1206, 0.0
      %v1559 = vadd.f32 %v1557, %v1558
      %v1560 = vsel %vm1474, %v1211, 0.0
      %v1561 = vadd.f32 %v1559, %v1560
      %v1562 = vsel %vm1474, %v1216, 0.0
      %v1563 = vadd.f32 %v1561, %v1562
      %v1564 = vsel %vm1474, %v1221, 0.0
      %v1565 = vadd.f32 %v1563, %v1564
      %v1566 = vsel %vm1474, %v1226, 0.0
      %v1567 = vadd.f32 %v1565, %v1566
      %v1568 = vsel %vm1474, %v1231, 0.0
      %v1569 = vadd.f32 %v1567, %v1568
      %v1570 = vsel %vm1474, %v1236, 0.0
      %v1571 = vadd.f32 %v1569, %v1570
      %v1572 = vsel %vm1474, %v1241, 0.0
      %v1573 = vadd.f32 %v1571, %v1572
      %v1574 = vsel %vm1474, %v1246, 0.0
      %v1575 = vadd.f32 %v1573, %v1574
      %v1576 = vsel %vm1474, %v1251, 0.0
      %v1577 = vadd.f32 %v1575, %v1576
      %v1578 = vsel %vm1474, %v1256, 0.0
      %v1579 = vadd.f32 %v1577, %v1578
      %v1580 = vsel %vm1474, %v1261, 0.0
      %v1581 = vadd.f32 %v1579, %v1580
      %v1582 = vsel %vm1474, %v1266, 0.0
      %v1583 = vadd.f32 %v1581, %v1582
      %v1584 = vsel %vm1474, %v1271, 0.0
      %v1585 = vadd.f32 %v1583, %v1584
      %v1586 = vsel %vm1474, %v1276, 0.0
      %v1587 = vadd.f32 %v1585, %v1586
      %v1588 = vsel %vm1474, %v1281, 0.0
      %v1589 = vadd.f32 %v1587, %v1588
      %v1590 = vsel %vm1474, %v1286, 0.0
      %v1591 = vadd.f32 %v1589, %v1590
      %v1592 = vsel %vm1474, %v1291, 0.0
      %v1593 = vadd.f32 %v1591, %v1592
      %v1594 = vsel %vm1474, %v1296, 0.0
      %v1595 = vadd.f32 %v1593, %v1594
      %v1596 = vsel %vm1474, %v1301, 0.0
      %v1597 = vadd.f32 %v1595, %v1596
      %v1598 = vsel %vm1474, %v1306, 0.0
      %v1599 = vadd.f32 %v1597, %v1598
      %v1600 = vsel %vm1474, %v1311, 0.0
      %v1601 = vadd.f32 %v1599, %v1600
      %v1602 = vsel %vm1474, %v1316, 0.0
      %v1603 = vadd.f32 %v1601, %v1602
      %v1604 = vsel %vm1474, %v1321, 0.0
      %v1605 = vadd.f32 %v1603, %v1604
      %v1606 = vsel %vm1474, %v1326, 0.0
      %v1607 = vadd.f32 %v1605, %v1606
      %v1608 = vsel %vm1474, %v1331, 0.0
      %v1609 = vadd.f32 %v1607, %v1608
      %v1610 = vsel %vm1474, %v1336, 0.0
      %v1611 = vadd.f32 %v1609, %v1610
      %v1612 = vsel %vm1474, %v1341, 0.0
      %v1613 = vadd.f32 %v1611, %v1612
      %v1614 = vsel %vm1474, %v1346, 0.0
      %v1615 = vadd.f32 %v1613, %v1614
      %v1616 = vsel %vm1474, %v1351, 0.0
      %v1617 = vadd.f32 %v1615, %v1616
      %v1618 = vsel %vm1474, %v1356, 0.0
      %v1619 = vadd.f32 %v1617, %v1618
      %v1620 = vsel %vm1474, %v1361, 0.0
      %v1621 = vadd.f32 %v1619, %v1620
      %v1622 = vsel %vm1474, %v1366, 0.0
      %v1623 = vadd.f32 %v1621, %v1622
      %v1624 = vsel %vm1474, %v1371, 0.0
      %v1625 = vadd.f32 %v1623, %v1624
      %v1626 = vsel %vm1474, %v1376, 0.0
      %v1627 = vadd.f32 %v1625, %v1626
      %v1628 = vsel %vm1474, %v1381, 0.0
      %v1629 = vadd.f32 %v1627, %v1628
      %v1630 = vsel %vm1474, %v1386, 0.0
      %v1631 = vadd.f32 %v1629, %v1630
      %v1632 = vsel %vm1474, %v1391, 0.0
      %v1633 = vadd.f32 %v1631, %v1632
      %v1634 = vsel %vm1474, %v1396, 0.0
      %v1635 = vadd.f32 %v1633, %v1634
      %v1636 = vsel %vm1474, %v1401, 0.0
      %v1637 = vadd.f32 %v1635, %v1636
      %v1638 = vsel %vm1474, %v1406, 0.0
      %v1639 = vadd.f32 %v1637, %v1638
      %v1640 = vsel %vm1474, %v1411, 0.0
      %v1641 = vadd.f32 %v1639, %v1640
      %v1642 = vsel %vm1474, %v1416, 0.0
      %v1643 = vadd.f32 %v1641, %v1642
      %v1644 = vsel %vm1474, %v1421, 0.0
      %v1645 = vadd.f32 %v1643, %v1644
      %v1646 = vsel %vm1474, %v1426, 0.0
      %v1647 = vadd.f32 %v1645, %v1646
      %v1648 = vsel %vm1474, %v1431, 0.0
      %v1649 = vadd.f32 %v1647, %v1648
      %v1650 = vsel %vm1474, %v1436, 0.0
      %v1651 = vadd.f32 %v1649, %v1650
      %v1652 = vsel %vm1474, %v1441, 0.0
      %v1653 = vadd.f32 %v1651, %v1652
      %v1654 = vsel %vm1474, %v1446, 0.0
      %v1655 = vadd.f32 %v1653, %v1654
      %v1656 = vsel %vm1474, %v1451, 0.0
      %v1657 = vadd.f32 %v1655, %v1656
      %v1658 = vsel %vm1474, %v1456, 0.0
      %v1659 = vadd.f32 %v1657, %v1658
      %v1660 = vsel %vm1474, %v1461, 0.0
      %v1661 = vadd.f32 %v1659, %v1660
      %v1662 = vsel %vm1474, %v1466, 0.0
      %v1663 = vadd.f32 %v1661, %v1662
      %v1664 = vsel %vm1474, %v1471, 0.0
      %v1665 = vadd.f32 %v1663, %v1664
      %v1666 = vrot.slane %v1665, 4
      %v1667 = vadd.f32 %v1665, %v1666
      %v1668 = vrot.slane %v1667, 2
      %v1669 = vadd.f32 %v1667, %v1668
      %v1670 = vrot.slane %v1669, 1
      %v1671 = vadd.f32 %v1669, %v1670
      %vm1672 = vcmask 516096
      %1673 = vst.msk [vmem:[%s272] sm:$0x1] %vm1672, %v1671
      %v1674 = vmul.f32 %v1156, %v1156
      %v1675 = vmul.f32 %v1161, %v1161
      %v1676 = vmul.f32 %v1166, %v1166
      %v1677 = vmul.f32 %v1171, %v1171
      %v1678 = vmul.f32 %v1176, %v1176
      %v1679 = vmul.f32 %v1181, %v1181
      %v1680 = vmul.f32 %v1186, %v1186
      %v1681 = vmul.f32 %v1191, %v1191
      %v1682 = vmul.f32 %v1196, %v1196
      %v1683 = vmul.f32 %v1201, %v1201
      %v1684 = vmul.f32 %v1206, %v1206
      %v1685 = vmul.f32 %v1211, %v1211
      %v1686 = vmul.f32 %v1216, %v1216
      %v1687 = vmul.f32 %v1221, %v1221
      %v1688 = vmul.f32 %v1226, %v1226
      %v1689 = vmul.f32 %v1231, %v1231
      %v1690 = vmul.f32 %v1236, %v1236
      %v1691 = vmul.f32 %v1241, %v1241
      %v1692 = vmul.f32 %v1246, %v1246
      %v1693 = vmul.f32 %v1251, %v1251
      %v1694 = vmul.f32 %v1256, %v1256
      %v1695 = vmul.f32 %v1261, %v1261
      %v1696 = vmul.f32 %v1266, %v1266
      %v1697 = vmul.f32 %v1271, %v1271
      %v1698 = vmul.f32 %v1276, %v1276
      %v1699 = vmul.f32 %v1281, %v1281
      %v1700 = vmul.f32 %v1286, %v1286
      %v1701 = vmul.f32 %v1291, %v1291
      %v1702 = vmul.f32 %v1296, %v1296
      %v1703 = vmul.f32 %v1301, %v1301
      %v1704 = vmul.f32 %v1306, %v1306
      %v1705 = vmul.f32 %v1311, %v1311
      %v1706 = vmul.f32 %v1316, %v1316
      %v1707 = vmul.f32 %v1321, %v1321
      %v1708 = vmul.f32 %v1326, %v1326
      %v1709 = vmul.f32 %v1331, %v1331
      %v1710 = vmul.f32 %v1336, %v1336
      %v1711 = vmul.f32 %v1341, %v1341
      %v1712 = vmul.f32 %v1346, %v1346
      %v1713 = vmul.f32 %v1351, %v1351
      %v1714 = vmul.f32 %v1356, %v1356
      %v1715 = vmul.f32 %v1361, %v1361
      %v1716 = vmul.f32 %v1366, %v1366
      %v1717 = vmul.f32 %v1371, %v1371
      %v1718 = vmul.f32 %v1376, %v1376
      %v1719 = vmul.f32 %v1381, %v1381
      %v1720 = vmul.f32 %v1386, %v1386
      %v1721 = vmul.f32 %v1391, %v1391
      %v1722 = vmul.f32 %v1396, %v1396
      %v1723 = vmul.f32 %v1401, %v1401
      %v1724 = vmul.f32 %v1406, %v1406
      %v1725 = vmul.f32 %v1411, %v1411
      %v1726 = vmul.f32 %v1416, %v1416
      %v1727 = vmul.f32 %v1421, %v1421
      %v1728 = vmul.f32 %v1426, %v1426
      %v1729 = vmul.f32 %v1431, %v1431
      %v1730 = vmul.f32 %v1436, %v1436
      %v1731 = vmul.f32 %v1441, %v1441
      %v1732 = vmul.f32 %v1446, %v1446
      %v1733 = vmul.f32 %v1451, %v1451
      %v1734 = vmul.f32 %v1456, %v1456
      %v1735 = vmul.f32 %v1461, %v1461
      %v1736 = vmul.f32 %v1466, %v1466
      %v1737 = vmul.f32 %v1471, %v1471
      %v1738 = vsel %vm1474, %v1674, 0.0
      %v1739 = vsel %vm1474, %v1675, 0.0
      %v1740 = vadd.f32 %v1738, %v1739
      %v1741 = vsel %vm1474, %v1676, 0.0
      %v1742 = vadd.f32 %v1740, %v1741
      %v1743 = vsel %vm1474, %v1677, 0.0
      %v1744 = vadd.f32 %v1742, %v1743
      %v1745 = vsel %vm1474, %v1678, 0.0
      %v1746 = vadd.f32 %v1744, %v1745
      %v1747 = vsel %vm1474, %v1679, 0.0
      %v1748 = vadd.f32 %v1746, %v1747
      %v1749 = vsel %vm1474, %v1680, 0.0
      %v1750 = vadd.f32 %v1748, %v1749
      %v1751 = vsel %vm1474, %v1681, 0.0
      %v1752 = vadd.f32 %v1750, %v1751
      %v1753 = vsel %vm1474, %v1682, 0.0
      %v1754 = vadd.f32 %v1752, %v1753
      %v1755 = vsel %vm1474, %v1683, 0.0
      %v1756 = vadd.f32 %v1754, %v1755
      %v1757 = vsel %vm1474, %v1684, 0.0
      %v1758 = vadd.f32 %v1756, %v1757
      %v1759 = vsel %vm1474, %v1685, 0.0
      %v1760 = vadd.f32 %v1758, %v1759
      %v1761 = vsel %vm1474, %v1686, 0.0
      %v1762 = vadd.f32 %v1760, %v1761
      %v1763 = vsel %vm1474, %v1687, 0.0
      %v1764 = vadd.f32 %v1762, %v1763
      %v1765 = vsel %vm1474, %v1688, 0.0
      %v1766 = vadd.f32 %v1764, %v1765
      %v1767 = vsel %vm1474, %v1689, 0.0
      %v1768 = vadd.f32 %v1766, %v1767
      %v1769 = vsel %vm1474, %v1690, 0.0
      %v1770 = vadd.f32 %v1768, %v1769
      %v1771 = vsel %vm1474, %v1691, 0.0
      %v1772 = vadd.f32 %v1770, %v1771
      %v1773 = vsel %vm1474, %v1692, 0.0
      %v1774 = vadd.f32 %v1772, %v1773
      %v1775 = vsel %vm1474, %v1693, 0.0
      %v1776 = vadd.f32 %v1774, %v1775
      %v1777 = vsel %vm1474, %v1694, 0.0
      %v1778 = vadd.f32 %v1776, %v1777
      %v1779 = vsel %vm1474, %v1695, 0.0
      %v1780 = vadd.f32 %v1778, %v1779
      %v1781 = vsel %vm1474, %v1696, 0.0
      %v1782 = vadd.f32 %v1780, %v1781
      %v1783 = vsel %vm1474, %v1697, 0.0
      %v1784 = vadd.f32 %v1782, %v1783
      %v1785 = vsel %vm1474, %v1698, 0.0
      %v1786 = vadd.f32 %v1784, %v1785
      %v1787 = vsel %vm1474, %v1699, 0.0
      %v1788 = vadd.f32 %v1786, %v1787
      %v1789 = vsel %vm1474, %v1700, 0.0
      %v1790 = vadd.f32 %v1788, %v1789
      %v1791 = vsel %vm1474, %v1701, 0.0
      %v1792 = vadd.f32 %v1790, %v1791
      %v1793 = vsel %vm1474, %v1702, 0.0
      %v1794 = vadd.f32 %v1792, %v1793
      %v1795 = vsel %vm1474, %v1703, 0.0
      %v1796 = vadd.f32 %v1794, %v1795
      %v1797 = vsel %vm1474, %v1704, 0.0
      %v1798 = vadd.f32 %v1796, %v1797
      %v1799 = vsel %vm1474, %v1705, 0.0
      %v1800 = vadd.f32 %v1798, %v1799
      %v1801 = vsel %vm1474, %v1706, 0.0
      %v1802 = vadd.f32 %v1800, %v1801
      %v1803 = vsel %vm1474, %v1707, 0.0
      %v1804 = vadd.f32 %v1802, %v1803
      %v1805 = vsel %vm1474, %v1708, 0.0
      %v1806 = vadd.f32 %v1804, %v1805
      %v1807 = vsel %vm1474, %v1709, 0.0
      %v1808 = vadd.f32 %v1806, %v1807
      %v1809 = vsel %vm1474, %v1710, 0.0
      %v1810 = vadd.f32 %v1808, %v1809
      %v1811 = vsel %vm1474, %v1711, 0.0
      %v1812 = vadd.f32 %v1810, %v1811
      %v1813 = vsel %vm1474, %v1712, 0.0
      %v1814 = vadd.f32 %v1812, %v1813
      %v1815 = vsel %vm1474, %v1713, 0.0
      %v1816 = vadd.f32 %v1814, %v1815
      %v1817 = vsel %vm1474, %v1714, 0.0
      %v1818 = vadd.f32 %v1816, %v1817
      %v1819 = vsel %vm1474, %v1715, 0.0
      %v1820 = vadd.f32 %v1818, %v1819
      %v1821 = vsel %vm1474, %v1716, 0.0
      %v1822 = vadd.f32 %v1820, %v1821
      %v1823 = vsel %vm1474, %v1717, 0.0
      %v1824 = vadd.f32 %v1822, %v1823
      %v1825 = vsel %vm1474, %v1718, 0.0
      %v1826 = vadd.f32 %v1824, %v1825
      %v1827 = vsel %vm1474, %v1719, 0.0
      %v1828 = vadd.f32 %v1826, %v1827
      %v1829 = vsel %vm1474, %v1720, 0.0
      %v1830 = vadd.f32 %v1828, %v1829
      %v1831 = vsel %vm1474, %v1721, 0.0
      %v1832 = vadd.f32 %v1830, %v1831
      %v1833 = vsel %vm1474, %v1722, 0.0
      %v1834 = vadd.f32 %v1832, %v1833
      %v1835 = vsel %vm1474, %v1723, 0.0
      %v1836 = vadd.f32 %v1834, %v1835
      %v1837 = vsel %vm1474, %v1724, 0.0
      %v1838 = vadd.f32 %v1836, %v1837
      %v1839 = vsel %vm1474, %v1725, 0.0
      %v1840 = vadd.f32 %v1838, %v1839
      %v1841 = vsel %vm1474, %v1726, 0.0
      %v1842 = vadd.f32 %v1840, %v1841
      %v1843 = vsel %vm1474, %v1727, 0.0
      %v1844 = vadd.f32 %v1842, %v1843
      %v1845 = vsel %vm1474, %v1728, 0.0
      %v1846 = vadd.f32 %v1844, %v1845
      %v1847 = vsel %vm1474, %v1729, 0.0
      %v1848 = vadd.f32 %v1846, %v1847
      %v1849 = vsel %vm1474, %v1730, 0.0
      %v1850 = vadd.f32 %v1848, %v1849
      %v1851 = vsel %vm1474, %v1731, 0.0
      %v1852 = vadd.f32 %v1850, %v1851
      %v1853 = vsel %vm1474, %v1732, 0.0
      %v1854 = vadd.f32 %v1852, %v1853
      %v1855 = vsel %vm1474, %v1733, 0.0
      %v1856 = vadd.f32 %v1854, %v1855
      %v1857 = vsel %vm1474, %v1734, 0.0
      %v1858 = vadd.f32 %v1856, %v1857
      %v1859 = vsel %vm1474, %v1735, 0.0
      %v1860 = vadd.f32 %v1858, %v1859
      %v1861 = vsel %vm1474, %v1736, 0.0
      %v1862 = vadd.f32 %v1860, %v1861
      %v1863 = vsel %vm1474, %v1737, 0.0
      %v1864 = vadd.f32 %v1862, %v1863
      %v1865 = vrot.slane %v1864, 4
      %v1866 = vadd.f32 %v1864, %v1865
      %v1867 = vrot.slane %v1866, 2
      %v1868 = vadd.f32 %v1866, %v1867
      %v1869 = vrot.slane %v1868, 1
      %v1870 = vadd.f32 %v1868, %v1869
      %1871 = vst.msk [vmem:[%s275] sm:$0x1] %vm1672, %v1870
      %p1872 = scmp.lt.s32.totalorder %s17, 3
      %s1873 = scalar_select %p1872, %s17, 3
      %s1874 = smul.addr %s1873, 64
      %s1875 = smul.addr %s1874, 8
      %s1876 = scalar_lea.vmem %s3, %s1875
      %p1877 = scmp.lt.s32.totalorder %s17, 3
      %s1878 = scalar_select %p1877, %s17, 3
      %s1879 = scalar_lea.vmem %s4, %s1878
      %p1880 = scmp.lt.s32.totalorder %s17, 3
      %s1881 = scalar_select %p1880, %s17, 3
      %s1882 = scalar_lea.vmem %s5, %s1881
      // Predicated region
      $region33: #{batch_ensemble_cnn_forward.7} parent=31 // pred_check
        %p1883 = pneg %p113
      $region34: #{batch_ensemble_cnn_forward.7} parent=31 // pred_check_branch
        %1885 = sbr.rel (%p1883) target = $region36
      $region35: #{batch_ensemble_cnn_forward.7} parent=31 // pred_region
        _
      $region36: #{batch_ensemble_cnn_forward.7} parent=31 // pred_fallthru
        _
      // Predicated region
      $region37: #{batch_ensemble_cnn_forward.7} parent=31 // pred_check
        %p1886 = pneg %p139
      $region38: #{batch_ensemble_cnn_forward.7} parent=31 // pred_check_branch
        %1888 = sbr.rel (%p1886) target = $region40
      $region39: #{batch_ensemble_cnn_forward.7} parent=31 // pred_region
        _
      $region40: #{batch_ensemble_cnn_forward.7} parent=31 // pred_fallthru
        _
      // Predicated region
      $region41: #{batch_ensemble_cnn_forward.7} parent=31 // pred_check
        %p1889 = pneg %p165
      $region42: #{batch_ensemble_cnn_forward.7} parent=31 // pred_check_branch
        %1891 = sbr.rel (%p1889) target = $region44
      $region43: #{batch_ensemble_cnn_forward.7} parent=31 // pred_region
        _
      $region44: #{batch_ensemble_cnn_forward.7} parent=31 // pred_fallthru
        _
    $region32: #{batch_ensemble_cnn_forward.7} parent=5 // pred_fallthru
      _
    %p1892 = scmp.le.s32.totalorder 2, %s12
    // Predicated region
    $region45: #{batch_ensemble_cnn_forward.7} parent=5 // pred_check
      %p1893 = pneg %p1892
    $region46: #{batch_ensemble_cnn_forward.7} parent=5 // pred_check_branch
      %1895 = sbr.rel (%p1893) target = $region48
    $region47: #{batch_ensemble_cnn_forward.7} parent=5 // pred_region
      %s1896 = ssub.s32 %s12, 2
      // Predicated region
      $region49: #{batch_ensemble_cnn_forward.7} parent=47 // pred_check
        %p1897 = pneg %p119
      $region50: #{batch_ensemble_cnn_forward.7} parent=47 // pred_check_branch
        %1899 = sbr.rel (%p1897) target = $region52
      $region51: #{batch_ensemble_cnn_forward.7} parent=47 // pred_region
        %p1900 = scmp.lt.s32.totalorder %s18, 3
        %s1901 = scalar_select %p1900, %s18, 3
        %s1902 = smul.addr %s1901, 64
        %s1903 = smul.addr %s1902, 8
        %s1904 = scalar_lea.vmem %s3, %s1903
      $region52: #{batch_ensemble_cnn_forward.7} parent=47 // pred_fallthru
        _
      // Predicated region
      $region53: #{batch_ensemble_cnn_forward.7} parent=47 // pred_check
        %p1905 = pneg %p145
      $region54: #{batch_ensemble_cnn_forward.7} parent=47 // pred_check_branch
        %1907 = sbr.rel (%p1905) target = $region56
      $region55: #{batch_ensemble_cnn_forward.7} parent=47 // pred_region
        %p1908 = scmp.lt.s32.totalorder %s18, 3
        %s1909 = scalar_select %p1908, %s18, 3
        %s1910 = scalar_lea.vmem %s4, %s1909
      $region56: #{batch_ensemble_cnn_forward.7} parent=47 // pred_fallthru
        _
      // Predicated region
      $region57: #{batch_ensemble_cnn_forward.7} parent=47 // pred_check
        %p1911 = pneg %p171
      $region58: #{batch_ensemble_cnn_forward.7} parent=47 // pred_check_branch
        %1913 = sbr.rel (%p1911) target = $region60
      $region59: #{batch_ensemble_cnn_forward.7} parent=47 // pred_region
        %p1914 = scmp.lt.s32.totalorder %s18, 3
        %s1915 = scalar_select %p1914, %s18, 3
        %s1916 = scalar_lea.vmem %s5, %s1915
      $region60: #{batch_ensemble_cnn_forward.7} parent=47 // pred_fallthru
        _
    $region48: #{batch_ensemble_cnn_forward.7} parent=5 // pred_fallthru
      _
  $region6: #{batch_ensemble_cnn_forward.7} parent=0 // loop_footer
    %s16 = sadd.s32 1, %s12
  $region7: #{batch_ensemble_cnn_forward.7} parent=0 // loop_footer_branch
    %11 = sbr.rel target = $region3
  $region8: #{batch_ensemble_cnn_forward.7} parent=0 // loop_exit
    _

// kernel: batch_ensemble_cnn_forward.8
$region0: #{batch_ensemble_cnn_forward.8}
  #allocation0 [shape = 'u32[]', space=smem, size = 0x4, offset = 0x4, fixed_abs, tag = 'smem constant byte address 0x4 - core index']
  #allocation1 [shape = 'u32[144,128]{1,0:T(1,128)}', space=vmem, size = 0x12000, scoped, tag = 'internal scratch']
  %s0 = inlined_call_operand.vmem [shape: f32[8,8,2,4,256], index: 0, kind: input, shape index: {}]
  %s1 = inlined_call_operand.vmem [shape: f32[4,1,256], index: 1, kind: input, shape index: {}]
  %s2 = inlined_call_operand.vmem [shape: f32[4,1,256], index: 2, kind: input, shape index: {}]
  %s3 = inlined_call_operand.vmem [shape: f32[8,8,4,128], index: 3, kind: output, shape index: {}]
  %s4 = sld [smem:[#allocation0]]
  $region45: #{batch_ensemble_cnn_forward.8} parent=0
    _
  %s6 = ssub.s32 1, %s4
  %s7 = scalar_select 0, %s6, %s4
  loop: start=0, step=1, limit=6
  $region2: #{batch_ensemble_cnn_forward.8} parent=0 // loop_pre_header
    _
  $region3: #{batch_ensemble_cnn_forward.8} parent=0 // loop_header
    %s9 = sphi 0, %s13
    %p10 = scmp.ge.s32.totalorder %s9, 6
    %s19 = sphi 0, %s21
    %s22 = sphi 0, %s19
    %s23 = sphi 0, %s22
    %s39 = sphi 0, %s23
    %s45 = sphi 0, %s47
    %s48 = sphi 0, %s45
    %s49 = sphi 0, %s48
    %s65 = sphi 0, %s49
    %s71 = sphi 0, %s73
    %s74 = sphi 0, %s71
    %s75 = sphi 0, %s74
    %s91 = sphi 0, %s75
    %s97 = sphi 0, %s99
    %s100 = sphi 0, %s97
    %s101 = sphi 0, %s100
    %s117 = sphi 0, %s101
  $region4: #{batch_ensemble_cnn_forward.8} parent=0 // loop_header_branch
    %12 = sbr.rel (%p10) target = $region8
  $region5: #{batch_ensemble_cnn_forward.8} parent=0 // loop_body
    %s14 = ssub.s32 %s9, 1
    %s15 = ssub.s32 %s9, 2
    %s16 = sadd.s32 %s9, 1
    %s17 = ssub.s32 %s9, %s16
    %p18 = scmp.eq.s32.totalorder %s17, 0
    %s20 = sadd.s32 %s19, 1
    %s21 = scalar_select %p18, %s19, %s20
    %p24 = pneg %p18
    %p25 = scmp.eq.s32.totalorder %s9, 3
    %p26 = por %p24, %p25
    %p27 = scmp.ne.s32.totalorder %s19, %s22
    %p28 = scmp.eq.s32.totalorder %s9, 0
    %p29 = por %p27, %p28
    %p30 = scmp.ne.s32.totalorder %s19, %s22
    %p31 = scmp.eq.s32.totalorder %s14, 3
    %p32 = por %p30, %p31
    %p33 = scmp.ne.s32.totalorder %s22, %s23
    %p34 = scmp.eq.s32.totalorder %s14, 0
    %p35 = por %p33, %p34
    %p36 = scmp.ne.s32.totalorder %s22, %s23
    %p37 = scmp.eq.s32.totalorder %s15, 3
    %p38 = por %p36, %p37
    %p40 = scmp.ne.s32.totalorder %s23, %s39
    %p41 = scmp.eq.s32.totalorder %s15, 0
    %p42 = por %p40, %p41
    %s43 = ssub.s32 %s9, %s16
    %p44 = scmp.eq.s32.totalorder %s43, 0
    %s46 = sadd.s32 %s45, 1
    %s47 = scalar_select %p44, %s45, %s46
    %p50 = pneg %p44
    %p51 = scmp.eq.s32.totalorder %s9, 3
    %p52 = por %p50, %p51
    %p53 = scmp.ne.s32.totalorder %s45, %s48
    %p54 = scmp.eq.s32.totalorder %s9, 0
    %p55 = por %p53, %p54
    %p56 = scmp.ne.s32.totalorder %s45, %s48
    %p57 = scmp.eq.s32.totalorder %s14, 3
    %p58 = por %p56, %p57
    %p59 = scmp.ne.s32.totalorder %s48, %s49
    %p60 = scmp.eq.s32.totalorder %s14, 0
    %p61 = por %p59, %p60
    %p62 = scmp.ne.s32.totalorder %s48, %s49
    %p63 = scmp.eq.s32.totalorder %s15, 3
    %p64 = por %p62, %p63
    %p66 = scmp.ne.s32.totalorder %s49, %s65
    %p67 = scmp.eq.s32.totalorder %s15, 0
    %p68 = por %p66, %p67
    %s69 = ssub.s32 %s9, %s16
    %p70 = scmp.eq.s32.totalorder %s69, 0
    %s72 = sadd.s32 %s71, 1
    %s73 = scalar_select %p70, %s71, %s72
    %p76 = pneg %p70
    %p77 = scmp.eq.s32.totalorder %s9, 3
    %p78 = por %p76, %p77
    %p79 = scmp.ne.s32.totalorder %s71, %s74
    %p80 = scmp.eq.s32.totalorder %s9, 0
    %p81 = por %p79, %p80
    %p82 = scmp.ne.s32.totalorder %s71, %s74
    %p83 = scmp.eq.s32.totalorder %s14, 3
    %p84 = por %p82, %p83
    %p85 = scmp.ne.s32.totalorder %s74, %s75
    %p86 = scmp.eq.s32.totalorder %s14, 0
    %p87 = por %p85, %p86
    %p88 = scmp.ne.s32.totalorder %s74, %s75
    %p89 = scmp.eq.s32.totalorder %s15, 3
    %p90 = por %p88, %p89
    %p92 = scmp.ne.s32.totalorder %s75, %s91
    %p93 = scmp.eq.s32.totalorder %s15, 0
    %p94 = por %p92, %p93
    %s95 = ssub.s32 %s9, %s16
    %p96 = scmp.eq.s32.totalorder %s95, 0
    %s98 = sadd.s32 %s97, 1
    %s99 = scalar_select %p96, %s97, %s98
    %p102 = pneg %p96
    %p103 = scmp.eq.s32.totalorder %s9, 3
    %p104 = por %p102, %p103
    %p105 = scmp.ne.s32.totalorder %s97, %s100
    %p106 = scmp.eq.s32.totalorder %s9, 0
    %p107 = por %p105, %p106
    %p108 = scmp.ne.s32.totalorder %s97, %s100
    %p109 = scmp.eq.s32.totalorder %s14, 3
    %p110 = por %p108, %p109
    %p111 = scmp.ne.s32.totalorder %s100, %s101
    %p112 = scmp.eq.s32.totalorder %s14, 0
    %p113 = por %p111, %p112
    %p114 = scmp.ne.s32.totalorder %s100, %s101
    %p115 = scmp.eq.s32.totalorder %s15, 3
    %p116 = por %p114, %p115
    %p118 = scmp.ne.s32.totalorder %s101, %s117
    %p119 = scmp.eq.s32.totalorder %s15, 0
    %p120 = por %p118, %p119
    %p121 = scmp.le.s32.totalorder 1, %s9
    %p122 = scmp.lt.s32.totalorder %s9, 5
    %p123 = pnand %p121, %p122
    %p124 = pneg %p123
    // Predicated region
    $region9: #{batch_ensemble_cnn_forward.8} parent=5 // pred_check
      _
    $region10: #{batch_ensemble_cnn_forward.8} parent=5 // pred_check_branch
      %126 = sbr.rel (%p123) target = $region12
    $region11: #{batch_ensemble_cnn_forward.8} parent=5 // pred_region
      %s127 = ssub.s32 %s9, 1
    $region12: #{batch_ensemble_cnn_forward.8} parent=5 // pred_fallthru
      _
    %p128 = scmp.lt.s32.totalorder %s9, 4
    // Predicated region
    $region13: #{batch_ensemble_cnn_forward.8} parent=5 // pred_check
      %p129 = pneg %p128
    $region14: #{batch_ensemble_cnn_forward.8} parent=5 // pred_check_branch
      %131 = sbr.rel (%p129) target = $region16
    $region15: #{batch_ensemble_cnn_forward.8} parent=5 // pred_region
      // Predicated region
      $region17: #{batch_ensemble_cnn_forward.8} parent=15 // pred_check
        %p132 = pneg %p29
      $region18: #{batch_ensemble_cnn_forward.8} parent=15 // pred_check_branch
        %134 = sbr.rel (%p132) target = $region20
      $region19: #{batch_ensemble_cnn_forward.8} parent=15 // pred_region
        %s135 = smul.u32 2, %s9
        %p136 = scmp.lt.s32.totalorder %s135, 7
        %s137 = scalar_select %p136, %s135, 7
        %s138 = smul.addr %s137, 32
        %s139 = smul.addr %s138, 4
        %s140 = scalar_lea.vmem %s0, %s139
        %s141 = smul.u32 2, %s9
      $region20: #{batch_ensemble_cnn_forward.8} parent=15 // pred_fallthru
        _
      // Predicated region
      $region21: #{batch_ensemble_cnn_forward.8} parent=15 // pred_check
        %p142 = pneg %p55
      $region22: #{batch_ensemble_cnn_forward.8} parent=15 // pred_check_branch
        %144 = sbr.rel (%p142) target = $region24
      $region23: #{batch_ensemble_cnn_forward.8} parent=15 // pred_region
        %p145 = scmp.lt.s32.totalorder %s9, 3
        %s146 = scalar_select %p145, %s9, 3
        %s147 = smul.addr %s146, 2
        %s148 = scalar_lea.vmem %s1, %s147
      $region24: #{batch_ensemble_cnn_forward.8} parent=15 // pred_fallthru
        _
      // Predicated region
      $region25: #{batch_ensemble_cnn_forward.8} parent=15 // pred_check
        %p149 = pneg %p81
      $region26: #{batch_ensemble_cnn_forward.8} parent=15 // pred_check_branch
        %151 = sbr.rel (%p149) target = $region28
      $region27: #{batch_ensemble_cnn_forward.8} parent=15 // pred_region
        %p152 = scmp.lt.s32.totalorder %s9, 3
        %s153 = scalar_select %p152, %s9, 3
        %s154 = smul.addr %s153, 2
        %s155 = scalar_lea.vmem %s2, %s154
      $region28: #{batch_ensemble_cnn_forward.8} parent=15 // pred_fallthru
        _
    $region16: #{batch_ensemble_cnn_forward.8} parent=5 // pred_fallthru
      _
    %p156 = scmp.le.s32.totalorder 1, %s9
    %p157 = scmp.lt.s32.totalorder %s9, 5
    %p158 = pnand %p156, %p157
    %p159 = pneg %p158
    // Predicated region
    $region29: #{batch_ensemble_cnn_forward.8} parent=5 // pred_check
      _
    $region30: #{batch_ensemble_cnn_forward.8} parent=5 // pred_check_branch
      %161 = sbr.rel (%p158) target = $region32
    $region31: #{batch_ensemble_cnn_forward.8} parent=5 // pred_region
      %s162 = ssub.s32 %s9, 1
      %s163 = smul.u32 2, %s14
      %p164 = scmp.lt.s32.totalorder %s163, 7
      %s165 = scalar_select %p164, %s163, 7
      %s166 = smul.addr %s165, 32
      %s167 = smul.addr %s166, 4
      %s168 = scalar_lea.vmem %s0, %s167
      %p169 = pneg %p35
      %p170 = pneg %p32
      %p171 = scmp.lt.s32.totalorder %s14, 3
      %s172 = scalar_select %p171, %s14, 3
      %s173 = smul.addr %s172, 2
      %s174 = scalar_lea.vmem %s1, %s173
      %p175 = pneg %p61
      %p176 = pneg %p58
      %p177 = scmp.lt.s32.totalorder %s14, 3
      %s178 = scalar_select %p177, %s14, 3
      %s179 = smul.addr %s178, 2
      %s180 = scalar_lea.vmem %s2, %s179
      %p181 = pneg %p87
      %p182 = pneg %p84
      %p183 = pneg %p113
      %p184 = pneg %p110
      %s185 = smul.u32 2, %s14
      %p186 = scmp.lt.s32.totalorder %s185, 7
      %s187 = scalar_select %p186, %s185, 7
      %s188 = smul.addr %s187, 8
      %s189 = smul.addr %s188, 4
      %s190 = scalar_lea.vmem %s3, %s189
      %s191 = smul.u32 2, %s14
      %p192 = scmp.lt.s32.totalorder %s191, 7
      %s193 = scalar_select %p192, %s191, 7
      %s194 = smul.addr %s193, 32
      %s195 = smul.addr %s194, 4
      %s196 = scalar_lea.vmem %s0, %s195
      %s197 = smul.u32 2, %s14
      %p198 = scmp.lt.s32.totalorder %s14, 3
      %s199 = scalar_select %p198, %s14, 3
      %s200 = smul.addr %s199, 2
      %s201 = scalar_lea.vmem %s1, %s200
      %p202 = scmp.lt.s32.totalorder %s14, 3
      %s203 = scalar_select %p202, %s14, 3
      %s204 = smul.addr %s203, 2
      %s205 = scalar_lea.vmem %s2, %s204
      %s206 = smul.u32 2, %s14
      %p207 = scmp.lt.s32.totalorder %s206, 7
      %s208 = scalar_select %p207, %s206, 7
      %s209 = smul.addr %s208, 8
      %s210 = smul.addr %s209, 4
      %s211 = scalar_lea.vmem %s3, %s210
      %s212 = smul.u32 2, %s14
      %v213 = vld [vmem:[%s201] sm:$0x3]
      %v214 = vld [vmem:[%s205] sm:$0x3]
      %v215 = vld [vmem:[%s196] sm:$0xff]
      %v216 = vld [vmem:[%s196 + $0x8] sm:$0xff]
      %v217 = vld [vmem:[%s196 + $0x10] sm:$0xff]
      %v218 = vld [vmem:[%s196 + $0x18] sm:$0xff]
      %v219 = vld [vmem:[%s196 + $0x20] sm:$0xff]
      %v220 = vld [vmem:[%s196 + $0x28] sm:$0xff]
      %v221 = vld [vmem:[%s196 + $0x30] sm:$0xff]
      %v222 = vld [vmem:[%s196 + $0x38] sm:$0xff]
      %v223 = vld [vmem:[%s196 + $0x40] sm:$0xff]
      %v224 = vld [vmem:[%s196 + $0x48] sm:$0xff]
      %v225 = vld [vmem:[%s196 + $0x50] sm:$0xff]
      %v226 = vld [vmem:[%s196 + $0x58] sm:$0xff]
      %v227 = vld [vmem:[%s196 + $0x60] sm:$0xff]
      %v228 = vld [vmem:[%s196 + $0x68] sm:$0xff]
      %v229 = vld [vmem:[%s196 + $0x70] sm:$0xff]
      %v230 = vld [vmem:[%s196 + $0x78] sm:$0xff]
      %v231 = vld [vmem:[%s196 + $0x80] sm:$0xff]
      %v232 = vld [vmem:[%s196 + $0x88] sm:$0xff]
      %v233 = vld [vmem:[%s196 + $0x90] sm:$0xff]
      %v234 = vld [vmem:[%s196 + $0x98] sm:$0xff]
      %v235 = vld [vmem:[%s196 + $0xa0] sm:$0xff]
      %v236 = vld [vmem:[%s196 + $0xa8] sm:$0xff]
      %v237 = vld [vmem:[%s196 + $0xb0] sm:$0xff]
      %v238 = vld [vmem:[%s196 + $0xb8] sm:$0xff]
      %v239 = vld [vmem:[%s196 + $0xc0] sm:$0xff]
      %v240 = vld [vmem:[%s196 + $0xc8] sm:$0xff]
      %v241 = vld [vmem:[%s196 + $0xd0] sm:$0xff]
      %v242 = vld [vmem:[%s196 + $0xd8] sm:$0xff]
      %v243 = vld [vmem:[%s196 + $0xe0] sm:$0xff]
      %v244 = vld [vmem:[%s196 + $0xe8] sm:$0xff]
      %v245 = vld [vmem:[%s196 + $0xf0] sm:$0xff]
      %v246 = vld [vmem:[%s196 + $0xf8] sm:$0xff]
      %v248 = vlaneseq
      %v249 = vshrl.u32 %v248, 7
      %v250 = vsub.s32 0, %v249
      %v251 = vrot.slane %v213, %v250
      %v252 = vlaneseq
      %v253 = vshrl.u32 %v252, 7
      %v254 = vsub.s32 1, %v253
      %v255 = vrot.slane %v213, %v254
      %v256 = vcombine.low %v251, %v255
      %v258 = vmul.f32 %v215, %v256
      %v259 = vmul.f32 %v217, %v256
      %v260 = vmul.f32 %v219, %v256
      %v261 = vmul.f32 %v221, %v256
      %v262 = vmul.f32 %v223, %v256
      %v263 = vmul.f32 %v225, %v256
      %v264 = vmul.f32 %v227, %v256
      %v265 = vmul.f32 %v229, %v256
      %v266 = vmul.f32 %v231, %v256
      %v267 = vmul.f32 %v233, %v256
      %v268 = vmul.f32 %v235, %v256
      %v269 = vmul.f32 %v237, %v256
      %v270 = vmul.f32 %v239, %v256
      %v271 = vmul.f32 %v241, %v256
      %v272 = vmul.f32 %v243, %v256
      %v273 = vmul.f32 %v245, %v256
      %v275 = vlaneseq
      %v276 = vshrl.u32 %v275, 7
      %v277 = vsub.s32 0, %v276
      %v278 = vrot.slane %v214, %v277
      %v279 = vlaneseq
      %v280 = vshrl.u32 %v279, 7
      %v281 = vsub.s32 1, %v280
      %v282 = vrot.slane %v214, %v281
      %v283 = vcombine.low %v278, %v282
      %v285 = vadd.f32 %v258, %v283
      %v286 = vadd.f32 %v259, %v283
      %v287 = vadd.f32 %v260, %v283
      %v288 = vadd.f32 %v261, %v283
      %v289 = vadd.f32 %v262, %v283
      %v290 = vadd.f32 %v263, %v283
      %v291 = vadd.f32 %v264, %v283
      %v292 = vadd.f32 %v265, %v283
      %v293 = vadd.f32 %v266, %v283
      %v294 = vadd.f32 %v267, %v283
      %v295 = vadd.f32 %v268, %v283
      %v296 = vadd.f32 %v269, %v283
      %v297 = vadd.f32 %v270, %v283
      %v298 = vadd.f32 %v271, %v283
      %v299 = vadd.f32 %v272, %v283
      %v300 = vadd.f32 %v273, %v283
      %v301 = vmul.f32 %v216, %v256
      %v302 = vmul.f32 %v218, %v256
      %v303 = vmul.f32 %v220, %v256
      %v304 = vmul.f32 %v222, %v256
      %v305 = vmul.f32 %v224, %v256
      %v306 = vmul.f32 %v226, %v256
      %v307 = vmul.f32 %v228, %v256
      %v308 = vmul.f32 %v230, %v256
      %v309 = vmul.f32 %v232, %v256
      %v310 = vmul.f32 %v234, %v256
      %v311 = vmul.f32 %v236, %v256
      %v312 = vmul.f32 %v238, %v256
      %v313 = vmul.f32 %v240, %v256
      %v314 = vmul.f32 %v242, %v256
      %v315 = vmul.f32 %v244, %v256
      %v316 = vmul.f32 %v246, %v256
      %v317 = vadd.f32 %v301, %v283
      %v318 = vadd.f32 %v302, %v283
      %v319 = vadd.f32 %v303, %v283
      %v320 = vadd.f32 %v304, %v283
      %v321 = vadd.f32 %v305, %v283
      %v322 = vadd.f32 %v306, %v283
      %v323 = vadd.f32 %v307, %v283
      %v324 = vadd.f32 %v308, %v283
      %v325 = vadd.f32 %v309, %v283
      %v326 = vadd.f32 %v310, %v283
      %v327 = vadd.f32 %v311, %v283
      %v328 = vadd.f32 %v312, %v283
      %v329 = vadd.f32 %v313, %v283
      %v330 = vadd.f32 %v314, %v283
      %v331 = vadd.f32 %v315, %v283
      %v332 = vadd.f32 %v316, %v283
      %v333 = vmax.f32 %v285, %v317
      %v334 = vmax.f32 %v286, %v318
      %v335 = vmax.f32 %v287, %v319
      %v336 = vmax.f32 %v288, %v320
      %v337 = vmax.f32 %v289, %v321
      %v338 = vmax.f32 %v290, %v322
      %v339 = vmax.f32 %v291, %v323
      %v340 = vmax.f32 %v292, %v324
      %v341 = vmax.f32 %v293, %v325
      %v342 = vmax.f32 %v294, %v326
      %v343 = vmax.f32 %v295, %v327
      %v344 = vmax.f32 %v296, %v328
      %v345 = vmax.f32 %v297, %v329
      %v346 = vmax.f32 %v298, %v330
      %v347 = vmax.f32 %v299, %v331
      %v348 = vmax.f32 %v300, %v332
      %365 = vrot.lane.b32.xlu0 %v333, 64
      %v366 = vpop.permute.xlu0 %365
      %367 = vrot.lane.b32.xlu0 %v334, 64
      %v368 = vpop.permute.xlu0 %367
      %369 = vrot.lane.b32.xlu0 %v335, 64
      %v370 = vpop.permute.xlu0 %369
      %371 = vrot.lane.b32.xlu0 %v336, 64
      %v372 = vpop.permute.xlu0 %371
      %373 = vrot.lane.b32.xlu0 %v337, 64
      %v374 = vpop.permute.xlu0 %373
      %375 = vrot.lane.b32.xlu0 %v338, 64
      %v376 = vpop.permute.xlu0 %375
      %377 = vrot.lane.b32.xlu0 %v339, 64
      %v378 = vpop.permute.xlu0 %377
      %379 = vrot.lane.b32.xlu0 %v340, 64
      %v380 = vpop.permute.xlu0 %379
      %381 = vrot.lane.b32.xlu0 %v341, 64
      %v382 = vpop.permute.xlu0 %381
      %383 = vrot.lane.b32.xlu0 %v342, 64
      %v384 = vpop.permute.xlu0 %383
      %385 = vrot.lane.b32.xlu0 %v343, 64
      %v386 = vpop.permute.xlu0 %385
      %387 = vrot.lane.b32.xlu0 %v344, 64
      %v388 = vpop.permute.xlu0 %387
      %389 = vrot.lane.b32.xlu0 %v345, 64
      %v390 = vpop.permute.xlu0 %389
      %391 = vrot.lane.b32.xlu0 %v346, 64
      %v392 = vpop.permute.xlu0 %391
      %393 = vrot.lane.b32.xlu0 %v347, 64
      %v394 = vpop.permute.xlu0 %393
      %395 = vrot.lane.b32.xlu0 %v348, 64
      %v396 = vpop.permute.xlu0 %395
      %v413 = vmax.f32 %v333, %v366
      %v414 = vmax.f32 %v334, %v368
      %v415 = vmax.f32 %v335, %v370
      %v416 = vmax.f32 %v336, %v372
      %v417 = vmax.f32 %v337, %v374
      %v418 = vmax.f32 %v338, %v376
      %v419 = vmax.f32 %v339, %v378
      %v420 = vmax.f32 %v340, %v380
      %v421 = vmax.f32 %v341, %v382
      %v422 = vmax.f32 %v342, %v384
      %v423 = vmax.f32 %v343, %v386
      %v424 = vmax.f32 %v344, %v388
      %v425 = vmax.f32 %v345, %v390
      %v426 = vmax.f32 %v346, %v392
      %v427 = vmax.f32 %v347, %v394
      %v428 = vmax.f32 %v348, %v396
      %v429 = vrot.slane %v333, 4
      %v430 = vrot.slane %v334, 4
      %v431 = vrot.slane %v335, 4
      %v432 = vrot.slane %v336, 4
      %v433 = vrot.slane %v337, 4
      %v434 = vrot.slane %v338, 4
      %v435 = vrot.slane %v339, 4
      %v436 = vrot.slane %v340, 4
      %v437 = vrot.slane %v341, 4
      %v438 = vrot.slane %v342, 4
      %v439 = vrot.slane %v343, 4
      %v440 = vrot.slane %v344, 4
      %v441 = vrot.slane %v345, 4
      %v442 = vrot.slane %v346, 4
      %v443 = vrot.slane %v347, 4
      %v444 = vrot.slane %v348, 4
      %v461 = vrot.slane %v366, 4
      %v462 = vrot.slane %v368, 4
      %v463 = vrot.slane %v370, 4
      %v464 = vrot.slane %v372, 4
      %v465 = vrot.slane %v374, 4
      %v466 = vrot.slane %v376, 4
      %v467 = vrot.slane %v378, 4
      %v468 = vrot.slane %v380, 4
      %v469 = vrot.slane %v382, 4
      %v470 = vrot.slane %v384, 4
      %v471 = vrot.slane %v386, 4
      %v472 = vrot.slane %v388, 4
      %v473 = vrot.slane %v390, 4
      %v474 = vrot.slane %v392, 4
      %v475 = vrot.slane %v394, 4
      %v476 = vrot.slane %v396, 4
      %v493 = vmax.f32 %v429, %v461
      %v494 = vmax.f32 %v430, %v462
      %v495 = vmax.f32 %v431, %v463
      %v496 = vmax.f32 %v432, %v464
      %v497 = vmax.f32 %v433, %v465
      %v498 = vmax.f32 %v434, %v466
      %v499 = vmax.f32 %v435, %v467
      %v500 = vmax.f32 %v436, %v468
      %v501 = vmax.f32 %v437, %v469
      %v502 = vmax.f32 %v438, %v470
      %v503 = vmax.f32 %v439, %v471
      %v504 = vmax.f32 %v440, %v472
      %v505 = vmax.f32 %v441, %v473
      %v506 = vmax.f32 %v442, %v474
      %v507 = vmax.f32 %v443, %v475
      %v508 = vmax.f32 %v444, %v476
      %525 = vrot.lane.b32.xlu0 %v493, 64
      %v526 = vpop.permute.xlu0 %525
      %527 = vrot.lane.b32.xlu0 %v494, 64
      %v528 = vpop.permute.xlu0 %527
      %529 = vrot.lane.b32.xlu0 %v495, 64
      %v530 = vpop.permute.xlu0 %529
      %531 = vrot.lane.b32.xlu0 %v496, 64
      %v532 = vpop.permute.xlu0 %531
      %533 = vrot.lane.b32.xlu0 %v497, 64
      %v534 = vpop.permute.xlu0 %533
      %535 = vrot.lane.b32.xlu0 %v498, 64
      %v536 = vpop.permute.xlu0 %535
      %537 = vrot.lane.b32.xlu0 %v499, 64
      %v538 = vpop.permute.xlu0 %537
      %539 = vrot.lane.b32.xlu0 %v500, 64
      %v540 = vpop.permute.xlu0 %539
      %541 = vrot.lane.b32.xlu0 %v501, 64
      %v542 = vpop.permute.xlu0 %541
      %543 = vrot.lane.b32.xlu0 %v502, 64
      %v544 = vpop.permute.xlu0 %543
      %545 = vrot.lane.b32.xlu0 %v503, 64
      %v546 = vpop.permute.xlu0 %545
      %547 = vrot.lane.b32.xlu0 %v504, 64
      %v548 = vpop.permute.xlu0 %547
      %549 = vrot.lane.b32.xlu0 %v505, 64
      %v550 = vpop.permute.xlu0 %549
      %551 = vrot.lane.b32.xlu0 %v506, 64
      %v552 = vpop.permute.xlu0 %551
      %553 = vrot.lane.b32.xlu0 %v507, 64
      %v554 = vpop.permute.xlu0 %553
      %555 = vrot.lane.b32.xlu0 %v508, 64
      %v556 = vpop.permute.xlu0 %555
      %vm573 = vcmask 523264
      %v574 = vsel %vm573, %v413, %v526
      %v575 = vsel %vm573, %v414, %v528
      %v576 = vsel %vm573, %v415, %v530
      %v577 = vsel %vm573, %v416, %v532
      %v578 = vsel %vm573, %v417, %v534
      %v579 = vsel %vm573, %v418, %v536
      %v580 = vsel %vm573, %v419, %v538
      %v581 = vsel %vm573, %v420, %v540
      %v582 = vsel %vm573, %v421, %v542
      %v583 = vsel %vm573, %v422, %v544
      %v584 = vsel %vm573, %v423, %v546
      %v585 = vsel %vm573, %v424, %v548
      %v586 = vsel %vm573, %v425, %v550
      %v587 = vsel %vm573, %v426, %v552
      %v588 = vsel %vm573, %v427, %v554
      %v589 = vsel %vm573, %v428, %v556
      %v590 = vmax.f32 %v574, 0.0
      %v591 = vmax.f32 %v575, 0.0
      %v592 = vmax.f32 %v576, 0.0
      %v593 = vmax.f32 %v577, 0.0
      %v594 = vmax.f32 %v578, 0.0
      %v595 = vmax.f32 %v579, 0.0
      %v596 = vmax.f32 %v580, 0.0
      %v597 = vmax.f32 %v581, 0.0
      %v598 = vmax.f32 %v582, 0.0
      %v599 = vmax.f32 %v583, 0.0
      %v600 = vmax.f32 %v584, 0.0
      %v601 = vmax.f32 %v585, 0.0
      %v602 = vmax.f32 %v586, 0.0
      %v603 = vmax.f32 %v587, 0.0
      %v604 = vmax.f32 %v588, 0.0
      %v605 = vmax.f32 %v589, 0.0
      %606 = vst [vmem:[%s211] sm:$0xf] %v590
      %607 = vst [vmem:[%s211 + $0x4] sm:$0xf] %v591
      %608 = vst [vmem:[%s211 + $0x8] sm:$0xf] %v592
      %609 = vst [vmem:[%s211 + $0xc] sm:$0xf] %v593
      %610 = vst [vmem:[%s211 + $0x10] sm:$0xf] %v594
      %611 = vst [vmem:[%s211 + $0x14] sm:$0xf] %v595
      %612 = vst [vmem:[%s211 + $0x18] sm:$0xf] %v596
      %613 = vst [vmem:[%s211 + $0x1c] sm:$0xf] %v597
      %614 = vst [vmem:[%s211 + $0x20] sm:$0xf] %v598
      %615 = vst [vmem:[%s211 + $0x24] sm:$0xf] %v599
      %616 = vst [vmem:[%s211 + $0x28] sm:$0xf] %v600
      %617 = vst [vmem:[%s211 + $0x2c] sm:$0xf] %v601
      %618 = vst [vmem:[%s211 + $0x30] sm:$0xf] %v602
      %619 = vst [vmem:[%s211 + $0x34] sm:$0xf] %v603
      %620 = vst [vmem:[%s211 + $0x38] sm:$0xf] %v604
      %621 = vst [vmem:[%s211 + $0x3c] sm:$0xf] %v605
      %s622 = smul.u32 2, %s14
      %p623 = scmp.lt.s32.totalorder %s622, 7
      %s624 = scalar_select %p623, %s622, 7
      %s625 = smul.addr %s624, 8
      %s626 = smul.addr %s625, 4
      %s627 = scalar_lea.vmem %s3, %s626
      // Predicated region
      $region33: #{batch_ensemble_cnn_forward.8} parent=31 // pred_check
        %p628 = pneg %p110
      $region34: #{batch_ensemble_cnn_forward.8} parent=31 // pred_check_branch
        %630 = sbr.rel (%p628) target = $region36
      $region35: #{batch_ensemble_cnn_forward.8} parent=31 // pred_region
        %s631 = smul.u32 2, %s14
      $region36: #{batch_ensemble_cnn_forward.8} parent=31 // pred_fallthru
        _
    $region32: #{batch_ensemble_cnn_forward.8} parent=5 // pred_fallthru
      _
    %p632 = scmp.le.s32.totalorder 2, %s9
    // Predicated region
    $region37: #{batch_ensemble_cnn_forward.8} parent=5 // pred_check
      %p633 = pneg %p632
    $region38: #{batch_ensemble_cnn_forward.8} parent=5 // pred_check_branch
      %635 = sbr.rel (%p633) target = $region40
    $region39: #{batch_ensemble_cnn_forward.8} parent=5 // pred_region
      %s636 = ssub.s32 %s9, 2
      // Predicated region
      $region41: #{batch_ensemble_cnn_forward.8} parent=39 // pred_check
        %p637 = pneg %p116
      $region42: #{batch_ensemble_cnn_forward.8} parent=39 // pred_check_branch
        %639 = sbr.rel (%p637) target = $region44
      $region43: #{batch_ensemble_cnn_forward.8} parent=39 // pred_region
        %s640 = smul.u32 2, %s15
        %p641 = scmp.lt.s32.totalorder %s640, 7
        %s642 = scalar_select %p641, %s640, 7
        %s643 = smul.addr %s642, 8
        %s644 = smul.addr %s643, 4
        %s645 = scalar_lea.vmem %s3, %s644
      $region44: #{batch_ensemble_cnn_forward.8} parent=39 // pred_fallthru
        _
    $region40: #{batch_ensemble_cnn_forward.8} parent=5 // pred_fallthru
      _
  $region6: #{batch_ensemble_cnn_forward.8} parent=0 // loop_footer
    %s13 = sadd.s32 1, %s9
  $region7: #{batch_ensemble_cnn_forward.8} parent=0 // loop_footer_branch
    %8 = sbr.rel target = $region3
  $region8: #{batch_ensemble_cnn_forward.8} parent=0 // loop_exit
    _

// kernel: mul.92
$region0: #{mul.92}
  %s0 = inlined_call_operand.vmem [shape: f32[4,8,8,64], index: 0, kind: input, shape index: {}]
  %s1 = inlined_call_operand.vmem [shape: f32[4,4096], index: 1, kind: output, shape index: {}]
  $region1: #{mul.92} parent=0
    #allocation0 [shape = 'u8[131072]{0}', space=vmem, size = 0x20000, scoped, tag = 'scoped mem for output reshape']
    %v2 = vld [vmem:[%s0] ss:$2 sm:$0xff]
    %vm3 = vcmask 523264
    %4 = vst.msk [vmem:[#allocation0] ss:$8 sm:$0xf] %vm3, %v2
    %5 = vst.msk [vmem:[#allocation0] ss:$8 sm:$0xf0] %vm3, %v2
    %s6 = scalar_lea.vmem %s0, 16
    %v7 = vld [vmem:[%s6] ss:$2 sm:$0xff]
    %vm8 = vcmask 523264
    %s9 = scalar_lea.vmem [#allocation0], 64
    %10 = vst.msk [vmem:[%s9] ss:$8 sm:$0xf] %vm8, %v7
    %s11 = scalar_lea.vmem [#allocation0], 64
    %12 = vst.msk [vmem:[%s11] ss:$8 sm:$0xf0] %vm8, %v7
    %s13 = scalar_lea.vmem %s0, 32
    %v14 = vld [vmem:[%s13] ss:$2 sm:$0xff]
    %vm15 = vcmask 523264
    %s16 = scalar_lea.vmem [#allocation0], 128
    %17 = vst.msk [vmem:[%s16] ss:$8 sm:$0xf] %vm15, %v14
    %s18 = scalar_lea.vmem [#allocation0], 128
    %19 = vst.msk [vmem:[%s18] ss:$8 sm:$0xf0] %vm15, %v14
    %s20 = scalar_lea.vmem %s0, 48
    %v21 = vld [vmem:[%s20] ss:$2 sm:$0xff]
    %vm22 = vcmask 523264
    %s23 = scalar_lea.vmem [#allocation0], 192
    %24 = vst.msk [vmem:[%s23] ss:$8 sm:$0xf] %vm22, %v21
    %s25 = scalar_lea.vmem [#allocation0], 192
    %26 = vst.msk [vmem:[%s25] ss:$8 sm:$0xf0] %vm22, %v21
    %s27 = scalar_lea.vmem %s0, 64
    %v28 = vld [vmem:[%s27] ss:$2 sm:$0xff]
    %vm29 = vcmask 523264
    %s30 = scalar_lea.vmem [#allocation0], 1
    %31 = vst.msk [vmem:[%s30] ss:$8 sm:$0xf] %vm29, %v28
    %s32 = scalar_lea.vmem [#allocation0], 1
    %33 = vst.msk [vmem:[%s32] ss:$8 sm:$0xf0] %vm29, %v28
    %s34 = scalar_lea.vmem %s0, 80
    %v35 = vld [vmem:[%s34] ss:$2 sm:$0xff]
    %vm36 = vcmask 523264
    %s37 = scalar_lea.vmem [#allocation0], 65
    %38 = vst.msk [vmem:[%s37] ss:$8 sm:$0xf] %vm36, %v35
    %s39 = scalar_lea.vmem [#allocation0], 65
    %40 = vst.msk [vmem:[%s39] ss:$8 sm:$0xf0] %vm36, %v35
    %s41 = scalar_lea.vmem %s0, 96
    %v42 = vld [vmem:[%s41] ss:$2 sm:$0xff]
    %vm43 = vcmask 523264
    %s44 = scalar_lea.vmem [#allocation0], 129
    %45 = vst.msk [vmem:[%s44] ss:$8 sm:$0xf] %vm43, %v42
    %s46 = scalar_lea.vmem [#allocation0], 129
    %47 = vst.msk [vmem:[%s46] ss:$8 sm:$0xf0] %vm43, %v42
    %s48 = scalar_lea.vmem %s0, 112
    %v49 = vld [vmem:[%s48] ss:$2 sm:$0xff]
    %vm50 = vcmask 523264
    %s51 = scalar_lea.vmem [#allocation0], 193
    %52 = vst.msk [vmem:[%s51] ss:$8 sm:$0xf] %vm50, %v49
    %s53 = scalar_lea.vmem [#allocation0], 193
    %54 = vst.msk [vmem:[%s53] ss:$8 sm:$0xf0] %vm50, %v49
    %s55 = scalar_lea.vmem %s0, 128
    %v56 = vld [vmem:[%s55] ss:$2 sm:$0xff]
    %vm57 = vcmask 523264
    %s58 = scalar_lea.vmem [#allocation0], 2
    %59 = vst.msk [vmem:[%s58] ss:$8 sm:$0xf] %vm57, %v56
    %s60 = scalar_lea.vmem [#allocation0], 2
    %61 = vst.msk [vmem:[%s60] ss:$8 sm:$0xf0] %vm57, %v56
    %s62 = scalar_lea.vmem %s0, 144
    %v63 = vld [vmem:[%s62] ss:$2 sm:$0xff]
    %vm64 = vcmask 523264
    %s65 = scalar_lea.vmem [#allocation0], 66
    %66 = vst.msk [vmem:[%s65] ss:$8 sm:$0xf] %vm64, %v63
    %s67 = scalar_lea.vmem [#allocation0], 66
    %68 = vst.msk [vmem:[%s67] ss:$8 sm:$0xf0] %vm64, %v63
    %s69 = scalar_lea.vmem %s0, 160
    %v70 = vld [vmem:[%s69] ss:$2 sm:$0xff]
    %vm71 = vcmask 523264
    %s72 = scalar_lea.vmem [#allocation0], 130
    %73 = vst.msk [vmem:[%s72] ss:$8 sm:$0xf] %vm71, %v70
    %s74 = scalar_lea.vmem [#allocation0], 130
    %75 = vst.msk [vmem:[%s74] ss:$8 sm:$0xf0] %vm71, %v70
    %s76 = scalar_lea.vmem %s0, 176
    %v77 = vld [vmem:[%s76] ss:$2 sm:$0xff]
    %vm78 = vcmask 523264
    %s79 = scalar_lea.vmem [#allocation0], 194
    %80 = vst.msk [vmem:[%s79] ss:$8 sm:$0xf] %vm78, %v77
    %s81 = scalar_lea.vmem [#allocation0], 194
    %82 = vst.msk [vmem:[%s81] ss:$8 sm:$0xf0] %vm78, %v77
    %s83 = scalar_lea.vmem %s0, 192
    %v84 = vld [vmem:[%s83] ss:$2 sm:$0xff]
    %vm85 = vcmask 523264
    %s86 = scalar_lea.vmem [#allocation0], 3
    %87 = vst.msk [vmem:[%s86] ss:$8 sm:$0xf] %vm85, %v84
    %s88 = scalar_lea.vmem [#allocation0], 3
    %89 = vst.msk [vmem:[%s88] ss:$8 sm:$0xf0] %vm85, %v84
    %s90 = scalar_lea.vmem %s0, 208
    %v91 = vld [vmem:[%s90] ss:$2 sm:$0xff]
    %vm92 = vcmask 523264
    %s93 = scalar_lea.vmem [#allocation0], 67
    %94 = vst.msk [vmem:[%s93] ss:$8 sm:$0xf] %vm92, %v91
    %s95 = scalar_lea.vmem [#allocation0], 67
    %96 = vst.msk [vmem:[%s95] ss:$8 sm:$0xf0] %vm92, %v91
    %s97 = scalar_lea.vmem %s0, 224
    %v98 = vld [vmem:[%s97] ss:$2 sm:$0xff]
    %vm99 = vcmask 523264
    %s100 = scalar_lea.vmem [#allocation0], 131
    %101 = vst.msk [vmem:[%s100] ss:$8 sm:$0xf] %vm99, %v98
    %s102 = scalar_lea.vmem [#allocation0], 131
    %103 = vst.msk [vmem:[%s102] ss:$8 sm:$0xf0] %vm99, %v98
    %s104 = scalar_lea.vmem %s0, 240
    %v105 = vld [vmem:[%s104] ss:$2 sm:$0xff]
    %vm106 = vcmask 523264
    %s107 = scalar_lea.vmem [#allocation0], 195
    %108 = vst.msk [vmem:[%s107] ss:$8 sm:$0xf] %vm106, %v105
    %s109 = scalar_lea.vmem [#allocation0], 195
    %110 = vst.msk [vmem:[%s109] ss:$8 sm:$0xf0] %vm106, %v105
    %s111 = scalar_lea.vmem %s0, 1
    %v112 = vld [vmem:[%s111] sm:$0x1]
    %s113 = scalar_lea.vmem %s0, 64
    %v114 = vld [vmem:[%s113] sm:$0x2]
    %vm115 = vcmask 1041409
    %v116 = vsel %vm115, %v114, %v112
    %s117 = scalar_lea.vmem %s0, 127
    %v118 = vld [vmem:[%s117] sm:$0x4]
    %vm119 = vcmask 1042434
    %v120 = vsel %vm119, %v118, %v116
    %s121 = scalar_lea.vmem %s0, 763
    %s122 = smov 24
    %v123 = vld [vmem:[%s121] ss:$-190 sm:%s122]
    %vm124 = vcmask 1044483
    %v125 = vsel %vm124, %v123, %v120
    %s126 = scalar_lea.vmem %s0, 62
    %v127 = vld [vmem:[%s126] sm:$0x20]
    %vm128 = vcmask 1045509
    %v129 = vsel %vm128, %v127, %v125
    %s130 = scalar_lea.vmem %s0, 125
    %v131 = vld [vmem:[%s130] sm:$0x40]
    %vm132 = vcmask 1046534
    %v133 = vsel %vm132, %v131, %v129
    %s134 = scalar_lea.vmem %s0, 188
    %v135 = vld [vmem:[%s134] sm:$0x80]
    %vm136 = vcmask 1047559
    %v137 = vsel %vm136, %v135, %v133
    %138 = vrot.lane.b32.xlu0 %v137, 64
    %v139 = vpop.permute.xlu0 %138
    %vm140 = vcmask 1048064
    %141 = vst.msk [vmem:[#allocation0] sm:$0xf] %vm140, %v139
    %s142 = scalar_lea.vmem [#allocation0], 4
    %143 = vst.msk [vmem:[%s142] sm:$0xf0] %vm140, %v139
    %s144 = scalar_lea.vmem %s0, 9
    %v145 = vld [vmem:[%s144] sm:$0x1]
    %s146 = scalar_lea.vmem %s0, 72
    %v147 = vld [vmem:[%s146] sm:$0x2]
    %vm148 = vcmask 1041409
    %v149 = vsel %vm148, %v147, %v145
    %s150 = scalar_lea.vmem %s0, 135
    %v151 = vld [vmem:[%s150] sm:$0x4]
    %vm152 = vcmask 1042434
    %v153 = vsel %vm152, %v151, %v149
    %s154 = scalar_lea.vmem %s0, 771
    %s155 = smov 24
    %v156 = vld [vmem:[%s154] ss:$-190 sm:%s155]
    %vm157 = vcmask 1044483
    %v158 = vsel %vm157, %v156, %v153
    %s159 = scalar_lea.vmem %s0, 70
    %v160 = vld [vmem:[%s159] sm:$0x20]
    %vm161 = vcmask 1045509
    %v162 = vsel %vm161, %v160, %v158
    %s163 = scalar_lea.vmem %s0, 133
    %v164 = vld [vmem:[%s163] sm:$0x40]
    %vm165 = vcmask 1046534
    %v166 = vsel %vm165, %v164, %v162
    %s167 = scalar_lea.vmem %s0, 196
    %v168 = vld [vmem:[%s167] sm:$0x80]
    %vm169 = vcmask 1047559
    %v170 = vsel %vm169, %v168, %v166
    %171 = vrot.lane.b32.xlu0 %v170, 64
    %v172 = vpop.permute.xlu0 %171
    %vm173 = vcmask 1048064
    %s174 = scalar_lea.vmem [#allocation0], 32
    %175 = vst.msk [vmem:[%s174] sm:$0xf] %vm173, %v172
    %s176 = scalar_lea.vmem [#allocation0], 36
    %177 = vst.msk [vmem:[%s176] sm:$0xf0] %vm173, %v172
    %s178 = scalar_lea.vmem %s0, 17
    %v179 = vld [vmem:[%s178] sm:$0x1]
    %s180 = scalar_lea.vmem %s0, 80
    %v181 = vld [vmem:[%s180] sm:$0x2]
    %vm182 = vcmask 1041409
    %v183 = vsel %vm182, %v181, %v179
    %s184 = scalar_lea.vmem %s0, 143
    %v185 = vld [vmem:[%s184] sm:$0x4]
    %vm186 = vcmask 1042434
    %v187 = vsel %vm186, %v185, %v183
    %s188 = scalar_lea.vmem %s0, 779
    %s189 = smov 24
    %v190 = vld [vmem:[%s188] ss:$-190 sm:%s189]
    %vm191 = vcmask 1044483
    %v192 = vsel %vm191, %v190, %v187
    %s193 = scalar_lea.vmem %s0, 78
    %v194 = vld [vmem:[%s193] sm:$0x20]
    %vm195 = vcmask 1045509
    %v196 = vsel %vm195, %v194, %v192
    %s197 = scalar_lea.vmem %s0, 141
    %v198 = vld [vmem:[%s197] sm:$0x40]
    %vm199 = vcmask 1046534
    %v200 = vsel %vm199, %v198, %v196
    %s201 = scalar_lea.vmem %s0, 204
    %v202 = vld [vmem:[%s201] sm:$0x80]
    %vm203 = vcmask 1047559
    %v204 = vsel %vm203, %v202, %v200
    %205 = vrot.lane.b32.xlu0 %v204, 64
    %v206 = vpop.permute.xlu0 %205
    %vm207 = vcmask 1048064
    %s208 = scalar_lea.vmem [#allocation0], 64
    %209 = vst.msk [vmem:[%s208] sm:$0xf] %vm207, %v206
    %s210 = scalar_lea.vmem [#allocation0], 68
    %211 = vst.msk [vmem:[%s210] sm:$0xf0] %vm207, %v206
    %s212 = scalar_lea.vmem %s0, 25
    %v213 = vld [vmem:[%s212] sm:$0x1]
    %s214 = scalar_lea.vmem %s0, 88
    %v215 = vld [vmem:[%s214] sm:$0x2]
    %vm216 = vcmask 1041409
    %v217 = vsel %vm216, %v215, %v213
    %s218 = scalar_lea.vmem %s0, 151
    %v219 = vld [vmem:[%s218] sm:$0x4]
    %vm220 = vcmask 1042434
    %v221 = vsel %vm220, %v219, %v217
    %s222 = scalar_lea.vmem %s0, 787
    %s223 = smov 24
    %v224 = vld [vmem:[%s222] ss:$-190 sm:%s223]
    %vm225 = vcmask 1044483
    %v226 = vsel %vm225, %v224, %v221
    %s227 = scalar_lea.vmem %s0, 86
    %v228 = vld [vmem:[%s227] sm:$0x20]
    %vm229 = vcmask 1045509
    %v230 = vsel %vm229, %v228, %v226
    %s231 = scalar_lea.vmem %s0, 149
    %v232 = vld [vmem:[%s231] sm:$0x40]
    %vm233 = vcmask 1046534
    %v234 = vsel %vm233, %v232, %v230
    %s235 = scalar_lea.vmem %s0, 212
    %v236 = vld [vmem:[%s235] sm:$0x80]
    %vm237 = vcmask 1047559
    %v238 = vsel %vm237, %v236, %v234
    %239 = vrot.lane.b32.xlu0 %v238, 64
    %v240 = vpop.permute.xlu0 %239
    %vm241 = vcmask 1048064
    %s242 = scalar_lea.vmem [#allocation0], 96
    %243 = vst.msk [vmem:[%s242] sm:$0xf] %vm241, %v240
    %s244 = scalar_lea.vmem [#allocation0], 100
    %245 = vst.msk [vmem:[%s244] sm:$0xf0] %vm241, %v240
    %s246 = scalar_lea.vmem %s0, 33
    %v247 = vld [vmem:[%s246] sm:$0x1]
    %s248 = scalar_lea.vmem %s0, 96
    %v249 = vld [vmem:[%s248] sm:$0x2]
    %vm250 = vcmask 1041409
    %v251 = vsel %vm250, %v249, %v247
    %s252 = scalar_lea.vmem %s0, 159
    %v253 = vld [vmem:[%s252] sm:$0x4]
    %vm254 = vcmask 1042434
    %v255 = vsel %vm254, %v253, %v251
    %s256 = scalar_lea.vmem %s0, 795
    %s257 = smov 24
    %v258 = vld [vmem:[%s256] ss:$-190 sm:%s257]
    %vm259 = vcmask 1044483
    %v260 = vsel %vm259, %v258, %v255
    %s261 = scalar_lea.vmem %s0, 94
    %v262 = vld [vmem:[%s261] sm:$0x20]
    %vm263 = vcmask 1045509
    %v264 = vsel %vm263, %v262, %v260
    %s265 = scalar_lea.vmem %s0, 157
    %v266 = vld [vmem:[%s265] sm:$0x40]
    %vm267 = vcmask 1046534
    %v268 = vsel %vm267, %v266, %v264
    %s269 = scalar_lea.vmem %s0, 220
    %v270 = vld [vmem:[%s269] sm:$0x80]
    %vm271 = vcmask 1047559
    %v272 = vsel %vm271, %v270, %v268
    %273 = vrot.lane.b32.xlu0 %v272, 64
    %v274 = vpop.permute.xlu0 %273
    %vm275 = vcmask 1048064
    %s276 = scalar_lea.vmem [#allocation0], 128
    %277 = vst.msk [vmem:[%s276] sm:$0xf] %vm275, %v274
    %s278 = scalar_lea.vmem [#allocation0], 132
    %279 = vst.msk [vmem:[%s278] sm:$0xf0] %vm275, %v274
    %s280 = scalar_lea.vmem %s0, 41
    %v281 = vld [vmem:[%s280] sm:$0x1]
    %s282 = scalar_lea.vmem %s0, 104
    %v283 = vld [vmem:[%s282] sm:$0x2]
    %vm284 = vcmask 1041409
    %v285 = vsel %vm284, %v283, %v281
    %s286 = scalar_lea.vmem %s0, 167
    %v287 = vld [vmem:[%s286] sm:$0x4]
    %vm288 = vcmask 1042434
    %v289 = vsel %vm288, %v287, %v285
    %s290 = scalar_lea.vmem %s0, 803
    %s291 = smov 24
    %v292 = vld [vmem:[%s290] ss:$-190 sm:%s291]
    %vm293 = vcmask 1044483
    %v294 = vsel %vm293, %v292, %v289
    %s295 = scalar_lea.vmem %s0, 102
    %v296 = vld [vmem:[%s295] sm:$0x20]
    %vm297 = vcmask 1045509
    %v298 = vsel %vm297, %v296, %v294
    %s299 = scalar_lea.vmem %s0, 165
    %v300 = vld [vmem:[%s299] sm:$0x40]
    %vm301 = vcmask 1046534
    %v302 = vsel %vm301, %v300, %v298
    %s303 = scalar_lea.vmem %s0, 228
    %v304 = vld [vmem:[%s303] sm:$0x80]
    %vm305 = vcmask 1047559
    %v306 = vsel %vm305, %v304, %v302
    %307 = vrot.lane.b32.xlu0 %v306, 64
    %v308 = vpop.permute.xlu0 %307
    %vm309 = vcmask 1048064
    %s310 = scalar_lea.vmem [#allocation0], 160
    %311 = vst.msk [vmem:[%s310] sm:$0xf] %vm309, %v308
    %s312 = scalar_lea.vmem [#allocation0], 164
    %313 = vst.msk [vmem:[%s312] sm:$0xf0] %vm309, %v308
    %s314 = scalar_lea.vmem %s0, 49
    %v315 = vld [vmem:[%s314] sm:$0x1]
    %s316 = scalar_lea.vmem %s0, 112
    %v317 = vld [vmem:[%s316] sm:$0x2]
    %vm318 = vcmask 1041409
    %v319 = vsel %vm318, %v317, %v315
    %s320 = scalar_lea.vmem %s0, 175
    %v321 = vld [vmem:[%s320] sm:$0x4]
    %vm322 = vcmask 1042434
    %v323 = vsel %vm322, %v321, %v319
    %s324 = scalar_lea.vmem %s0, 811
    %s325 = smov 24
    %v326 = vld [vmem:[%s324] ss:$-190 sm:%s325]
    %vm327 = vcmask 1044483
    %v328 = vsel %vm327, %v326, %v323
    %s329 = scalar_lea.vmem %s0, 110
    %v330 = vld [vmem:[%s329] sm:$0x20]
    %vm331 = vcmask 1045509
    %v332 = vsel %vm331, %v330, %v328
    %s333 = scalar_lea.vmem %s0, 173
    %v334 = vld [vmem:[%s333] sm:$0x40]
    %vm335 = vcmask 1046534
    %v336 = vsel %vm335, %v334, %v332
    %s337 = scalar_lea.vmem %s0, 236
    %v338 = vld [vmem:[%s337] sm:$0x80]
    %vm339 = vcmask 1047559
    %v340 = vsel %vm339, %v338, %v336
    %341 = vrot.lane.b32.xlu0 %v340, 64
    %v342 = vpop.permute.xlu0 %341
    %vm343 = vcmask 1048064
    %s344 = scalar_lea.vmem [#allocation0], 192
    %345 = vst.msk [vmem:[%s344] sm:$0xf] %vm343, %v342
    %s346 = scalar_lea.vmem [#allocation0], 196
    %347 = vst.msk [vmem:[%s346] sm:$0xf0] %vm343, %v342
    %s348 = scalar_lea.vmem %s0, 57
    %v349 = vld [vmem:[%s348] sm:$0x1]
    %s350 = scalar_lea.vmem %s0, 120
    %v351 = vld [vmem:[%s350] sm:$0x2]
    %vm352 = vcmask 1041409
    %v353 = vsel %vm352, %v351, %v349
    %s354 = scalar_lea.vmem %s0, 183
    %v355 = vld [vmem:[%s354] sm:$0x4]
    %vm356 = vcmask 1042434
    %v357 = vsel %vm356, %v355, %v353
    %s358 = scalar_lea.vmem %s0, 819
    %s359 = smov 24
    %v360 = vld [vmem:[%s358] ss:$-190 sm:%s359]
    %vm361 = vcmask 1044483
    %v362 = vsel %vm361, %v360, %v357
    %s363 = scalar_lea.vmem %s0, 118
    %v364 = vld [vmem:[%s363] sm:$0x20]
    %vm365 = vcmask 1045509
    %v366 = vsel %vm365, %v364, %v362
    %s367 = scalar_lea.vmem %s0, 181
    %v368 = vld [vmem:[%s367] sm:$0x40]
    %vm369 = vcmask 1046534
    %v370 = vsel %vm369, %v368, %v366
    %s371 = scalar_lea.vmem %s0, 244
    %v372 = vld [vmem:[%s371] sm:$0x80]
    %vm373 = vcmask 1047559
    %v374 = vsel %vm373, %v372, %v370
    %375 = vrot.lane.b32.xlu0 %v374, 64
    %v376 = vpop.permute.xlu0 %375
    %vm377 = vcmask 1048064
    %s378 = scalar_lea.vmem [#allocation0], 224
    %379 = vst.msk [vmem:[%s378] sm:$0xf] %vm377, %v376
    %s380 = scalar_lea.vmem [#allocation0], 228
    %381 = vst.msk [vmem:[%s380] sm:$0xf0] %vm377, %v376
    %s382 = scalar_lea.vmem %s0, 5
    %v383 = vld [vmem:[%s382] sm:$0x1]
    %s384 = scalar_lea.vmem %s0, 68
    %v385 = vld [vmem:[%s384] sm:$0x2]
    %vm386 = vcmask 1041409
    %v387 = vsel %vm386, %v385, %v383
    %s388 = scalar_lea.vmem %s0, 131
    %v389 = vld [vmem:[%s388] sm:$0x4]
    %vm390 = vcmask 1042434
    %v391 = vsel %vm390, %v389, %v387
    %s392 = scalar_lea.vmem %s0, 767
    %s393 = smov 24
    %v394 = vld [vmem:[%s392] ss:$-190 sm:%s393]
    %vm395 = vcmask 1044483
    %v396 = vsel %vm395, %v394, %v391
    %s397 = scalar_lea.vmem %s0, 66
    %v398 = vld [vmem:[%s397] sm:$0x20]
    %vm399 = vcmask 1045509
    %v400 = vsel %vm399, %v398, %v396
    %s401 = scalar_lea.vmem %s0, 129
    %v402 = vld [vmem:[%s401] sm:$0x40]
    %vm403 = vcmask 1046534
    %v404 = vsel %vm403, %v402, %v400
    %s405 = scalar_lea.vmem %s0, 192
    %v406 = vld [vmem:[%s405] sm:$0x80]
    %vm407 = vcmask 1047559
    %v408 = vsel %vm407, %v406, %v404
    %409 = vrot.lane.b32.xlu0 %v408, 64
    %v410 = vpop.permute.xlu0 %409
    %vm411 = vcmask 1048064
    %s412 = scalar_lea.vmem [#allocation0], 16
    %413 = vst.msk [vmem:[%s412] sm:$0xf] %vm411, %v410
    %s414 = scalar_lea.vmem [#allocation0], 20
    %415 = vst.msk [vmem:[%s414] sm:$0xf0] %vm411, %v410
    %s416 = scalar_lea.vmem %s0, 13
    %v417 = vld [vmem:[%s416] sm:$0x1]
    %s418 = scalar_lea.vmem %s0, 76
    %v419 = vld [vmem:[%s418] sm:$0x2]
    %vm420 = vcmask 1041409
    %v421 = vsel %vm420, %v419, %v417
    %s422 = scalar_lea.vmem %s0, 139
    %v423 = vld [vmem:[%s422] sm:$0x4]
    %vm424 = vcmask 1042434
    %v425 = vsel %vm424, %v423, %v421
    %s426 = scalar_lea.vmem %s0, 775
    %s427 = smov 24
    %v428 = vld [vmem:[%s426] ss:$-190 sm:%s427]
    %vm429 = vcmask 1044483
    %v430 = vsel %vm429, %v428, %v425
    %s431 = scalar_lea.vmem %s0, 74
    %v432 = vld [vmem:[%s431] sm:$0x20]
    %vm433 = vcmask 1045509
    %v434 = vsel %vm433, %v432, %v430
    %s435 = scalar_lea.vmem %s0, 137
    %v436 = vld [vmem:[%s435] sm:$0x40]
    %vm437 = vcmask 1046534
    %v438 = vsel %vm437, %v436, %v434
    %s439 = scalar_lea.vmem %s0, 200
    %v440 = vld [vmem:[%s439] sm:$0x80]
    %vm441 = vcmask 1047559
    %v442 = vsel %vm441, %v440, %v438
    %443 = vrot.lane.b32.xlu0 %v442, 64
    %v444 = vpop.permute.xlu0 %443
    %vm445 = vcmask 1048064
    %s446 = scalar_lea.vmem [#allocation0], 48
    %447 = vst.msk [vmem:[%s446] sm:$0xf] %vm445, %v444
    %s448 = scalar_lea.vmem [#allocation0], 52
    %449 = vst.msk [vmem:[%s448] sm:$0xf0] %vm445, %v444
    %s450 = scalar_lea.vmem %s0, 21
    %v451 = vld [vmem:[%s450] sm:$0x1]
    %s452 = scalar_lea.vmem %s0, 84
    %v453 = vld [vmem:[%s452] sm:$0x2]
    %vm454 = vcmask 1041409
    %v455 = vsel %vm454, %v453, %v451
    %s456 = scalar_lea.vmem %s0, 147
    %v457 = vld [vmem:[%s456] sm:$0x4]
    %vm458 = vcmask 1042434
    %v459 = vsel %vm458, %v457, %v455
    %s460 = scalar_lea.vmem %s0, 783
    %s461 = smov 24
    %v462 = vld [vmem:[%s460] ss:$-190 sm:%s461]
    %vm463 = vcmask 1044483
    %v464 = vsel %vm463, %v462, %v459
    %s465 = scalar_lea.vmem %s0, 82
    %v466 = vld [vmem:[%s465] sm:$0x20]
    %vm467 = vcmask 1045509
    %v468 = vsel %vm467, %v466, %v464
    %s469 = scalar_lea.vmem %s0, 145
    %v470 = vld [vmem:[%s469] sm:$0x40]
    %vm471 = vcmask 1046534
    %v472 = vsel %vm471, %v470, %v468
    %s473 = scalar_lea.vmem %s0, 208
    %v474 = vld [vmem:[%s473] sm:$0x80]
    %vm475 = vcmask 1047559
    %v476 = vsel %vm475, %v474, %v472
    %477 = vrot.lane.b32.xlu0 %v476, 64
    %v478 = vpop.permute.xlu0 %477
    %vm479 = vcmask 1048064
    %s480 = scalar_lea.vmem [#allocation0], 80
    %481 = vst.msk [vmem:[%s480] sm:$0xf] %vm479, %v478
    %s482 = scalar_lea.vmem [#allocation0], 84
    %483 = vst.msk [vmem:[%s482] sm:$0xf0] %vm479, %v478
    %s484 = scalar_lea.vmem %s0, 29
    %v485 = vld [vmem:[%s484] sm:$0x1]
    %s486 = scalar_lea.vmem %s0, 92
    %v487 = vld [vmem:[%s486] sm:$0x2]
    %vm488 = vcmask 1041409
    %v489 = vsel %vm488, %v487, %v485
    %s490 = scalar_lea.vmem %s0, 155
    %v491 = vld [vmem:[%s490] sm:$0x4]
    %vm492 = vcmask 1042434
    %v493 = vsel %vm492, %v491, %v489
    %s494 = scalar_lea.vmem %s0, 791
    %s495 = smov 24
    %v496 = vld [vmem:[%s494] ss:$-190 sm:%s495]
    %vm497 = vcmask 1044483
    %v498 = vsel %vm497, %v496, %v493
    %s499 = scalar_lea.vmem %s0, 90
    %v500 = vld [vmem:[%s499] sm:$0x20]
    %vm501 = vcmask 1045509
    %v502 = vsel %vm501, %v500, %v498
    %s503 = scalar_lea.vmem %s0, 153
    %v504 = vld [vmem:[%s503] sm:$0x40]
    %vm505 = vcmask 1046534
    %v506 = vsel %vm505, %v504, %v502
    %s507 = scalar_lea.vmem %s0, 216
    %v508 = vld [vmem:[%s507] sm:$0x80]
    %vm509 = vcmask 1047559
    %v510 = vsel %vm509, %v508, %v506
    %511 = vrot.lane.b32.xlu0 %v510, 64
    %v512 = vpop.permute.xlu0 %511
    %vm513 = vcmask 1048064
    %s514 = scalar_lea.vmem [#allocation0], 112
    %515 = vst.msk [vmem:[%s514] sm:$0xf] %vm513, %v512
    %s516 = scalar_lea.vmem [#allocation0], 116
    %517 = vst.msk [vmem:[%s516] sm:$0xf0] %vm513, %v512
    %s518 = scalar_lea.vmem %s0, 37
    %v519 = vld [vmem:[%s518] sm:$0x1]
    %s520 = scalar_lea.vmem %s0, 100
    %v521 = vld [vmem:[%s520] sm:$0x2]
    %vm522 = vcmask 1041409
    %v523 = vsel %vm522, %v521, %v519
    %s524 = scalar_lea.vmem %s0, 163
    %v525 = vld [vmem:[%s524] sm:$0x4]
    %vm526 = vcmask 1042434
    %v527 = vsel %vm526, %v525, %v523
    %s528 = scalar_lea.vmem %s0, 799
    %s529 = smov 24
    %v530 = vld [vmem:[%s528] ss:$-190 sm:%s529]
    %vm531 = vcmask 1044483
    %v532 = vsel %vm531, %v530, %v527
    %s533 = scalar_lea.vmem %s0, 98
    %v534 = vld [vmem:[%s533] sm:$0x20]
    %vm535 = vcmask 1045509
    %v536 = vsel %vm535, %v534, %v532
    %s537 = scalar_lea.vmem %s0, 161
    %v538 = vld [vmem:[%s537] sm:$0x40]
    %vm539 = vcmask 1046534
    %v540 = vsel %vm539, %v538, %v536
    %s541 = scalar_lea.vmem %s0, 224
    %v542 = vld [vmem:[%s541] sm:$0x80]
    %vm543 = vcmask 1047559
    %v544 = vsel %vm543, %v542, %v540
    %545 = vrot.lane.b32.xlu0 %v544, 64
    %v546 = vpop.permute.xlu0 %545
    %vm547 = vcmask 1048064
    %s548 = scalar_lea.vmem [#allocation0], 144
    %549 = vst.msk [vmem:[%s548] sm:$0xf] %vm547, %v546
    %s550 = scalar_lea.vmem [#allocation0], 148
    %551 = vst.msk [vmem:[%s550] sm:$0xf0] %vm547, %v546
    %s552 = scalar_lea.vmem %s0, 45
    %v553 = vld [vmem:[%s552] sm:$0x1]
    %s554 = scalar_lea.vmem %s0, 108
    %v555 = vld [vmem:[%s554] sm:$0x2]
    %vm556 = vcmask 1041409
    %v557 = vsel %vm556, %v555, %v553
    %s558 = scalar_lea.vmem %s0, 171
    %v559 = vld [vmem:[%s558] sm:$0x4]
    %vm560 = vcmask 1042434
    %v561 = vsel %vm560, %v559, %v557
    %s562 = scalar_lea.vmem %s0, 807
    %s563 = smov 24
    %v564 = vld [vmem:[%s562] ss:$-190 sm:%s563]
    %vm565 = vcmask 1044483
    %v566 = vsel %vm565, %v564, %v561
    %s567 = scalar_lea.vmem %s0, 106
    %v568 = vld [vmem:[%s567] sm:$0x20]
    %vm569 = vcmask 1045509
    %v570 = vsel %vm569, %v568, %v566
    %s571 = scalar_lea.vmem %s0, 169
    %v572 = vld [vmem:[%s571] sm:$0x40]
    %vm573 = vcmask 1046534
    %v574 = vsel %vm573, %v572, %v570
    %s575 = scalar_lea.vmem %s0, 232
    %v576 = vld [vmem:[%s575] sm:$0x80]
    %vm577 = vcmask 1047559
    %v578 = vsel %vm577, %v576, %v574
    %579 = vrot.lane.b32.xlu0 %v578, 64
    %v580 = vpop.permute.xlu0 %579
    %vm581 = vcmask 1048064
    %s582 = scalar_lea.vmem [#allocation0], 176
    %583 = vst.msk [vmem:[%s582] sm:$0xf] %vm581, %v580
    %s584 = scalar_lea.vmem [#allocation0], 180
    %585 = vst.msk [vmem:[%s584] sm:$0xf0] %vm581, %v580
    %s586 = scalar_lea.vmem %s0, 53
    %v587 = vld [vmem:[%s586] sm:$0x1]
    %s588 = scalar_lea.vmem %s0, 116
    %v589 = vld [vmem:[%s588] sm:$0x2]
    %vm590 = vcmask 1041409
    %v591 = vsel %vm590, %v589, %v587
    %s592 = scalar_lea.vmem %s0, 179
    %v593 = vld [vmem:[%s592] sm:$0x4]
    %vm594 = vcmask 1042434
    %v595 = vsel %vm594, %v593, %v591
    %s596 = scalar_lea.vmem %s0, 815
    %s597 = smov 24
    %v598 = vld [vmem:[%s596] ss:$-190 sm:%s597]
    %vm599 = vcmask 1044483
    %v600 = vsel %vm599, %v598, %v595
    %s601 = scalar_lea.vmem %s0, 114
    %v602 = vld [vmem:[%s601] sm:$0x20]
    %vm603 = vcmask 1045509
    %v604 = vsel %vm603, %v602, %v600
    %s605 = scalar_lea.vmem %s0, 177
    %v606 = vld [vmem:[%s605] sm:$0x40]
    %vm607 = vcmask 1046534
    %v608 = vsel %vm607, %v606, %v604
    %s609 = scalar_lea.vmem %s0, 240
    %v610 = vld [vmem:[%s609] sm:$0x80]
    %vm611 = vcmask 1047559
    %v612 = vsel %vm611, %v610, %v608
    %613 = vrot.lane.b32.xlu0 %v612, 64
    %v614 = vpop.permute.xlu0 %613
    %vm615 = vcmask 1048064
    %s616 = scalar_lea.vmem [#allocation0], 208
    %617 = vst.msk [vmem:[%s616] sm:$0xf] %vm615, %v614
    %s618 = scalar_lea.vmem [#allocation0], 212
    %619 = vst.msk [vmem:[%s618] sm:$0xf0] %vm615, %v614
    %s620 = scalar_lea.vmem %s0, 61
    %v621 = vld [vmem:[%s620] sm:$0x1]
    %s622 = scalar_lea.vmem %s0, 124
    %v623 = vld [vmem:[%s622] sm:$0x2]
    %vm624 = vcmask 1041409
    %v625 = vsel %vm624, %v623, %v621
    %s626 = scalar_lea.vmem %s0, 187
    %v627 = vld [vmem:[%s626] sm:$0x4]
    %vm628 = vcmask 1042434
    %v629 = vsel %vm628, %v627, %v625
    %s630 = scalar_lea.vmem %s0, 823
    %s631 = smov 24
    %v632 = vld [vmem:[%s630] ss:$-190 sm:%s631]
    %vm633 = vcmask 1044483
    %v634 = vsel %vm633, %v632, %v629
    %s635 = scalar_lea.vmem %s0, 122
    %v636 = vld [vmem:[%s635] sm:$0x20]
    %vm637 = vcmask 1045509
    %v638 = vsel %vm637, %v636, %v634
    %s639 = scalar_lea.vmem %s0, 185
    %v640 = vld [vmem:[%s639] sm:$0x40]
    %vm641 = vcmask 1046534
    %v642 = vsel %vm641, %v640, %v638
    %s643 = scalar_lea.vmem %s0, 248
    %v644 = vld [vmem:[%s643] sm:$0x80]
    %vm645 = vcmask 1047559
    %v646 = vsel %vm645, %v644, %v642
    %647 = vrot.lane.b32.xlu0 %v646, 64
    %v648 = vpop.permute.xlu0 %647
    %vm649 = vcmask 1048064
    %s650 = scalar_lea.vmem [#allocation0], 240
    %651 = vst.msk [vmem:[%s650] sm:$0xf] %vm649, %v648
    %s652 = scalar_lea.vmem [#allocation0], 244
    %653 = vst.msk [vmem:[%s652] sm:$0xf0] %vm649, %v648
    %s655 = sshllo.u32 0, 4
    %v657 = vld [vmem:[#allocation0] sm:%s655]
    %s658 = sshllo.u32 0, 4
    %659 = vst [vmem:[%s1] sm:%s658] %v657
    %s660 = scalar_lea.vmem [#allocation0], 8
    %v661 = vld [vmem:[%s660] sm:%s655]
    %s662 = sshllo.u32 0, 4
    %s663 = scalar_lea.vmem %s1, 4
    %664 = vst [vmem:[%s663] sm:%s662] %v661
    %s665 = scalar_lea.vmem [#allocation0], 16
    %v666 = vld [vmem:[%s665] sm:%s655]
    %s667 = sshllo.u32 0, 4
    %s668 = smul.addr 4, 2
    %s669 = scalar_lea.vmem %s1, %s668
    %670 = vst [vmem:[%s669] sm:%s667] %v666
    %s671 = scalar_lea.vmem [#allocation0], 24
    %v672 = vld [vmem:[%s671] sm:%s655]
    %s673 = sshllo.u32 0, 4
    %s674 = smul.addr 4, 3
    %s675 = scalar_lea.vmem %s1, %s674
    %676 = vst [vmem:[%s675] sm:%s673] %v672
    %s677 = scalar_lea.vmem [#allocation0], 32
    %v678 = vld [vmem:[%s677] sm:%s655]
    %s679 = sshllo.u32 0, 4
    %s680 = smul.addr 4, 4
    %s681 = scalar_lea.vmem %s1, %s680
    %682 = vst [vmem:[%s681] sm:%s679] %v678
    %s683 = scalar_lea.vmem [#allocation0], 40
    %v684 = vld [vmem:[%s683] sm:%s655]
    %s685 = sshllo.u32 0, 4
    %s686 = smul.addr 4, 5
    %s687 = scalar_lea.vmem %s1, %s686
    %688 = vst [vmem:[%s687] sm:%s685] %v684
    %s689 = scalar_lea.vmem [#allocation0], 48
    %v690 = vld [vmem:[%s689] sm:%s655]
    %s691 = sshllo.u32 0, 4
    %s692 = smul.addr 4, 6
    %s693 = scalar_lea.vmem %s1, %s692
    %694 = vst [vmem:[%s693] sm:%s691] %v690
    %s695 = scalar_lea.vmem [#allocation0], 56
    %v696 = vld [vmem:[%s695] sm:%s655]
    %s697 = sshllo.u32 0, 4
    %s698 = smul.addr 4, 7
    %s699 = scalar_lea.vmem %s1, %s698
    %700 = vst [vmem:[%s699] sm:%s697] %v696
    %s701 = scalar_lea.vmem [#allocation0], 64
    %v702 = vld [vmem:[%s701] sm:%s655]
    %s703 = sshllo.u32 0, 4
    %s704 = smul.addr 4, 8
    %s705 = scalar_lea.vmem %s1, %s704
    %706 = vst [vmem:[%s705] sm:%s703] %v702
    %s707 = scalar_lea.vmem [#allocation0], 72
    %v708 = vld [vmem:[%s707] sm:%s655]
    %s709 = sshllo.u32 0, 4
    %s710 = smul.addr 4, 9
    %s711 = scalar_lea.vmem %s1, %s710
    %712 = vst [vmem:[%s711] sm:%s709] %v708
    %s713 = scalar_lea.vmem [#allocation0], 80
    %v714 = vld [vmem:[%s713] sm:%s655]
    %s715 = sshllo.u32 0, 4
    %s716 = smul.addr 4, 10
    %s717 = scalar_lea.vmem %s1, %s716
    %718 = vst [vmem:[%s717] sm:%s715] %v714
    %s719 = scalar_lea.vmem [#allocation0], 88
    %v720 = vld [vmem:[%s719] sm:%s655]
    %s721 = sshllo.u32 0, 4
    %s722 = smul.addr 4, 11
    %s723 = scalar_lea.vmem %s1, %s722
    %724 = vst [vmem:[%s723] sm:%s721] %v720
    %s725 = scalar_lea.vmem [#allocation0], 96
    %v726 = vld [vmem:[%s725] sm:%s655]
    %s727 = sshllo.u32 0, 4
    %s728 = smul.addr 4, 12
    %s729 = scalar_lea.vmem %s1, %s728
    %730 = vst [vmem:[%s729] sm:%s727] %v726
    %s731 = scalar_lea.vmem [#allocation0], 104
    %v732 = vld [vmem:[%s731] sm:%s655]
    %s733 = sshllo.u32 0, 4
    %s734 = smul.addr 4, 13
    %s735 = scalar_lea.vmem %s1, %s734
    %736 = vst [vmem:[%s735] sm:%s733] %v732
    %s737 = scalar_lea.vmem [#allocation0], 112
    %v738 = vld [vmem:[%s737] sm:%s655]
    %s739 = sshllo.u32 0, 4
    %s740 = smul.addr 4, 14
    %s741 = scalar_lea.vmem %s1, %s740
    %742 = vst [vmem:[%s741] sm:%s739] %v738
    %s743 = scalar_lea.vmem [#allocation0], 120
    %v744 = vld [vmem:[%s743] sm:%s655]
    %s745 = sshllo.u32 0, 4
    %s746 = smul.addr 4, 15
    %s747 = scalar_lea.vmem %s1, %s746
    %748 = vst [vmem:[%s747] sm:%s745] %v744
    %s749 = scalar_lea.vmem [#allocation0], 128
    %v750 = vld [vmem:[%s749] sm:%s655]
    %s751 = sshllo.u32 0, 4
    %s752 = smul.addr 4, 16
    %s753 = scalar_lea.vmem %s1, %s752
    %754 = vst [vmem:[%s753] sm:%s751] %v750
    %s755 = scalar_lea.vmem [#allocation0], 136
    %v756 = vld [vmem:[%s755] sm:%s655]
    %s757 = sshllo.u32 0, 4
    %s758 = smul.addr 4, 17
    %s759 = scalar_lea.vmem %s1, %s758
    %760 = vst [vmem:[%s759] sm:%s757] %v756
    %s761 = scalar_lea.vmem [#allocation0], 144
    %v762 = vld [vmem:[%s761] sm:%s655]
    %s763 = sshllo.u32 0, 4
    %s764 = smul.addr 4, 18
    %s765 = scalar_lea.vmem %s1, %s764
    %766 = vst [vmem:[%s765] sm:%s763] %v762
    %s767 = scalar_lea.vmem [#allocation0], 152
    %v768 = vld [vmem:[%s767] sm:%s655]
    %s769 = sshllo.u32 0, 4
    %s770 = smul.addr 4, 19
    %s771 = scalar_lea.vmem %s1, %s770
    %772 = vst [vmem:[%s771] sm:%s769] %v768
    %s773 = scalar_lea.vmem [#allocation0], 160
    %v774 = vld [vmem:[%s773] sm:%s655]
    %s775 = sshllo.u32 0, 4
    %s776 = smul.addr 4, 20
    %s777 = scalar_lea.vmem %s1, %s776
    %778 = vst [vmem:[%s777] sm:%s775] %v774
    %s779 = scalar_lea.vmem [#allocation0], 168
    %v780 = vld [vmem:[%s779] sm:%s655]
    %s781 = sshllo.u32 0, 4
    %s782 = smul.addr 4, 21
    %s783 = scalar_lea.vmem %s1, %s782
    %784 = vst [vmem:[%s783] sm:%s781] %v780
    %s785 = scalar_lea.vmem [#allocation0], 176
    %v786 = vld [vmem:[%s785] sm:%s655]
    %s787 = sshllo.u32 0, 4
    %s788 = smul.addr 4, 22
    %s789 = scalar_lea.vmem %s1, %s788
    %790 = vst [vmem:[%s789] sm:%s787] %v786
    %s791 = scalar_lea.vmem [#allocation0], 184
    %v792 = vld [vmem:[%s791] sm:%s655]
    %s793 = sshllo.u32 0, 4
    %s794 = smul.addr 4, 23
    %s795 = scalar_lea.vmem %s1, %s794
    %796 = vst [vmem:[%s795] sm:%s793] %v792
    %s797 = scalar_lea.vmem [#allocation0], 192
    %v798 = vld [vmem:[%s797] sm:%s655]
    %s799 = sshllo.u32 0, 4
    %s800 = smul.addr 4, 24
    %s801 = scalar_lea.vmem %s1, %s800
    %802 = vst [vmem:[%s801] sm:%s799] %v798
    %s803 = scalar_lea.vmem [#allocation0], 200
    %v804 = vld [vmem:[%s803] sm:%s655]
    %s805 = sshllo.u32 0, 4
    %s806 = smul.addr 4, 25
    %s807 = scalar_lea.vmem %s1, %s806
    %808 = vst [vmem:[%s807] sm:%s805] %v804
    %s809 = scalar_lea.vmem [#allocation0], 208
    %v810 = vld [vmem:[%s809] sm:%s655]
    %s811 = sshllo.u32 0, 4
    %s812 = smul.addr 4, 26
    %s813 = scalar_lea.vmem %s1, %s812
    %814 = vst [vmem:[%s813] sm:%s811] %v810
    %s815 = scalar_lea.vmem [#allocation0], 216
    %v816 = vld [vmem:[%s815] sm:%s655]
    %s817 = sshllo.u32 0, 4
    %s818 = smul.addr 4, 27
    %s819 = scalar_lea.vmem %s1, %s818
    %820 = vst [vmem:[%s819] sm:%s817] %v816
    %s821 = scalar_lea.vmem [#allocation0], 224
    %v822 = vld [vmem:[%s821] sm:%s655]
    %s823 = sshllo.u32 0, 4
    %s824 = smul.addr 4, 28
    %s825 = scalar_lea.vmem %s1, %s824
    %826 = vst [vmem:[%s825] sm:%s823] %v822
    %s827 = scalar_lea.vmem [#allocation0], 232
    %v828 = vld [vmem:[%s827] sm:%s655]
    %s829 = sshllo.u32 0, 4
    %s830 = smul.addr 4, 29
    %s831 = scalar_lea.vmem %s1, %s830
    %832 = vst [vmem:[%s831] sm:%s829] %v828
    %s833 = scalar_lea.vmem [#allocation0], 240
    %v834 = vld [vmem:[%s833] sm:%s655]
    %s835 = sshllo.u32 0, 4
    %s836 = smul.addr 4, 30
    %s837 = scalar_lea.vmem %s1, %s836
    %838 = vst [vmem:[%s837] sm:%s835] %v834
    %s839 = scalar_lea.vmem [#allocation0], 248
    %v840 = vld [vmem:[%s839] sm:%s655]
    %s841 = sshllo.u32 0, 4
    %s842 = smul.addr 4, 31
    %s843 = scalar_lea.vmem %s1, %s842
    %844 = vst [vmem:[%s843] sm:%s841] %v840

// kernel: batch_ensemble_cnn_forward.9
$region0: #{batch_ensemble_cnn_forward.9}
  #allocation0 [shape = 'u32[]', space=smem, size = 0x4, offset = 0x4, fixed_abs, tag = 'smem constant byte address 0x4 - core index']
  #allocation1 [shape = 'u32[144,128]{1,0:T(1,128)}', space=vmem, size = 0x12000, scoped, tag = 'internal scratch']
  %s0 = inlined_call_operand.vmem [shape: f32[4,2,4096], index: 0, kind: input, shape index: {}]
  %s1 = inlined_call_operand.vmem [shape: f32[4,4096,128], index: 1, kind: input, shape index: {}]
  %s2 = inlined_call_operand.vmem [shape: f32[4,1,128], index: 2, kind: input, shape index: {}]
  %s3 = inlined_call_operand.vmem [shape: f32[4,1,128], index: 3, kind: input, shape index: {}]
  %s4 = inlined_call_operand.hbm [shape: f32[4,2,128], index: 4, kind: output, shape index: {}]
  %s5 = sld [smem:[#allocation0]]
  $region49: #{batch_ensemble_cnn_forward.9} parent=0
    _
  %s7 = ssub.s32 1, %s5
  %s8 = scalar_select 0, %s7, %s5
  $region1: #{batch_ensemble_cnn_forward.9} parent=0
    #allocation2 [shape = 'u8[2048]{0}', space=vmem, size = 0x800, scoped, tag = 'output window, operand 0']
    #allocation3 [shape = 's32[2]{0}', space=sflag, size = 0x8, scoped, tag = 'scoped memory for batch_ensemble_cnn_forward.9']
    %9 = vsyncpa [#allocation3], 0
    %s10 = scalar_lea.sflag [#allocation3], 1
    %11 = vsyncpa %s10, 0
    loop: start=0, step=1, limit=6
    $region2: #{batch_ensemble_cnn_forward.9} parent=1 // loop_pre_header
      _
    $region3: #{batch_ensemble_cnn_forward.9} parent=1 // loop_header
      %s13 = sphi 0, %s17
      %p14 = scmp.ge.s32.totalorder %s13, 6
      %s23 = sphi 0, %s25
      %s26 = sphi 0, %s23
      %s27 = sphi 0, %s26
      %s43 = sphi 0, %s27
      %s49 = sphi 0, %s51
      %s52 = sphi 0, %s49
      %s53 = sphi 0, %s52
      %s69 = sphi 0, %s53
      %s75 = sphi 0, %s77
      %s78 = sphi 0, %s75
      %s79 = sphi 0, %s78
      %s95 = sphi 0, %s79
      %s101 = sphi 0, %s103
      %s104 = sphi 0, %s101
      %s105 = sphi 0, %s104
      %s121 = sphi 0, %s105
      %s127 = sphi 0, %s129
      %s130 = sphi 0, %s127
      %s131 = sphi 0, %s130
      %s147 = sphi 0, %s131
    $region4: #{batch_ensemble_cnn_forward.9} parent=1 // loop_header_branch
      %16 = sbr.rel (%p14) target = $region8
    $region5: #{batch_ensemble_cnn_forward.9} parent=1 // loop_body
      %s18 = ssub.s32 %s13, 1
      %s19 = ssub.s32 %s13, 2
      %s20 = sadd.s32 %s13, 1
      %s21 = ssub.s32 %s13, %s20
      %p22 = scmp.eq.s32.totalorder %s21, 0
      %s24 = sadd.s32 %s23, 1
      %s25 = scalar_select %p22, %s23, %s24
      %p28 = pneg %p22
      %p29 = scmp.eq.s32.totalorder %s13, 3
      %p30 = por %p28, %p29
      %p31 = scmp.ne.s32.totalorder %s23, %s26
      %p32 = scmp.eq.s32.totalorder %s13, 0
      %p33 = por %p31, %p32
      %p34 = scmp.ne.s32.totalorder %s23, %s26
      %p35 = scmp.eq.s32.totalorder %s18, 3
      %p36 = por %p34, %p35
      %p37 = scmp.ne.s32.totalorder %s26, %s27
      %p38 = scmp.eq.s32.totalorder %s18, 0
      %p39 = por %p37, %p38
      %p40 = scmp.ne.s32.totalorder %s26, %s27
      %p41 = scmp.eq.s32.totalorder %s19, 3
      %p42 = por %p40, %p41
      %p44 = scmp.ne.s32.totalorder %s27, %s43
      %p45 = scmp.eq.s32.totalorder %s19, 0
      %p46 = por %p44, %p45
      %s47 = ssub.s32 %s13, %s20
      %p48 = scmp.eq.s32.totalorder %s47, 0
      %s50 = sadd.s32 %s49, 1
      %s51 = scalar_select %p48, %s49, %s50
      %p54 = pneg %p48
      %p55 = scmp.eq.s32.totalorder %s13, 3
      %p56 = por %p54, %p55
      %p57 = scmp.ne.s32.totalorder %s49, %s52
      %p58 = scmp.eq.s32.totalorder %s13, 0
      %p59 = por %p57, %p58
      %p60 = scmp.ne.s32.totalorder %s49, %s52
      %p61 = scmp.eq.s32.totalorder %s18, 3
      %p62 = por %p60, %p61
      %p63 = scmp.ne.s32.totalorder %s52, %s53
      %p64 = scmp.eq.s32.totalorder %s18, 0
      %p65 = por %p63, %p64
      %p66 = scmp.ne.s32.totalorder %s52, %s53
      %p67 = scmp.eq.s32.totalorder %s19, 3
      %p68 = por %p66, %p67
      %p70 = scmp.ne.s32.totalorder %s53, %s69
      %p71 = scmp.eq.s32.totalorder %s19, 0
      %p72 = por %p70, %p71
      %s73 = ssub.s32 %s13, %s20
      %p74 = scmp.eq.s32.totalorder %s73, 0
      %s76 = sadd.s32 %s75, 1
      %s77 = scalar_select %p74, %s75, %s76
      %p80 = pneg %p74
      %p81 = scmp.eq.s32.totalorder %s13, 3
      %p82 = por %p80, %p81
      %p83 = scmp.ne.s32.totalorder %s75, %s78
      %p84 = scmp.eq.s32.totalorder %s13, 0
      %p85 = por %p83, %p84
      %p86 = scmp.ne.s32.totalorder %s75, %s78
      %p87 = scmp.eq.s32.totalorder %s18, 3
      %p88 = por %p86, %p87
      %p89 = scmp.ne.s32.totalorder %s78, %s79
      %p90 = scmp.eq.s32.totalorder %s18, 0
      %p91 = por %p89, %p90
      %p92 = scmp.ne.s32.totalorder %s78, %s79
      %p93 = scmp.eq.s32.totalorder %s19, 3
      %p94 = por %p92, %p93
      %p96 = scmp.ne.s32.totalorder %s79, %s95
      %p97 = scmp.eq.s32.totalorder %s19, 0
      %p98 = por %p96, %p97
      %s99 = ssub.s32 %s13, %s20
      %p100 = scmp.eq.s32.totalorder %s99, 0
      %s102 = sadd.s32 %s101, 1
      %s103 = scalar_select %p100, %s101, %s102
      %p106 = pneg %p100
      %p107 = scmp.eq.s32.totalorder %s13, 3
      %p108 = por %p106, %p107
      %p109 = scmp.ne.s32.totalorder %s101, %s104
      %p110 = scmp.eq.s32.totalorder %s13, 0
      %p111 = por %p109, %p110
      %p112 = scmp.ne.s32.totalorder %s101, %s104
      %p113 = scmp.eq.s32.totalorder %s18, 3
      %p114 = por %p112, %p113
      %p115 = scmp.ne.s32.totalorder %s104, %s105
      %p116 = scmp.eq.s32.totalorder %s18, 0
      %p117 = por %p115, %p116
      %p118 = scmp.ne.s32.totalorder %s104, %s105
      %p119 = scmp.eq.s32.totalorder %s19, 3
      %p120 = por %p118, %p119
      %p122 = scmp.ne.s32.totalorder %s105, %s121
      %p123 = scmp.eq.s32.totalorder %s19, 0
      %p124 = por %p122, %p123
      %s125 = ssub.s32 %s13, %s20
      %p126 = scmp.eq.s32.totalorder %s125, 0
      %s128 = sadd.s32 %s127, 1
      %s129 = scalar_select %p126, %s127, %s128
      %p132 = pneg %p126
      %p133 = scmp.eq.s32.totalorder %s13, 3
      %p134 = por %p132, %p133
      %p135 = scmp.ne.s32.totalorder %s127, %s130
      %p136 = scmp.eq.s32.totalorder %s13, 0
      %p137 = por %p135, %p136
      %p138 = scmp.ne.s32.totalorder %s127, %s130
      %p139 = scmp.eq.s32.totalorder %s18, 3
      %p140 = por %p138, %p139
      %p141 = scmp.ne.s32.totalorder %s130, %s131
      %p142 = scmp.eq.s32.totalorder %s18, 0
      %p143 = por %p141, %p142
      %p144 = scmp.ne.s32.totalorder %s130, %s131
      %p145 = scmp.eq.s32.totalorder %s19, 3
      %p146 = por %p144, %p145
      %p148 = scmp.ne.s32.totalorder %s131, %s147
      %p149 = scmp.eq.s32.totalorder %s19, 0
      %p150 = por %p148, %p149
      %p151 = scmp.le.s32.totalorder 1, %s13
      %p152 = scmp.lt.s32.totalorder %s13, 5
      %p153 = pnand %p151, %p152
      %p154 = pneg %p153
      // Predicated region
      $region9: #{batch_ensemble_cnn_forward.9} parent=5 // pred_check
        _
      $region10: #{batch_ensemble_cnn_forward.9} parent=5 // pred_check_branch
        %156 = sbr.rel (%p153) target = $region12
      $region11: #{batch_ensemble_cnn_forward.9} parent=5 // pred_region
        %s157 = ssub.s32 %s13, 1
      $region12: #{batch_ensemble_cnn_forward.9} parent=5 // pred_fallthru
        _
      %p158 = scmp.lt.s32.totalorder %s13, 4
      // Predicated region
      $region13: #{batch_ensemble_cnn_forward.9} parent=5 // pred_check
        %p159 = pneg %p158
      $region14: #{batch_ensemble_cnn_forward.9} parent=5 // pred_check_branch
        %161 = sbr.rel (%p159) target = $region16
      $region15: #{batch_ensemble_cnn_forward.9} parent=5 // pred_region
        // Predicated region
        $region17: #{batch_ensemble_cnn_forward.9} parent=15 // pred_check
          %p162 = pneg %p33
        $region18: #{batch_ensemble_cnn_forward.9} parent=15 // pred_check_branch
          %164 = sbr.rel (%p162) target = $region20
        $region19: #{batch_ensemble_cnn_forward.9} parent=15 // pred_region
          %p165 = scmp.lt.s32.totalorder %s13, 3
          %s166 = scalar_select %p165, %s13, 3
          %s167 = smul.addr %s166, 32
          %s168 = smul.addr %s167, 2
          %s169 = scalar_lea.vmem %s0, %s168
        $region20: #{batch_ensemble_cnn_forward.9} parent=15 // pred_fallthru
          _
        // Predicated region
        $region21: #{batch_ensemble_cnn_forward.9} parent=15 // pred_check
          %p170 = pneg %p59
        $region22: #{batch_ensemble_cnn_forward.9} parent=15 // pred_check_branch
          %172 = sbr.rel (%p170) target = $region24
        $region23: #{batch_ensemble_cnn_forward.9} parent=15 // pred_region
          %p173 = scmp.lt.s32.totalorder %s13, 3
          %s174 = scalar_select %p173, %s13, 3
          %s175 = smul.addr %s174, 512
          %s176 = smul.addr %s175, 8
          %s177 = scalar_lea.vmem %s1, %s176
        $region24: #{batch_ensemble_cnn_forward.9} parent=15 // pred_fallthru
          _
        // Predicated region
        $region25: #{batch_ensemble_cnn_forward.9} parent=15 // pred_check
          %p178 = pneg %p85
        $region26: #{batch_ensemble_cnn_forward.9} parent=15 // pred_check_branch
          %180 = sbr.rel (%p178) target = $region28
        $region27: #{batch_ensemble_cnn_forward.9} parent=15 // pred_region
          %p181 = scmp.lt.s32.totalorder %s13, 3
          %s182 = scalar_select %p181, %s13, 3
          %s183 = scalar_lea.vmem %s2, %s182
        $region28: #{batch_ensemble_cnn_forward.9} parent=15 // pred_fallthru
          _
        // Predicated region
        $region29: #{batch_ensemble_cnn_forward.9} parent=15 // pred_check
          %p184 = pneg %p111
        $region30: #{batch_ensemble_cnn_forward.9} parent=15 // pred_check_branch
          %186 = sbr.rel (%p184) target = $region32
        $region31: #{batch_ensemble_cnn_forward.9} parent=15 // pred_region
          %p187 = scmp.lt.s32.totalorder %s13, 3
          %s188 = scalar_select %p187, %s13, 3
          %s189 = scalar_lea.vmem %s3, %s188
        $region32: #{batch_ensemble_cnn_forward.9} parent=15 // pred_fallthru
          _
      $region16: #{batch_ensemble_cnn_forward.9} parent=5 // pred_fallthru
        _
      %p190 = scmp.le.s32.totalorder 1, %s13
      %p191 = scmp.lt.s32.totalorder %s13, 5
      %p192 = pnand %p190, %p191
      %p193 = pneg %p192
      // Predicated region
      $region33: #{batch_ensemble_cnn_forward.9} parent=5 // pred_check
        _
      $region34: #{batch_ensemble_cnn_forward.9} parent=5 // pred_check_branch
        %195 = sbr.rel (%p192) target = $region36
      $region35: #{batch_ensemble_cnn_forward.9} parent=5 // pred_region
        %s196 = ssub.s32 %s13, 1
        %p197 = scmp.lt.s32.totalorder %s18, 3
        %s198 = scalar_select %p197, %s18, 3
        %s199 = smul.addr %s198, 32
        %s200 = smul.addr %s199, 2
        %s201 = scalar_lea.vmem %s0, %s200
        %p202 = pneg %p39
        %p203 = pneg %p36
        %p204 = scmp.lt.s32.totalorder %s18, 3
        %s205 = scalar_select %p204, %s18, 3
        %s206 = smul.addr %s205, 512
        %s207 = smul.addr %s206, 8
        %s208 = scalar_lea.vmem %s1, %s207
        %p209 = pneg %p65
        %p210 = pneg %p62
        %p211 = scmp.lt.s32.totalorder %s18, 3
        %s212 = scalar_select %p211, %s18, 3
        %s213 = scalar_lea.vmem %s2, %s212
        %p214 = pneg %p91
        %p215 = pneg %p88
        %p216 = scmp.lt.s32.totalorder %s18, 3
        %s217 = scalar_select %p216, %s18, 3
        %s218 = scalar_lea.vmem %s3, %s217
        %p219 = pneg %p117
        %p220 = pneg %p114
        %p221 = pneg %p143
        %p222 = pneg %p140
        %s223 = sand.u32 %s130, 1
        %s224 = scalar_lea.sflag [#allocation3], %s223
        %s225 = sand.u32 %s130, 1
        %s226 = smul.addr %s225, 2
        %s227 = scalar_lea.vmem [#allocation2], %s226
        %p228 = scmp.lt.s32.totalorder %s18, 3
        %s229 = scalar_select %p228, %s18, 3
        %s230 = smul.addr %s229, 32
        %s231 = smul.addr %s230, 2
        %s232 = scalar_lea.vmem %s0, %s231
        %p233 = scmp.lt.s32.totalorder %s18, 3
        %s234 = scalar_select %p233, %s18, 3
        %s235 = smul.addr %s234, 512
        %s236 = smul.addr %s235, 8
        %s237 = scalar_lea.vmem %s1, %s236
        %p238 = scmp.lt.s32.totalorder %s18, 3
        %s239 = scalar_select %p238, %s18, 3
        %s240 = scalar_lea.vmem %s2, %s239
        %p241 = scmp.lt.s32.totalorder %s18, 3
        %s242 = scalar_select %p241, %s18, 3
        %s243 = scalar_lea.vmem %s3, %s242
        %v244 = vld [vmem:[%s232] sm:$0xff]
        %v245 = vld [vmem:[%s232 + $0x8] sm:$0xff]
        %v246 = vld [vmem:[%s232 + $0x10] sm:$0xff]
        %v247 = vld [vmem:[%s232 + $0x18] sm:$0xff]
        %v248 = vld [vmem:[%s232 + $0x20] sm:$0xff]
        %v249 = vld [vmem:[%s232 + $0x28] sm:$0xff]
        %v250 = vld [vmem:[%s232 + $0x30] sm:$0xff]
        %v251 = vld [vmem:[%s232 + $0x38] sm:$0xff]
        %v252 = vld [vmem:[%s237] sm:$0xff]
        %v253 = vld [vmem:[%s237 + $0x8] sm:$0xff]
        %v254 = vld [vmem:[%s237 + $0x10] sm:$0xff]
        %v255 = vld [vmem:[%s237 + $0x18] sm:$0xff]
        %v256 = vld [vmem:[%s237 + $0x20] sm:$0xff]
        %v257 = vld [vmem:[%s237 + $0x28] sm:$0xff]
        %v258 = vld [vmem:[%s237 + $0x30] sm:$0xff]
        %v259 = vld [vmem:[%s237 + $0x38] sm:$0xff]
        %v260 = vld [vmem:[%s237 + $0x40] sm:$0xff]
        %v261 = vld [vmem:[%s237 + $0x48] sm:$0xff]
        %v262 = vld [vmem:[%s237 + $0x50] sm:$0xff]
        %v263 = vld [vmem:[%s237 + $0x58] sm:$0xff]
        %v264 = vld [vmem:[%s237 + $0x60] sm:$0xff]
        %v265 = vld [vmem:[%s237 + $0x68] sm:$0xff]
        %v266 = vld [vmem:[%s237 + $0x70] sm:$0xff]
        %v267 = vld [vmem:[%s237 + $0x78] sm:$0xff]
        %v268 = vld [vmem:[%s237 + $0x80] sm:$0xff]
        %v269 = vld [vmem:[%s237 + $0x88] sm:$0xff]
        %v270 = vld [vmem:[%s237 + $0x90] sm:$0xff]
        %v271 = vld [vmem:[%s237 + $0x98] sm:$0xff]
        %v272 = vld [vmem:[%s237 + $0xa0] sm:$0xff]
        %v273 = vld [vmem:[%s237 + $0xa8] sm:$0xff]
        %v274 = vld [vmem:[%s237 + $0xb0] sm:$0xff]
        %v275 = vld [vmem:[%s237 + $0xb8] sm:$0xff]
        %v276 = vld [vmem:[%s237 + $0xc0] sm:$0xff]
        %v277 = vld [vmem:[%s237 + $0xc8] sm:$0xff]
        %v278 = vld [vmem:[%s237 + $0xd0] sm:$0xff]
        %v279 = vld [vmem:[%s237 + $0xd8] sm:$0xff]
        %v280 = vld [vmem:[%s237 + $0xe0] sm:$0xff]
        %v281 = vld [vmem:[%s237 + $0xe8] sm:$0xff]
        %v282 = vld [vmem:[%s237 + $0xf0] sm:$0xff]
        %v283 = vld [vmem:[%s237 + $0xf8] sm:$0xff]
        %v284 = vld [vmem:[%s237 + $0x100] sm:$0xff]
        %v285 = vld [vmem:[%s237 + $0x108] sm:$0xff]
        %v286 = vld [vmem:[%s237 + $0x110] sm:$0xff]
        %v287 = vld [vmem:[%s237 + $0x118] sm:$0xff]
        %v288 = vld [vmem:[%s237 + $0x120] sm:$0xff]
        %v289 = vld [vmem:[%s237 + $0x128] sm:$0xff]
        %v290 = vld [vmem:[%s237 + $0x130] sm:$0xff]
        %v291 = vld [vmem:[%s237 + $0x138] sm:$0xff]
        %v292 = vld [vmem:[%s237 + $0x140] sm:$0xff]
        %v293 = vld [vmem:[%s237 + $0x148] sm:$0xff]
        %v294 = vld [vmem:[%s237 + $0x150] sm:$0xff]
        %v295 = vld [vmem:[%s237 + $0x158] sm:$0xff]
        %v296 = vld [vmem:[%s237 + $0x160] sm:$0xff]
        %v297 = vld [vmem:[%s237 + $0x168] sm:$0xff]
        %v298 = vld [vmem:[%s237 + $0x170] sm:$0xff]
        %v299 = vld [vmem:[%s237 + $0x178] sm:$0xff]
        %v300 = vld [vmem:[%s237 + $0x180] sm:$0xff]
        %v301 = vld [vmem:[%s237 + $0x188] sm:$0xff]
        %v302 = vld [vmem:[%s237 + $0x190] sm:$0xff]
        %v303 = vld [vmem:[%s237 + $0x198] sm:$0xff]
        %v304 = vld [vmem:[%s237 + $0x1a0] sm:$0xff]
        %v305 = vld [vmem:[%s237 + $0x1a8] sm:$0xff]
        %v306 = vld [vmem:[%s237 + $0x1b0] sm:$0xff]
        %v307 = vld [vmem:[%s237 + $0x1b8] sm:$0xff]
        %v308 = vld [vmem:[%s237 + $0x1c0] sm:$0xff]
        %v309 = vld [vmem:[%s237 + $0x1c8] sm:$0xff]
        %v310 = vld [vmem:[%s237 + $0x1d0] sm:$0xff]
        %v311 = vld [vmem:[%s237 + $0x1d8] sm:$0xff]
        %v312 = vld [vmem:[%s237 + $0x1e0] sm:$0xff]
        %v313 = vld [vmem:[%s237 + $0x1e8] sm:$0xff]
        %v314 = vld [vmem:[%s237 + $0x1f0] sm:$0xff]
        %v315 = vld [vmem:[%s237 + $0x1f8] sm:$0xff]
        %v316 = vld [vmem:[%s237 + $0x200] sm:$0xff]
        %v317 = vld [vmem:[%s237 + $0x208] sm:$0xff]
        %v318 = vld [vmem:[%s237 + $0x210] sm:$0xff]
        %v319 = vld [vmem:[%s237 + $0x218] sm:$0xff]
        %v320 = vld [vmem:[%s237 + $0x220] sm:$0xff]
        %v321 = vld [vmem:[%s237 + $0x228] sm:$0xff]
        %v322 = vld [vmem:[%s237 + $0x230] sm:$0xff]
        %v323 = vld [vmem:[%s237 + $0x238] sm:$0xff]
        %v324 = vld [vmem:[%s237 + $0x240] sm:$0xff]
        %v325 = vld [vmem:[%s237 + $0x248] sm:$0xff]
        %v326 = vld [vmem:[%s237 + $0x250] sm:$0xff]
        %v327 = vld [vmem:[%s237 + $0x258] sm:$0xff]
        %v328 = vld [vmem:[%s237 + $0x260] sm:$0xff]
        %v329 = vld [vmem:[%s237 + $0x268] sm:$0xff]
        %v330 = vld [vmem:[%s237 + $0x270] sm:$0xff]
        %v331 = vld [vmem:[%s237 + $0x278] sm:$0xff]
        %v332 = vld [vmem:[%s237 + $0x280] sm:$0xff]
        %v333 = vld [vmem:[%s237 + $0x288] sm:$0xff]
        %v334 = vld [vmem:[%s237 + $0x290] sm:$0xff]
        %v335 = vld [vmem:[%s237 + $0x298] sm:$0xff]
        %v336 = vld [vmem:[%s237 + $0x2a0] sm:$0xff]
        %v337 = vld [vmem:[%s237 + $0x2a8] sm:$0xff]
        %v338 = vld [vmem:[%s237 + $0x2b0] sm:$0xff]
        %v339 = vld [vmem:[%s237 + $0x2b8] sm:$0xff]
        %v340 = vld [vmem:[%s237 + $0x2c0] sm:$0xff]
        %v341 = vld [vmem:[%s237 + $0x2c8] sm:$0xff]
        %v342 = vld [vmem:[%s237 + $0x2d0] sm:$0xff]
        %v343 = vld [vmem:[%s237 + $0x2d8] sm:$0xff]
        %v344 = vld [vmem:[%s237 + $0x2e0] sm:$0xff]
        %v345 = vld [vmem:[%s237 + $0x2e8] sm:$0xff]
        %v346 = vld [vmem:[%s237 + $0x2f0] sm:$0xff]
        %v347 = vld [vmem:[%s237 + $0x2f8] sm:$0xff]
        %v348 = vld [vmem:[%s237 + $0x300] sm:$0xff]
        %v349 = vld [vmem:[%s237 + $0x308] sm:$0xff]
        %v350 = vld [vmem:[%s237 + $0x310] sm:$0xff]
        %v351 = vld [vmem:[%s237 + $0x318] sm:$0xff]
        %v352 = vld [vmem:[%s237 + $0x320] sm:$0xff]
        %v353 = vld [vmem:[%s237 + $0x328] sm:$0xff]
        %v354 = vld [vmem:[%s237 + $0x330] sm:$0xff]
        %v355 = vld [vmem:[%s237 + $0x338] sm:$0xff]
        %v356 = vld [vmem:[%s237 + $0x340] sm:$0xff]
        %v357 = vld [vmem:[%s237 + $0x348] sm:$0xff]
        %v358 = vld [vmem:[%s237 + $0x350] sm:$0xff]
        %v359 = vld [vmem:[%s237 + $0x358] sm:$0xff]
        %v360 = vld [vmem:[%s237 + $0x360] sm:$0xff]
        %v361 = vld [vmem:[%s237 + $0x368] sm:$0xff]
        %v362 = vld [vmem:[%s237 + $0x370] sm:$0xff]
        %v363 = vld [vmem:[%s237 + $0x378] sm:$0xff]
        %v364 = vld [vmem:[%s237 + $0x380] sm:$0xff]
        %v365 = vld [vmem:[%s237 + $0x388] sm:$0xff]
        %v366 = vld [vmem:[%s237 + $0x390] sm:$0xff]
        %v367 = vld [vmem:[%s237 + $0x398] sm:$0xff]
        %v368 = vld [vmem:[%s237 + $0x3a0] sm:$0xff]
        %v369 = vld [vmem:[%s237 + $0x3a8] sm:$0xff]
        %v370 = vld [vmem:[%s237 + $0x3b0] sm:$0xff]
        %v371 = vld [vmem:[%s237 + $0x3b8] sm:$0xff]
        %v372 = vld [vmem:[%s237 + $0x3c0] sm:$0xff]
        %v373 = vld [vmem:[%s237 + $0x3c8] sm:$0xff]
        %v374 = vld [vmem:[%s237 + $0x3d0] sm:$0xff]
        %v375 = vld [vmem:[%s237 + $0x3d8] sm:$0xff]
        %v376 = vld [vmem:[%s237 + $0x3e0] sm:$0xff]
        %v377 = vld [vmem:[%s237 + $0x3e8] sm:$0xff]
        %v378 = vld [vmem:[%s237 + $0x3f0] sm:$0xff]
        %v379 = vld [vmem:[%s237 + $0x3f8] sm:$0xff]
        %v380 = vld [vmem:[%s237 + $0x400] sm:$0xff]
        %v381 = vld [vmem:[%s237 + $0x408] sm:$0xff]
        %v382 = vld [vmem:[%s237 + $0x410] sm:$0xff]
        %v383 = vld [vmem:[%s237 + $0x418] sm:$0xff]
        %v384 = vld [vmem:[%s237 + $0x420] sm:$0xff]
        %v385 = vld [vmem:[%s237 + $0x428] sm:$0xff]
        %v386 = vld [vmem:[%s237 + $0x430] sm:$0xff]
        %v387 = vld [vmem:[%s237 + $0x438] sm:$0xff]
        %v388 = vld [vmem:[%s237 + $0x440] sm:$0xff]
        %v389 = vld [vmem:[%s237 + $0x448] sm:$0xff]
        %v390 = vld [vmem:[%s237 + $0x450] sm:$0xff]
        %v391 = vld [vmem:[%s237 + $0x458] sm:$0xff]
        %v392 = vld [vmem:[%s237 + $0x460] sm:$0xff]
        %v393 = vld [vmem:[%s237 + $0x468] sm:$0xff]
        %v394 = vld [vmem:[%s237 + $0x470] sm:$0xff]
        %v395 = vld [vmem:[%s237 + $0x478] sm:$0xff]
        %v396 = vld [vmem:[%s237 + $0x480] sm:$0xff]
        %v397 = vld [vmem:[%s237 + $0x488] sm:$0xff]
        %v398 = vld [vmem:[%s237 + $0x490] sm:$0xff]
        %v399 = vld [vmem:[%s237 + $0x498] sm:$0xff]
        %v400 = vld [vmem:[%s237 + $0x4a0] sm:$0xff]
        %v401 = vld [vmem:[%s237 + $0x4a8] sm:$0xff]
        %v402 = vld [vmem:[%s237 + $0x4b0] sm:$0xff]
        %v403 = vld [vmem:[%s237 + $0x4b8] sm:$0xff]
        %v404 = vld [vmem:[%s237 + $0x4c0] sm:$0xff]
        %v405 = vld [vmem:[%s237 + $0x4c8] sm:$0xff]
        %v406 = vld [vmem:[%s237 + $0x4d0] sm:$0xff]
        %v407 = vld [vmem:[%s237 + $0x4d8] sm:$0xff]
        %v408 = vld [vmem:[%s237 + $0x4e0] sm:$0xff]
        %v409 = vld [vmem:[%s237 + $0x4e8] sm:$0xff]
        %v410 = vld [vmem:[%s237 + $0x4f0] sm:$0xff]
        %v411 = vld [vmem:[%s237 + $0x4f8] sm:$0xff]
        %v412 = vld [vmem:[%s237 + $0x500] sm:$0xff]
        %v413 = vld [vmem:[%s237 + $0x508] sm:$0xff]
        %v414 = vld [vmem:[%s237 + $0x510] sm:$0xff]
        %v415 = vld [vmem:[%s237 + $0x518] sm:$0xff]
        %v416 = vld [vmem:[%s237 + $0x520] sm:$0xff]
        %v417 = vld [vmem:[%s237 + $0x528] sm:$0xff]
        %v418 = vld [vmem:[%s237 + $0x530] sm:$0xff]
        %v419 = vld [vmem:[%s237 + $0x538] sm:$0xff]
        %v420 = vld [vmem:[%s237 + $0x540] sm:$0xff]
        %v421 = vld [vmem:[%s237 + $0x548] sm:$0xff]
        %v422 = vld [vmem:[%s237 + $0x550] sm:$0xff]
        %v423 = vld [vmem:[%s237 + $0x558] sm:$0xff]
        %v424 = vld [vmem:[%s237 + $0x560] sm:$0xff]
        %v425 = vld [vmem:[%s237 + $0x568] sm:$0xff]
        %v426 = vld [vmem:[%s237 + $0x570] sm:$0xff]
        %v427 = vld [vmem:[%s237 + $0x578] sm:$0xff]
        %v428 = vld [vmem:[%s237 + $0x580] sm:$0xff]
        %v429 = vld [vmem:[%s237 + $0x588] sm:$0xff]
        %v430 = vld [vmem:[%s237 + $0x590] sm:$0xff]
        %v431 = vld [vmem:[%s237 + $0x598] sm:$0xff]
        %v432 = vld [vmem:[%s237 + $0x5a0] sm:$0xff]
        %v433 = vld [vmem:[%s237 + $0x5a8] sm:$0xff]
        %v434 = vld [vmem:[%s237 + $0x5b0] sm:$0xff]
        %v435 = vld [vmem:[%s237 + $0x5b8] sm:$0xff]
        %v436 = vld [vmem:[%s237 + $0x5c0] sm:$0xff]
        %v437 = vld [vmem:[%s237 + $0x5c8] sm:$0xff]
        %v438 = vld [vmem:[%s237 + $0x5d0] sm:$0xff]
        %v439 = vld [vmem:[%s237 + $0x5d8] sm:$0xff]
        %v440 = vld [vmem:[%s237 + $0x5e0] sm:$0xff]
        %v441 = vld [vmem:[%s237 + $0x5e8] sm:$0xff]
        %v442 = vld [vmem:[%s237 + $0x5f0] sm:$0xff]
        %v443 = vld [vmem:[%s237 + $0x5f8] sm:$0xff]
        %v444 = vld [vmem:[%s237 + $0x600] sm:$0xff]
        %v445 = vld [vmem:[%s237 + $0x608] sm:$0xff]
        %v446 = vld [vmem:[%s237 + $0x610] sm:$0xff]
        %v447 = vld [vmem:[%s237 + $0x618] sm:$0xff]
        %v448 = vld [vmem:[%s237 + $0x620] sm:$0xff]
        %v449 = vld [vmem:[%s237 + $0x628] sm:$0xff]
        %v450 = vld [vmem:[%s237 + $0x630] sm:$0xff]
        %v451 = vld [vmem:[%s237 + $0x638] sm:$0xff]
        %v452 = vld [vmem:[%s237 + $0x640] sm:$0xff]
        %v453 = vld [vmem:[%s237 + $0x648] sm:$0xff]
        %v454 = vld [vmem:[%s237 + $0x650] sm:$0xff]
        %v455 = vld [vmem:[%s237 + $0x658] sm:$0xff]
        %v456 = vld [vmem:[%s237 + $0x660] sm:$0xff]
        %v457 = vld [vmem:[%s237 + $0x668] sm:$0xff]
        %v458 = vld [vmem:[%s237 + $0x670] sm:$0xff]
        %v459 = vld [vmem:[%s237 + $0x678] sm:$0xff]
        %v460 = vld [vmem:[%s237 + $0x680] sm:$0xff]
        %v461 = vld [vmem:[%s237 + $0x688] sm:$0xff]
        %v462 = vld [vmem:[%s237 + $0x690] sm:$0xff]
        %v463 = vld [vmem:[%s237 + $0x698] sm:$0xff]
        %v464 = vld [vmem:[%s237 + $0x6a0] sm:$0xff]
        %v465 = vld [vmem:[%s237 + $0x6a8] sm:$0xff]
        %v466 = vld [vmem:[%s237 + $0x6b0] sm:$0xff]
        %v467 = vld [vmem:[%s237 + $0x6b8] sm:$0xff]
        %v468 = vld [vmem:[%s237 + $0x6c0] sm:$0xff]
        %v469 = vld [vmem:[%s237 + $0x6c8] sm:$0xff]
        %v470 = vld [vmem:[%s237 + $0x6d0] sm:$0xff]
        %v471 = vld [vmem:[%s237 + $0x6d8] sm:$0xff]
        %v472 = vld [vmem:[%s237 + $0x6e0] sm:$0xff]
        %v473 = vld [vmem:[%s237 + $0x6e8] sm:$0xff]
        %v474 = vld [vmem:[%s237 + $0x6f0] sm:$0xff]
        %v475 = vld [vmem:[%s237 + $0x6f8] sm:$0xff]
        %v476 = vld [vmem:[%s237 + $0x700] sm:$0xff]
        %v477 = vld [vmem:[%s237 + $0x708] sm:$0xff]
        %v478 = vld [vmem:[%s237 + $0x710] sm:$0xff]
        %v479 = vld [vmem:[%s237 + $0x718] sm:$0xff]
        %v480 = vld [vmem:[%s237 + $0x720] sm:$0xff]
        %v481 = vld [vmem:[%s237 + $0x728] sm:$0xff]
        %v482 = vld [vmem:[%s237 + $0x730] sm:$0xff]
        %v483 = vld [vmem:[%s237 + $0x738] sm:$0xff]
        %v484 = vld [vmem:[%s237 + $0x740] sm:$0xff]
        %v485 = vld [vmem:[%s237 + $0x748] sm:$0xff]
        %v486 = vld [vmem:[%s237 + $0x750] sm:$0xff]
        %v487 = vld [vmem:[%s237 + $0x758] sm:$0xff]
        %v488 = vld [vmem:[%s237 + $0x760] sm:$0xff]
        %v489 = vld [vmem:[%s237 + $0x768] sm:$0xff]
        %v490 = vld [vmem:[%s237 + $0x770] sm:$0xff]
        %v491 = vld [vmem:[%s237 + $0x778] sm:$0xff]
        %v492 = vld [vmem:[%s237 + $0x780] sm:$0xff]
        %v493 = vld [vmem:[%s237 + $0x788] sm:$0xff]
        %v494 = vld [vmem:[%s237 + $0x790] sm:$0xff]
        %v495 = vld [vmem:[%s237 + $0x798] sm:$0xff]
        %v496 = vld [vmem:[%s237 + $0x7a0] sm:$0xff]
        %v497 = vld [vmem:[%s237 + $0x7a8] sm:$0xff]
        %v498 = vld [vmem:[%s237 + $0x7b0] sm:$0xff]
        %v499 = vld [vmem:[%s237 + $0x7b8] sm:$0xff]
        %v500 = vld [vmem:[%s237 + $0x7c0] sm:$0xff]
        %v501 = vld [vmem:[%s237 + $0x7c8] sm:$0xff]
        %v502 = vld [vmem:[%s237 + $0x7d0] sm:$0xff]
        %v503 = vld [vmem:[%s237 + $0x7d8] sm:$0xff]
        %v504 = vld [vmem:[%s237 + $0x7e0] sm:$0xff]
        %v505 = vld [vmem:[%s237 + $0x7e8] sm:$0xff]
        %v506 = vld [vmem:[%s237 + $0x7f0] sm:$0xff]
        %v507 = vld [vmem:[%s237 + $0x7f8] sm:$0xff]
        %v508 = vld [vmem:[%s237 + $0x800] sm:$0xff]
        %v509 = vld [vmem:[%s237 + $0x808] sm:$0xff]
        %v510 = vld [vmem:[%s237 + $0x810] sm:$0xff]
        %v511 = vld [vmem:[%s237 + $0x818] sm:$0xff]
        %v512 = vld [vmem:[%s237 + $0x820] sm:$0xff]
        %v513 = vld [vmem:[%s237 + $0x828] sm:$0xff]
        %v514 = vld [vmem:[%s237 + $0x830] sm:$0xff]
        %v515 = vld [vmem:[%s237 + $0x838] sm:$0xff]
        %v516 = vld [vmem:[%s237 + $0x840] sm:$0xff]
        %v517 = vld [vmem:[%s237 + $0x848] sm:$0xff]
        %v518 = vld [vmem:[%s237 + $0x850] sm:$0xff]
        %v519 = vld [vmem:[%s237 + $0x858] sm:$0xff]
        %v520 = vld [vmem:[%s237 + $0x860] sm:$0xff]
        %v521 = vld [vmem:[%s237 + $0x868] sm:$0xff]
        %v522 = vld [vmem:[%s237 + $0x870] sm:$0xff]
        %v523 = vld [vmem:[%s237 + $0x878] sm:$0xff]
        %v524 = vld [vmem:[%s237 + $0x880] sm:$0xff]
        %v525 = vld [vmem:[%s237 + $0x888] sm:$0xff]
        %v526 = vld [vmem:[%s237 + $0x890] sm:$0xff]
        %v527 = vld [vmem:[%s237 + $0x898] sm:$0xff]
        %v528 = vld [vmem:[%s237 + $0x8a0] sm:$0xff]
        %v529 = vld [vmem:[%s237 + $0x8a8] sm:$0xff]
        %v530 = vld [vmem:[%s237 + $0x8b0] sm:$0xff]
        %v531 = vld [vmem:[%s237 + $0x8b8] sm:$0xff]
        %v532 = vld [vmem:[%s237 + $0x8c0] sm:$0xff]
        %v533 = vld [vmem:[%s237 + $0x8c8] sm:$0xff]
        %v534 = vld [vmem:[%s237 + $0x8d0] sm:$0xff]
        %v535 = vld [vmem:[%s237 + $0x8d8] sm:$0xff]
        %v536 = vld [vmem:[%s237 + $0x8e0] sm:$0xff]
        %v537 = vld [vmem:[%s237 + $0x8e8] sm:$0xff]
        %v538 = vld [vmem:[%s237 + $0x8f0] sm:$0xff]
        %v539 = vld [vmem:[%s237 + $0x8f8] sm:$0xff]
        %v540 = vld [vmem:[%s237 + $0x900] sm:$0xff]
        %v541 = vld [vmem:[%s237 + $0x908] sm:$0xff]
        %v542 = vld [vmem:[%s237 + $0x910] sm:$0xff]
        %v543 = vld [vmem:[%s237 + $0x918] sm:$0xff]
        %v544 = vld [vmem:[%s237 + $0x920] sm:$0xff]
        %v545 = vld [vmem:[%s237 + $0x928] sm:$0xff]
        %v546 = vld [vmem:[%s237 + $0x930] sm:$0xff]
        %v547 = vld [vmem:[%s237 + $0x938] sm:$0xff]
        %v548 = vld [vmem:[%s237 + $0x940] sm:$0xff]
        %v549 = vld [vmem:[%s237 + $0x948] sm:$0xff]
        %v550 = vld [vmem:[%s237 + $0x950] sm:$0xff]
        %v551 = vld [vmem:[%s237 + $0x958] sm:$0xff]
        %v552 = vld [vmem:[%s237 + $0x960] sm:$0xff]
        %v553 = vld [vmem:[%s237 + $0x968] sm:$0xff]
        %v554 = vld [vmem:[%s237 + $0x970] sm:$0xff]
        %v555 = vld [vmem:[%s237 + $0x978] sm:$0xff]
        %v556 = vld [vmem:[%s237 + $0x980] sm:$0xff]
        %v557 = vld [vmem:[%s237 + $0x988] sm:$0xff]
        %v558 = vld [vmem:[%s237 + $0x990] sm:$0xff]
        %v559 = vld [vmem:[%s237 + $0x998] sm:$0xff]
        %v560 = vld [vmem:[%s237 + $0x9a0] sm:$0xff]
        %v561 = vld [vmem:[%s237 + $0x9a8] sm:$0xff]
        %v562 = vld [vmem:[%s237 + $0x9b0] sm:$0xff]
        %v563 = vld [vmem:[%s237 + $0x9b8] sm:$0xff]
        %v564 = vld [vmem:[%s237 + $0x9c0] sm:$0xff]
        %v565 = vld [vmem:[%s237 + $0x9c8] sm:$0xff]
        %v566 = vld [vmem:[%s237 + $0x9d0] sm:$0xff]
        %v567 = vld [vmem:[%s237 + $0x9d8] sm:$0xff]
        %v568 = vld [vmem:[%s237 + $0x9e0] sm:$0xff]
        %v569 = vld [vmem:[%s237 + $0x9e8] sm:$0xff]
        %v570 = vld [vmem:[%s237 + $0x9f0] sm:$0xff]
        %v571 = vld [vmem:[%s237 + $0x9f8] sm:$0xff]
        %v572 = vld [vmem:[%s237 + $0xa00] sm:$0xff]
        %v573 = vld [vmem:[%s237 + $0xa08] sm:$0xff]
        %v574 = vld [vmem:[%s237 + $0xa10] sm:$0xff]
        %v575 = vld [vmem:[%s237 + $0xa18] sm:$0xff]
        %v576 = vld [vmem:[%s237 + $0xa20] sm:$0xff]
        %v577 = vld [vmem:[%s237 + $0xa28] sm:$0xff]
        %v578 = vld [vmem:[%s237 + $0xa30] sm:$0xff]
        %v579 = vld [vmem:[%s237 + $0xa38] sm:$0xff]
        %v580 = vld [vmem:[%s237 + $0xa40] sm:$0xff]
        %v581 = vld [vmem:[%s237 + $0xa48] sm:$0xff]
        %v582 = vld [vmem:[%s237 + $0xa50] sm:$0xff]
        %v583 = vld [vmem:[%s237 + $0xa58] sm:$0xff]
        %v584 = vld [vmem:[%s237 + $0xa60] sm:$0xff]
        %v585 = vld [vmem:[%s237 + $0xa68] sm:$0xff]
        %v586 = vld [vmem:[%s237 + $0xa70] sm:$0xff]
        %v587 = vld [vmem:[%s237 + $0xa78] sm:$0xff]
        %v588 = vld [vmem:[%s237 + $0xa80] sm:$0xff]
        %v589 = vld [vmem:[%s237 + $0xa88] sm:$0xff]
        %v590 = vld [vmem:[%s237 + $0xa90] sm:$0xff]
        %v591 = vld [vmem:[%s237 + $0xa98] sm:$0xff]
        %v592 = vld [vmem:[%s237 + $0xaa0] sm:$0xff]
        %v593 = vld [vmem:[%s237 + $0xaa8] sm:$0xff]
        %v594 = vld [vmem:[%s237 + $0xab0] sm:$0xff]
        %v595 = vld [vmem:[%s237 + $0xab8] sm:$0xff]
        %v596 = vld [vmem:[%s237 + $0xac0] sm:$0xff]
        %v597 = vld [vmem:[%s237 + $0xac8] sm:$0xff]
        %v598 = vld [vmem:[%s237 + $0xad0] sm:$0xff]
        %v599 = vld [vmem:[%s237 + $0xad8] sm:$0xff]
        %v600 = vld [vmem:[%s237 + $0xae0] sm:$0xff]
        %v601 = vld [vmem:[%s237 + $0xae8] sm:$0xff]
        %v602 = vld [vmem:[%s237 + $0xaf0] sm:$0xff]
        %v603 = vld [vmem:[%s237 + $0xaf8] sm:$0xff]
        %v604 = vld [vmem:[%s237 + $0xb00] sm:$0xff]
        %v605 = vld [vmem:[%s237 + $0xb08] sm:$0xff]
        %v606 = vld [vmem:[%s237 + $0xb10] sm:$0xff]
        %v607 = vld [vmem:[%s237 + $0xb18] sm:$0xff]
        %v608 = vld [vmem:[%s237 + $0xb20] sm:$0xff]
        %v609 = vld [vmem:[%s237 + $0xb28] sm:$0xff]
        %v610 = vld [vmem:[%s237 + $0xb30] sm:$0xff]
        %v611 = vld [vmem:[%s237 + $0xb38] sm:$0xff]
        %v612 = vld [vmem:[%s237 + $0xb40] sm:$0xff]
        %v613 = vld [vmem:[%s237 + $0xb48] sm:$0xff]
        %v614 = vld [vmem:[%s237 + $0xb50] sm:$0xff]
        %v615 = vld [vmem:[%s237 + $0xb58] sm:$0xff]
        %v616 = vld [vmem:[%s237 + $0xb60] sm:$0xff]
        %v617 = vld [vmem:[%s237 + $0xb68] sm:$0xff]
        %v618 = vld [vmem:[%s237 + $0xb70] sm:$0xff]
        %v619 = vld [vmem:[%s237 + $0xb78] sm:$0xff]
        %v620 = vld [vmem:[%s237 + $0xb80] sm:$0xff]
        %v621 = vld [vmem:[%s237 + $0xb88] sm:$0xff]
        %v622 = vld [vmem:[%s237 + $0xb90] sm:$0xff]
        %v623 = vld [vmem:[%s237 + $0xb98] sm:$0xff]
        %v624 = vld [vmem:[%s237 + $0xba0] sm:$0xff]
        %v625 = vld [vmem:[%s237 + $0xba8] sm:$0xff]
        %v626 = vld [vmem:[%s237 + $0xbb0] sm:$0xff]
        %v627 = vld [vmem:[%s237 + $0xbb8] sm:$0xff]
        %v628 = vld [vmem:[%s237 + $0xbc0] sm:$0xff]
        %v629 = vld [vmem:[%s237 + $0xbc8] sm:$0xff]
        %v630 = vld [vmem:[%s237 + $0xbd0] sm:$0xff]
        %v631 = vld [vmem:[%s237 + $0xbd8] sm:$0xff]
        %v632 = vld [vmem:[%s237 + $0xbe0] sm:$0xff]
        %v633 = vld [vmem:[%s237 + $0xbe8] sm:$0xff]
        %v634 = vld [vmem:[%s237 + $0xbf0] sm:$0xff]
        %v635 = vld [vmem:[%s237 + $0xbf8] sm:$0xff]
        %v636 = vld [vmem:[%s237 + $0xc00] sm:$0xff]
        %v637 = vld [vmem:[%s237 + $0xc08] sm:$0xff]
        %v638 = vld [vmem:[%s237 + $0xc10] sm:$0xff]
        %v639 = vld [vmem:[%s237 + $0xc18] sm:$0xff]
        %v640 = vld [vmem:[%s237 + $0xc20] sm:$0xff]
        %v641 = vld [vmem:[%s237 + $0xc28] sm:$0xff]
        %v642 = vld [vmem:[%s237 + $0xc30] sm:$0xff]
        %v643 = vld [vmem:[%s237 + $0xc38] sm:$0xff]
        %v644 = vld [vmem:[%s237 + $0xc40] sm:$0xff]
        %v645 = vld [vmem:[%s237 + $0xc48] sm:$0xff]
        %v646 = vld [vmem:[%s237 + $0xc50] sm:$0xff]
        %v647 = vld [vmem:[%s237 + $0xc58] sm:$0xff]
        %v648 = vld [vmem:[%s237 + $0xc60] sm:$0xff]
        %v649 = vld [vmem:[%s237 + $0xc68] sm:$0xff]
        %v650 = vld [vmem:[%s237 + $0xc70] sm:$0xff]
        %v651 = vld [vmem:[%s237 + $0xc78] sm:$0xff]
        %v652 = vld [vmem:[%s237 + $0xc80] sm:$0xff]
        %v653 = vld [vmem:[%s237 + $0xc88] sm:$0xff]
        %v654 = vld [vmem:[%s237 + $0xc90] sm:$0xff]
        %v655 = vld [vmem:[%s237 + $0xc98] sm:$0xff]
        %v656 = vld [vmem:[%s237 + $0xca0] sm:$0xff]
        %v657 = vld [vmem:[%s237 + $0xca8] sm:$0xff]
        %v658 = vld [vmem:[%s237 + $0xcb0] sm:$0xff]
        %v659 = vld [vmem:[%s237 + $0xcb8] sm:$0xff]
        %v660 = vld [vmem:[%s237 + $0xcc0] sm:$0xff]
        %v661 = vld [vmem:[%s237 + $0xcc8] sm:$0xff]
        %v662 = vld [vmem:[%s237 + $0xcd0] sm:$0xff]
        %v663 = vld [vmem:[%s237 + $0xcd8] sm:$0xff]
        %v664 = vld [vmem:[%s237 + $0xce0] sm:$0xff]
        %v665 = vld [vmem:[%s237 + $0xce8] sm:$0xff]
        %v666 = vld [vmem:[%s237 + $0xcf0] sm:$0xff]
        %v667 = vld [vmem:[%s237 + $0xcf8] sm:$0xff]
        %v668 = vld [vmem:[%s237 + $0xd00] sm:$0xff]
        %v669 = vld [vmem:[%s237 + $0xd08] sm:$0xff]
        %v670 = vld [vmem:[%s237 + $0xd10] sm:$0xff]
        %v671 = vld [vmem:[%s237 + $0xd18] sm:$0xff]
        %v672 = vld [vmem:[%s237 + $0xd20] sm:$0xff]
        %v673 = vld [vmem:[%s237 + $0xd28] sm:$0xff]
        %v674 = vld [vmem:[%s237 + $0xd30] sm:$0xff]
        %v675 = vld [vmem:[%s237 + $0xd38] sm:$0xff]
        %v676 = vld [vmem:[%s237 + $0xd40] sm:$0xff]
        %v677 = vld [vmem:[%s237 + $0xd48] sm:$0xff]
        %v678 = vld [vmem:[%s237 + $0xd50] sm:$0xff]
        %v679 = vld [vmem:[%s237 + $0xd58] sm:$0xff]
        %v680 = vld [vmem:[%s237 + $0xd60] sm:$0xff]
        %v681 = vld [vmem:[%s237 + $0xd68] sm:$0xff]
        %v682 = vld [vmem:[%s237 + $0xd70] sm:$0xff]
        %v683 = vld [vmem:[%s237 + $0xd78] sm:$0xff]
        %v684 = vld [vmem:[%s237 + $0xd80] sm:$0xff]
        %v685 = vld [vmem:[%s237 + $0xd88] sm:$0xff]
        %v686 = vld [vmem:[%s237 + $0xd90] sm:$0xff]
        %v687 = vld [vmem:[%s237 + $0xd98] sm:$0xff]
        %v688 = vld [vmem:[%s237 + $0xda0] sm:$0xff]
        %v689 = vld [vmem:[%s237 + $0xda8] sm:$0xff]
        %v690 = vld [vmem:[%s237 + $0xdb0] sm:$0xff]
        %v691 = vld [vmem:[%s237 + $0xdb8] sm:$0xff]
        %v692 = vld [vmem:[%s237 + $0xdc0] sm:$0xff]
        %v693 = vld [vmem:[%s237 + $0xdc8] sm:$0xff]
        %v694 = vld [vmem:[%s237 + $0xdd0] sm:$0xff]
        %v695 = vld [vmem:[%s237 + $0xdd8] sm:$0xff]
        %v696 = vld [vmem:[%s237 + $0xde0] sm:$0xff]
        %v697 = vld [vmem:[%s237 + $0xde8] sm:$0xff]
        %v698 = vld [vmem:[%s237 + $0xdf0] sm:$0xff]
        %v699 = vld [vmem:[%s237 + $0xdf8] sm:$0xff]
        %v700 = vld [vmem:[%s237 + $0xe00] sm:$0xff]
        %v701 = vld [vmem:[%s237 + $0xe08] sm:$0xff]
        %v702 = vld [vmem:[%s237 + $0xe10] sm:$0xff]
        %v703 = vld [vmem:[%s237 + $0xe18] sm:$0xff]
        %v704 = vld [vmem:[%s237 + $0xe20] sm:$0xff]
        %v705 = vld [vmem:[%s237 + $0xe28] sm:$0xff]
        %v706 = vld [vmem:[%s237 + $0xe30] sm:$0xff]
        %v707 = vld [vmem:[%s237 + $0xe38] sm:$0xff]
        %v708 = vld [vmem:[%s237 + $0xe40] sm:$0xff]
        %v709 = vld [vmem:[%s237 + $0xe48] sm:$0xff]
        %v710 = vld [vmem:[%s237 + $0xe50] sm:$0xff]
        %v711 = vld [vmem:[%s237 + $0xe58] sm:$0xff]
        %v712 = vld [vmem:[%s237 + $0xe60] sm:$0xff]
        %v713 = vld [vmem:[%s237 + $0xe68] sm:$0xff]
        %v714 = vld [vmem:[%s237 + $0xe70] sm:$0xff]
        %v715 = vld [vmem:[%s237 + $0xe78] sm:$0xff]
        %v716 = vld [vmem:[%s237 + $0xe80] sm:$0xff]
        %v717 = vld [vmem:[%s237 + $0xe88] sm:$0xff]
        %v718 = vld [vmem:[%s237 + $0xe90] sm:$0xff]
        %v719 = vld [vmem:[%s237 + $0xe98] sm:$0xff]
        %v720 = vld [vmem:[%s237 + $0xea0] sm:$0xff]
        %v721 = vld [vmem:[%s237 + $0xea8] sm:$0xff]
        %v722 = vld [vmem:[%s237 + $0xeb0] sm:$0xff]
        %v723 = vld [vmem:[%s237 + $0xeb8] sm:$0xff]
        %v724 = vld [vmem:[%s237 + $0xec0] sm:$0xff]
        %v725 = vld [vmem:[%s237 + $0xec8] sm:$0xff]
        %v726 = vld [vmem:[%s237 + $0xed0] sm:$0xff]
        %v727 = vld [vmem:[%s237 + $0xed8] sm:$0xff]
        %v728 = vld [vmem:[%s237 + $0xee0] sm:$0xff]
        %v729 = vld [vmem:[%s237 + $0xee8] sm:$0xff]
        %v730 = vld [vmem:[%s237 + $0xef0] sm:$0xff]
        %v731 = vld [vmem:[%s237 + $0xef8] sm:$0xff]
        %v732 = vld [vmem:[%s237 + $0xf00] sm:$0xff]
        %v733 = vld [vmem:[%s237 + $0xf08] sm:$0xff]
        %v734 = vld [vmem:[%s237 + $0xf10] sm:$0xff]
        %v735 = vld [vmem:[%s237 + $0xf18] sm:$0xff]
        %v736 = vld [vmem:[%s237 + $0xf20] sm:$0xff]
        %v737 = vld [vmem:[%s237 + $0xf28] sm:$0xff]
        %v738 = vld [vmem:[%s237 + $0xf30] sm:$0xff]
        %v739 = vld [vmem:[%s237 + $0xf38] sm:$0xff]
        %v740 = vld [vmem:[%s237 + $0xf40] sm:$0xff]
        %v741 = vld [vmem:[%s237 + $0xf48] sm:$0xff]
        %v742 = vld [vmem:[%s237 + $0xf50] sm:$0xff]
        %v743 = vld [vmem:[%s237 + $0xf58] sm:$0xff]
        %v744 = vld [vmem:[%s237 + $0xf60] sm:$0xff]
        %v745 = vld [vmem:[%s237 + $0xf68] sm:$0xff]
        %v746 = vld [vmem:[%s237 + $0xf70] sm:$0xff]
        %v747 = vld [vmem:[%s237 + $0xf78] sm:$0xff]
        %v748 = vld [vmem:[%s237 + $0xf80] sm:$0xff]
        %v749 = vld [vmem:[%s237 + $0xf88] sm:$0xff]
        %v750 = vld [vmem:[%s237 + $0xf90] sm:$0xff]
        %v751 = vld [vmem:[%s237 + $0xf98] sm:$0xff]
        %v752 = vld [vmem:[%s237 + $0xfa0] sm:$0xff]
        %v753 = vld [vmem:[%s237 + $0xfa8] sm:$0xff]
        %v754 = vld [vmem:[%s237 + $0xfb0] sm:$0xff]
        %v755 = vld [vmem:[%s237 + $0xfb8] sm:$0xff]
        %v756 = vld [vmem:[%s237 + $0xfc0] sm:$0xff]
        %v757 = vld [vmem:[%s237 + $0xfc8] sm:$0xff]
        %v758 = vld [vmem:[%s237 + $0xfd0] sm:$0xff]
        %v759 = vld [vmem:[%s237 + $0xfd8] sm:$0xff]
        %v760 = vld [vmem:[%s237 + $0xfe0] sm:$0xff]
        %v761 = vld [vmem:[%s237 + $0xfe8] sm:$0xff]
        %v762 = vld [vmem:[%s237 + $0xff0] sm:$0xff]
        %v763 = vld [vmem:[%s237 + $0xff8] sm:$0xff]
        %v772 = vcombine.high %v244, %v244
        %v774 = vunpack.c.l.s4 1983009808
        %v775 = vunpack.c.0.s8 %v774
        %v776 = vlaneseq
        %v777 = vshrl.u32 %v776, 7
        %v778 = vsub.s32 %v775, %v777
        %v779 = vrot.slane %v244, %v778
        %v781 = vunpack.c.l.s4 1983009808
        %v782 = vunpack.c.0.s8 %v781
        %v783 = vlaneseq
        %v784 = vshrl.u32 %v783, 7
        %v785 = vsub.s32 %v782, %v784
        %v786 = vrot.slane %v772, %v785
        %v787 = vcombine.high %v779, %v779
        %v788 = vcombine.high %v786, %v786
        %v789 = vcombine.high %v245, %v245
        %v791 = vunpack.c.l.s4 1983009808
        %v792 = vunpack.c.0.s8 %v791
        %v793 = vlaneseq
        %v794 = vshrl.u32 %v793, 7
        %v795 = vsub.s32 %v792, %v794
        %v796 = vrot.slane %v245, %v795
        %v798 = vunpack.c.l.s4 1983009808
        %v799 = vunpack.c.0.s8 %v798
        %v800 = vlaneseq
        %v801 = vshrl.u32 %v800, 7
        %v802 = vsub.s32 %v799, %v801
        %v803 = vrot.slane %v789, %v802
        %v804 = vcombine.high %v796, %v796
        %v805 = vcombine.high %v803, %v803
        %v806 = vcombine.high %v246, %v246
        %v808 = vunpack.c.l.s4 1983009808
        %v809 = vunpack.c.0.s8 %v808
        %v810 = vlaneseq
        %v811 = vshrl.u32 %v810, 7
        %v812 = vsub.s32 %v809, %v811
        %v813 = vrot.slane %v246, %v812
        %v815 = vunpack.c.l.s4 1983009808
        %v816 = vunpack.c.0.s8 %v815
        %v817 = vlaneseq
        %v818 = vshrl.u32 %v817, 7
        %v819 = vsub.s32 %v816, %v818
        %v820 = vrot.slane %v806, %v819
        %v821 = vcombine.high %v813, %v813
        %v822 = vcombine.high %v820, %v820
        %v823 = vcombine.high %v247, %v247
        %v825 = vunpack.c.l.s4 1983009808
        %v826 = vunpack.c.0.s8 %v825
        %v827 = vlaneseq
        %v828 = vshrl.u32 %v827, 7
        %v829 = vsub.s32 %v826, %v828
        %v830 = vrot.slane %v247, %v829
        %v832 = vunpack.c.l.s4 1983009808
        %v833 = vunpack.c.0.s8 %v832
        %v834 = vlaneseq
        %v835 = vshrl.u32 %v834, 7
        %v836 = vsub.s32 %v833, %v835
        %v837 = vrot.slane %v823, %v836
        %v838 = vcombine.high %v830, %v830
        %v839 = vcombine.high %v837, %v837
        %v840 = vcombine.high %v248, %v248
        %v842 = vunpack.c.l.s4 1983009808
        %v843 = vunpack.c.0.s8 %v842
        %v844 = vlaneseq
        %v845 = vshrl.u32 %v844, 7
        %v846 = vsub.s32 %v843, %v845
        %v847 = vrot.slane %v248, %v846
        %v849 = vunpack.c.l.s4 1983009808
        %v850 = vunpack.c.0.s8 %v849
        %v851 = vlaneseq
        %v852 = vshrl.u32 %v851, 7
        %v853 = vsub.s32 %v850, %v852
        %v854 = vrot.slane %v840, %v853
        %v855 = vcombine.high %v847, %v847
        %v856 = vcombine.high %v854, %v854
        %v857 = vcombine.high %v249, %v249
        %v859 = vunpack.c.l.s4 1983009808
        %v860 = vunpack.c.0.s8 %v859
        %v861 = vlaneseq
        %v862 = vshrl.u32 %v861, 7
        %v863 = vsub.s32 %v860, %v862
        %v864 = vrot.slane %v249, %v863
        %v866 = vunpack.c.l.s4 1983009808
        %v867 = vunpack.c.0.s8 %v866
        %v868 = vlaneseq
        %v869 = vshrl.u32 %v868, 7
        %v870 = vsub.s32 %v867, %v869
        %v871 = vrot.slane %v857, %v870
        %v872 = vcombine.high %v864, %v864
        %v873 = vcombine.high %v871, %v871
        %v874 = vcombine.high %v250, %v250
        %v876 = vunpack.c.l.s4 1983009808
        %v877 = vunpack.c.0.s8 %v876
        %v878 = vlaneseq
        %v879 = vshrl.u32 %v878, 7
        %v880 = vsub.s32 %v877, %v879
        %v881 = vrot.slane %v250, %v880
        %v883 = vunpack.c.l.s4 1983009808
        %v884 = vunpack.c.0.s8 %v883
        %v885 = vlaneseq
        %v886 = vshrl.u32 %v885, 7
        %v887 = vsub.s32 %v884, %v886
        %v888 = vrot.slane %v874, %v887
        %v889 = vcombine.high %v881, %v881
        %v890 = vcombine.high %v888, %v888
        %v891 = vcombine.high %v251, %v251
        %v893 = vunpack.c.l.s4 1983009808
        %v894 = vunpack.c.0.s8 %v893
        %v895 = vlaneseq
        %v896 = vshrl.u32 %v895, 7
        %v897 = vsub.s32 %v894, %v896
        %v898 = vrot.slane %v251, %v897
        %v900 = vunpack.c.l.s4 1983009808
        %v901 = vunpack.c.0.s8 %v900
        %v902 = vlaneseq
        %v903 = vshrl.u32 %v902, 7
        %v904 = vsub.s32 %v901, %v903
        %v905 = vrot.slane %v891, %v904
        %v906 = vcombine.high %v898, %v898
        %v907 = vcombine.high %v905, %v905
        %940 = vmatprep.subr.mxu0 0.0
        %941 = vmatpush1.msra.mxu0 %v252
        %942 = vmatprep.subr.mxu0 0.0
        %943 = vmatpush1.msra.mxu0 %v253
        %944 = vmatprep.subr.mxu0 0.0
        %945 = vmatpush1.msra.mxu0 %v254
        %946 = vmatprep.subr.mxu0 0.0
        %947 = vmatpush1.msra.mxu0 %v255
        %948 = vmatprep.subr.mxu0 0.0
        %949 = vmatpush1.msra.mxu0 %v256
        %950 = vmatprep.subr.mxu0 0.0
        %951 = vmatpush1.msra.mxu0 %v257
        %952 = vmatprep.subr.mxu0 0.0
        %953 = vmatpush1.msra.mxu0 %v258
        %954 = vmatprep.subr.mxu0 0.0
        %955 = vmatpush1.msra.mxu0 %v259
        %956 = vmatprep.subr.mxu0 0.0
        %957 = vmatpush1.msra.mxu0 %v260
        %958 = vmatprep.subr.mxu0 0.0
        %959 = vmatpush1.msra.mxu0 %v261
        %960 = vmatprep.subr.mxu0 0.0
        %961 = vmatpush1.msra.mxu0 %v262
        %962 = vmatprep.subr.mxu0 0.0
        %963 = vmatpush1.msra.mxu0 %v263
        %964 = vmatprep.subr.mxu0 0.0
        %965 = vmatpush1.msra.mxu0 %v264
        %966 = vmatprep.subr.mxu0 0.0
        %967 = vmatpush1.msra.mxu0 %v265
        %968 = vmatprep.subr.mxu0 0.0
        %969 = vmatpush1.msra.mxu0 %v266
        %970 = vmatprep.subr.mxu0 0.0
        %971 = vmatpush1.msra.mxu0 %v267
        %972 = vmatprep.subr.mxu0 0.0
        %973 = vmatpush1.msra.mxu0 %v268
        %974 = vmatprep.subr.mxu0 0.0
        %975 = vmatpush1.msra.mxu0 %v269
        %976 = vmatprep.subr.mxu0 0.0
        %977 = vmatpush1.msra.mxu0 %v270
        %978 = vmatprep.subr.mxu0 0.0
        %979 = vmatpush1.msra.mxu0 %v271
        %980 = vmatprep.subr.mxu0 0.0
        %981 = vmatpush1.msra.mxu0 %v272
        %982 = vmatprep.subr.mxu0 0.0
        %983 = vmatpush1.msra.mxu0 %v273
        %984 = vmatprep.subr.mxu0 0.0
        %985 = vmatpush1.msra.mxu0 %v274
        %986 = vmatprep.subr.mxu0 0.0
        %987 = vmatpush1.msra.mxu0 %v275
        %988 = vmatprep.subr.mxu0 0.0
        %989 = vmatpush1.msra.mxu0 %v276
        %990 = vmatprep.subr.mxu0 0.0
        %991 = vmatpush1.msra.mxu0 %v277
        %992 = vmatprep.subr.mxu0 0.0
        %993 = vmatpush1.msra.mxu0 %v278
        %994 = vmatprep.subr.mxu0 0.0
        %995 = vmatpush1.msra.mxu0 %v279
        %996 = vmatprep.subr.mxu0 0.0
        %997 = vmatpush1.msra.mxu0 %v280
        %998 = vmatprep.subr.mxu0 0.0
        %999 = vmatpush1.msra.mxu0 %v281
        %1000 = vmatprep.subr.mxu0 0.0
        %1001 = vmatpush1.msra.mxu0 %v282
        %1002 = vmatprep.subr.mxu0 0.0
        %1003 = vmatpush1.msra.mxu0 %v283
        %1004 = vmatprep.mubr.f32.mxu0 %v787
        %1005 = vmatmul.mubr.f32.gmra.mrb[0].mxu0 %v779
        %v1006 = vpop.f32.mrb[0].mxu0
        %v1007 = vadd.f32 0.0, %v1006
        %v1008 = vpop.f32.mrb[0].mxu0
        %1009 = vdwg.mxu0
        %1010 = vmatprep.subr.mxu0 0.0
        %1011 = vmatpush1.msra.mxu0 %v284
        %1012 = vmatprep.subr.mxu0 0.0
        %1013 = vmatpush1.msra.mxu0 %v285
        %1014 = vmatprep.subr.mxu0 0.0
        %1015 = vmatpush1.msra.mxu0 %v286
        %1016 = vmatprep.subr.mxu0 0.0
        %1017 = vmatpush1.msra.mxu0 %v287
        %1018 = vmatprep.subr.mxu0 0.0
        %1019 = vmatpush1.msra.mxu0 %v288
        %1020 = vmatprep.subr.mxu0 0.0
        %1021 = vmatpush1.msra.mxu0 %v289
        %1022 = vmatprep.subr.mxu0 0.0
        %1023 = vmatpush1.msra.mxu0 %v290
        %1024 = vmatprep.subr.mxu0 0.0
        %1025 = vmatpush1.msra.mxu0 %v291
        %1026 = vmatprep.subr.mxu0 0.0
        %1027 = vmatpush1.msra.mxu0 %v292
        %1028 = vmatprep.subr.mxu0 0.0
        %1029 = vmatpush1.msra.mxu0 %v293
        %1030 = vmatprep.subr.mxu0 0.0
        %1031 = vmatpush1.msra.mxu0 %v294
        %1032 = vmatprep.subr.mxu0 0.0
        %1033 = vmatpush1.msra.mxu0 %v295
        %1034 = vmatprep.subr.mxu0 0.0
        %1035 = vmatpush1.msra.mxu0 %v296
        %1036 = vmatprep.subr.mxu0 0.0
        %1037 = vmatpush1.msra.mxu0 %v297
        %1038 = vmatprep.subr.mxu0 0.0
        %1039 = vmatpush1.msra.mxu0 %v298
        %1040 = vmatprep.subr.mxu0 0.0
        %1041 = vmatpush1.msra.mxu0 %v299
        %1042 = vmatprep.subr.mxu0 0.0
        %1043 = vmatpush1.msra.mxu0 %v300
        %1044 = vmatprep.subr.mxu0 0.0
        %1045 = vmatpush1.msra.mxu0 %v301
        %1046 = vmatprep.subr.mxu0 0.0
        %1047 = vmatpush1.msra.mxu0 %v302
        %1048 = vmatprep.subr.mxu0 0.0
        %1049 = vmatpush1.msra.mxu0 %v303
        %1050 = vmatprep.subr.mxu0 0.0
        %1051 = vmatpush1.msra.mxu0 %v304
        %1052 = vmatprep.subr.mxu0 0.0
        %1053 = vmatpush1.msra.mxu0 %v305
        %1054 = vmatprep.subr.mxu0 0.0
        %1055 = vmatpush1.msra.mxu0 %v306
        %1056 = vmatprep.subr.mxu0 0.0
        %1057 = vmatpush1.msra.mxu0 %v307
        %1058 = vmatprep.subr.mxu0 0.0
        %1059 = vmatpush1.msra.mxu0 %v308
        %1060 = vmatprep.subr.mxu0 0.0
        %1061 = vmatpush1.msra.mxu0 %v309
        %1062 = vmatprep.subr.mxu0 0.0
        %1063 = vmatpush1.msra.mxu0 %v310
        %1064 = vmatprep.subr.mxu0 0.0
        %1065 = vmatpush1.msra.mxu0 %v311
        %1066 = vmatprep.subr.mxu0 0.0
        %1067 = vmatpush1.msra.mxu0 %v312
        %1068 = vmatprep.subr.mxu0 0.0
        %1069 = vmatpush1.msra.mxu0 %v313
        %1070 = vmatprep.subr.mxu0 0.0
        %1071 = vmatpush1.msra.mxu0 %v314
        %1072 = vmatprep.subr.mxu0 0.0
        %1073 = vmatpush1.msra.mxu0 %v315
        %1074 = vmatprep.mubr.f32.mxu0 %v788
        %1075 = vmatmul.mubr.f32.gmra.mrb[0].mxu0 %v786
        %v1076 = vpop.f32.mrb[0].mxu0
        %v1077 = vadd.f32 %v1007, %v1076
        %v1078 = vpop.f32.mrb[0].mxu0
        %1079 = vdwg.mxu0
        %1080 = vmatprep.subr.mxu0 0.0
        %1081 = vmatpush1.msra.mxu0 %v316
        %1082 = vmatprep.subr.mxu0 0.0
        %1083 = vmatpush1.msra.mxu0 %v317
        %1084 = vmatprep.subr.mxu0 0.0
        %1085 = vmatpush1.msra.mxu0 %v318
        %1086 = vmatprep.subr.mxu0 0.0
        %1087 = vmatpush1.msra.mxu0 %v319
        %1088 = vmatprep.subr.mxu0 0.0
        %1089 = vmatpush1.msra.mxu0 %v320
        %1090 = vmatprep.subr.mxu0 0.0
        %1091 = vmatpush1.msra.mxu0 %v321
        %1092 = vmatprep.subr.mxu0 0.0
        %1093 = vmatpush1.msra.mxu0 %v322
        %1094 = vmatprep.subr.mxu0 0.0
        %1095 = vmatpush1.msra.mxu0 %v323
        %1096 = vmatprep.subr.mxu0 0.0
        %1097 = vmatpush1.msra.mxu0 %v324
        %1098 = vmatprep.subr.mxu0 0.0
        %1099 = vmatpush1.msra.mxu0 %v325
        %1100 = vmatprep.subr.mxu0 0.0
        %1101 = vmatpush1.msra.mxu0 %v326
        %1102 = vmatprep.subr.mxu0 0.0
        %1103 = vmatpush1.msra.mxu0 %v327
        %1104 = vmatprep.subr.mxu0 0.0
        %1105 = vmatpush1.msra.mxu0 %v328
        %1106 = vmatprep.subr.mxu0 0.0
        %1107 = vmatpush1.msra.mxu0 %v329
        %1108 = vmatprep.subr.mxu0 0.0
        %1109 = vmatpush1.msra.mxu0 %v330
        %1110 = vmatprep.subr.mxu0 0.0
        %1111 = vmatpush1.msra.mxu0 %v331
        %1112 = vmatprep.subr.mxu0 0.0
        %1113 = vmatpush1.msra.mxu0 %v332
        %1114 = vmatprep.subr.mxu0 0.0
        %1115 = vmatpush1.msra.mxu0 %v333
        %1116 = vmatprep.subr.mxu0 0.0
        %1117 = vmatpush1.msra.mxu0 %v334
        %1118 = vmatprep.subr.mxu0 0.0
        %1119 = vmatpush1.msra.mxu0 %v335
        %1120 = vmatprep.subr.mxu0 0.0
        %1121 = vmatpush1.msra.mxu0 %v336
        %1122 = vmatprep.subr.mxu0 0.0
        %1123 = vmatpush1.msra.mxu0 %v337
        %1124 = vmatprep.subr.mxu0 0.0
        %1125 = vmatpush1.msra.mxu0 %v338
        %1126 = vmatprep.subr.mxu0 0.0
        %1127 = vmatpush1.msra.mxu0 %v339
        %1128 = vmatprep.subr.mxu0 0.0
        %1129 = vmatpush1.msra.mxu0 %v340
        %1130 = vmatprep.subr.mxu0 0.0
        %1131 = vmatpush1.msra.mxu0 %v341
        %1132 = vmatprep.subr.mxu0 0.0
        %1133 = vmatpush1.msra.mxu0 %v342
        %1134 = vmatprep.subr.mxu0 0.0
        %1135 = vmatpush1.msra.mxu0 %v343
        %1136 = vmatprep.subr.mxu0 0.0
        %1137 = vmatpush1.msra.mxu0 %v344
        %1138 = vmatprep.subr.mxu0 0.0
        %1139 = vmatpush1.msra.mxu0 %v345
        %1140 = vmatprep.subr.mxu0 0.0
        %1141 = vmatpush1.msra.mxu0 %v346
        %1142 = vmatprep.subr.mxu0 0.0
        %1143 = vmatpush1.msra.mxu0 %v347
        %1144 = vmatprep.mubr.f32.mxu0 %v804
        %1145 = vmatmul.mubr.f32.gmra.mrb[0].mxu0 %v796
        %v1146 = vpop.f32.mrb[0].mxu0
        %v1147 = vadd.f32 %v1077, %v1146
        %v1148 = vpop.f32.mrb[0].mxu0
        %1149 = vdwg.mxu0
        %1150 = vmatprep.subr.mxu0 0.0
        %1151 = vmatpush1.msra.mxu0 %v348
        %1152 = vmatprep.subr.mxu0 0.0
        %1153 = vmatpush1.msra.mxu0 %v349
        %1154 = vmatprep.subr.mxu0 0.0
        %1155 = vmatpush1.msra.mxu0 %v350
        %1156 = vmatprep.subr.mxu0 0.0
        %1157 = vmatpush1.msra.mxu0 %v351
        %1158 = vmatprep.subr.mxu0 0.0
        %1159 = vmatpush1.msra.mxu0 %v352
        %1160 = vmatprep.subr.mxu0 0.0
        %1161 = vmatpush1.msra.mxu0 %v353
        %1162 = vmatprep.subr.mxu0 0.0
        %1163 = vmatpush1.msra.mxu0 %v354
        %1164 = vmatprep.subr.mxu0 0.0
        %1165 = vmatpush1.msra.mxu0 %v355
        %1166 = vmatprep.subr.mxu0 0.0
        %1167 = vmatpush1.msra.mxu0 %v356
        %1168 = vmatprep.subr.mxu0 0.0
        %1169 = vmatpush1.msra.mxu0 %v357
        %1170 = vmatprep.subr.mxu0 0.0
        %1171 = vmatpush1.msra.mxu0 %v358
        %1172 = vmatprep.subr.mxu0 0.0
        %1173 = vmatpush1.msra.mxu0 %v359
        %1174 = vmatprep.subr.mxu0 0.0
        %1175 = vmatpush1.msra.mxu0 %v360
        %1176 = vmatprep.subr.mxu0 0.0
        %1177 = vmatpush1.msra.mxu0 %v361
        %1178 = vmatprep.subr.mxu0 0.0
        %1179 = vmatpush1.msra.mxu0 %v362
        %1180 = vmatprep.subr.mxu0 0.0
        %1181 = vmatpush1.msra.mxu0 %v363
        %1182 = vmatprep.subr.mxu0 0.0
        %1183 = vmatpush1.msra.mxu0 %v364
        %1184 = vmatprep.subr.mxu0 0.0
        %1185 = vmatpush1.msra.mxu0 %v365
        %1186 = vmatprep.subr.mxu0 0.0
        %1187 = vmatpush1.msra.mxu0 %v366
        %1188 = vmatprep.subr.mxu0 0.0
        %1189 = vmatpush1.msra.mxu0 %v367
        %1190 = vmatprep.subr.mxu0 0.0
        %1191 = vmatpush1.msra.mxu0 %v368
        %1192 = vmatprep.subr.mxu0 0.0
        %1193 = vmatpush1.msra.mxu0 %v369
        %1194 = vmatprep.subr.mxu0 0.0
        %1195 = vmatpush1.msra.mxu0 %v370
        %1196 = vmatprep.subr.mxu0 0.0
        %1197 = vmatpush1.msra.mxu0 %v371
        %1198 = vmatprep.subr.mxu0 0.0
        %1199 = vmatpush1.msra.mxu0 %v372
        %1200 = vmatprep.subr.mxu0 0.0
        %1201 = vmatpush1.msra.mxu0 %v373
        %1202 = vmatprep.subr.mxu0 0.0
        %1203 = vmatpush1.msra.mxu0 %v374
        %1204 = vmatprep.subr.mxu0 0.0
        %1205 = vmatpush1.msra.mxu0 %v375
        %1206 = vmatprep.subr.mxu0 0.0
        %1207 = vmatpush1.msra.mxu0 %v376
        %1208 = vmatprep.subr.mxu0 0.0
        %1209 = vmatpush1.msra.mxu0 %v377
        %1210 = vmatprep.subr.mxu0 0.0
        %1211 = vmatpush1.msra.mxu0 %v378
        %1212 = vmatprep.subr.mxu0 0.0
        %1213 = vmatpush1.msra.mxu0 %v379
        %1214 = vmatprep.mubr.f32.mxu0 %v805
        %1215 = vmatmul.mubr.f32.gmra.mrb[0].mxu0 %v803
        %v1216 = vpop.f32.mrb[0].mxu0
        %v1217 = vadd.f32 %v1147, %v1216
        %v1218 = vpop.f32.mrb[0].mxu0
        %1219 = vdwg.mxu0
        %1220 = vmatprep.subr.mxu0 0.0
        %1221 = vmatpush1.msra.mxu0 %v380
        %1222 = vmatprep.subr.mxu0 0.0
        %1223 = vmatpush1.msra.mxu0 %v381
        %1224 = vmatprep.subr.mxu0 0.0
        %1225 = vmatpush1.msra.mxu0 %v382
        %1226 = vmatprep.subr.mxu0 0.0
        %1227 = vmatpush1.msra.mxu0 %v383
        %1228 = vmatprep.subr.mxu0 0.0
        %1229 = vmatpush1.msra.mxu0 %v384
        %1230 = vmatprep.subr.mxu0 0.0
        %1231 = vmatpush1.msra.mxu0 %v385
        %1232 = vmatprep.subr.mxu0 0.0
        %1233 = vmatpush1.msra.mxu0 %v386
        %1234 = vmatprep.subr.mxu0 0.0
        %1235 = vmatpush1.msra.mxu0 %v387
        %1236 = vmatprep.subr.mxu0 0.0
        %1237 = vmatpush1.msra.mxu0 %v388
        %1238 = vmatprep.subr.mxu0 0.0
        %1239 = vmatpush1.msra.mxu0 %v389
        %1240 = vmatprep.subr.mxu0 0.0
        %1241 = vmatpush1.msra.mxu0 %v390
        %1242 = vmatprep.subr.mxu0 0.0
        %1243 = vmatpush1.msra.mxu0 %v391
        %1244 = vmatprep.subr.mxu0 0.0
        %1245 = vmatpush1.msra.mxu0 %v392
        %1246 = vmatprep.subr.mxu0 0.0
        %1247 = vmatpush1.msra.mxu0 %v393
        %1248 = vmatprep.subr.mxu0 0.0
        %1249 = vmatpush1.msra.mxu0 %v394
        %1250 = vmatprep.subr.mxu0 0.0
        %1251 = vmatpush1.msra.mxu0 %v395
        %1252 = vmatprep.subr.mxu0 0.0
        %1253 = vmatpush1.msra.mxu0 %v396
        %1254 = vmatprep.subr.mxu0 0.0
        %1255 = vmatpush1.msra.mxu0 %v397
        %1256 = vmatprep.subr.mxu0 0.0
        %1257 = vmatpush1.msra.mxu0 %v398
        %1258 = vmatprep.subr.mxu0 0.0
        %1259 = vmatpush1.msra.mxu0 %v399
        %1260 = vmatprep.subr.mxu0 0.0
        %1261 = vmatpush1.msra.mxu0 %v400
        %1262 = vmatprep.subr.mxu0 0.0
        %1263 = vmatpush1.msra.mxu0 %v401
        %1264 = vmatprep.subr.mxu0 0.0
        %1265 = vmatpush1.msra.mxu0 %v402
        %1266 = vmatprep.subr.mxu0 0.0
        %1267 = vmatpush1.msra.mxu0 %v403
        %1268 = vmatprep.subr.mxu0 0.0
        %1269 = vmatpush1.msra.mxu0 %v404
        %1270 = vmatprep.subr.mxu0 0.0
        %1271 = vmatpush1.msra.mxu0 %v405
        %1272 = vmatprep.subr.mxu0 0.0
        %1273 = vmatpush1.msra.mxu0 %v406
        %1274 = vmatprep.subr.mxu0 0.0
        %1275 = vmatpush1.msra.mxu0 %v407
        %1276 = vmatprep.subr.mxu0 0.0
        %1277 = vmatpush1.msra.mxu0 %v408
        %1278 = vmatprep.subr.mxu0 0.0
        %1279 = vmatpush1.msra.mxu0 %v409
        %1280 = vmatprep.subr.mxu0 0.0
        %1281 = vmatpush1.msra.mxu0 %v410
        %1282 = vmatprep.subr.mxu0 0.0
        %1283 = vmatpush1.msra.mxu0 %v411
        %1284 = vmatprep.mubr.f32.mxu0 %v821
        %1285 = vmatmul.mubr.f32.gmra.mrb[0].mxu0 %v813
        %v1286 = vpop.f32.mrb[0].mxu0
        %v1287 = vadd.f32 %v1217, %v1286
        %v1288 = vpop.f32.mrb[0].mxu0
        %1289 = vdwg.mxu0
        %1290 = vmatprep.subr.mxu0 0.0
        %1291 = vmatpush1.msra.mxu0 %v412
        %1292 = vmatprep.subr.mxu0 0.0
        %1293 = vmatpush1.msra.mxu0 %v413
        %1294 = vmatprep.subr.mxu0 0.0
        %1295 = vmatpush1.msra.mxu0 %v414
        %1296 = vmatprep.subr.mxu0 0.0
        %1297 = vmatpush1.msra.mxu0 %v415
        %1298 = vmatprep.subr.mxu0 0.0
        %1299 = vmatpush1.msra.mxu0 %v416
        %1300 = vmatprep.subr.mxu0 0.0
        %1301 = vmatpush1.msra.mxu0 %v417
        %1302 = vmatprep.subr.mxu0 0.0
        %1303 = vmatpush1.msra.mxu0 %v418
        %1304 = vmatprep.subr.mxu0 0.0
        %1305 = vmatpush1.msra.mxu0 %v419
        %1306 = vmatprep.subr.mxu0 0.0
        %1307 = vmatpush1.msra.mxu0 %v420
        %1308 = vmatprep.subr.mxu0 0.0
        %1309 = vmatpush1.msra.mxu0 %v421
        %1310 = vmatprep.subr.mxu0 0.0
        %1311 = vmatpush1.msra.mxu0 %v422
        %1312 = vmatprep.subr.mxu0 0.0
        %1313 = vmatpush1.msra.mxu0 %v423
        %1314 = vmatprep.subr.mxu0 0.0
        %1315 = vmatpush1.msra.mxu0 %v424
        %1316 = vmatprep.subr.mxu0 0.0
        %1317 = vmatpush1.msra.mxu0 %v425
        %1318 = vmatprep.subr.mxu0 0.0
        %1319 = vmatpush1.msra.mxu0 %v426
        %1320 = vmatprep.subr.mxu0 0.0
        %1321 = vmatpush1.msra.mxu0 %v427
        %1322 = vmatprep.subr.mxu0 0.0
        %1323 = vmatpush1.msra.mxu0 %v428
        %1324 = vmatprep.subr.mxu0 0.0
        %1325 = vmatpush1.msra.mxu0 %v429
        %1326 = vmatprep.subr.mxu0 0.0
        %1327 = vmatpush1.msra.mxu0 %v430
        %1328 = vmatprep.subr.mxu0 0.0
        %1329 = vmatpush1.msra.mxu0 %v431
        %1330 = vmatprep.subr.mxu0 0.0
        %1331 = vmatpush1.msra.mxu0 %v432
        %1332 = vmatprep.subr.mxu0 0.0
        %1333 = vmatpush1.msra.mxu0 %v433
        %1334 = vmatprep.subr.mxu0 0.0
        %1335 = vmatpush1.msra.mxu0 %v434
        %1336 = vmatprep.subr.mxu0 0.0
        %1337 = vmatpush1.msra.mxu0 %v435
        %1338 = vmatprep.subr.mxu0 0.0
        %1339 = vmatpush1.msra.mxu0 %v436
        %1340 = vmatprep.subr.mxu0 0.0
        %1341 = vmatpush1.msra.mxu0 %v437
        %1342 = vmatprep.subr.mxu0 0.0
        %1343 = vmatpush1.msra.mxu0 %v438
        %1344 = vmatprep.subr.mxu0 0.0
        %1345 = vmatpush1.msra.mxu0 %v439
        %1346 = vmatprep.subr.mxu0 0.0
        %1347 = vmatpush1.msra.mxu0 %v440
        %1348 = vmatprep.subr.mxu0 0.0
        %1349 = vmatpush1.msra.mxu0 %v441
        %1350 = vmatprep.subr.mxu0 0.0
        %1351 = vmatpush1.msra.mxu0 %v442
        %1352 = vmatprep.subr.mxu0 0.0
        %1353 = vmatpush1.msra.mxu0 %v443
        %1354 = vmatprep.mubr.f32.mxu0 %v822
        %1355 = vmatmul.mubr.f32.gmra.mrb[0].mxu0 %v820
        %v1356 = vpop.f32.mrb[0].mxu0
        %v1357 = vadd.f32 %v1287, %v1356
        %v1358 = vpop.f32.mrb[0].mxu0
        %1359 = vdwg.mxu0
        %1360 = vmatprep.subr.mxu0 0.0
        %1361 = vmatpush1.msra.mxu0 %v444
        %1362 = vmatprep.subr.mxu0 0.0
        %1363 = vmatpush1.msra.mxu0 %v445
        %1364 = vmatprep.subr.mxu0 0.0
        %1365 = vmatpush1.msra.mxu0 %v446
        %1366 = vmatprep.subr.mxu0 0.0
        %1367 = vmatpush1.msra.mxu0 %v447
        %1368 = vmatprep.subr.mxu0 0.0
        %1369 = vmatpush1.msra.mxu0 %v448
        %1370 = vmatprep.subr.mxu0 0.0
        %1371 = vmatpush1.msra.mxu0 %v449
        %1372 = vmatprep.subr.mxu0 0.0
        %1373 = vmatpush1.msra.mxu0 %v450
        %1374 = vmatprep.subr.mxu0 0.0
        %1375 = vmatpush1.msra.mxu0 %v451
        %1376 = vmatprep.subr.mxu0 0.0
        %1377 = vmatpush1.msra.mxu0 %v452
        %1378 = vmatprep.subr.mxu0 0.0
        %1379 = vmatpush1.msra.mxu0 %v453
        %1380 = vmatprep.subr.mxu0 0.0
        %1381 = vmatpush1.msra.mxu0 %v454
        %1382 = vmatprep.subr.mxu0 0.0
        %1383 = vmatpush1.msra.mxu0 %v455
        %1384 = vmatprep.subr.mxu0 0.0
        %1385 = vmatpush1.msra.mxu0 %v456
        %1386 = vmatprep.subr.mxu0 0.0
        %1387 = vmatpush1.msra.mxu0 %v457
        %1388 = vmatprep.subr.mxu0 0.0
        %1389 = vmatpush1.msra.mxu0 %v458
        %1390 = vmatprep.subr.mxu0 0.0
        %1391 = vmatpush1.msra.mxu0 %v459
        %1392 = vmatprep.subr.mxu0 0.0
        %1393 = vmatpush1.msra.mxu0 %v460
        %1394 = vmatprep.subr.mxu0 0.0
        %1395 = vmatpush1.msra.mxu0 %v461
        %1396 = vmatprep.subr.mxu0 0.0
        %1397 = vmatpush1.msra.mxu0 %v462
        %1398 = vmatprep.subr.mxu0 0.0
        %1399 = vmatpush1.msra.mxu0 %v463
        %1400 = vmatprep.subr.mxu0 0.0
        %1401 = vmatpush1.msra.mxu0 %v464
        %1402 = vmatprep.subr.mxu0 0.0
        %1403 = vmatpush1.msra.mxu0 %v465
        %1404 = vmatprep.subr.mxu0 0.0
        %1405 = vmatpush1.msra.mxu0 %v466
        %1406 = vmatprep.subr.mxu0 0.0
        %1407 = vmatpush1.msra.mxu0 %v467
        %1408 = vmatprep.subr.mxu0 0.0
        %1409 = vmatpush1.msra.mxu0 %v468
        %1410 = vmatprep.subr.mxu0 0.0
        %1411 = vmatpush1.msra.mxu0 %v469
        %1412 = vmatprep.subr.mxu0 0.0
        %1413 = vmatpush1.msra.mxu0 %v470
        %1414 = vmatprep.subr.mxu0 0.0
        %1415 = vmatpush1.msra.mxu0 %v471
        %1416 = vmatprep.subr.mxu0 0.0
        %1417 = vmatpush1.msra.mxu0 %v472
        %1418 = vmatprep.subr.mxu0 0.0
        %1419 = vmatpush1.msra.mxu0 %v473
        %1420 = vmatprep.subr.mxu0 0.0
        %1421 = vmatpush1.msra.mxu0 %v474
        %1422 = vmatprep.subr.mxu0 0.0
        %1423 = vmatpush1.msra.mxu0 %v475
        %1424 = vmatprep.mubr.f32.mxu0 %v838
        %1425 = vmatmul.mubr.f32.gmra.mrb[0].mxu0 %v830
        %v1426 = vpop.f32.mrb[0].mxu0
        %v1427 = vadd.f32 %v1357, %v1426
        %v1428 = vpop.f32.mrb[0].mxu0
        %1429 = vdwg.mxu0
        %1430 = vmatprep.subr.mxu0 0.0
        %1431 = vmatpush1.msra.mxu0 %v476
        %1432 = vmatprep.subr.mxu0 0.0
        %1433 = vmatpush1.msra.mxu0 %v477
        %1434 = vmatprep.subr.mxu0 0.0
        %1435 = vmatpush1.msra.mxu0 %v478
        %1436 = vmatprep.subr.mxu0 0.0
        %1437 = vmatpush1.msra.mxu0 %v479
        %1438 = vmatprep.subr.mxu0 0.0
        %1439 = vmatpush1.msra.mxu0 %v480
        %1440 = vmatprep.subr.mxu0 0.0
        %1441 = vmatpush1.msra.mxu0 %v481
        %1442 = vmatprep.subr.mxu0 0.0
        %1443 = vmatpush1.msra.mxu0 %v482
        %1444 = vmatprep.subr.mxu0 0.0
        %1445 = vmatpush1.msra.mxu0 %v483
        %1446 = vmatprep.subr.mxu0 0.0
        %1447 = vmatpush1.msra.mxu0 %v484
        %1448 = vmatprep.subr.mxu0 0.0
        %1449 = vmatpush1.msra.mxu0 %v485
        %1450 = vmatprep.subr.mxu0 0.0
        %1451 = vmatpush1.msra.mxu0 %v486
        %1452 = vmatprep.subr.mxu0 0.0
        %1453 = vmatpush1.msra.mxu0 %v487
        %1454 = vmatprep.subr.mxu0 0.0
        %1455 = vmatpush1.msra.mxu0 %v488
        %1456 = vmatprep.subr.mxu0 0.0
        %1457 = vmatpush1.msra.mxu0 %v489
        %1458 = vmatprep.subr.mxu0 0.0
        %1459 = vmatpush1.msra.mxu0 %v490
        %1460 = vmatprep.subr.mxu0 0.0
        %1461 = vmatpush1.msra.mxu0 %v491
        %1462 = vmatprep.subr.mxu0 0.0
        %1463 = vmatpush1.msra.mxu0 %v492
        %1464 = vmatprep.subr.mxu0 0.0
        %1465 = vmatpush1.msra.mxu0 %v493
        %1466 = vmatprep.subr.mxu0 0.0
        %1467 = vmatpush1.msra.mxu0 %v494
        %1468 = vmatprep.subr.mxu0 0.0
        %1469 = vmatpush1.msra.mxu0 %v495
        %1470 = vmatprep.subr.mxu0 0.0
        %1471 = vmatpush1.msra.mxu0 %v496
        %1472 = vmatprep.subr.mxu0 0.0
        %1473 = vmatpush1.msra.mxu0 %v497
        %1474 = vmatprep.subr.mxu0 0.0
        %1475 = vmatpush1.msra.mxu0 %v498
        %1476 = vmatprep.subr.mxu0 0.0
        %1477 = vmatpush1.msra.mxu0 %v499
        %1478 = vmatprep.subr.mxu0 0.0
        %1479 = vmatpush1.msra.mxu0 %v500
        %1480 = vmatprep.subr.mxu0 0.0
        %1481 = vmatpush1.msra.mxu0 %v501
        %1482 = vmatprep.subr.mxu0 0.0
        %1483 = vmatpush1.msra.mxu0 %v502
        %1484 = vmatprep.subr.mxu0 0.0
        %1485 = vmatpush1.msra.mxu0 %v503
        %1486 = vmatprep.subr.mxu0 0.0
        %1487 = vmatpush1.msra.mxu0 %v504
        %1488 = vmatprep.subr.mxu0 0.0
        %1489 = vmatpush1.msra.mxu0 %v505
        %1490 = vmatprep.subr.mxu0 0.0
        %1491 = vmatpush1.msra.mxu0 %v506
        %1492 = vmatprep.subr.mxu0 0.0
        %1493 = vmatpush1.msra.mxu0 %v507
        %1494 = vmatprep.mubr.f32.mxu0 %v839
        %1495 = vmatmul.mubr.f32.gmra.mrb[0].mxu0 %v837
        %v1496 = vpop.f32.mrb[0].mxu0
        %v1497 = vadd.f32 %v1427, %v1496
        %v1498 = vpop.f32.mrb[0].mxu0
        %1499 = vdwg.mxu0
        %1500 = vmatprep.subr.mxu0 0.0
        %1501 = vmatpush1.msra.mxu0 %v508
        %1502 = vmatprep.subr.mxu0 0.0
        %1503 = vmatpush1.msra.mxu0 %v509
        %1504 = vmatprep.subr.mxu0 0.0
        %1505 = vmatpush1.msra.mxu0 %v510
        %1506 = vmatprep.subr.mxu0 0.0
        %1507 = vmatpush1.msra.mxu0 %v511
        %1508 = vmatprep.subr.mxu0 0.0
        %1509 = vmatpush1.msra.mxu0 %v512
        %1510 = vmatprep.subr.mxu0 0.0
        %1511 = vmatpush1.msra.mxu0 %v513
        %1512 = vmatprep.subr.mxu0 0.0
        %1513 = vmatpush1.msra.mxu0 %v514
        %1514 = vmatprep.subr.mxu0 0.0
        %1515 = vmatpush1.msra.mxu0 %v515
        %1516 = vmatprep.subr.mxu0 0.0
        %1517 = vmatpush1.msra.mxu0 %v516
        %1518 = vmatprep.subr.mxu0 0.0
        %1519 = vmatpush1.msra.mxu0 %v517
        %1520 = vmatprep.subr.mxu0 0.0
        %1521 = vmatpush1.msra.mxu0 %v518
        %1522 = vmatprep.subr.mxu0 0.0
        %1523 = vmatpush1.msra.mxu0 %v519
        %1524 = vmatprep.subr.mxu0 0.0
        %1525 = vmatpush1.msra.mxu0 %v520
        %1526 = vmatprep.subr.mxu0 0.0
        %1527 = vmatpush1.msra.mxu0 %v521
        %1528 = vmatprep.subr.mxu0 0.0
        %1529 = vmatpush1.msra.mxu0 %v522
        %1530 = vmatprep.subr.mxu0 0.0
        %1531 = vmatpush1.msra.mxu0 %v523
        %1532 = vmatprep.subr.mxu0 0.0
        %1533 = vmatpush1.msra.mxu0 %v524
        %1534 = vmatprep.subr.mxu0 0.0
        %1535 = vmatpush1.msra.mxu0 %v525
        %1536 = vmatprep.subr.mxu0 0.0
        %1537 = vmatpush1.msra.mxu0 %v526
        %1538 = vmatprep.subr.mxu0 0.0
        %1539 = vmatpush1.msra.mxu0 %v527
        %1540 = vmatprep.subr.mxu0 0.0
        %1541 = vmatpush1.msra.mxu0 %v528
        %1542 = vmatprep.subr.mxu0 0.0
        %1543 = vmatpush1.msra.mxu0 %v529
        %1544 = vmatprep.subr.mxu0 0.0
        %1545 = vmatpush1.msra.mxu0 %v530
        %1546 = vmatprep.subr.mxu0 0.0
        %1547 = vmatpush1.msra.mxu0 %v531
        %1548 = vmatprep.subr.mxu0 0.0
        %1549 = vmatpush1.msra.mxu0 %v532
        %1550 = vmatprep.subr.mxu0 0.0
        %1551 = vmatpush1.msra.mxu0 %v533
        %1552 = vmatprep.subr.mxu0 0.0
        %1553 = vmatpush1.msra.mxu0 %v534
        %1554 = vmatprep.subr.mxu0 0.0
        %1555 = vmatpush1.msra.mxu0 %v535
        %1556 = vmatprep.subr.mxu0 0.0
        %1557 = vmatpush1.msra.mxu0 %v536
        %1558 = vmatprep.subr.mxu0 0.0
        %1559 = vmatpush1.msra.mxu0 %v537
        %1560 = vmatprep.subr.mxu0 0.0
        %1561 = vmatpush1.msra.mxu0 %v538
        %1562 = vmatprep.subr.mxu0 0.0
        %1563 = vmatpush1.msra.mxu0 %v539
        %1564 = vmatprep.mubr.f32.mxu0 %v855
        %1565 = vmatmul.mubr.f32.gmra.mrb[0].mxu0 %v847
        %v1566 = vpop.f32.mrb[0].mxu0
        %v1567 = vadd.f32 %v1497, %v1566
        %v1568 = vpop.f32.mrb[0].mxu0
        %1569 = vdwg.mxu0
        %1570 = vmatprep.subr.mxu0 0.0
        %1571 = vmatpush1.msra.mxu0 %v540
        %1572 = vmatprep.subr.mxu0 0.0
        %1573 = vmatpush1.msra.mxu0 %v541
        %1574 = vmatprep.subr.mxu0 0.0
        %1575 = vmatpush1.msra.mxu0 %v542
        %1576 = vmatprep.subr.mxu0 0.0
        %1577 = vmatpush1.msra.mxu0 %v543
        %1578 = vmatprep.subr.mxu0 0.0
        %1579 = vmatpush1.msra.mxu0 %v544
        %1580 = vmatprep.subr.mxu0 0.0
        %1581 = vmatpush1.msra.mxu0 %v545
        %1582 = vmatprep.subr.mxu0 0.0
        %1583 = vmatpush1.msra.mxu0 %v546
        %1584 = vmatprep.subr.mxu0 0.0
        %1585 = vmatpush1.msra.mxu0 %v547
        %1586 = vmatprep.subr.mxu0 0.0
        %1587 = vmatpush1.msra.mxu0 %v548
        %1588 = vmatprep.subr.mxu0 0.0
        %1589 = vmatpush1.msra.mxu0 %v549
        %1590 = vmatprep.subr.mxu0 0.0
        %1591 = vmatpush1.msra.mxu0 %v550
        %1592 = vmatprep.subr.mxu0 0.0
        %1593 = vmatpush1.msra.mxu0 %v551
        %1594 = vmatprep.subr.mxu0 0.0
        %1595 = vmatpush1.msra.mxu0 %v552
        %1596 = vmatprep.subr.mxu0 0.0
        %1597 = vmatpush1.msra.mxu0 %v553
        %1598 = vmatprep.subr.mxu0 0.0
        %1599 = vmatpush1.msra.mxu0 %v554
        %1600 = vmatprep.subr.mxu0 0.0
        %1601 = vmatpush1.msra.mxu0 %v555
        %1602 = vmatprep.subr.mxu0 0.0
        %1603 = vmatpush1.msra.mxu0 %v556
        %1604 = vmatprep.subr.mxu0 0.0
        %1605 = vmatpush1.msra.mxu0 %v557
        %1606 = vmatprep.subr.mxu0 0.0
        %1607 = vmatpush1.msra.mxu0 %v558
        %1608 = vmatprep.subr.mxu0 0.0
        %1609 = vmatpush1.msra.mxu0 %v559
        %1610 = vmatprep.subr.mxu0 0.0
        %1611 = vmatpush1.msra.mxu0 %v560
        %1612 = vmatprep.subr.mxu0 0.0
        %1613 = vmatpush1.msra.mxu0 %v561
        %1614 = vmatprep.subr.mxu0 0.0
        %1615 = vmatpush1.msra.mxu0 %v562
        %1616 = vmatprep.subr.mxu0 0.0
        %1617 = vmatpush1.msra.mxu0 %v563
        %1618 = vmatprep.subr.mxu0 0.0
        %1619 = vmatpush1.msra.mxu0 %v564
        %1620 = vmatprep.subr.mxu0 0.0
        %1621 = vmatpush1.msra.mxu0 %v565
        %1622 = vmatprep.subr.mxu0 0.0
        %1623 = vmatpush1.msra.mxu0 %v566
        %1624 = vmatprep.subr.mxu0 0.0
        %1625 = vmatpush1.msra.mxu0 %v567
        %1626 = vmatprep.subr.mxu0 0.0
        %1627 = vmatpush1.msra.mxu0 %v568
        %1628 = vmatprep.subr.mxu0 0.0
        %1629 = vmatpush1.msra.mxu0 %v569
        %1630 = vmatprep.subr.mxu0 0.0
        %1631 = vmatpush1.msra.mxu0 %v570
        %1632 = vmatprep.subr.mxu0 0.0
        %1633 = vmatpush1.msra.mxu0 %v571
        %1634 = vmatprep.mubr.f32.mxu0 %v856
        %1635 = vmatmul.mubr.f32.gmra.mrb[0].mxu0 %v854
        %v1636 = vpop.f32.mrb[0].mxu0
        %v1637 = vadd.f32 %v1567, %v1636
        %v1638 = vpop.f32.mrb[0].mxu0
        %1639 = vdwg.mxu0
        %1640 = vmatprep.subr.mxu0 0.0
        %1641 = vmatpush1.msra.mxu0 %v572
        %1642 = vmatprep.subr.mxu0 0.0
        %1643 = vmatpush1.msra.mxu0 %v573
        %1644 = vmatprep.subr.mxu0 0.0
        %1645 = vmatpush1.msra.mxu0 %v574
        %1646 = vmatprep.subr.mxu0 0.0
        %1647 = vmatpush1.msra.mxu0 %v575
        %1648 = vmatprep.subr.mxu0 0.0
        %1649 = vmatpush1.msra.mxu0 %v576
        %1650 = vmatprep.subr.mxu0 0.0
        %1651 = vmatpush1.msra.mxu0 %v577
        %1652 = vmatprep.subr.mxu0 0.0
        %1653 = vmatpush1.msra.mxu0 %v578
        %1654 = vmatprep.subr.mxu0 0.0
        %1655 = vmatpush1.msra.mxu0 %v579
        %1656 = vmatprep.subr.mxu0 0.0
        %1657 = vmatpush1.msra.mxu0 %v580
        %1658 = vmatprep.subr.mxu0 0.0
        %1659 = vmatpush1.msra.mxu0 %v581
        %1660 = vmatprep.subr.mxu0 0.0
        %1661 = vmatpush1.msra.mxu0 %v582
        %1662 = vmatprep.subr.mxu0 0.0
        %1663 = vmatpush1.msra.mxu0 %v583
        %1664 = vmatprep.subr.mxu0 0.0
        %1665 = vmatpush1.msra.mxu0 %v584
        %1666 = vmatprep.subr.mxu0 0.0
        %1667 = vmatpush1.msra.mxu0 %v585
        %1668 = vmatprep.subr.mxu0 0.0
        %1669 = vmatpush1.msra.mxu0 %v586
        %1670 = vmatprep.subr.mxu0 0.0
        %1671 = vmatpush1.msra.mxu0 %v587
        %1672 = vmatprep.subr.mxu0 0.0
        %1673 = vmatpush1.msra.mxu0 %v588
        %1674 = vmatprep.subr.mxu0 0.0
        %1675 = vmatpush1.msra.mxu0 %v589
        %1676 = vmatprep.subr.mxu0 0.0
        %1677 = vmatpush1.msra.mxu0 %v590
        %1678 = vmatprep.subr.mxu0 0.0
        %1679 = vmatpush1.msra.mxu0 %v591
        %1680 = vmatprep.subr.mxu0 0.0
        %1681 = vmatpush1.msra.mxu0 %v592
        %1682 = vmatprep.subr.mxu0 0.0
        %1683 = vmatpush1.msra.mxu0 %v593
        %1684 = vmatprep.subr.mxu0 0.0
        %1685 = vmatpush1.msra.mxu0 %v594
        %1686 = vmatprep.subr.mxu0 0.0
        %1687 = vmatpush1.msra.mxu0 %v595
        %1688 = vmatprep.subr.mxu0 0.0
        %1689 = vmatpush1.msra.mxu0 %v596
        %1690 = vmatprep.subr.mxu0 0.0
        %1691 = vmatpush1.msra.mxu0 %v597
        %1692 = vmatprep.subr.mxu0 0.0
        %1693 = vmatpush1.msra.mxu0 %v598
        %1694 = vmatprep.subr.mxu0 0.0
        %1695 = vmatpush1.msra.mxu0 %v599
        %1696 = vmatprep.subr.mxu0 0.0
        %1697 = vmatpush1.msra.mxu0 %v600
        %1698 = vmatprep.subr.mxu0 0.0
        %1699 = vmatpush1.msra.mxu0 %v601
        %1700 = vmatprep.subr.mxu0 0.0
        %1701 = vmatpush1.msra.mxu0 %v602
        %1702 = vmatprep.subr.mxu0 0.0
        %1703 = vmatpush1.msra.mxu0 %v603
        %1704 = vmatprep.mubr.f32.mxu0 %v872
        %1705 = vmatmul.mubr.f32.gmra.mrb[0].mxu0 %v864
        %v1706 = vpop.f32.mrb[0].mxu0
        %v1707 = vadd.f32 %v1637, %v1706
        %v1708 = vpop.f32.mrb[0].mxu0
        %1709 = vdwg.mxu0
        %1710 = vmatprep.subr.mxu0 0.0
        %1711 = vmatpush1.msra.mxu0 %v604
        %1712 = vmatprep.subr.mxu0 0.0
        %1713 = vmatpush1.msra.mxu0 %v605
        %1714 = vmatprep.subr.mxu0 0.0
        %1715 = vmatpush1.msra.mxu0 %v606
        %1716 = vmatprep.subr.mxu0 0.0
        %1717 = vmatpush1.msra.mxu0 %v607
        %1718 = vmatprep.subr.mxu0 0.0
        %1719 = vmatpush1.msra.mxu0 %v608
        %1720 = vmatprep.subr.mxu0 0.0
        %1721 = vmatpush1.msra.mxu0 %v609
        %1722 = vmatprep.subr.mxu0 0.0
        %1723 = vmatpush1.msra.mxu0 %v610
        %1724 = vmatprep.subr.mxu0 0.0
        %1725 = vmatpush1.msra.mxu0 %v611
        %1726 = vmatprep.subr.mxu0 0.0
        %1727 = vmatpush1.msra.mxu0 %v612
        %1728 = vmatprep.subr.mxu0 0.0
        %1729 = vmatpush1.msra.mxu0 %v613
        %1730 = vmatprep.subr.mxu0 0.0
        %1731 = vmatpush1.msra.mxu0 %v614
        %1732 = vmatprep.subr.mxu0 0.0
        %1733 = vmatpush1.msra.mxu0 %v615
        %1734 = vmatprep.subr.mxu0 0.0
        %1735 = vmatpush1.msra.mxu0 %v616
        %1736 = vmatprep.subr.mxu0 0.0
        %1737 = vmatpush1.msra.mxu0 %v617
        %1738 = vmatprep.subr.mxu0 0.0
        %1739 = vmatpush1.msra.mxu0 %v618
        %1740 = vmatprep.subr.mxu0 0.0
        %1741 = vmatpush1.msra.mxu0 %v619
        %1742 = vmatprep.subr.mxu0 0.0
        %1743 = vmatpush1.msra.mxu0 %v620
        %1744 = vmatprep.subr.mxu0 0.0
        %1745 = vmatpush1.msra.mxu0 %v621
        %1746 = vmatprep.subr.mxu0 0.0
        %1747 = vmatpush1.msra.mxu0 %v622
        %1748 = vmatprep.subr.mxu0 0.0
        %1749 = vmatpush1.msra.mxu0 %v623
        %1750 = vmatprep.subr.mxu0 0.0
        %1751 = vmatpush1.msra.mxu0 %v624
        %1752 = vmatprep.subr.mxu0 0.0
        %1753 = vmatpush1.msra.mxu0 %v625
        %1754 = vmatprep.subr.mxu0 0.0
        %1755 = vmatpush1.msra.mxu0 %v626
        %1756 = vmatprep.subr.mxu0 0.0
        %1757 = vmatpush1.msra.mxu0 %v627
        %1758 = vmatprep.subr.mxu0 0.0
        %1759 = vmatpush1.msra.mxu0 %v628
        %1760 = vmatprep.subr.mxu0 0.0
        %1761 = vmatpush1.msra.mxu0 %v629
        %1762 = vmatprep.subr.mxu0 0.0
        %1763 = vmatpush1.msra.mxu0 %v630
        %1764 = vmatprep.subr.mxu0 0.0
        %1765 = vmatpush1.msra.mxu0 %v631
        %1766 = vmatprep.subr.mxu0 0.0
        %1767 = vmatpush1.msra.mxu0 %v632
        %1768 = vmatprep.subr.mxu0 0.0
        %1769 = vmatpush1.msra.mxu0 %v633
        %1770 = vmatprep.subr.mxu0 0.0
        %1771 = vmatpush1.msra.mxu0 %v634
        %1772 = vmatprep.subr.mxu0 0.0
        %1773 = vmatpush1.msra.mxu0 %v635
        %1774 = vmatprep.mubr.f32.mxu0 %v873
        %1775 = vmatmul.mubr.f32.gmra.mrb[0].mxu0 %v871
        %v1776 = vpop.f32.mrb[0].mxu0
        %v1777 = vadd.f32 %v1707, %v1776
        %v1778 = vpop.f32.mrb[0].mxu0
        %1779 = vdwg.mxu0
        %1780 = vmatprep.subr.mxu0 0.0
        %1781 = vmatpush1.msra.mxu0 %v636
        %1782 = vmatprep.subr.mxu0 0.0
        %1783 = vmatpush1.msra.mxu0 %v637
        %1784 = vmatprep.subr.mxu0 0.0
        %1785 = vmatpush1.msra.mxu0 %v638
        %1786 = vmatprep.subr.mxu0 0.0
        %1787 = vmatpush1.msra.mxu0 %v639
        %1788 = vmatprep.subr.mxu0 0.0
        %1789 = vmatpush1.msra.mxu0 %v640
        %1790 = vmatprep.subr.mxu0 0.0
        %1791 = vmatpush1.msra.mxu0 %v641
        %1792 = vmatprep.subr.mxu0 0.0
        %1793 = vmatpush1.msra.mxu0 %v642
        %1794 = vmatprep.subr.mxu0 0.0
        %1795 = vmatpush1.msra.mxu0 %v643
        %1796 = vmatprep.subr.mxu0 0.0
        %1797 = vmatpush1.msra.mxu0 %v644
        %1798 = vmatprep.subr.mxu0 0.0
        %1799 = vmatpush1.msra.mxu0 %v645
        %1800 = vmatprep.subr.mxu0 0.0
        %1801 = vmatpush1.msra.mxu0 %v646
        %1802 = vmatprep.subr.mxu0 0.0
        %1803 = vmatpush1.msra.mxu0 %v647
        %1804 = vmatprep.subr.mxu0 0.0
        %1805 = vmatpush1.msra.mxu0 %v648
        %1806 = vmatprep.subr.mxu0 0.0
        %1807 = vmatpush1.msra.mxu0 %v649
        %1808 = vmatprep.subr.mxu0 0.0
        %1809 = vmatpush1.msra.mxu0 %v650
        %1810 = vmatprep.subr.mxu0 0.0
        %1811 = vmatpush1.msra.mxu0 %v651
        %1812 = vmatprep.subr.mxu0 0.0
        %1813 = vmatpush1.msra.mxu0 %v652
        %1814 = vmatprep.subr.mxu0 0.0
        %1815 = vmatpush1.msra.mxu0 %v653
        %1816 = vmatprep.subr.mxu0 0.0
        %1817 = vmatpush1.msra.mxu0 %v654
        %1818 = vmatprep.subr.mxu0 0.0
        %1819 = vmatpush1.msra.mxu0 %v655
        %1820 = vmatprep.subr.mxu0 0.0
        %1821 = vmatpush1.msra.mxu0 %v656
        %1822 = vmatprep.subr.mxu0 0.0
        %1823 = vmatpush1.msra.mxu0 %v657
        %1824 = vmatprep.subr.mxu0 0.0
        %1825 = vmatpush1.msra.mxu0 %v658
        %1826 = vmatprep.subr.mxu0 0.0
        %1827 = vmatpush1.msra.mxu0 %v659
        %1828 = vmatprep.subr.mxu0 0.0
        %1829 = vmatpush1.msra.mxu0 %v660
        %1830 = vmatprep.subr.mxu0 0.0
        %1831 = vmatpush1.msra.mxu0 %v661
        %1832 = vmatprep.subr.mxu0 0.0
        %1833 = vmatpush1.msra.mxu0 %v662
        %1834 = vmatprep.subr.mxu0 0.0
        %1835 = vmatpush1.msra.mxu0 %v663
        %1836 = vmatprep.subr.mxu0 0.0
        %1837 = vmatpush1.msra.mxu0 %v664
        %1838 = vmatprep.subr.mxu0 0.0
        %1839 = vmatpush1.msra.mxu0 %v665
        %1840 = vmatprep.subr.mxu0 0.0
        %1841 = vmatpush1.msra.mxu0 %v666
        %1842 = vmatprep.subr.mxu0 0.0
        %1843 = vmatpush1.msra.mxu0 %v667
        %1844 = vmatprep.mubr.f32.mxu0 %v889
        %1845 = vmatmul.mubr.f32.gmra.mrb[0].mxu0 %v881
        %v1846 = vpop.f32.mrb[0].mxu0
        %v1847 = vadd.f32 %v1777, %v1846
        %v1848 = vpop.f32.mrb[0].mxu0
        %1849 = vdwg.mxu0
        %1850 = vmatprep.subr.mxu0 0.0
        %1851 = vmatpush1.msra.mxu0 %v668
        %1852 = vmatprep.subr.mxu0 0.0
        %1853 = vmatpush1.msra.mxu0 %v669
        %1854 = vmatprep.subr.mxu0 0.0
        %1855 = vmatpush1.msra.mxu0 %v670
        %1856 = vmatprep.subr.mxu0 0.0
        %1857 = vmatpush1.msra.mxu0 %v671
        %1858 = vmatprep.subr.mxu0 0.0
        %1859 = vmatpush1.msra.mxu0 %v672
        %1860 = vmatprep.subr.mxu0 0.0
        %1861 = vmatpush1.msra.mxu0 %v673
        %1862 = vmatprep.subr.mxu0 0.0
        %1863 = vmatpush1.msra.mxu0 %v674
        %1864 = vmatprep.subr.mxu0 0.0
        %1865 = vmatpush1.msra.mxu0 %v675
        %1866 = vmatprep.subr.mxu0 0.0
        %1867 = vmatpush1.msra.mxu0 %v676
        %1868 = vmatprep.subr.mxu0 0.0
        %1869 = vmatpush1.msra.mxu0 %v677
        %1870 = vmatprep.subr.mxu0 0.0
        %1871 = vmatpush1.msra.mxu0 %v678
        %1872 = vmatprep.subr.mxu0 0.0
        %1873 = vmatpush1.msra.mxu0 %v679
        %1874 = vmatprep.subr.mxu0 0.0
        %1875 = vmatpush1.msra.mxu0 %v680
        %1876 = vmatprep.subr.mxu0 0.0
        %1877 = vmatpush1.msra.mxu0 %v681
        %1878 = vmatprep.subr.mxu0 0.0
        %1879 = vmatpush1.msra.mxu0 %v682
        %1880 = vmatprep.subr.mxu0 0.0
        %1881 = vmatpush1.msra.mxu0 %v683
        %1882 = vmatprep.subr.mxu0 0.0
        %1883 = vmatpush1.msra.mxu0 %v684
        %1884 = vmatprep.subr.mxu0 0.0
        %1885 = vmatpush1.msra.mxu0 %v685
        %1886 = vmatprep.subr.mxu0 0.0
        %1887 = vmatpush1.msra.mxu0 %v686
        %1888 = vmatprep.subr.mxu0 0.0
        %1889 = vmatpush1.msra.mxu0 %v687
        %1890 = vmatprep.subr.mxu0 0.0
        %1891 = vmatpush1.msra.mxu0 %v688
        %1892 = vmatprep.subr.mxu0 0.0
        %1893 = vmatpush1.msra.mxu0 %v689
        %1894 = vmatprep.subr.mxu0 0.0
        %1895 = vmatpush1.msra.mxu0 %v690
        %1896 = vmatprep.subr.mxu0 0.0
        %1897 = vmatpush1.msra.mxu0 %v691
        %1898 = vmatprep.subr.mxu0 0.0
        %1899 = vmatpush1.msra.mxu0 %v692
        %1900 = vmatprep.subr.mxu0 0.0
        %1901 = vmatpush1.msra.mxu0 %v693
        %1902 = vmatprep.subr.mxu0 0.0
        %1903 = vmatpush1.msra.mxu0 %v694
        %1904 = vmatprep.subr.mxu0 0.0
        %1905 = vmatpush1.msra.mxu0 %v695
        %1906 = vmatprep.subr.mxu0 0.0
        %1907 = vmatpush1.msra.mxu0 %v696
        %1908 = vmatprep.subr.mxu0 0.0
        %1909 = vmatpush1.msra.mxu0 %v697
        %1910 = vmatprep.subr.mxu0 0.0
        %1911 = vmatpush1.msra.mxu0 %v698
        %1912 = vmatprep.subr.mxu0 0.0
        %1913 = vmatpush1.msra.mxu0 %v699
        %1914 = vmatprep.mubr.f32.mxu0 %v890
        %1915 = vmatmul.mubr.f32.gmra.mrb[0].mxu0 %v888
        %v1916 = vpop.f32.mrb[0].mxu0
        %v1917 = vadd.f32 %v1847, %v1916
        %v1918 = vpop.f32.mrb[0].mxu0
        %1919 = vdwg.mxu0
        %1920 = vmatprep.subr.mxu0 0.0
        %1921 = vmatpush1.msra.mxu0 %v700
        %1922 = vmatprep.subr.mxu0 0.0
        %1923 = vmatpush1.msra.mxu0 %v701
        %1924 = vmatprep.subr.mxu0 0.0
        %1925 = vmatpush1.msra.mxu0 %v702
        %1926 = vmatprep.subr.mxu0 0.0
        %1927 = vmatpush1.msra.mxu0 %v703
        %1928 = vmatprep.subr.mxu0 0.0
        %1929 = vmatpush1.msra.mxu0 %v704
        %1930 = vmatprep.subr.mxu0 0.0
        %1931 = vmatpush1.msra.mxu0 %v705
        %1932 = vmatprep.subr.mxu0 0.0
        %1933 = vmatpush1.msra.mxu0 %v706
        %1934 = vmatprep.subr.mxu0 0.0
        %1935 = vmatpush1.msra.mxu0 %v707
        %1936 = vmatprep.subr.mxu0 0.0
        %1937 = vmatpush1.msra.mxu0 %v708
        %1938 = vmatprep.subr.mxu0 0.0
        %1939 = vmatpush1.msra.mxu0 %v709
        %1940 = vmatprep.subr.mxu0 0.0
        %1941 = vmatpush1.msra.mxu0 %v710
        %1942 = vmatprep.subr.mxu0 0.0
        %1943 = vmatpush1.msra.mxu0 %v711
        %1944 = vmatprep.subr.mxu0 0.0
        %1945 = vmatpush1.msra.mxu0 %v712
        %1946 = vmatprep.subr.mxu0 0.0
        %1947 = vmatpush1.msra.mxu0 %v713
        %1948 = vmatprep.subr.mxu0 0.0
        %1949 = vmatpush1.msra.mxu0 %v714
        %1950 = vmatprep.subr.mxu0 0.0
        %1951 = vmatpush1.msra.mxu0 %v715
        %1952 = vmatprep.subr.mxu0 0.0
        %1953 = vmatpush1.msra.mxu0 %v716
        %1954 = vmatprep.subr.mxu0 0.0
        %1955 = vmatpush1.msra.mxu0 %v717
        %1956 = vmatprep.subr.mxu0 0.0
        %1957 = vmatpush1.msra.mxu0 %v718
        %1958 = vmatprep.subr.mxu0 0.0
        %1959 = vmatpush1.msra.mxu0 %v719
        %1960 = vmatprep.subr.mxu0 0.0
        %1961 = vmatpush1.msra.mxu0 %v720
        %1962 = vmatprep.subr.mxu0 0.0
        %1963 = vmatpush1.msra.mxu0 %v721
        %1964 = vmatprep.subr.mxu0 0.0
        %1965 = vmatpush1.msra.mxu0 %v722
        %1966 = vmatprep.subr.mxu0 0.0
        %1967 = vmatpush1.msra.mxu0 %v723
        %1968 = vmatprep.subr.mxu0 0.0
        %1969 = vmatpush1.msra.mxu0 %v724
        %1970 = vmatprep.subr.mxu0 0.0
        %1971 = vmatpush1.msra.mxu0 %v725
        %1972 = vmatprep.subr.mxu0 0.0
        %1973 = vmatpush1.msra.mxu0 %v726
        %1974 = vmatprep.subr.mxu0 0.0
        %1975 = vmatpush1.msra.mxu0 %v727
        %1976 = vmatprep.subr.mxu0 0.0
        %1977 = vmatpush1.msra.mxu0 %v728
        %1978 = vmatprep.subr.mxu0 0.0
        %1979 = vmatpush1.msra.mxu0 %v729
        %1980 = vmatprep.subr.mxu0 0.0
        %1981 = vmatpush1.msra.mxu0 %v730
        %1982 = vmatprep.subr.mxu0 0.0
        %1983 = vmatpush1.msra.mxu0 %v731
        %1984 = vmatprep.mubr.f32.mxu0 %v906
        %1985 = vmatmul.mubr.f32.gmra.mrb[0].mxu0 %v898
        %v1986 = vpop.f32.mrb[0].mxu0
        %v1987 = vadd.f32 %v1917, %v1986
        %v1988 = vpop.f32.mrb[0].mxu0
        %1989 = vdwg.mxu0
        %1990 = vmatprep.subr.mxu0 0.0
        %1991 = vmatpush1.msra.mxu0 %v732
        %1992 = vmatprep.subr.mxu0 0.0
        %1993 = vmatpush1.msra.mxu0 %v733
        %1994 = vmatprep.subr.mxu0 0.0
        %1995 = vmatpush1.msra.mxu0 %v734
        %1996 = vmatprep.subr.mxu0 0.0
        %1997 = vmatpush1.msra.mxu0 %v735
        %1998 = vmatprep.subr.mxu0 0.0
        %1999 = vmatpush1.msra.mxu0 %v736
        %2000 = vmatprep.subr.mxu0 0.0
        %2001 = vmatpush1.msra.mxu0 %v737
        %2002 = vmatprep.subr.mxu0 0.0
        %2003 = vmatpush1.msra.mxu0 %v738
        %2004 = vmatprep.subr.mxu0 0.0
        %2005 = vmatpush1.msra.mxu0 %v739
        %2006 = vmatprep.subr.mxu0 0.0
        %2007 = vmatpush1.msra.mxu0 %v740
        %2008 = vmatprep.subr.mxu0 0.0
        %2009 = vmatpush1.msra.mxu0 %v741
        %2010 = vmatprep.subr.mxu0 0.0
        %2011 = vmatpush1.msra.mxu0 %v742
        %2012 = vmatprep.subr.mxu0 0.0
        %2013 = vmatpush1.msra.mxu0 %v743
        %2014 = vmatprep.subr.mxu0 0.0
        %2015 = vmatpush1.msra.mxu0 %v744
        %2016 = vmatprep.subr.mxu0 0.0
        %2017 = vmatpush1.msra.mxu0 %v745
        %2018 = vmatprep.subr.mxu0 0.0
        %2019 = vmatpush1.msra.mxu0 %v746
        %2020 = vmatprep.subr.mxu0 0.0
        %2021 = vmatpush1.msra.mxu0 %v747
        %2022 = vmatprep.subr.mxu0 0.0
        %2023 = vmatpush1.msra.mxu0 %v748
        %2024 = vmatprep.subr.mxu0 0.0
        %2025 = vmatpush1.msra.mxu0 %v749
        %2026 = vmatprep.subr.mxu0 0.0
        %2027 = vmatpush1.msra.mxu0 %v750
        %2028 = vmatprep.subr.mxu0 0.0
        %2029 = vmatpush1.msra.mxu0 %v751
        %2030 = vmatprep.subr.mxu0 0.0
        %2031 = vmatpush1.msra.mxu0 %v752
        %2032 = vmatprep.subr.mxu0 0.0
        %2033 = vmatpush1.msra.mxu0 %v753
        %2034 = vmatprep.subr.mxu0 0.0
        %2035 = vmatpush1.msra.mxu0 %v754
        %2036 = vmatprep.subr.mxu0 0.0
        %2037 = vmatpush1.msra.mxu0 %v755
        %2038 = vmatprep.subr.mxu0 0.0
        %2039 = vmatpush1.msra.mxu0 %v756
        %2040 = vmatprep.subr.mxu0 0.0
        %2041 = vmatpush1.msra.mxu0 %v757
        %2042 = vmatprep.subr.mxu0 0.0
        %2043 = vmatpush1.msra.mxu0 %v758
        %2044 = vmatprep.subr.mxu0 0.0
        %2045 = vmatpush1.msra.mxu0 %v759
        %2046 = vmatprep.subr.mxu0 0.0
        %2047 = vmatpush1.msra.mxu0 %v760
        %2048 = vmatprep.subr.mxu0 0.0
        %2049 = vmatpush1.msra.mxu0 %v761
        %2050 = vmatprep.subr.mxu0 0.0
        %2051 = vmatpush1.msra.mxu0 %v762
        %2052 = vmatprep.subr.mxu0 0.0
        %2053 = vmatpush1.msra.mxu0 %v763
        %2054 = vmatprep.mubr.f32.mxu0 %v907
        %2055 = vmatmul.mubr.f32.gmra.mrb[0].mxu0 %v905
        %v2056 = vpop.f32.mrb[0].mxu0
        %v2057 = vadd.f32 %v1987, %v2056
        %v2058 = vpop.f32.mrb[0].mxu0
        %2059 = vdwg.mxu0
        %v2060 = vld [vmem:[%s240] sm:$0x1]
        %v2062 = vlaneseq
        %v2063 = vshrl.u32 %v2062, 7
        %v2064 = vsub.s32 0, %v2063
        %v2065 = vrot.slane %v2060, %v2064
        %v2067 = vmul.f32 %v2057, %v2065
        %v2068 = vld [vmem:[%s243] sm:$0x1]
        %v2070 = vlaneseq
        %v2071 = vshrl.u32 %v2070, 7
        %v2072 = vsub.s32 0, %v2071
        %v2073 = vrot.slane %v2068, %v2072
        %v2075 = vadd.f32 %v2067, %v2073
        %2076 = vst [vmem:[%s227] sm:$0x3] %v2075
        %s2077 = sand.u32 %s130, 1
        %s2078 = scalar_lea.sflag [#allocation3], %s2077
        %s2079 = sand.u32 %s130, 1
        %s2080 = smul.addr %s2079, 2
        %s2081 = scalar_lea.vmem [#allocation2], %s2080
        // Predicated region
        $region37: #{batch_ensemble_cnn_forward.9} parent=35 // pred_check
          %p2082 = pneg %p140
        $region38: #{batch_ensemble_cnn_forward.9} parent=35 // pred_check_branch
          %2084 = sbr.rel (%p2082) target = $region40
        $region39: #{batch_ensemble_cnn_forward.9} parent=35 // pred_region
          %s2086 = ssub.s32 32, 32
          %2087 = vsyncadd %s2078, %s2086
          %s2088 = smul.addr %s18, 32
          %s2089 = scalar_lea.hbm %s4, %s2088
          %s2091 = sshll.u32 %s2081, 4
          %s2092 = int_to_ptr.vmem [resolvable:$true] %s2091
          %2094 = dma.vmem_to_hbm [thread:$0]  %s2092, 32, %s2089, %s2078
        $region40: #{batch_ensemble_cnn_forward.9} parent=35 // pred_fallthru
          _
      $region36: #{batch_ensemble_cnn_forward.9} parent=5 // pred_fallthru
        _
      %p2095 = scmp.le.s32.totalorder 2, %s13
      // Predicated region
      $region41: #{batch_ensemble_cnn_forward.9} parent=5 // pred_check
        %p2096 = pneg %p2095
      $region42: #{batch_ensemble_cnn_forward.9} parent=5 // pred_check_branch
        %2098 = sbr.rel (%p2096) target = $region44
      $region43: #{batch_ensemble_cnn_forward.9} parent=5 // pred_region
        %s2099 = ssub.s32 %s13, 2
        // Predicated region
        $region45: #{batch_ensemble_cnn_forward.9} parent=43 // pred_check
          %p2100 = pneg %p146
        $region46: #{batch_ensemble_cnn_forward.9} parent=43 // pred_check_branch
          %2102 = sbr.rel (%p2100) target = $region48
        $region47: #{batch_ensemble_cnn_forward.9} parent=43 // pred_region
          %s2103 = sand.u32 %s131, 1
          %s2104 = scalar_lea.sflag [#allocation3], %s2103
          %s2105 = sand.u32 %s131, 1
          %s2106 = smul.addr %s2105, 2
          %s2107 = scalar_lea.vmem [#allocation2], %s2106
          %2108 = dma.done %s2104, 32
        $region48: #{batch_ensemble_cnn_forward.9} parent=43 // pred_fallthru
          _
      $region44: #{batch_ensemble_cnn_forward.9} parent=5 // pred_fallthru
        _
    $region6: #{batch_ensemble_cnn_forward.9} parent=1 // loop_footer
      %s17 = sadd.s32 1, %s13
    $region7: #{batch_ensemble_cnn_forward.9} parent=1 // loop_footer_branch
      %12 = sbr.rel target = $region3
    $region8: #{batch_ensemble_cnn_forward.9} parent=1 // loop_exit
      _
    %2109 = vsyncpa [#allocation3], 1
    %s2110 = scalar_lea.sflag [#allocation3], 1
    %2111 = vsyncpa %s2110, 1

</llo_original>
